<compile_context>
chip_gen: v5e
topology: v5e:2x2
jax: 0.10.0
libtpu: 0.0.40
codegen_flags: <defaults>
</compile_context>

<pallas_src>
import jax
import jax.numpy as jnp
from jax import lax
from jax.experimental import pallas as pl
from jax.experimental.pallas import tpu as pltpu

# ----------------------------- fixed geometry (32x32 input) -----------------------------
_H0, _W0, _C0 = 32, 32, 3
_K1, _C1 = 5, 12          # conv1 5x5: 3->12   -> 28x28 -> pool -> 14x14
_K2, _C2 = 3, 24          # conv2 3x3: 12->24  -> 12x12 -> pool -> 6x6
_K3, _C3 = 2, 32          # conv3 2x2: 24->32  -> 5x5
_F1, _F2, _F3 = 108, 84, 10

_W1P = 16                 # pool1 row-group width inside kernel (14 valid + 2 zero rows)
_W2P = 8                  # pool2 row-group width inside kernel (6 valid + 2 zero rows)
_S0 = _H0 * _W0           # 1024 rows / batch in conv1 geometry
_S1 = 14 * _W1P           # 224 rows / batch in conv2 geometry
_S2 = 6 * _W2P            # 48 rows / batch in conv3 geometry


# ------------------------------------ fused kernel --------------------------------------
def _make_kernel(B):
    f32 = jnp.float32

    def kernel(xw_ref, w1_ref, b1_ref, w2_ref, b2_ref, w3_ref, b3_ref,
               fw1_ref, fb1_ref, fw2_ref, fb2_ref, fw3_ref, fb3_ref,
               s1e_ref, s1o_ref, s2e_ref, s2o_ref,
               out_ref,
               acc1_ref, pool1_ref, acc2_ref, pool2_ref, acc3_ref):
        # Zero the pooled-activation buffers once.  Their padding rows are read by the
        # shifted conv taps (feeding only invalid output rows) and must be finite.
        pool1_ref[...] = jnp.zeros(pool1_ref.shape, f32)
        pool2_ref[...] = jnp.zeros(pool2_ref.shape, f32)

        # ---------------- conv1 (5x5, 3->12) + ReLU ----------------
        # xw packs the 5 width-taps along lanes, so conv1 is 5 row-shifted matmuls.
        b1 = b1_ref[...]
        BR1 = 128
        def conv1_blk(blk, carry):
            base = pl.multiple_of(blk * BR1, BR1)
            acc = None
            for i in range(_K1):
                start = pl.multiple_of(base + i * _W0, 32)
                t = jnp.dot(xw_ref[pl.ds(start, BR1), :],
                            w1_ref[pl.ds(i * (_K1 * _C0), _K1 * _C0), :],
                            preferred_element_type=f32)
                acc = t if acc is None else acc + t
            acc1_ref[pl.ds(base, BR1), :] = jnp.maximum(acc + b1, 0.0)
            return carry
        lax.fori_loop(0, (B * _S0) // BR1, conv1_blk, 0)

        # ---------------- fused 2x2 maxpool + compaction ----------------
        def pool_stage(src_ref, dst_ref, se, so, Win, CW, ph, pw, Wp, bs_in, bs_out):
            # src rows: b*bs_in + y*Win + x (conv output, valid x < CW, y < 2*ph)
            # dst rows: b*bs_out + yp*Wp + xp (next conv's input geometry)
            for b in range(B):
                def body(yp, carry):
                    rowA = pl.multiple_of(b * bs_in + (2 * yp) * Win, 8)
                    rowB = pl.multiple_of(rowA + Win, 8)
                    runA = src_ref[pl.ds(rowA, CW), :]
                    runB = src_ref[pl.ds(rowB, CW), :]
                    m = jnp.maximum(
                        jnp.maximum(jnp.dot(se, runA, preferred_element_type=f32),
                                    jnp.dot(so, runA, preferred_element_type=f32)),
                        jnp.maximum(jnp.dot(se, runB, preferred_element_type=f32),
                                    jnp.dot(so, runB, preferred_element_type=f32)))
                    dst = pl.multiple_of(b * bs_out + yp * Wp, 8)
                    dst_ref[pl.ds(dst, pw), :] = m
                    return carry
                lax.fori_loop(0, ph, body, 0)

        pool_stage(acc1_ref, pool1_ref, s1e_ref[...], s1o_ref[...],
                   Win=_W0, CW=28, ph=14, pw=14, Wp=_W1P, bs_in=_S0, bs_out=_S1)

        # ---------------- conv2 (3x3, 12->24) + ReLU ----------------
        b2 = b2_ref[...]
        BR2 = 112
        for blk in range((B * _S1) // BR2):
            base = blk * BR2
            acc = None
            for t in range(_K2 * _K2):
                i, j = divmod(t, _K2)
                s = i * _W1P + j
                d = jnp.dot(pool1_ref[pl.ds(base + s, BR2), :],
                            w2_ref[pl.ds(t * _C1, _C1), :],
                            preferred_element_type=f32)
                acc = d if acc is None else acc + d
            acc2_ref[pl.ds(base, BR2), :] = jnp.maximum(acc + b2, 0.0)

        pool_stage(acc2_ref, pool2_ref, s2e_ref[...], s2o_ref[...],
                   Win=_W1P, CW=12, ph=6, pw=6, Wp=_W2P, bs_in=_S1, bs_out=_S2)

        # ---------------- conv3 (2x2, 24->32) + ReLU ----------------
        b3 = b3_ref[...]
        R3 = B * _S2
        acc = None
        for t in range(_K3 * _K3):
            i, j = divmod(t, _K3)
            s = i * _W2P + j
            d = jnp.dot(pool2_ref[pl.ds(s, R3), :],
                        w3_ref[pl.ds(t * _C2, _C2), :],
                        preferred_element_type=f32)
            acc = d if acc is None else acc + d
        acc3_ref[...] = jnp.maximum(acc + b3, 0.0)

        # ---------------- fc1 -> fc2 -> fc3 (+ReLU), flatten folded into fc1 ----------------
        fb1 = fb1_ref[...]
        fb2 = fb2_ref[...]
        fb3 = fb3_ref[...]
        fw2 = fw2_ref[...]
        fw3 = fw3_ref[...]
        for b in range(B):
            h = None
            for p in range(25):                       # 5x5 valid conv3 positions
                y, x = divmod(p, 5)
                row = acc3_ref[pl.ds(b * _S2 + y * _W2P + x, 1), :]        # (1, 32)
                d = jnp.dot(row, fw1_ref[pl.ds(p * _C3, _C3), :],
                            preferred_element_type=f32)
                h = d if h is None else h + d
            h = jnp.maximum(h + fb1, 0.0)
            h = jnp.maximum(jnp.dot(h, fw2, preferred_element_type=f32) + fb2, 0.0)
            h = jnp.maximum(jnp.dot(h, fw3, preferred_element_type=f32) + fb3, 0.0)
            out_ref[pl.ds(b, 1), :] = h

    return kernel


# ----------------------------- weight / input layout prep -------------------------------
def _prep_conv_w(w):
    # torch (Cout, Cin, kh, kw) -> (kh*kw*Cin, Cout); row = i*(kw*Cin) + j*Cin + c
    cout, cin, kh, kw = w.shape
    return jnp.transpose(w, (2, 3, 1, 0)).reshape(kh * kw * cin, cout)


def _prep_fc1_w(w):
    # torch fc1 weight (108, 800); torch flatten order of (32,5,5) is (c, y, x).
    # Kernel consumes rows ordered (y, x, c): row (y*5 + x)*32 + c.
    wt = jnp.transpose(w).reshape(_C3, 25, _F1)
    return jnp.transpose(wt, (1, 0, 2)).reshape(_C3 * 25, _F1)


def _sel(ph, cw, parity):
    r = jnp.arange(ph)[:, None]
    c = jnp.arange(cw)[None, :]
    return (c == 2 * r + parity).astype(jnp.float32)


@jax.jit
def mynet_forward(x, params):
    B = x.shape[0]

    # --- tiny layout plumbing on weights + raw input only (intermediates never leave VMEM)
    xf = jnp.transpose(x, (0, 2, 3, 1)).reshape(B * _S0, _C0).astype(jnp.float32)
    xfp = jnp.pad(xf, ((0, (_K1 - 1) * _W0 + _K1 - 1), (0, 0)))
    n_rows = B * _S0 + (_K1 - 1) * _W0
    # pack conv1's kw taps along lanes: xw[r, j*3 + c] = x_flat[r + j, c]
    xw = jnp.concatenate([xfp[j:j + n_rows, :] for j in range(_K1)], axis=1)

    w1 = _prep_conv_w(params["conv1_w"]); b1 = params["conv1_b"].reshape(1, _C1)
    w2 = _prep_conv_w(params["conv2_w"]); b2 = params["conv2_b"].reshape(1, _C2)
    w3 = _prep_conv_w(params["conv3_w"]); b3 = params["conv3_b"].reshape(1, _C3)
    fw1 = _prep_fc1_w(params["fc1_w"]);   fb1 = params["fc1_b"].reshape(1, _F1)
    fw2 = jnp.transpose(params["fc2_w"]); fb2 = params["fc2_b"].reshape(1, _F2)
    fw3 = jnp.transpose(params["fc3_w"]); fb3 = params["fc3_b"].reshape(1, _F3)

    s1e, s1o = _sel(14, 28, 0), _sel(14, 28, 1)
    s2e, s2o = _sel(6, 12, 0), _sel(6, 12, 1)

    args = (xw, w1, b1, w2, b2, w3, b3, fw1, fb1, fw2, fb2, fw3, fb3, s1e, s1o, s2e, s2o)

    def full(a):
        return pl.BlockSpec(a.shape, lambda i: (0, 0))

    out = pl.pallas_call(
        _make_kernel(B),
        grid=(1,),
        in_specs=[full(a) for a in args],
        out_specs=pl.BlockSpec((B, _F3), lambda i: (0, 0)),
        out_shape=jax.ShapeDtypeStruct((B, _F3), jnp.float32),
        scratch_shapes=[
            pltpu.VMEM((B * _S0, _C1), jnp.float32),        # conv1 output (input geometry)
            pltpu.VMEM((B * _S1 + 40, _C1), jnp.float32),   # pool1 output (+pad rows)
            pltpu.VMEM((B * _S1, _C2), jnp.float32),        # conv2 output
            pltpu.VMEM((B * _S2 + 16, _C2), jnp.float32),   # pool2 output (+pad rows)
            pltpu.VMEM((B * _S2, _C3), jnp.float32),        # conv3 output
        ],
    )(*args)
    return out


# --------------------------------- pure-JAX reference -----------------------------------
def _conv2d_ref(x, w, b):
    cout, cin, kh, kw = w.shape
    Bn, _, H, W = x.shape
    oh, ow = H - kh + 1, W - kw + 1
    cols = []
    for c in range(cin):
        for i in range(kh):
            for j in range(kw):
                cols.append(x[:, c, i:i + oh, j:j + ow])
    patches = jnp.stack(cols, axis=-1).reshape(Bn * oh * ow, cin * kh * kw)
    wmat = w.reshape(cout, cin * kh * kw).T
    out = jnp.dot(patches, wmat, precision=jax.lax.Precision.HIGHEST) + b
    return out.reshape(Bn, oh, ow, cout).transpose(0, 3, 1, 2)


def _maxpool_ref(x):
    return jnp.maximum(jnp.maximum(x[:, :, 0::2, 0::2], x[:, :, 0::2, 1::2]),
                       jnp.maximum(x[:, :, 1::2, 0::2], x[:, :, 1::2, 1::2]))


def reference_forward(x, p):
    hp = jax.lax.Precision.HIGHEST
    h = jnp.maximum(_conv2d_ref(x, p["conv1_w"], p["conv1_b"]), 0.0)
    h = _maxpool_ref(h)
    h = jnp.maximum(_conv2d_ref(h, p["conv2_w"], p["conv2_b"]), 0.0)
    h = _maxpool_ref(h)
    h = jnp.maximum(_conv2d_ref(h, p["conv3_w"], p["conv3_b"]), 0.0)
    h = h.reshape(h.shape[0], -1)
    h = jnp.maximum(jnp.dot(h, p["fc1_w"].T, precision=hp) + p["fc1_b"], 0.0)
    h = jnp.maximum(jnp.dot(h, p["fc2_w"].T, precision=hp) + p["fc2_b"], 0.0)
    h = jnp.maximum(jnp.dot(h, p["fc3_w"].T, precision=hp) + p["fc3_b"], 0.0)
    return h


# --------------------------------------- params -----------------------------------------
def init_params(key):
    ks = jax.random.split(key, 6)

    def w(k, shape, fan_in):
        return jax.random.normal(k, shape, jnp.float32) / (fan_in ** 0.5)

    return {
        "conv1_w": w(ks[0], (_C1, _C0, _K1, _K1), _C0 * _K1 * _K1),
        "conv1_b": 0.01 * jnp.ones((_C1,), jnp.float32),
        "conv2_w": w(ks[1], (_C2, _C1, _K2, _K2), _C1 * _K2 * _K2),
        "conv2_b": 0.01 * jnp.ones((_C2,), jnp.float32),
        "conv3_w": w(ks[2], (_C3, _C2, _K3, _K3), _C2 * _K3 * _K3),
        "conv3_b": 0.01 * jnp.ones((_C3,), jnp.float32),
        "fc1_w": w(ks[3], (_F1, _C3 * 25), _C3 * 25),
        "fc1_b": 0.01 * jnp.ones((_F1,), jnp.float32),
        "fc2_w": w(ks[4], (_F2, _F1), _F1),
        "fc2_b": 0.01 * jnp.ones((_F2,), jnp.float32),
        "fc3_w": w(ks[5], (_F3, _F2), _F2),
        "fc3_b": 0.01 * jnp.ones((_F3,), jnp.float32),
    }


if __name__ == "__main__":
    key = jax.random.PRNGKey(0)
    kx, kp = jax.random.split(key)

    x = jax.random.normal(kx, (2, _C0, _H0, _W0), jnp.float32)   # NCHW like PyTorch
    params = init_params(kp)

    out = jax.block_until_ready(mynet_forward(x, params))
    assert out.shape == (2, _F3), out.shape
    assert out.dtype == jnp.float32

    ref = jax.block_until_ready(reference_forward(x, params))
    err = float(jnp.max(jnp.abs(out - ref)))
    scale = max(1.0, float(jnp.max(jnp.abs(ref))))
    assert err <= 5e-2 * scale, f"kernel/reference mismatch: max|diff|={err}"

    print("KERNEL_OK")
</pallas_src>

<mosaic_0001>
module attributes {stable_mosaic.version = 11 : i64} {
  func.func @kernel(%arg0: i32, %arg1: memref<2176x15xf32, #tpu.memory_space<vmem>>, %arg2: memref<75x12xf32, #tpu.memory_space<vmem>>, %arg3: memref<1x12xf32, #tpu.memory_space<vmem>>, %arg4: memref<108x24xf32, #tpu.memory_space<vmem>>, %arg5: memref<1x24xf32, #tpu.memory_space<vmem>>, %arg6: memref<96x32xf32, #tpu.memory_space<vmem>>, %arg7: memref<1x32xf32, #tpu.memory_space<vmem>>, %arg8: memref<800x108xf32, #tpu.memory_space<vmem>>, %arg9: memref<1x108xf32, #tpu.memory_space<vmem>>, %arg10: memref<108x84xf32, #tpu.memory_space<vmem>>, %arg11: memref<1x84xf32, #tpu.memory_space<vmem>>, %arg12: memref<84x10xf32, #tpu.memory_space<vmem>>, %arg13: memref<1x10xf32, #tpu.memory_space<vmem>>, %arg14: memref<14x28xf32, #tpu.memory_space<vmem>>, %arg15: memref<14x28xf32, #tpu.memory_space<vmem>>, %arg16: memref<6x12xf32, #tpu.memory_space<vmem>>, %arg17: memref<6x12xf32, #tpu.memory_space<vmem>>, %arg18: memref<2x10xf32, #tpu.memory_space<vmem>>, %arg19: memref<2048x12xf32, #tpu.memory_space<vmem>>, %arg20: memref<488x12xf32, #tpu.memory_space<vmem>>, %arg21: memref<448x24xf32, #tpu.memory_space<vmem>>, %arg22: memref<112x24xf32, #tpu.memory_space<vmem>>, %arg23: memref<96x32xf32, #tpu.memory_space<vmem>>) attributes {dimension_semantics = [#tpu.dimension_semantics<arbitrary>], iteration_bounds = array<i64: 1>, scalar_prefetch = 0 : i64, scratch_operands = 5 : i64, tpu.core_type = #tpu.core_type<tc>, window_params = [{pipeline_mode = #tpu.pipeline_mode<synchronous>, transform_indices = @transform_0, window_bounds = array<i64: 2176, 15>}, {pipeline_mode = #tpu.pipeline_mode<synchronous>, transform_indices = @transform_1, window_bounds = array<i64: 75, 12>}, {pipeline_mode = #tpu.pipeline_mode<synchronous>, transform_indices = @transform_2, window_bounds = array<i64: 1, 12>}, {pipeline_mode = #tpu.pipeline_mode<synchronous>, transform_indices = @transform_3, window_bounds = array<i64: 108, 24>}, {pipeline_mode = #tpu.pipeline_mode<synchronous>, transform_indices = @transform_4, window_bounds = array<i64: 1, 24>}, {pipeline_mode = #tpu.pipeline_mode<synchronous>, transform_indices = @transform_5, window_bounds = array<i64: 96, 32>}, {pipeline_mode = #tpu.pipeline_mode<synchronous>, transform_indices = @transform_6, window_bounds = array<i64: 1, 32>}, {pipeline_mode = #tpu.pipeline_mode<synchronous>, transform_indices = @transform_7, window_bounds = array<i64: 800, 108>}, {pipeline_mode = #tpu.pipeline_mode<synchronous>, transform_indices = @transform_8, window_bounds = array<i64: 1, 108>}, {pipeline_mode = #tpu.pipeline_mode<synchronous>, transform_indices = @transform_9, window_bounds = array<i64: 108, 84>}, {pipeline_mode = #tpu.pipeline_mode<synchronous>, transform_indices = @transform_10, window_bounds = array<i64: 1, 84>}, {pipeline_mode = #tpu.pipeline_mode<synchronous>, transform_indices = @transform_11, window_bounds = array<i64: 84, 10>}, {pipeline_mode = #tpu.pipeline_mode<synchronous>, transform_indices = @transform_12, window_bounds = array<i64: 1, 10>}, {pipeline_mode = #tpu.pipeline_mode<synchronous>, transform_indices = @transform_13, window_bounds = array<i64: 14, 28>}, {pipeline_mode = #tpu.pipeline_mode<synchronous>, transform_indices = @transform_14, window_bounds = array<i64: 14, 28>}, {pipeline_mode = #tpu.pipeline_mode<synchronous>, transform_indices = @transform_15, window_bounds = array<i64: 6, 12>}, {pipeline_mode = #tpu.pipeline_mode<synchronous>, transform_indices = @transform_16, window_bounds = array<i64: 6, 12>}, {pipeline_mode = #tpu.pipeline_mode<synchronous>, transform_indices = @transform_17, window_bounds = array<i64: 2, 10>}]} {
    %cst = arith.constant 0.000000e+00 : f32
    %0 = vector.broadcast %cst : f32 to vector<488x12xf32>
    %c0 = arith.constant 0 : index
    %c0_0 = arith.constant 0 : index
    %1 = vector.load %arg20[%c0, %c0_0] : memref<488x12xf32, #tpu.memory_space<vmem>>, vector<488x12xf32>
    tpu.vector_store %arg20[%c0, %c0_0], %0 {strides = array<i32>} : memref<488x12xf32, #tpu.memory_space<vmem>>, vector<488x12xf32>,
    %cst_1 = arith.constant 0.000000e+00 : f32
    %2 = vector.broadcast %cst_1 : f32 to vector<112x24xf32>
    %c0_2 = arith.constant 0 : index
    %c0_3 = arith.constant 0 : index
    %3 = vector.load %arg22[%c0_2, %c0_3] : memref<112x24xf32, #tpu.memory_space<vmem>>, vector<112x24xf32>
    tpu.vector_store %arg22[%c0_2, %c0_3], %2 {strides = array<i32>} : memref<112x24xf32, #tpu.memory_space<vmem>>, vector<112x24xf32>,
    %c0_4 = arith.constant 0 : index
    %c0_5 = arith.constant 0 : index
    %4 = vector.load %arg3[%c0_4, %c0_5] : memref<1x12xf32, #tpu.memory_space<vmem>>, vector<1x12xf32>
    %c0_i32 = arith.constant 0 : i32
    %c16_i32 = arith.constant 16 : i32
    %5 = arith.addi %c0_i32, %c16_i32 : i32
    %c1_i32 = arith.constant 1 : i32
    scf.for %arg24 = %c0_i32 to %5 step %c1_i32  : i32 {
      %c128_i32 = arith.constant 128 : i32
      %423 = arith.muli %arg24, %c128_i32 : i32
      %424 = tpu.assume_multiple %423, 128 : i32
      %c0_i32_428 = arith.constant 0 : i32
      %425 = arith.addi %424, %c0_i32_428 : i32
      %426 = tpu.assume_multiple %425, 32 : i32
      %427 = arith.index_cast %426 : i32 to index
      %c0_429 = arith.constant 0 : index
      %428 = vector.load %arg1[%427, %c0_429] : memref<2176x15xf32, #tpu.memory_space<vmem>>, vector<128x15xf32>
      %c0_430 = arith.constant 0 : index
      %c0_431 = arith.constant 0 : index
      %429 = vector.load %arg2[%c0_430, %c0_431] : memref<75x12xf32, #tpu.memory_space<vmem>>, vector<15x12xf32>
      %cst_432 = arith.constant dense<0.000000e+00> : vector<128x12xf32>
      %430 = tpu.matmul %428, %429, %cst_432 {dimension_numbers = #tpu.dot_dimension_numbers<[1], [0], [0], [1], [0, 0, 1, 1], [], []>} : vector<128x15xf32>, vector<15x12xf32>, vector<128x12xf32> -> vector<128x12xf32>
      %c32_i32 = arith.constant 32 : i32
      %431 = arith.addi %424, %c32_i32 : i32
      %432 = tpu.assume_multiple %431, 32 : i32
      %433 = arith.index_cast %432 : i32 to index
      %c0_433 = arith.constant 0 : index
      %434 = vector.load %arg1[%433, %c0_433] : memref<2176x15xf32, #tpu.memory_space<vmem>>, vector<128x15xf32>
      %c15 = arith.constant 15 : index
      %c0_434 = arith.constant 0 : index
      %435 = vector.load %arg2[%c15, %c0_434] : memref<75x12xf32, #tpu.memory_space<vmem>>, vector<15x12xf32>
      %cst_435 = arith.constant dense<0.000000e+00> : vector<128x12xf32>
      %436 = tpu.matmul %434, %435, %cst_435 {dimension_numbers = #tpu.dot_dimension_numbers<[1], [0], [0], [1], [0, 0, 1, 1], [], []>} : vector<128x15xf32>, vector<15x12xf32>, vector<128x12xf32> -> vector<128x12xf32>
      %437 = arith.addf %430, %436 : vector<128x12xf32>
      %c64_i32 = arith.constant 64 : i32
      %438 = arith.addi %424, %c64_i32 : i32
      %439 = tpu.assume_multiple %438, 32 : i32
      %440 = arith.index_cast %439 : i32 to index
      %c0_436 = arith.constant 0 : index
      %441 = vector.load %arg1[%440, %c0_436] : memref<2176x15xf32, #tpu.memory_space<vmem>>, vector<128x15xf32>
      %c30 = arith.constant 30 : index
      %c0_437 = arith.constant 0 : index
      %442 = vector.load %arg2[%c30, %c0_437] : memref<75x12xf32, #tpu.memory_space<vmem>>, vector<15x12xf32>
      %cst_438 = arith.constant dense<0.000000e+00> : vector<128x12xf32>
      %443 = tpu.matmul %441, %442, %cst_438 {dimension_numbers = #tpu.dot_dimension_numbers<[1], [0], [0], [1], [0, 0, 1, 1], [], []>} : vector<128x15xf32>, vector<15x12xf32>, vector<128x12xf32> -> vector<128x12xf32>
      %444 = arith.addf %437, %443 : vector<128x12xf32>
      %c96_i32 = arith.constant 96 : i32
      %445 = arith.addi %424, %c96_i32 : i32
      %446 = tpu.assume_multiple %445, 32 : i32
      %447 = arith.index_cast %446 : i32 to index
      %c0_439 = arith.constant 0 : index
      %448 = vector.load %arg1[%447, %c0_439] : memref<2176x15xf32, #tpu.memory_space<vmem>>, vector<128x15xf32>
      %c45 = arith.constant 45 : index
      %c0_440 = arith.constant 0 : index
      %449 = vector.load %arg2[%c45, %c0_440] : memref<75x12xf32, #tpu.memory_space<vmem>>, vector<15x12xf32>
      %cst_441 = arith.constant dense<0.000000e+00> : vector<128x12xf32>
      %450 = tpu.matmul %448, %449, %cst_441 {dimension_numbers = #tpu.dot_dimension_numbers<[1], [0], [0], [1], [0, 0, 1, 1], [], []>} : vector<128x15xf32>, vector<15x12xf32>, vector<128x12xf32> -> vector<128x12xf32>
      %451 = arith.addf %444, %450 : vector<128x12xf32>
      %c128_i32_442 = arith.constant 128 : i32
      %452 = arith.addi %424, %c128_i32_442 : i32
      %453 = tpu.assume_multiple %452, 32 : i32
      %454 = arith.index_cast %453 : i32 to index
      %c0_443 = arith.constant 0 : index
      %455 = vector.load %arg1[%454, %c0_443] : memref<2176x15xf32, #tpu.memory_space<vmem>>, vector<128x15xf32>
      %c60_444 = arith.constant 60 : index
      %c0_445 = arith.constant 0 : index
      %456 = vector.load %arg2[%c60_444, %c0_445] : memref<75x12xf32, #tpu.memory_space<vmem>>, vector<15x12xf32>
      %cst_446 = arith.constant dense<0.000000e+00> : vector<128x12xf32>
      %457 = tpu.matmul %455, %456, %cst_446 {dimension_numbers = #tpu.dot_dimension_numbers<[1], [0], [0], [1], [0, 0, 1, 1], [], []>} : vector<128x15xf32>, vector<15x12xf32>, vector<128x12xf32> -> vector<128x12xf32>
      %458 = arith.addf %451, %457 : vector<128x12xf32>
      %459 = vector.broadcast %4 : vector<1x12xf32> to vector<128x12xf32>
      %460 = arith.addf %458, %459 : vector<128x12xf32>
      %cst_447 = arith.constant 0.000000e+00 : f32
      %461 = vector.broadcast %cst_447 : f32 to vector<128x12xf32>
      %462 = arith.maximumf %460, %461 : vector<128x12xf32>
      %463 = arith.index_cast %424 : i32 to index
      %c0_448 = arith.constant 0 : index
      %464 = vector.load %arg19[%463, %c0_448] : memref<2048x12xf32, #tpu.memory_space<vmem>>, vector<128x12xf32>
      tpu.vector_store %arg19[%463, %c0_448], %462 {strides = array<i32>} : memref<2048x12xf32, #tpu.memory_space<vmem>>, vector<128x12xf32>,
    }
    %c16_i32_6 = arith.constant 16 : i32
    %c0_7 = arith.constant 0 : index
    %c0_8 = arith.constant 0 : index
    %6 = vector.load %arg14[%c0_7, %c0_8] : memref<14x28xf32, #tpu.memory_space<vmem>>, vector<14x28xf32>
    %c0_9 = arith.constant 0 : index
    %c0_10 = arith.constant 0 : index
    %7 = vector.load %arg15[%c0_9, %c0_10] : memref<14x28xf32, #tpu.memory_space<vmem>>, vector<14x28xf32>
    %c0_i32_11 = arith.constant 0 : i32
    %c14_i32 = arith.constant 14 : i32
    %8 = arith.addi %c0_i32_11, %c14_i32 : i32
    %c1_i32_12 = arith.constant 1 : i32
    scf.for %arg24 = %c0_i32_11 to %8 step %c1_i32_12  : i32 {
      %c2_i32 = arith.constant 2 : i32
      %423 = arith.muli %c2_i32, %arg24 : i32
      %c32_i32 = arith.constant 32 : i32
      %424 = arith.muli %423, %c32_i32 : i32
      %c0_i32_428 = arith.constant 0 : i32
      %425 = arith.addi %c0_i32_428, %424 : i32
      %426 = tpu.assume_multiple %425, 8 : i32
      %c32_i32_429 = arith.constant 32 : i32
      %427 = arith.addi %426, %c32_i32_429 : i32
      %428 = tpu.assume_multiple %427, 8 : i32
      %429 = arith.index_cast %426 : i32 to index
      %c0_430 = arith.constant 0 : index
      %430 = vector.load %arg19[%429, %c0_430] : memref<2048x12xf32, #tpu.memory_space<vmem>>, vector<28x12xf32>
      %431 = arith.index_cast %428 : i32 to index
      %c0_431 = arith.constant 0 : index
      %432 = vector.load %arg19[%431, %c0_431] : memref<2048x12xf32, #tpu.memory_space<vmem>>, vector<28x12xf32>
      %cst_432 = arith.constant dense<0.000000e+00> : vector<14x12xf32>
      %433 = tpu.matmul %6, %430, %cst_432 {dimension_numbers = #tpu.dot_dimension_numbers<[1], [0], [0], [1], [0, 0, 1, 1], [], []>} : vector<14x28xf32>, vector<28x12xf32>, vector<14x12xf32> -> vector<14x12xf32>
      %cst_433 = arith.constant dense<0.000000e+00> : vector<14x12xf32>
      %434 = tpu.matmul %7, %430, %cst_433 {dimension_numbers = #tpu.dot_dimension_numbers<[1], [0], [0], [1], [0, 0, 1, 1], [], []>} : vector<14x28xf32>, vector<28x12xf32>, vector<14x12xf32> -> vector<14x12xf32>
      %435 = arith.maximumf %433, %434 : vector<14x12xf32>
      %cst_434 = arith.constant dense<0.000000e+00> : vector<14x12xf32>
      %436 = tpu.matmul %6, %432, %cst_434 {dimension_numbers = #tpu.dot_dimension_numbers<[1], [0], [0], [1], [0, 0, 1, 1], [], []>} : vector<14x28xf32>, vector<28x12xf32>, vector<14x12xf32> -> vector<14x12xf32>
      %cst_435 = arith.constant dense<0.000000e+00> : vector<14x12xf32>
      %437 = tpu.matmul %7, %432, %cst_435 {dimension_numbers = #tpu.dot_dimension_numbers<[1], [0], [0], [1], [0, 0, 1, 1], [], []>} : vector<14x28xf32>, vector<28x12xf32>, vector<14x12xf32> -> vector<14x12xf32>
      %438 = arith.maximumf %436, %437 : vector<14x12xf32>
      %439 = arith.maximumf %435, %438 : vector<14x12xf32>
      %c16_i32_436 = arith.constant 16 : i32
      %440 = arith.muli %arg24, %c16_i32_436 : i32
      %c0_i32_437 = arith.constant 0 : i32
      %441 = arith.addi %c0_i32_437, %440 : i32
      %442 = tpu.assume_multiple %441, 8 : i32
      %443 = arith.index_cast %442 : i32 to index
      %c0_438 = arith.constant 0 : index
      %444 = vector.load %arg20[%443, %c0_438] : memref<488x12xf32, #tpu.memory_space<vmem>>, vector<14x12xf32>
      tpu.vector_store %arg20[%443, %c0_438], %439 {strides = array<i32>} : memref<488x12xf32, #tpu.memory_space<vmem>>, vector<14x12xf32>,
    }
    %c14_i32_13 = arith.constant 14 : i32
    %c0_i32_14 = arith.constant 0 : i32
    %c14_i32_15 = arith.constant 14 : i32
    %9 = arith.addi %c0_i32_14, %c14_i32_15 : i32
    %c1_i32_16 = arith.constant 1 : i32
    scf.for %arg24 = %c0_i32_14 to %9 step %c1_i32_16  : i32 {
      %c2_i32 = arith.constant 2 : i32
      %423 = arith.muli %c2_i32, %arg24 : i32
      %c32_i32 = arith.constant 32 : i32
      %424 = arith.muli %423, %c32_i32 : i32
      %c1024_i32 = arith.constant 1024 : i32
      %425 = arith.addi %c1024_i32, %424 : i32
      %426 = tpu.assume_multiple %425, 8 : i32
      %c32_i32_428 = arith.constant 32 : i32
      %427 = arith.addi %426, %c32_i32_428 : i32
      %428 = tpu.assume_multiple %427, 8 : i32
      %429 = arith.index_cast %426 : i32 to index
      %c0_429 = arith.constant 0 : index
      %430 = vector.load %arg19[%429, %c0_429] : memref<2048x12xf32, #tpu.memory_space<vmem>>, vector<28x12xf32>
      %431 = arith.index_cast %428 : i32 to index
      %c0_430 = arith.constant 0 : index
      %432 = vector.load %arg19[%431, %c0_430] : memref<2048x12xf32, #tpu.memory_space<vmem>>, vector<28x12xf32>
      %cst_431 = arith.constant dense<0.000000e+00> : vector<14x12xf32>
      %433 = tpu.matmul %6, %430, %cst_431 {dimension_numbers = #tpu.dot_dimension_numbers<[1], [0], [0], [1], [0, 0, 1, 1], [], []>} : vector<14x28xf32>, vector<28x12xf32>, vector<14x12xf32> -> vector<14x12xf32>
      %cst_432 = arith.constant dense<0.000000e+00> : vector<14x12xf32>
      %434 = tpu.matmul %7, %430, %cst_432 {dimension_numbers = #tpu.dot_dimension_numbers<[1], [0], [0], [1], [0, 0, 1, 1], [], []>} : vector<14x28xf32>, vector<28x12xf32>, vector<14x12xf32> -> vector<14x12xf32>
      %435 = arith.maximumf %433, %434 : vector<14x12xf32>
      %cst_433 = arith.constant dense<0.000000e+00> : vector<14x12xf32>
      %436 = tpu.matmul %6, %432, %cst_433 {dimension_numbers = #tpu.dot_dimension_numbers<[1], [0], [0], [1], [0, 0, 1, 1], [], []>} : vector<14x28xf32>, vector<28x12xf32>, vector<14x12xf32> -> vector<14x12xf32>
      %cst_434 = arith.constant dense<0.000000e+00> : vector<14x12xf32>
      %437 = tpu.matmul %7, %432, %cst_434 {dimension_numbers = #tpu.dot_dimension_numbers<[1], [0], [0], [1], [0, 0, 1, 1], [], []>} : vector<14x28xf32>, vector<28x12xf32>, vector<14x12xf32> -> vector<14x12xf32>
      %438 = arith.maximumf %436, %437 : vector<14x12xf32>
      %439 = arith.maximumf %435, %438 : vector<14x12xf32>
      %c16_i32_435 = arith.constant 16 : i32
      %440 = arith.muli %arg24, %c16_i32_435 : i32
      %c224_i32 = arith.constant 224 : i32
      %441 = arith.addi %c224_i32, %440 : i32
      %442 = tpu.assume_multiple %441, 8 : i32
      %443 = arith.index_cast %442 : i32 to index
      %c0_436 = arith.constant 0 : index
      %444 = vector.load %arg20[%443, %c0_436] : memref<488x12xf32, #tpu.memory_space<vmem>>, vector<14x12xf32>
      tpu.vector_store %arg20[%443, %c0_436], %439 {strides = array<i32>} : memref<488x12xf32, #tpu.memory_space<vmem>>, vector<14x12xf32>,
    }
    %c14_i32_17 = arith.constant 14 : i32
    %c0_18 = arith.constant 0 : index
    %c0_19 = arith.constant 0 : index
    %10 = vector.load %arg5[%c0_18, %c0_19] : memref<1x24xf32, #tpu.memory_space<vmem>>, vector<1x24xf32>
    %c0_20 = arith.constant 0 : index
    %c0_21 = arith.constant 0 : index
    %11 = vector.load %arg20[%c0_20, %c0_21] : memref<488x12xf32, #tpu.memory_space<vmem>>, vector<112x12xf32>
    %c0_22 = arith.constant 0 : index
    %c0_23 = arith.constant 0 : index
    %12 = vector.load %arg4[%c0_22, %c0_23] : memref<108x24xf32, #tpu.memory_space<vmem>>, vector<12x24xf32>
    %cst_24 = arith.constant dense<0.000000e+00> : vector<112x24xf32>
    %13 = tpu.matmul %11, %12, %cst_24 {dimension_numbers = #tpu.dot_dimension_numbers<[1], [0], [0], [1], [0, 0, 1, 1], [], []>} : vector<112x12xf32>, vector<12x24xf32>, vector<112x24xf32> -> vector<112x24xf32>
    %c1 = arith.constant 1 : index
    %c0_25 = arith.constant 0 : index
    %14 = vector.load %arg20[%c1, %c0_25] : memref<488x12xf32, #tpu.memory_space<vmem>>, vector<112x12xf32>
    %c12 = arith.constant 12 : index
    %c0_26 = arith.constant 0 : index
    %15 = vector.load %arg4[%c12, %c0_26] : memref<108x24xf32, #tpu.memory_space<vmem>>, vector<12x24xf32>
    %cst_27 = arith.constant dense<0.000000e+00> : vector<112x24xf32>
    %16 = tpu.matmul %14, %15, %cst_27 {dimension_numbers = #tpu.dot_dimension_numbers<[1], [0], [0], [1], [0, 0, 1, 1], [], []>} : vector<112x12xf32>, vector<12x24xf32>, vector<112x24xf32> -> vector<112x24xf32>
    %17 = arith.addf %13, %16 : vector<112x24xf32>
    %c2 = arith.constant 2 : index
    %c0_28 = arith.constant 0 : index
    %18 = vector.load %arg20[%c2, %c0_28] : memref<488x12xf32, #tpu.memory_space<vmem>>, vector<112x12xf32>
    %c24 = arith.constant 24 : index
    %c0_29 = arith.constant 0 : index
    %19 = vector.load %arg4[%c24, %c0_29] : memref<108x24xf32, #tpu.memory_space<vmem>>, vector<12x24xf32>
    %cst_30 = arith.constant dense<0.000000e+00> : vector<112x24xf32>
    %20 = tpu.matmul %18, %19, %cst_30 {dimension_numbers = #tpu.dot_dimension_numbers<[1], [0], [0], [1], [0, 0, 1, 1], [], []>} : vector<112x12xf32>, vector<12x24xf32>, vector<112x24xf32> -> vector<112x24xf32>
    %21 = arith.addf %17, %20 : vector<112x24xf32>
    %c16 = arith.constant 16 : index
    %c0_31 = arith.constant 0 : index
    %22 = vector.load %arg20[%c16, %c0_31] : memref<488x12xf32, #tpu.memory_space<vmem>>, vector<112x12xf32>
    %c36 = arith.constant 36 : index
    %c0_32 = arith.constant 0 : index
    %23 = vector.load %arg4[%c36, %c0_32] : memref<108x24xf32, #tpu.memory_space<vmem>>, vector<12x24xf32>
    %cst_33 = arith.constant dense<0.000000e+00> : vector<112x24xf32>
    %24 = tpu.matmul %22, %23, %cst_33 {dimension_numbers = #tpu.dot_dimension_numbers<[1], [0], [0], [1], [0, 0, 1, 1], [], []>} : vector<112x12xf32>, vector<12x24xf32>, vector<112x24xf32> -> vector<112x24xf32>
    %25 = arith.addf %21, %24 : vector<112x24xf32>
    %c17 = arith.constant 17 : index
    %c0_34 = arith.constant 0 : index
    %26 = vector.load %arg20[%c17, %c0_34] : memref<488x12xf32, #tpu.memory_space<vmem>>, vector<112x12xf32>
    %c48 = arith.constant 48 : index
    %c0_35 = arith.constant 0 : index
    %27 = vector.load %arg4[%c48, %c0_35] : memref<108x24xf32, #tpu.memory_space<vmem>>, vector<12x24xf32>
    %cst_36 = arith.constant dense<0.000000e+00> : vector<112x24xf32>
    %28 = tpu.matmul %26, %27, %cst_36 {dimension_numbers = #tpu.dot_dimension_numbers<[1], [0], [0], [1], [0, 0, 1, 1], [], []>} : vector<112x12xf32>, vector<12x24xf32>, vector<112x24xf32> -> vector<112x24xf32>
    %29 = arith.addf %25, %28 : vector<112x24xf32>
    %c18 = arith.constant 18 : index
    %c0_37 = arith.constant 0 : index
    %30 = vector.load %arg20[%c18, %c0_37] : memref<488x12xf32, #tpu.memory_space<vmem>>, vector<112x12xf32>
    %c60 = arith.constant 60 : index
    %c0_38 = arith.constant 0 : index
    %31 = vector.load %arg4[%c60, %c0_38] : memref<108x24xf32, #tpu.memory_space<vmem>>, vector<12x24xf32>
    %cst_39 = arith.constant dense<0.000000e+00> : vector<112x24xf32>
    %32 = tpu.matmul %30, %31, %cst_39 {dimension_numbers = #tpu.dot_dimension_numbers<[1], [0], [0], [1], [0, 0, 1, 1], [], []>} : vector<112x12xf32>, vector<12x24xf32>, vector<112x24xf32> -> vector<112x24xf32>
    %33 = arith.addf %29, %32 : vector<112x24xf32>
    %c32 = arith.constant 32 : index
    %c0_40 = arith.constant 0 : index
    %34 = vector.load %arg20[%c32, %c0_40] : memref<488x12xf32, #tpu.memory_space<vmem>>, vector<112x12xf32>
    %c72 = arith.constant 72 : index
    %c0_41 = arith.constant 0 : index
    %35 = vector.load %arg4[%c72, %c0_41] : memref<108x24xf32, #tpu.memory_space<vmem>>, vector<12x24xf32>
    %cst_42 = arith.constant dense<0.000000e+00> : vector<112x24xf32>
    %36 = tpu.matmul %34, %35, %cst_42 {dimension_numbers = #tpu.dot_dimension_numbers<[1], [0], [0], [1], [0, 0, 1, 1], [], []>} : vector<112x12xf32>, vector<12x24xf32>, vector<112x24xf32> -> vector<112x24xf32>
    %37 = arith.addf %33, %36 : vector<112x24xf32>
    %c33 = arith.constant 33 : index
    %c0_43 = arith.constant 0 : index
    %38 = vector.load %arg20[%c33, %c0_43] : memref<488x12xf32, #tpu.memory_space<vmem>>, vector<112x12xf32>
    %c84 = arith.constant 84 : index
    %c0_44 = arith.constant 0 : index
    %39 = vector.load %arg4[%c84, %c0_44] : memref<108x24xf32, #tpu.memory_space<vmem>>, vector<12x24xf32>
    %cst_45 = arith.constant dense<0.000000e+00> : vector<112x24xf32>
    %40 = tpu.matmul %38, %39, %cst_45 {dimension_numbers = #tpu.dot_dimension_numbers<[1], [0], [0], [1], [0, 0, 1, 1], [], []>} : vector<112x12xf32>, vector<12x24xf32>, vector<112x24xf32> -> vector<112x24xf32>
    %41 = arith.addf %37, %40 : vector<112x24xf32>
    %c34 = arith.constant 34 : index
    %c0_46 = arith.constant 0 : index
    %42 = vector.load %arg20[%c34, %c0_46] : memref<488x12xf32, #tpu.memory_space<vmem>>, vector<112x12xf32>
    %c96 = arith.constant 96 : index
    %c0_47 = arith.constant 0 : index
    %43 = vector.load %arg4[%c96, %c0_47] : memref<108x24xf32, #tpu.memory_space<vmem>>, vector<12x24xf32>
    %cst_48 = arith.constant dense<0.000000e+00> : vector<112x24xf32>
    %44 = tpu.matmul %42, %43, %cst_48 {dimension_numbers = #tpu.dot_dimension_numbers<[1], [0], [0], [1], [0, 0, 1, 1], [], []>} : vector<112x12xf32>, vector<12x24xf32>, vector<112x24xf32> -> vector<112x24xf32>
    %45 = arith.addf %41, %44 : vector<112x24xf32>
    %46 = vector.broadcast %10 : vector<1x24xf32> to vector<112x24xf32>
    %47 = arith.addf %45, %46 : vector<112x24xf32>
    %cst_49 = arith.constant 0.000000e+00 : f32
    %48 = vector.broadcast %cst_49 : f32 to vector<112x24xf32>
    %49 = arith.maximumf %47, %48 : vector<112x24xf32>
    %c0_50 = arith.constant 0 : index
    %c0_51 = arith.constant 0 : index
    %50 = vector.load %arg21[%c0_50, %c0_51] : memref<448x24xf32, #tpu.memory_space<vmem>>, vector<112x24xf32>
    tpu.vector_store %arg21[%c0_50, %c0_51], %49 {strides = array<i32>} : memref<448x24xf32, #tpu.memory_space<vmem>>, vector<112x24xf32>,
    %c112 = arith.constant 112 : index
    %c0_52 = arith.constant 0 : index
    %51 = vector.load %arg20[%c112, %c0_52] : memref<488x12xf32, #tpu.memory_space<vmem>>, vector<112x12xf32>
    %c0_53 = arith.constant 0 : index
    %c0_54 = arith.constant 0 : index
    %52 = vector.load %arg4[%c0_53, %c0_54] : memref<108x24xf32, #tpu.memory_space<vmem>>, vector<12x24xf32>
    %cst_55 = arith.constant dense<0.000000e+00> : vector<112x24xf32>
    %53 = tpu.matmul %51, %52, %cst_55 {dimension_numbers = #tpu.dot_dimension_numbers<[1], [0], [0], [1], [0, 0, 1, 1], [], []>} : vector<112x12xf32>, vector<12x24xf32>, vector<112x24xf32> -> vector<112x24xf32>
    %c113 = arith.constant 113 : index
    %c0_56 = arith.constant 0 : index
    %54 = vector.load %arg20[%c113, %c0_56] : memref<488x12xf32, #tpu.memory_space<vmem>>, vector<112x12xf32>
    %c12_57 = arith.constant 12 : index
    %c0_58 = arith.constant 0 : index
    %55 = vector.load %arg4[%c12_57, %c0_58] : memref<108x24xf32, #tpu.memory_space<vmem>>, vector<12x24xf32>
    %cst_59 = arith.constant dense<0.000000e+00> : vector<112x24xf32>
    %56 = tpu.matmul %54, %55, %cst_59 {dimension_numbers = #tpu.dot_dimension_numbers<[1], [0], [0], [1], [0, 0, 1, 1], [], []>} : vector<112x12xf32>, vector<12x24xf32>, vector<112x24xf32> -> vector<112x24xf32>
    %57 = arith.addf %53, %56 : vector<112x24xf32>
    %c114 = arith.constant 114 : index
    %c0_60 = arith.constant 0 : index
    %58 = vector.load %arg20[%c114, %c0_60] : memref<488x12xf32, #tpu.memory_space<vmem>>, vector<112x12xf32>
    %c24_61 = arith.constant 24 : index
    %c0_62 = arith.constant 0 : index
    %59 = vector.load %arg4[%c24_61, %c0_62] : memref<108x24xf32, #tpu.memory_space<vmem>>, vector<12x24xf32>
    %cst_63 = arith.constant dense<0.000000e+00> : vector<112x24xf32>
    %60 = tpu.matmul %58, %59, %cst_63 {dimension_numbers = #tpu.dot_dimension_numbers<[1], [0], [0], [1], [0, 0, 1, 1], [], []>} : vector<112x12xf32>, vector<12x24xf32>, vector<112x24xf32> -> vector<112x24xf32>
    %61 = arith.addf %57, %60 : vector<112x24xf32>
    %c128 = arith.constant 128 : index
    %c0_64 = arith.constant 0 : index
    %62 = vector.load %arg20[%c128, %c0_64] : memref<488x12xf32, #tpu.memory_space<vmem>>, vector<112x12xf32>
    %c36_65 = arith.constant 36 : index
    %c0_66 = arith.constant 0 : index
    %63 = vector.load %arg4[%c36_65, %c0_66] : memref<108x24xf32, #tpu.memory_space<vmem>>, vector<12x24xf32>
    %cst_67 = arith.constant dense<0.000000e+00> : vector<112x24xf32>
    %64 = tpu.matmul %62, %63, %cst_67 {dimension_numbers = #tpu.dot_dimension_numbers<[1], [0], [0], [1], [0, 0, 1, 1], [], []>} : vector<112x12xf32>, vector<12x24xf32>, vector<112x24xf32> -> vector<112x24xf32>
    %65 = arith.addf %61, %64 : vector<112x24xf32>
    %c129 = arith.constant 129 : index
    %c0_68 = arith.constant 0 : index
    %66 = vector.load %arg20[%c129, %c0_68] : memref<488x12xf32, #tpu.memory_space<vmem>>, vector<112x12xf32>
    %c48_69 = arith.constant 48 : index
    %c0_70 = arith.constant 0 : index
    %67 = vector.load %arg4[%c48_69, %c0_70] : memref<108x24xf32, #tpu.memory_space<vmem>>, vector<12x24xf32>
    %cst_71 = arith.constant dense<0.000000e+00> : vector<112x24xf32>
    %68 = tpu.matmul %66, %67, %cst_71 {dimension_numbers = #tpu.dot_dimension_numbers<[1], [0], [0], [1], [0, 0, 1, 1], [], []>} : vector<112x12xf32>, vector<12x24xf32>, vector<112x24xf32> -> vector<112x24xf32>
    %69 = arith.addf %65, %68 : vector<112x24xf32>
    %c130 = arith.constant 130 : index
    %c0_72 = arith.constant 0 : index
    %70 = vector.load %arg20[%c130, %c0_72] : memref<488x12xf32, #tpu.memory_space<vmem>>, vector<112x12xf32>
    %c60_73 = arith.constant 60 : index
    %c0_74 = arith.constant 0 : index
    %71 = vector.load %arg4[%c60_73, %c0_74] : memref<108x24xf32, #tpu.memory_space<vmem>>, vector<12x24xf32>
    %cst_75 = arith.constant dense<0.000000e+00> : vector<112x24xf32>
    %72 = tpu.matmul %70, %71, %cst_75 {dimension_numbers = #tpu.dot_dimension_numbers<[1], [0], [0], [1], [0, 0, 1, 1], [], []>} : vector<112x12xf32>, vector<12x24xf32>, vector<112x24xf32> -> vector<112x24xf32>
    %73 = arith.addf %69, %72 : vector<112x24xf32>
    %c144 = arith.constant 144 : index
    %c0_76 = arith.constant 0 : index
    %74 = vector.load %arg20[%c144, %c0_76] : memref<488x12xf32, #tpu.memory_space<vmem>>, vector<112x12xf32>
    %c72_77 = arith.constant 72 : index
    %c0_78 = arith.constant 0 : index
    %75 = vector.load %arg4[%c72_77, %c0_78] : memref<108x24xf32, #tpu.memory_space<vmem>>, vector<12x24xf32>
    %cst_79 = arith.constant dense<0.000000e+00> : vector<112x24xf32>
    %76 = tpu.matmul %74, %75, %cst_79 {dimension_numbers = #tpu.dot_dimension_numbers<[1], [0], [0], [1], [0, 0, 1, 1], [], []>} : vector<112x12xf32>, vector<12x24xf32>, vector<112x24xf32> -> vector<112x24xf32>
    %77 = arith.addf %73, %76 : vector<112x24xf32>
    %c145 = arith.constant 145 : index
    %c0_80 = arith.constant 0 : index
    %78 = vector.load %arg20[%c145, %c0_80] : memref<488x12xf32, #tpu.memory_space<vmem>>, vector<112x12xf32>
    %c84_81 = arith.constant 84 : index
    %c0_82 = arith.constant 0 : index
    %79 = vector.load %arg4[%c84_81, %c0_82] : memref<108x24xf32, #tpu.memory_space<vmem>>, vector<12x24xf32>
    %cst_83 = arith.constant dense<0.000000e+00> : vector<112x24xf32>
    %80 = tpu.matmul %78, %79, %cst_83 {dimension_numbers = #tpu.dot_dimension_numbers<[1], [0], [0], [1], [0, 0, 1, 1], [], []>} : vector<112x12xf32>, vector<12x24xf32>, vector<112x24xf32> -> vector<112x24xf32>
    %81 = arith.addf %77, %80 : vector<112x24xf32>
    %c146 = arith.constant 146 : index
    %c0_84 = arith.constant 0 : index
    %82 = vector.load %arg20[%c146, %c0_84] : memref<488x12xf32, #tpu.memory_space<vmem>>, vector<112x12xf32>
    %c96_85 = arith.constant 96 : index
    %c0_86 = arith.constant 0 : index
    %83 = vector.load %arg4[%c96_85, %c0_86] : memref<108x24xf32, #tpu.memory_space<vmem>>, vector<12x24xf32>
    %cst_87 = arith.constant dense<0.000000e+00> : vector<112x24xf32>
    %84 = tpu.matmul %82, %83, %cst_87 {dimension_numbers = #tpu.dot_dimension_numbers<[1], [0], [0], [1], [0, 0, 1, 1], [], []>} : vector<112x12xf32>, vector<12x24xf32>, vector<112x24xf32> -> vector<112x24xf32>
    %85 = arith.addf %81, %84 : vector<112x24xf32>
    %86 = vector.broadcast %10 : vector<1x24xf32> to vector<112x24xf32>
    %87 = arith.addf %85, %86 : vector<112x24xf32>
    %cst_88 = arith.constant 0.000000e+00 : f32
    %88 = vector.broadcast %cst_88 : f32 to vector<112x24xf32>
    %89 = arith.maximumf %87, %88 : vector<112x24xf32>
    %c112_89 = arith.constant 112 : index
    %c0_90 = arith.constant 0 : index
    %90 = vector.load %arg21[%c112_89, %c0_90] : memref<448x24xf32, #tpu.memory_space<vmem>>, vector<112x24xf32>
    tpu.vector_store %arg21[%c112_89, %c0_90], %89 {strides = array<i32>} : memref<448x24xf32, #tpu.memory_space<vmem>>, vector<112x24xf32>,
    %c224 = arith.constant 224 : index
    %c0_91 = arith.constant 0 : index
    %91 = vector.load %arg20[%c224, %c0_91] : memref<488x12xf32, #tpu.memory_space<vmem>>, vector<112x12xf32>
    %c0_92 = arith.constant 0 : index
    %c0_93 = arith.constant 0 : index
    %92 = vector.load %arg4[%c0_92, %c0_93] : memref<108x24xf32, #tpu.memory_space<vmem>>, vector<12x24xf32>
    %cst_94 = arith.constant dense<0.000000e+00> : vector<112x24xf32>
    %93 = tpu.matmul %91, %92, %cst_94 {dimension_numbers = #tpu.dot_dimension_numbers<[1], [0], [0], [1], [0, 0, 1, 1], [], []>} : vector<112x12xf32>, vector<12x24xf32>, vector<112x24xf32> -> vector<112x24xf32>
    %c225 = arith.constant 225 : index
    %c0_95 = arith.constant 0 : index
    %94 = vector.load %arg20[%c225, %c0_95] : memref<488x12xf32, #tpu.memory_space<vmem>>, vector<112x12xf32>
    %c12_96 = arith.constant 12 : index
    %c0_97 = arith.constant 0 : index
    %95 = vector.load %arg4[%c12_96, %c0_97] : memref<108x24xf32, #tpu.memory_space<vmem>>, vector<12x24xf32>
    %cst_98 = arith.constant dense<0.000000e+00> : vector<112x24xf32>
    %96 = tpu.matmul %94, %95, %cst_98 {dimension_numbers = #tpu.dot_dimension_numbers<[1], [0], [0], [1], [0, 0, 1, 1], [], []>} : vector<112x12xf32>, vector<12x24xf32>, vector<112x24xf32> -> vector<112x24xf32>
    %97 = arith.addf %93, %96 : vector<112x24xf32>
    %c226 = arith.constant 226 : index
    %c0_99 = arith.constant 0 : index
    %98 = vector.load %arg20[%c226, %c0_99] : memref<488x12xf32, #tpu.memory_space<vmem>>, vector<112x12xf32>
    %c24_100 = arith.constant 24 : index
    %c0_101 = arith.constant 0 : index
    %99 = vector.load %arg4[%c24_100, %c0_101] : memref<108x24xf32, #tpu.memory_space<vmem>>, vector<12x24xf32>
    %cst_102 = arith.constant dense<0.000000e+00> : vector<112x24xf32>
    %100 = tpu.matmul %98, %99, %cst_102 {dimension_numbers = #tpu.dot_dimension_numbers<[1], [0], [0], [1], [0, 0, 1, 1], [], []>} : vector<112x12xf32>, vector<12x24xf32>, vector<112x24xf32> -> vector<112x24xf32>
    %101 = arith.addf %97, %100 : vector<112x24xf32>
    %c240 = arith.constant 240 : index
    %c0_103 = arith.constant 0 : index
    %102 = vector.load %arg20[%c240, %c0_103] : memref<488x12xf32, #tpu.memory_space<vmem>>, vector<112x12xf32>
    %c36_104 = arith.constant 36 : index
    %c0_105 = arith.constant 0 : index
    %103 = vector.load %arg4[%c36_104, %c0_105] : memref<108x24xf32, #tpu.memory_space<vmem>>, vector<12x24xf32>
    %cst_106 = arith.constant dense<0.000000e+00> : vector<112x24xf32>
    %104 = tpu.matmul %102, %103, %cst_106 {dimension_numbers = #tpu.dot_dimension_numbers<[1], [0], [0], [1], [0, 0, 1, 1], [], []>} : vector<112x12xf32>, vector<12x24xf32>, vector<112x24xf32> -> vector<112x24xf32>
    %105 = arith.addf %101, %104 : vector<112x24xf32>
    %c241 = arith.constant 241 : index
    %c0_107 = arith.constant 0 : index
    %106 = vector.load %arg20[%c241, %c0_107] : memref<488x12xf32, #tpu.memory_space<vmem>>, vector<112x12xf32>
    %c48_108 = arith.constant 48 : index
    %c0_109 = arith.constant 0 : index
    %107 = vector.load %arg4[%c48_108, %c0_109] : memref<108x24xf32, #tpu.memory_space<vmem>>, vector<12x24xf32>
    %cst_110 = arith.constant dense<0.000000e+00> : vector<112x24xf32>
    %108 = tpu.matmul %106, %107, %cst_110 {dimension_numbers = #tpu.dot_dimension_numbers<[1], [0], [0], [1], [0, 0, 1, 1], [], []>} : vector<112x12xf32>, vector<12x24xf32>, vector<112x24xf32> -> vector<112x24xf32>
    %109 = arith.addf %105, %108 : vector<112x24xf32>
    %c242 = arith.constant 242 : index
    %c0_111 = arith.constant 0 : index
    %110 = vector.load %arg20[%c242, %c0_111] : memref<488x12xf32, #tpu.memory_space<vmem>>, vector<112x12xf32>
    %c60_112 = arith.constant 60 : index
    %c0_113 = arith.constant 0 : index
    %111 = vector.load %arg4[%c60_112, %c0_113] : memref<108x24xf32, #tpu.memory_space<vmem>>, vector<12x24xf32>
    %cst_114 = arith.constant dense<0.000000e+00> : vector<112x24xf32>
    %112 = tpu.matmul %110, %111, %cst_114 {dimension_numbers = #tpu.dot_dimension_numbers<[1], [0], [0], [1], [0, 0, 1, 1], [], []>} : vector<112x12xf32>, vector<12x24xf32>, vector<112x24xf32> -> vector<112x24xf32>
    %113 = arith.addf %109, %112 : vector<112x24xf32>
    %c256 = arith.constant 256 : index
    %c0_115 = arith.constant 0 : index
    %114 = vector.load %arg20[%c256, %c0_115] : memref<488x12xf32, #tpu.memory_space<vmem>>, vector<112x12xf32>
    %c72_116 = arith.constant 72 : index
    %c0_117 = arith.constant 0 : index
    %115 = vector.load %arg4[%c72_116, %c0_117] : memref<108x24xf32, #tpu.memory_space<vmem>>, vector<12x24xf32>
    %cst_118 = arith.constant dense<0.000000e+00> : vector<112x24xf32>
    %116 = tpu.matmul %114, %115, %cst_118 {dimension_numbers = #tpu.dot_dimension_numbers<[1], [0], [0], [1], [0, 0, 1, 1], [], []>} : vector<112x12xf32>, vector<12x24xf32>, vector<112x24xf32> -> vector<112x24xf32>
    %117 = arith.addf %113, %116 : vector<112x24xf32>
    %c257 = arith.constant 257 : index
    %c0_119 = arith.constant 0 : index
    %118 = vector.load %arg20[%c257, %c0_119] : memref<488x12xf32, #tpu.memory_space<vmem>>, vector<112x12xf32>
    %c84_120 = arith.constant 84 : index
    %c0_121 = arith.constant 0 : index
    %119 = vector.load %arg4[%c84_120, %c0_121] : memref<108x24xf32, #tpu.memory_space<vmem>>, vector<12x24xf32>
    %cst_122 = arith.constant dense<0.000000e+00> : vector<112x24xf32>
    %120 = tpu.matmul %118, %119, %cst_122 {dimension_numbers = #tpu.dot_dimension_numbers<[1], [0], [0], [1], [0, 0, 1, 1], [], []>} : vector<112x12xf32>, vector<12x24xf32>, vector<112x24xf32> -> vector<112x24xf32>
    %121 = arith.addf %117, %120 : vector<112x24xf32>
    %c258 = arith.constant 258 : index
    %c0_123 = arith.constant 0 : index
    %122 = vector.load %arg20[%c258, %c0_123] : memref<488x12xf32, #tpu.memory_space<vmem>>, vector<112x12xf32>
    %c96_124 = arith.constant 96 : index
    %c0_125 = arith.constant 0 : index
    %123 = vector.load %arg4[%c96_124, %c0_125] : memref<108x24xf32, #tpu.memory_space<vmem>>, vector<12x24xf32>
    %cst_126 = arith.constant dense<0.000000e+00> : vector<112x24xf32>
    %124 = tpu.matmul %122, %123, %cst_126 {dimension_numbers = #tpu.dot_dimension_numbers<[1], [0], [0], [1], [0, 0, 1, 1], [], []>} : vector<112x12xf32>, vector<12x24xf32>, vector<112x24xf32> -> vector<112x24xf32>
    %125 = arith.addf %121, %124 : vector<112x24xf32>
    %126 = vector.broadcast %10 : vector<1x24xf32> to vector<112x24xf32>
    %127 = arith.addf %125, %126 : vector<112x24xf32>
    %cst_127 = arith.constant 0.000000e+00 : f32
    %128 = vector.broadcast %cst_127 : f32 to vector<112x24xf32>
    %129 = arith.maximumf %127, %128 : vector<112x24xf32>
    %c224_128 = arith.constant 224 : index
    %c0_129 = arith.constant 0 : index
    %130 = vector.load %arg21[%c224_128, %c0_129] : memref<448x24xf32, #tpu.memory_space<vmem>>, vector<112x24xf32>
    tpu.vector_store %arg21[%c224_128, %c0_129], %129 {strides = array<i32>} : memref<448x24xf32, #tpu.memory_space<vmem>>, vector<112x24xf32>,
    %c336 = arith.constant 336 : index
    %c0_130 = arith.constant 0 : index
    %131 = vector.load %arg20[%c336, %c0_130] : memref<488x12xf32, #tpu.memory_space<vmem>>, vector<112x12xf32>
    %c0_131 = arith.constant 0 : index
    %c0_132 = arith.constant 0 : index
    %132 = vector.load %arg4[%c0_131, %c0_132] : memref<108x24xf32, #tpu.memory_space<vmem>>, vector<12x24xf32>
    %cst_133 = arith.constant dense<0.000000e+00> : vector<112x24xf32>
    %133 = tpu.matmul %131, %132, %cst_133 {dimension_numbers = #tpu.dot_dimension_numbers<[1], [0], [0], [1], [0, 0, 1, 1], [], []>} : vector<112x12xf32>, vector<12x24xf32>, vector<112x24xf32> -> vector<112x24xf32>
    %c337 = arith.constant 337 : index
    %c0_134 = arith.constant 0 : index
    %134 = vector.load %arg20[%c337, %c0_134] : memref<488x12xf32, #tpu.memory_space<vmem>>, vector<112x12xf32>
    %c12_135 = arith.constant 12 : index
    %c0_136 = arith.constant 0 : index
    %135 = vector.load %arg4[%c12_135, %c0_136] : memref<108x24xf32, #tpu.memory_space<vmem>>, vector<12x24xf32>
    %cst_137 = arith.constant dense<0.000000e+00> : vector<112x24xf32>
    %136 = tpu.matmul %134, %135, %cst_137 {dimension_numbers = #tpu.dot_dimension_numbers<[1], [0], [0], [1], [0, 0, 1, 1], [], []>} : vector<112x12xf32>, vector<12x24xf32>, vector<112x24xf32> -> vector<112x24xf32>
    %137 = arith.addf %133, %136 : vector<112x24xf32>
    %c338 = arith.constant 338 : index
    %c0_138 = arith.constant 0 : index
    %138 = vector.load %arg20[%c338, %c0_138] : memref<488x12xf32, #tpu.memory_space<vmem>>, vector<112x12xf32>
    %c24_139 = arith.constant 24 : index
    %c0_140 = arith.constant 0 : index
    %139 = vector.load %arg4[%c24_139, %c0_140] : memref<108x24xf32, #tpu.memory_space<vmem>>, vector<12x24xf32>
    %cst_141 = arith.constant dense<0.000000e+00> : vector<112x24xf32>
    %140 = tpu.matmul %138, %139, %cst_141 {dimension_numbers = #tpu.dot_dimension_numbers<[1], [0], [0], [1], [0, 0, 1, 1], [], []>} : vector<112x12xf32>, vector<12x24xf32>, vector<112x24xf32> -> vector<112x24xf32>
    %141 = arith.addf %137, %140 : vector<112x24xf32>
    %c352 = arith.constant 352 : index
    %c0_142 = arith.constant 0 : index
    %142 = vector.load %arg20[%c352, %c0_142] : memref<488x12xf32, #tpu.memory_space<vmem>>, vector<112x12xf32>
    %c36_143 = arith.constant 36 : index
    %c0_144 = arith.constant 0 : index
    %143 = vector.load %arg4[%c36_143, %c0_144] : memref<108x24xf32, #tpu.memory_space<vmem>>, vector<12x24xf32>
    %cst_145 = arith.constant dense<0.000000e+00> : vector<112x24xf32>
    %144 = tpu.matmul %142, %143, %cst_145 {dimension_numbers = #tpu.dot_dimension_numbers<[1], [0], [0], [1], [0, 0, 1, 1], [], []>} : vector<112x12xf32>, vector<12x24xf32>, vector<112x24xf32> -> vector<112x24xf32>
    %145 = arith.addf %141, %144 : vector<112x24xf32>
    %c353 = arith.constant 353 : index
    %c0_146 = arith.constant 0 : index
    %146 = vector.load %arg20[%c353, %c0_146] : memref<488x12xf32, #tpu.memory_space<vmem>>, vector<112x12xf32>
    %c48_147 = arith.constant 48 : index
    %c0_148 = arith.constant 0 : index
    %147 = vector.load %arg4[%c48_147, %c0_148] : memref<108x24xf32, #tpu.memory_space<vmem>>, vector<12x24xf32>
    %cst_149 = arith.constant dense<0.000000e+00> : vector<112x24xf32>
    %148 = tpu.matmul %146, %147, %cst_149 {dimension_numbers = #tpu.dot_dimension_numbers<[1], [0], [0], [1], [0, 0, 1, 1], [], []>} : vector<112x12xf32>, vector<12x24xf32>, vector<112x24xf32> -> vector<112x24xf32>
    %149 = arith.addf %145, %148 : vector<112x24xf32>
    %c354 = arith.constant 354 : index
    %c0_150 = arith.constant 0 : index
    %150 = vector.load %arg20[%c354, %c0_150] : memref<488x12xf32, #tpu.memory_space<vmem>>, vector<112x12xf32>
    %c60_151 = arith.constant 60 : index
    %c0_152 = arith.constant 0 : index
    %151 = vector.load %arg4[%c60_151, %c0_152] : memref<108x24xf32, #tpu.memory_space<vmem>>, vector<12x24xf32>
    %cst_153 = arith.constant dense<0.000000e+00> : vector<112x24xf32>
    %152 = tpu.matmul %150, %151, %cst_153 {dimension_numbers = #tpu.dot_dimension_numbers<[1], [0], [0], [1], [0, 0, 1, 1], [], []>} : vector<112x12xf32>, vector<12x24xf32>, vector<112x24xf32> -> vector<112x24xf32>
    %153 = arith.addf %149, %152 : vector<112x24xf32>
    %c368 = arith.constant 368 : index
    %c0_154 = arith.constant 0 : index
    %154 = vector.load %arg20[%c368, %c0_154] : memref<488x12xf32, #tpu.memory_space<vmem>>, vector<112x12xf32>
    %c72_155 = arith.constant 72 : index
    %c0_156 = arith.constant 0 : index
    %155 = vector.load %arg4[%c72_155, %c0_156] : memref<108x24xf32, #tpu.memory_space<vmem>>, vector<12x24xf32>
    %cst_157 = arith.constant dense<0.000000e+00> : vector<112x24xf32>
    %156 = tpu.matmul %154, %155, %cst_157 {dimension_numbers = #tpu.dot_dimension_numbers<[1], [0], [0], [1], [0, 0, 1, 1], [], []>} : vector<112x12xf32>, vector<12x24xf32>, vector<112x24xf32> -> vector<112x24xf32>
    %157 = arith.addf %153, %156 : vector<112x24xf32>
    %c369 = arith.constant 369 : index
    %c0_158 = arith.constant 0 : index
    %158 = vector.load %arg20[%c369, %c0_158] : memref<488x12xf32, #tpu.memory_space<vmem>>, vector<112x12xf32>
    %c84_159 = arith.constant 84 : index
    %c0_160 = arith.constant 0 : index
    %159 = vector.load %arg4[%c84_159, %c0_160] : memref<108x24xf32, #tpu.memory_space<vmem>>, vector<12x24xf32>
    %cst_161 = arith.constant dense<0.000000e+00> : vector<112x24xf32>
    %160 = tpu.matmul %158, %159, %cst_161 {dimension_numbers = #tpu.dot_dimension_numbers<[1], [0], [0], [1], [0, 0, 1, 1], [], []>} : vector<112x12xf32>, vector<12x24xf32>, vector<112x24xf32> -> vector<112x24xf32>
    %161 = arith.addf %157, %160 : vector<112x24xf32>
    %c370 = arith.constant 370 : index
    %c0_162 = arith.constant 0 : index
    %162 = vector.load %arg20[%c370, %c0_162] : memref<488x12xf32, #tpu.memory_space<vmem>>, vector<112x12xf32>
    %c96_163 = arith.constant 96 : index
    %c0_164 = arith.constant 0 : index
    %163 = vector.load %arg4[%c96_163, %c0_164] : memref<108x24xf32, #tpu.memory_space<vmem>>, vector<12x24xf32>
    %cst_165 = arith.constant dense<0.000000e+00> : vector<112x24xf32>
    %164 = tpu.matmul %162, %163, %cst_165 {dimension_numbers = #tpu.dot_dimension_numbers<[1], [0], [0], [1], [0, 0, 1, 1], [], []>} : vector<112x12xf32>, vector<12x24xf32>, vector<112x24xf32> -> vector<112x24xf32>
    %165 = arith.addf %161, %164 : vector<112x24xf32>
    %166 = vector.broadcast %10 : vector<1x24xf32> to vector<112x24xf32>
    %167 = arith.addf %165, %166 : vector<112x24xf32>
    %cst_166 = arith.constant 0.000000e+00 : f32
    %168 = vector.broadcast %cst_166 : f32 to vector<112x24xf32>
    %169 = arith.maximumf %167, %168 : vector<112x24xf32>
    %c336_167 = arith.constant 336 : index
    %c0_168 = arith.constant 0 : index
    %170 = vector.load %arg21[%c336_167, %c0_168] : memref<448x24xf32, #tpu.memory_space<vmem>>, vector<112x24xf32>
    tpu.vector_store %arg21[%c336_167, %c0_168], %169 {strides = array<i32>} : memref<448x24xf32, #tpu.memory_space<vmem>>, vector<112x24xf32>,
    %c0_169 = arith.constant 0 : index
    %c0_170 = arith.constant 0 : index
    %171 = vector.load %arg16[%c0_169, %c0_170] : memref<6x12xf32, #tpu.memory_space<vmem>>, vector<6x12xf32>
    %c0_171 = arith.constant 0 : index
    %c0_172 = arith.constant 0 : index
    %172 = vector.load %arg17[%c0_171, %c0_172] : memref<6x12xf32, #tpu.memory_space<vmem>>, vector<6x12xf32>
    %c0_i32_173 = arith.constant 0 : i32
    %c6_i32 = arith.constant 6 : i32
    %173 = arith.addi %c0_i32_173, %c6_i32 : i32
    %c1_i32_174 = arith.constant 1 : i32
    scf.for %arg24 = %c0_i32_173 to %173 step %c1_i32_174  : i32 {
      %c2_i32 = arith.constant 2 : i32
      %423 = arith.muli %c2_i32, %arg24 : i32
      %c16_i32_428 = arith.constant 16 : i32
      %424 = arith.muli %423, %c16_i32_428 : i32
      %c0_i32_429 = arith.constant 0 : i32
      %425 = arith.addi %c0_i32_429, %424 : i32
      %426 = tpu.assume_multiple %425, 8 : i32
      %c16_i32_430 = arith.constant 16 : i32
      %427 = arith.addi %426, %c16_i32_430 : i32
      %428 = tpu.assume_multiple %427, 8 : i32
      %429 = arith.index_cast %426 : i32 to index
      %c0_431 = arith.constant 0 : index
      %430 = vector.load %arg21[%429, %c0_431] : memref<448x24xf32, #tpu.memory_space<vmem>>, vector<12x24xf32>
      %431 = arith.index_cast %428 : i32 to index
      %c0_432 = arith.constant 0 : index
      %432 = vector.load %arg21[%431, %c0_432] : memref<448x24xf32, #tpu.memory_space<vmem>>, vector<12x24xf32>
      %cst_433 = arith.constant dense<0.000000e+00> : vector<6x24xf32>
      %433 = tpu.matmul %171, %430, %cst_433 {dimension_numbers = #tpu.dot_dimension_numbers<[1], [0], [0], [1], [0, 0, 1, 1], [], []>} : vector<6x12xf32>, vector<12x24xf32>, vector<6x24xf32> -> vector<6x24xf32>
      %cst_434 = arith.constant dense<0.000000e+00> : vector<6x24xf32>
      %434 = tpu.matmul %172, %430, %cst_434 {dimension_numbers = #tpu.dot_dimension_numbers<[1], [0], [0], [1], [0, 0, 1, 1], [], []>} : vector<6x12xf32>, vector<12x24xf32>, vector<6x24xf32> -> vector<6x24xf32>
      %435 = arith.maximumf %433, %434 : vector<6x24xf32>
      %cst_435 = arith.constant dense<0.000000e+00> : vector<6x24xf32>
      %436 = tpu.matmul %171, %432, %cst_435 {dimension_numbers = #tpu.dot_dimension_numbers<[1], [0], [0], [1], [0, 0, 1, 1], [], []>} : vector<6x12xf32>, vector<12x24xf32>, vector<6x24xf32> -> vector<6x24xf32>
      %cst_436 = arith.constant dense<0.000000e+00> : vector<6x24xf32>
      %437 = tpu.matmul %172, %432, %cst_436 {dimension_numbers = #tpu.dot_dimension_numbers<[1], [0], [0], [1], [0, 0, 1, 1], [], []>} : vector<6x12xf32>, vector<12x24xf32>, vector<6x24xf32> -> vector<6x24xf32>
      %438 = arith.maximumf %436, %437 : vector<6x24xf32>
      %439 = arith.maximumf %435, %438 : vector<6x24xf32>
      %c8_i32 = arith.constant 8 : i32
      %440 = arith.muli %arg24, %c8_i32 : i32
      %c0_i32_437 = arith.constant 0 : i32
      %441 = arith.addi %c0_i32_437, %440 : i32
      %442 = tpu.assume_multiple %441, 8 : i32
      %443 = arith.index_cast %442 : i32 to index
      %c0_438 = arith.constant 0 : index
      %444 = vector.load %arg22[%443, %c0_438] : memref<112x24xf32, #tpu.memory_space<vmem>>, vector<6x24xf32>
      tpu.vector_store %arg22[%443, %c0_438], %439 {strides = array<i32>} : memref<112x24xf32, #tpu.memory_space<vmem>>, vector<6x24xf32>,
    }
    %c6_i32_175 = arith.constant 6 : i32
    %c0_i32_176 = arith.constant 0 : i32
    %c6_i32_177 = arith.constant 6 : i32
    %174 = arith.addi %c0_i32_176, %c6_i32_177 : i32
    %c1_i32_178 = arith.constant 1 : i32
    scf.for %arg24 = %c0_i32_176 to %174 step %c1_i32_178  : i32 {
      %c2_i32 = arith.constant 2 : i32
      %423 = arith.muli %c2_i32, %arg24 : i32
      %c16_i32_428 = arith.constant 16 : i32
      %424 = arith.muli %423, %c16_i32_428 : i32
      %c224_i32 = arith.constant 224 : i32
      %425 = arith.addi %c224_i32, %424 : i32
      %426 = tpu.assume_multiple %425, 8 : i32
      %c16_i32_429 = arith.constant 16 : i32
      %427 = arith.addi %426, %c16_i32_429 : i32
      %428 = tpu.assume_multiple %427, 8 : i32
      %429 = arith.index_cast %426 : i32 to index
      %c0_430 = arith.constant 0 : index
      %430 = vector.load %arg21[%429, %c0_430] : memref<448x24xf32, #tpu.memory_space<vmem>>, vector<12x24xf32>
      %431 = arith.index_cast %428 : i32 to index
      %c0_431 = arith.constant 0 : index
      %432 = vector.load %arg21[%431, %c0_431] : memref<448x24xf32, #tpu.memory_space<vmem>>, vector<12x24xf32>
      %cst_432 = arith.constant dense<0.000000e+00> : vector<6x24xf32>
      %433 = tpu.matmul %171, %430, %cst_432 {dimension_numbers = #tpu.dot_dimension_numbers<[1], [0], [0], [1], [0, 0, 1, 1], [], []>} : vector<6x12xf32>, vector<12x24xf32>, vector<6x24xf32> -> vector<6x24xf32>
      %cst_433 = arith.constant dense<0.000000e+00> : vector<6x24xf32>
      %434 = tpu.matmul %172, %430, %cst_433 {dimension_numbers = #tpu.dot_dimension_numbers<[1], [0], [0], [1], [0, 0, 1, 1], [], []>} : vector<6x12xf32>, vector<12x24xf32>, vector<6x24xf32> -> vector<6x24xf32>
      %435 = arith.maximumf %433, %434 : vector<6x24xf32>
      %cst_434 = arith.constant dense<0.000000e+00> : vector<6x24xf32>
      %436 = tpu.matmul %171, %432, %cst_434 {dimension_numbers = #tpu.dot_dimension_numbers<[1], [0], [0], [1], [0, 0, 1, 1], [], []>} : vector<6x12xf32>, vector<12x24xf32>, vector<6x24xf32> -> vector<6x24xf32>
      %cst_435 = arith.constant dense<0.000000e+00> : vector<6x24xf32>
      %437 = tpu.matmul %172, %432, %cst_435 {dimension_numbers = #tpu.dot_dimension_numbers<[1], [0], [0], [1], [0, 0, 1, 1], [], []>} : vector<6x12xf32>, vector<12x24xf32>, vector<6x24xf32> -> vector<6x24xf32>
      %438 = arith.maximumf %436, %437 : vector<6x24xf32>
      %439 = arith.maximumf %435, %438 : vector<6x24xf32>
      %c8_i32 = arith.constant 8 : i32
      %440 = arith.muli %arg24, %c8_i32 : i32
      %c48_i32 = arith.constant 48 : i32
      %441 = arith.addi %c48_i32, %440 : i32
      %442 = tpu.assume_multiple %441, 8 : i32
      %443 = arith.index_cast %442 : i32 to index
      %c0_436 = arith.constant 0 : index
      %444 = vector.load %arg22[%443, %c0_436] : memref<112x24xf32, #tpu.memory_space<vmem>>, vector<6x24xf32>
      tpu.vector_store %arg22[%443, %c0_436], %439 {strides = array<i32>} : memref<112x24xf32, #tpu.memory_space<vmem>>, vector<6x24xf32>,
    }
    %c6_i32_179 = arith.constant 6 : i32
    %c0_180 = arith.constant 0 : index
    %c0_181 = arith.constant 0 : index
    %175 = vector.load %arg7[%c0_180, %c0_181] : memref<1x32xf32, #tpu.memory_space<vmem>>, vector<1x32xf32>
    %c0_182 = arith.constant 0 : index
    %c0_183 = arith.constant 0 : index
    %176 = vector.load %arg22[%c0_182, %c0_183] : memref<112x24xf32, #tpu.memory_space<vmem>>, vector<96x24xf32>
    %c0_184 = arith.constant 0 : index
    %c0_185 = arith.constant 0 : index
    %177 = vector.load %arg6[%c0_184, %c0_185] : memref<96x32xf32, #tpu.memory_space<vmem>>, vector<24x32xf32>
    %cst_186 = arith.constant dense<0.000000e+00> : vector<96x32xf32>
    %178 = tpu.matmul %176, %177, %cst_186 {dimension_numbers = #tpu.dot_dimension_numbers<[1], [0], [0], [1], [0, 0, 1, 1], [], []>} : vector<96x24xf32>, vector<24x32xf32>, vector<96x32xf32> -> vector<96x32xf32>
    %c1_187 = arith.constant 1 : index
    %c0_188 = arith.constant 0 : index
    %179 = vector.load %arg22[%c1_187, %c0_188] : memref<112x24xf32, #tpu.memory_space<vmem>>, vector<96x24xf32>
    %c24_189 = arith.constant 24 : index
    %c0_190 = arith.constant 0 : index
    %180 = vector.load %arg6[%c24_189, %c0_190] : memref<96x32xf32, #tpu.memory_space<vmem>>, vector<24x32xf32>
    %cst_191 = arith.constant dense<0.000000e+00> : vector<96x32xf32>
    %181 = tpu.matmul %179, %180, %cst_191 {dimension_numbers = #tpu.dot_dimension_numbers<[1], [0], [0], [1], [0, 0, 1, 1], [], []>} : vector<96x24xf32>, vector<24x32xf32>, vector<96x32xf32> -> vector<96x32xf32>
    %182 = arith.addf %178, %181 : vector<96x32xf32>
    %c8 = arith.constant 8 : index
    %c0_192 = arith.constant 0 : index
    %183 = vector.load %arg22[%c8, %c0_192] : memref<112x24xf32, #tpu.memory_space<vmem>>, vector<96x24xf32>
    %c48_193 = arith.constant 48 : index
    %c0_194 = arith.constant 0 : index
    %184 = vector.load %arg6[%c48_193, %c0_194] : memref<96x32xf32, #tpu.memory_space<vmem>>, vector<24x32xf32>
    %cst_195 = arith.constant dense<0.000000e+00> : vector<96x32xf32>
    %185 = tpu.matmul %183, %184, %cst_195 {dimension_numbers = #tpu.dot_dimension_numbers<[1], [0], [0], [1], [0, 0, 1, 1], [], []>} : vector<96x24xf32>, vector<24x32xf32>, vector<96x32xf32> -> vector<96x32xf32>
    %186 = arith.addf %182, %185 : vector<96x32xf32>
    %c9 = arith.constant 9 : index
    %c0_196 = arith.constant 0 : index
    %187 = vector.load %arg22[%c9, %c0_196] : memref<112x24xf32, #tpu.memory_space<vmem>>, vector<96x24xf32>
    %c72_197 = arith.constant 72 : index
    %c0_198 = arith.constant 0 : index
    %188 = vector.load %arg6[%c72_197, %c0_198] : memref<96x32xf32, #tpu.memory_space<vmem>>, vector<24x32xf32>
    %cst_199 = arith.constant dense<0.000000e+00> : vector<96x32xf32>
    %189 = tpu.matmul %187, %188, %cst_199 {dimension_numbers = #tpu.dot_dimension_numbers<[1], [0], [0], [1], [0, 0, 1, 1], [], []>} : vector<96x24xf32>, vector<24x32xf32>, vector<96x32xf32> -> vector<96x32xf32>
    %190 = arith.addf %186, %189 : vector<96x32xf32>
    %191 = vector.broadcast %175 : vector<1x32xf32> to vector<96x32xf32>
    %192 = arith.addf %190, %191 : vector<96x32xf32>
    %cst_200 = arith.constant 0.000000e+00 : f32
    %193 = vector.broadcast %cst_200 : f32 to vector<96x32xf32>
    %194 = arith.maximumf %192, %193 : vector<96x32xf32>
    %c0_201 = arith.constant 0 : index
    %c0_202 = arith.constant 0 : index
    %195 = vector.load %arg23[%c0_201, %c0_202] : memref<96x32xf32, #tpu.memory_space<vmem>>, vector<96x32xf32>
    tpu.vector_store %arg23[%c0_201, %c0_202], %194 {strides = array<i32>} : memref<96x32xf32, #tpu.memory_space<vmem>>, vector<96x32xf32>,
    %c0_203 = arith.constant 0 : index
    %c0_204 = arith.constant 0 : index
    %196 = vector.load %arg9[%c0_203, %c0_204] : memref<1x108xf32, #tpu.memory_space<vmem>>, vector<1x108xf32>
    %c0_205 = arith.constant 0 : index
    %c0_206 = arith.constant 0 : index
    %197 = vector.load %arg11[%c0_205, %c0_206] : memref<1x84xf32, #tpu.memory_space<vmem>>, vector<1x84xf32>
    %c0_207 = arith.constant 0 : index
    %c0_208 = arith.constant 0 : index
    %198 = vector.load %arg13[%c0_207, %c0_208] : memref<1x10xf32, #tpu.memory_space<vmem>>, vector<1x10xf32>
    %c0_209 = arith.constant 0 : index
    %c0_210 = arith.constant 0 : index
    %199 = vector.load %arg10[%c0_209, %c0_210] : memref<108x84xf32, #tpu.memory_space<vmem>>, vector<108x84xf32>
    %c0_211 = arith.constant 0 : index
    %c0_212 = arith.constant 0 : index
    %200 = vector.load %arg12[%c0_211, %c0_212] : memref<84x10xf32, #tpu.memory_space<vmem>>, vector<84x10xf32>
    %c0_213 = arith.constant 0 : index
    %c0_214 = arith.constant 0 : index
    %201 = vector.load %arg23[%c0_213, %c0_214] : memref<96x32xf32, #tpu.memory_space<vmem>>, vector<1x32xf32>
    %c0_215 = arith.constant 0 : index
    %c0_216 = arith.constant 0 : index
    %202 = vector.load %arg8[%c0_215, %c0_216] : memref<800x108xf32, #tpu.memory_space<vmem>>, vector<32x108xf32>
    %cst_217 = arith.constant dense<0.000000e+00> : vector<1x108xf32>
    %203 = tpu.matmul %201, %202, %cst_217 {dimension_numbers = #tpu.dot_dimension_numbers<[1], [0], [0], [1], [0, 0, 1, 1], [], []>} : vector<1x32xf32>, vector<32x108xf32>, vector<1x108xf32> -> vector<1x108xf32>
    %c1_218 = arith.constant 1 : index
    %c0_219 = arith.constant 0 : index
    %204 = vector.load %arg23[%c1_218, %c0_219] : memref<96x32xf32, #tpu.memory_space<vmem>>, vector<1x32xf32>
    %c32_220 = arith.constant 32 : index
    %c0_221 = arith.constant 0 : index
    %205 = vector.load %arg8[%c32_220, %c0_221] : memref<800x108xf32, #tpu.memory_space<vmem>>, vector<32x108xf32>
    %cst_222 = arith.constant dense<0.000000e+00> : vector<1x108xf32>
    %206 = tpu.matmul %204, %205, %cst_222 {dimension_numbers = #tpu.dot_dimension_numbers<[1], [0], [0], [1], [0, 0, 1, 1], [], []>} : vector<1x32xf32>, vector<32x108xf32>, vector<1x108xf32> -> vector<1x108xf32>
    %207 = arith.addf %203, %206 : vector<1x108xf32>
    %c2_223 = arith.constant 2 : index
    %c0_224 = arith.constant 0 : index
    %208 = vector.load %arg23[%c2_223, %c0_224] : memref<96x32xf32, #tpu.memory_space<vmem>>, vector<1x32xf32>
    %c64 = arith.constant 64 : index
    %c0_225 = arith.constant 0 : index
    %209 = vector.load %arg8[%c64, %c0_225] : memref<800x108xf32, #tpu.memory_space<vmem>>, vector<32x108xf32>
    %cst_226 = arith.constant dense<0.000000e+00> : vector<1x108xf32>
    %210 = tpu.matmul %208, %209, %cst_226 {dimension_numbers = #tpu.dot_dimension_numbers<[1], [0], [0], [1], [0, 0, 1, 1], [], []>} : vector<1x32xf32>, vector<32x108xf32>, vector<1x108xf32> -> vector<1x108xf32>
    %211 = arith.addf %207, %210 : vector<1x108xf32>
    %c3 = arith.constant 3 : index
    %c0_227 = arith.constant 0 : index
    %212 = vector.load %arg23[%c3, %c0_227] : memref<96x32xf32, #tpu.memory_space<vmem>>, vector<1x32xf32>
    %c96_228 = arith.constant 96 : index
    %c0_229 = arith.constant 0 : index
    %213 = vector.load %arg8[%c96_228, %c0_229] : memref<800x108xf32, #tpu.memory_space<vmem>>, vector<32x108xf32>
    %cst_230 = arith.constant dense<0.000000e+00> : vector<1x108xf32>
    %214 = tpu.matmul %212, %213, %cst_230 {dimension_numbers = #tpu.dot_dimension_numbers<[1], [0], [0], [1], [0, 0, 1, 1], [], []>} : vector<1x32xf32>, vector<32x108xf32>, vector<1x108xf32> -> vector<1x108xf32>
    %215 = arith.addf %211, %214 : vector<1x108xf32>
    %c4 = arith.constant 4 : index
    %c0_231 = arith.constant 0 : index
    %216 = vector.load %arg23[%c4, %c0_231] : memref<96x32xf32, #tpu.memory_space<vmem>>, vector<1x32xf32>
    %c128_232 = arith.constant 128 : index
    %c0_233 = arith.constant 0 : index
    %217 = vector.load %arg8[%c128_232, %c0_233] : memref<800x108xf32, #tpu.memory_space<vmem>>, vector<32x108xf32>
    %cst_234 = arith.constant dense<0.000000e+00> : vector<1x108xf32>
    %218 = tpu.matmul %216, %217, %cst_234 {dimension_numbers = #tpu.dot_dimension_numbers<[1], [0], [0], [1], [0, 0, 1, 1], [], []>} : vector<1x32xf32>, vector<32x108xf32>, vector<1x108xf32> -> vector<1x108xf32>
    %219 = arith.addf %215, %218 : vector<1x108xf32>
    %c8_235 = arith.constant 8 : index
    %c0_236 = arith.constant 0 : index
    %220 = vector.load %arg23[%c8_235, %c0_236] : memref<96x32xf32, #tpu.memory_space<vmem>>, vector<1x32xf32>
    %c160 = arith.constant 160 : index
    %c0_237 = arith.constant 0 : index
    %221 = vector.load %arg8[%c160, %c0_237] : memref<800x108xf32, #tpu.memory_space<vmem>>, vector<32x108xf32>
    %cst_238 = arith.constant dense<0.000000e+00> : vector<1x108xf32>
    %222 = tpu.matmul %220, %221, %cst_238 {dimension_numbers = #tpu.dot_dimension_numbers<[1], [0], [0], [1], [0, 0, 1, 1], [], []>} : vector<1x32xf32>, vector<32x108xf32>, vector<1x108xf32> -> vector<1x108xf32>
    %223 = arith.addf %219, %222 : vector<1x108xf32>
    %c9_239 = arith.constant 9 : index
    %c0_240 = arith.constant 0 : index
    %224 = vector.load %arg23[%c9_239, %c0_240] : memref<96x32xf32, #tpu.memory_space<vmem>>, vector<1x32xf32>
    %c192 = arith.constant 192 : index
    %c0_241 = arith.constant 0 : index
    %225 = vector.load %arg8[%c192, %c0_241] : memref<800x108xf32, #tpu.memory_space<vmem>>, vector<32x108xf32>
    %cst_242 = arith.constant dense<0.000000e+00> : vector<1x108xf32>
    %226 = tpu.matmul %224, %225, %cst_242 {dimension_numbers = #tpu.dot_dimension_numbers<[1], [0], [0], [1], [0, 0, 1, 1], [], []>} : vector<1x32xf32>, vector<32x108xf32>, vector<1x108xf32> -> vector<1x108xf32>
    %227 = arith.addf %223, %226 : vector<1x108xf32>
    %c10 = arith.constant 10 : index
    %c0_243 = arith.constant 0 : index
    %228 = vector.load %arg23[%c10, %c0_243] : memref<96x32xf32, #tpu.memory_space<vmem>>, vector<1x32xf32>
    %c224_244 = arith.constant 224 : index
    %c0_245 = arith.constant 0 : index
    %229 = vector.load %arg8[%c224_244, %c0_245] : memref<800x108xf32, #tpu.memory_space<vmem>>, vector<32x108xf32>
    %cst_246 = arith.constant dense<0.000000e+00> : vector<1x108xf32>
    %230 = tpu.matmul %228, %229, %cst_246 {dimension_numbers = #tpu.dot_dimension_numbers<[1], [0], [0], [1], [0, 0, 1, 1], [], []>} : vector<1x32xf32>, vector<32x108xf32>, vector<1x108xf32> -> vector<1x108xf32>
    %231 = arith.addf %227, %230 : vector<1x108xf32>
    %c11 = arith.constant 11 : index
    %c0_247 = arith.constant 0 : index
    %232 = vector.load %arg23[%c11, %c0_247] : memref<96x32xf32, #tpu.memory_space<vmem>>, vector<1x32xf32>
    %c256_248 = arith.constant 256 : index
    %c0_249 = arith.constant 0 : index
    %233 = vector.load %arg8[%c256_248, %c0_249] : memref<800x108xf32, #tpu.memory_space<vmem>>, vector<32x108xf32>
    %cst_250 = arith.constant dense<0.000000e+00> : vector<1x108xf32>
    %234 = tpu.matmul %232, %233, %cst_250 {dimension_numbers = #tpu.dot_dimension_numbers<[1], [0], [0], [1], [0, 0, 1, 1], [], []>} : vector<1x32xf32>, vector<32x108xf32>, vector<1x108xf32> -> vector<1x108xf32>
    %235 = arith.addf %231, %234 : vector<1x108xf32>
    %c12_251 = arith.constant 12 : index
    %c0_252 = arith.constant 0 : index
    %236 = vector.load %arg23[%c12_251, %c0_252] : memref<96x32xf32, #tpu.memory_space<vmem>>, vector<1x32xf32>
    %c288 = arith.constant 288 : index
    %c0_253 = arith.constant 0 : index
    %237 = vector.load %arg8[%c288, %c0_253] : memref<800x108xf32, #tpu.memory_space<vmem>>, vector<32x108xf32>
    %cst_254 = arith.constant dense<0.000000e+00> : vector<1x108xf32>
    %238 = tpu.matmul %236, %237, %cst_254 {dimension_numbers = #tpu.dot_dimension_numbers<[1], [0], [0], [1], [0, 0, 1, 1], [], []>} : vector<1x32xf32>, vector<32x108xf32>, vector<1x108xf32> -> vector<1x108xf32>
    %239 = arith.addf %235, %238 : vector<1x108xf32>
    %c16_255 = arith.constant 16 : index
    %c0_256 = arith.constant 0 : index
    %240 = vector.load %arg23[%c16_255, %c0_256] : memref<96x32xf32, #tpu.memory_space<vmem>>, vector<1x32xf32>
    %c320 = arith.constant 320 : index
    %c0_257 = arith.constant 0 : index
    %241 = vector.load %arg8[%c320, %c0_257] : memref<800x108xf32, #tpu.memory_space<vmem>>, vector<32x108xf32>
    %cst_258 = arith.constant dense<0.000000e+00> : vector<1x108xf32>
    %242 = tpu.matmul %240, %241, %cst_258 {dimension_numbers = #tpu.dot_dimension_numbers<[1], [0], [0], [1], [0, 0, 1, 1], [], []>} : vector<1x32xf32>, vector<32x108xf32>, vector<1x108xf32> -> vector<1x108xf32>
    %243 = arith.addf %239, %242 : vector<1x108xf32>
    %c17_259 = arith.constant 17 : index
    %c0_260 = arith.constant 0 : index
    %244 = vector.load %arg23[%c17_259, %c0_260] : memref<96x32xf32, #tpu.memory_space<vmem>>, vector<1x32xf32>
    %c352_261 = arith.constant 352 : index
    %c0_262 = arith.constant 0 : index
    %245 = vector.load %arg8[%c352_261, %c0_262] : memref<800x108xf32, #tpu.memory_space<vmem>>, vector<32x108xf32>
    %cst_263 = arith.constant dense<0.000000e+00> : vector<1x108xf32>
    %246 = tpu.matmul %244, %245, %cst_263 {dimension_numbers = #tpu.dot_dimension_numbers<[1], [0], [0], [1], [0, 0, 1, 1], [], []>} : vector<1x32xf32>, vector<32x108xf32>, vector<1x108xf32> -> vector<1x108xf32>
    %247 = arith.addf %243, %246 : vector<1x108xf32>
    %c18_264 = arith.constant 18 : index
    %c0_265 = arith.constant 0 : index
    %248 = vector.load %arg23[%c18_264, %c0_265] : memref<96x32xf32, #tpu.memory_space<vmem>>, vector<1x32xf32>
    %c384 = arith.constant 384 : index
    %c0_266 = arith.constant 0 : index
    %249 = vector.load %arg8[%c384, %c0_266] : memref<800x108xf32, #tpu.memory_space<vmem>>, vector<32x108xf32>
    %cst_267 = arith.constant dense<0.000000e+00> : vector<1x108xf32>
    %250 = tpu.matmul %248, %249, %cst_267 {dimension_numbers = #tpu.dot_dimension_numbers<[1], [0], [0], [1], [0, 0, 1, 1], [], []>} : vector<1x32xf32>, vector<32x108xf32>, vector<1x108xf32> -> vector<1x108xf32>
    %251 = arith.addf %247, %250 : vector<1x108xf32>
    %c19 = arith.constant 19 : index
    %c0_268 = arith.constant 0 : index
    %252 = vector.load %arg23[%c19, %c0_268] : memref<96x32xf32, #tpu.memory_space<vmem>>, vector<1x32xf32>
    %c416 = arith.constant 416 : index
    %c0_269 = arith.constant 0 : index
    %253 = vector.load %arg8[%c416, %c0_269] : memref<800x108xf32, #tpu.memory_space<vmem>>, vector<32x108xf32>
    %cst_270 = arith.constant dense<0.000000e+00> : vector<1x108xf32>
    %254 = tpu.matmul %252, %253, %cst_270 {dimension_numbers = #tpu.dot_dimension_numbers<[1], [0], [0], [1], [0, 0, 1, 1], [], []>} : vector<1x32xf32>, vector<32x108xf32>, vector<1x108xf32> -> vector<1x108xf32>
    %255 = arith.addf %251, %254 : vector<1x108xf32>
    %c20 = arith.constant 20 : index
    %c0_271 = arith.constant 0 : index
    %256 = vector.load %arg23[%c20, %c0_271] : memref<96x32xf32, #tpu.memory_space<vmem>>, vector<1x32xf32>
    %c448 = arith.constant 448 : index
    %c0_272 = arith.constant 0 : index
    %257 = vector.load %arg8[%c448, %c0_272] : memref<800x108xf32, #tpu.memory_space<vmem>>, vector<32x108xf32>
    %cst_273 = arith.constant dense<0.000000e+00> : vector<1x108xf32>
    %258 = tpu.matmul %256, %257, %cst_273 {dimension_numbers = #tpu.dot_dimension_numbers<[1], [0], [0], [1], [0, 0, 1, 1], [], []>} : vector<1x32xf32>, vector<32x108xf32>, vector<1x108xf32> -> vector<1x108xf32>
    %259 = arith.addf %255, %258 : vector<1x108xf32>
    %c24_274 = arith.constant 24 : index
    %c0_275 = arith.constant 0 : index
    %260 = vector.load %arg23[%c24_274, %c0_275] : memref<96x32xf32, #tpu.memory_space<vmem>>, vector<1x32xf32>
    %c480 = arith.constant 480 : index
    %c0_276 = arith.constant 0 : index
    %261 = vector.load %arg8[%c480, %c0_276] : memref<800x108xf32, #tpu.memory_space<vmem>>, vector<32x108xf32>
    %cst_277 = arith.constant dense<0.000000e+00> : vector<1x108xf32>
    %262 = tpu.matmul %260, %261, %cst_277 {dimension_numbers = #tpu.dot_dimension_numbers<[1], [0], [0], [1], [0, 0, 1, 1], [], []>} : vector<1x32xf32>, vector<32x108xf32>, vector<1x108xf32> -> vector<1x108xf32>
    %263 = arith.addf %259, %262 : vector<1x108xf32>
    %c25 = arith.constant 25 : index
    %c0_278 = arith.constant 0 : index
    %264 = vector.load %arg23[%c25, %c0_278] : memref<96x32xf32, #tpu.memory_space<vmem>>, vector<1x32xf32>
    %c512 = arith.constant 512 : index
    %c0_279 = arith.constant 0 : index
    %265 = vector.load %arg8[%c512, %c0_279] : memref<800x108xf32, #tpu.memory_space<vmem>>, vector<32x108xf32>
    %cst_280 = arith.constant dense<0.000000e+00> : vector<1x108xf32>
    %266 = tpu.matmul %264, %265, %cst_280 {dimension_numbers = #tpu.dot_dimension_numbers<[1], [0], [0], [1], [0, 0, 1, 1], [], []>} : vector<1x32xf32>, vector<32x108xf32>, vector<1x108xf32> -> vector<1x108xf32>
    %267 = arith.addf %263, %266 : vector<1x108xf32>
    %c26 = arith.constant 26 : index
    %c0_281 = arith.constant 0 : index
    %268 = vector.load %arg23[%c26, %c0_281] : memref<96x32xf32, #tpu.memory_space<vmem>>, vector<1x32xf32>
    %c544 = arith.constant 544 : index
    %c0_282 = arith.constant 0 : index
    %269 = vector.load %arg8[%c544, %c0_282] : memref<800x108xf32, #tpu.memory_space<vmem>>, vector<32x108xf32>
    %cst_283 = arith.constant dense<0.000000e+00> : vector<1x108xf32>
    %270 = tpu.matmul %268, %269, %cst_283 {dimension_numbers = #tpu.dot_dimension_numbers<[1], [0], [0], [1], [0, 0, 1, 1], [], []>} : vector<1x32xf32>, vector<32x108xf32>, vector<1x108xf32> -> vector<1x108xf32>
    %271 = arith.addf %267, %270 : vector<1x108xf32>
    %c27 = arith.constant 27 : index
    %c0_284 = arith.constant 0 : index
    %272 = vector.load %arg23[%c27, %c0_284] : memref<96x32xf32, #tpu.memory_space<vmem>>, vector<1x32xf32>
    %c576 = arith.constant 576 : index
    %c0_285 = arith.constant 0 : index
    %273 = vector.load %arg8[%c576, %c0_285] : memref<800x108xf32, #tpu.memory_space<vmem>>, vector<32x108xf32>
    %cst_286 = arith.constant dense<0.000000e+00> : vector<1x108xf32>
    %274 = tpu.matmul %272, %273, %cst_286 {dimension_numbers = #tpu.dot_dimension_numbers<[1], [0], [0], [1], [0, 0, 1, 1], [], []>} : vector<1x32xf32>, vector<32x108xf32>, vector<1x108xf32> -> vector<1x108xf32>
    %275 = arith.addf %271, %274 : vector<1x108xf32>
    %c28 = arith.constant 28 : index
    %c0_287 = arith.constant 0 : index
    %276 = vector.load %arg23[%c28, %c0_287] : memref<96x32xf32, #tpu.memory_space<vmem>>, vector<1x32xf32>
    %c608 = arith.constant 608 : index
    %c0_288 = arith.constant 0 : index
    %277 = vector.load %arg8[%c608, %c0_288] : memref<800x108xf32, #tpu.memory_space<vmem>>, vector<32x108xf32>
    %cst_289 = arith.constant dense<0.000000e+00> : vector<1x108xf32>
    %278 = tpu.matmul %276, %277, %cst_289 {dimension_numbers = #tpu.dot_dimension_numbers<[1], [0], [0], [1], [0, 0, 1, 1], [], []>} : vector<1x32xf32>, vector<32x108xf32>, vector<1x108xf32> -> vector<1x108xf32>
    %279 = arith.addf %275, %278 : vector<1x108xf32>
    %c32_290 = arith.constant 32 : index
    %c0_291 = arith.constant 0 : index
    %280 = vector.load %arg23[%c32_290, %c0_291] : memref<96x32xf32, #tpu.memory_space<vmem>>, vector<1x32xf32>
    %c640 = arith.constant 640 : index
    %c0_292 = arith.constant 0 : index
    %281 = vector.load %arg8[%c640, %c0_292] : memref<800x108xf32, #tpu.memory_space<vmem>>, vector<32x108xf32>
    %cst_293 = arith.constant dense<0.000000e+00> : vector<1x108xf32>
    %282 = tpu.matmul %280, %281, %cst_293 {dimension_numbers = #tpu.dot_dimension_numbers<[1], [0], [0], [1], [0, 0, 1, 1], [], []>} : vector<1x32xf32>, vector<32x108xf32>, vector<1x108xf32> -> vector<1x108xf32>
    %283 = arith.addf %279, %282 : vector<1x108xf32>
    %c33_294 = arith.constant 33 : index
    %c0_295 = arith.constant 0 : index
    %284 = vector.load %arg23[%c33_294, %c0_295] : memref<96x32xf32, #tpu.memory_space<vmem>>, vector<1x32xf32>
    %c672 = arith.constant 672 : index
    %c0_296 = arith.constant 0 : index
    %285 = vector.load %arg8[%c672, %c0_296] : memref<800x108xf32, #tpu.memory_space<vmem>>, vector<32x108xf32>
    %cst_297 = arith.constant dense<0.000000e+00> : vector<1x108xf32>
    %286 = tpu.matmul %284, %285, %cst_297 {dimension_numbers = #tpu.dot_dimension_numbers<[1], [0], [0], [1], [0, 0, 1, 1], [], []>} : vector<1x32xf32>, vector<32x108xf32>, vector<1x108xf32> -> vector<1x108xf32>
    %287 = arith.addf %283, %286 : vector<1x108xf32>
    %c34_298 = arith.constant 34 : index
    %c0_299 = arith.constant 0 : index
    %288 = vector.load %arg23[%c34_298, %c0_299] : memref<96x32xf32, #tpu.memory_space<vmem>>, vector<1x32xf32>
    %c704 = arith.constant 704 : index
    %c0_300 = arith.constant 0 : index
    %289 = vector.load %arg8[%c704, %c0_300] : memref<800x108xf32, #tpu.memory_space<vmem>>, vector<32x108xf32>
    %cst_301 = arith.constant dense<0.000000e+00> : vector<1x108xf32>
    %290 = tpu.matmul %288, %289, %cst_301 {dimension_numbers = #tpu.dot_dimension_numbers<[1], [0], [0], [1], [0, 0, 1, 1], [], []>} : vector<1x32xf32>, vector<32x108xf32>, vector<1x108xf32> -> vector<1x108xf32>
    %291 = arith.addf %287, %290 : vector<1x108xf32>
    %c35 = arith.constant 35 : index
    %c0_302 = arith.constant 0 : index
    %292 = vector.load %arg23[%c35, %c0_302] : memref<96x32xf32, #tpu.memory_space<vmem>>, vector<1x32xf32>
    %c736 = arith.constant 736 : index
    %c0_303 = arith.constant 0 : index
    %293 = vector.load %arg8[%c736, %c0_303] : memref<800x108xf32, #tpu.memory_space<vmem>>, vector<32x108xf32>
    %cst_304 = arith.constant dense<0.000000e+00> : vector<1x108xf32>
    %294 = tpu.matmul %292, %293, %cst_304 {dimension_numbers = #tpu.dot_dimension_numbers<[1], [0], [0], [1], [0, 0, 1, 1], [], []>} : vector<1x32xf32>, vector<32x108xf32>, vector<1x108xf32> -> vector<1x108xf32>
    %295 = arith.addf %291, %294 : vector<1x108xf32>
    %c36_305 = arith.constant 36 : index
    %c0_306 = arith.constant 0 : index
    %296 = vector.load %arg23[%c36_305, %c0_306] : memref<96x32xf32, #tpu.memory_space<vmem>>, vector<1x32xf32>
    %c768 = arith.constant 768 : index
    %c0_307 = arith.constant 0 : index
    %297 = vector.load %arg8[%c768, %c0_307] : memref<800x108xf32, #tpu.memory_space<vmem>>, vector<32x108xf32>
    %cst_308 = arith.constant dense<0.000000e+00> : vector<1x108xf32>
    %298 = tpu.matmul %296, %297, %cst_308 {dimension_numbers = #tpu.dot_dimension_numbers<[1], [0], [0], [1], [0, 0, 1, 1], [], []>} : vector<1x32xf32>, vector<32x108xf32>, vector<1x108xf32> -> vector<1x108xf32>
    %299 = arith.addf %295, %298 : vector<1x108xf32>
    %300 = arith.addf %299, %196 : vector<1x108xf32>
    %cst_309 = arith.constant 0.000000e+00 : f32
    %301 = vector.broadcast %cst_309 : f32 to vector<1x108xf32>
    %302 = arith.maximumf %300, %301 : vector<1x108xf32>
    %cst_310 = arith.constant dense<0.000000e+00> : vector<1x84xf32>
    %303 = tpu.matmul %302, %199, %cst_310 {dimension_numbers = #tpu.dot_dimension_numbers<[1], [0], [0], [1], [0, 0, 1, 1], [], []>} : vector<1x108xf32>, vector<108x84xf32>, vector<1x84xf32> -> vector<1x84xf32>
    %304 = arith.addf %303, %197 : vector<1x84xf32>
    %cst_311 = arith.constant 0.000000e+00 : f32
    %305 = vector.broadcast %cst_311 : f32 to vector<1x84xf32>
    %306 = arith.maximumf %304, %305 : vector<1x84xf32>
    %cst_312 = arith.constant dense<0.000000e+00> : vector<1x10xf32>
    %307 = tpu.matmul %306, %200, %cst_312 {dimension_numbers = #tpu.dot_dimension_numbers<[1], [0], [0], [1], [0, 0, 1, 1], [], []>} : vector<1x84xf32>, vector<84x10xf32>, vector<1x10xf32> -> vector<1x10xf32>
    %308 = arith.addf %307, %198 : vector<1x10xf32>
    %cst_313 = arith.constant 0.000000e+00 : f32
    %309 = vector.broadcast %cst_313 : f32 to vector<1x10xf32>
    %310 = arith.maximumf %308, %309 : vector<1x10xf32>
    %c0_314 = arith.constant 0 : index
    %c0_315 = arith.constant 0 : index
    %311 = vector.load %arg18[%c0_314, %c0_315] : memref<2x10xf32, #tpu.memory_space<vmem>>, vector<1x10xf32>
    tpu.vector_store %arg18[%c0_314, %c0_315], %310 {strides = array<i32>} : memref<2x10xf32, #tpu.memory_space<vmem>>, vector<1x10xf32>,
    %c48_316 = arith.constant 48 : index
    %c0_317 = arith.constant 0 : index
    %312 = vector.load %arg23[%c48_316, %c0_317] : memref<96x32xf32, #tpu.memory_space<vmem>>, vector<1x32xf32>
    %c0_318 = arith.constant 0 : index
    %c0_319 = arith.constant 0 : index
    %313 = vector.load %arg8[%c0_318, %c0_319] : memref<800x108xf32, #tpu.memory_space<vmem>>, vector<32x108xf32>
    %cst_320 = arith.constant dense<0.000000e+00> : vector<1x108xf32>
    %314 = tpu.matmul %312, %313, %cst_320 {dimension_numbers = #tpu.dot_dimension_numbers<[1], [0], [0], [1], [0, 0, 1, 1], [], []>} : vector<1x32xf32>, vector<32x108xf32>, vector<1x108xf32> -> vector<1x108xf32>
    %c49 = arith.constant 49 : index
    %c0_321 = arith.constant 0 : index
    %315 = vector.load %arg23[%c49, %c0_321] : memref<96x32xf32, #tpu.memory_space<vmem>>, vector<1x32xf32>
    %c32_322 = arith.constant 32 : index
    %c0_323 = arith.constant 0 : index
    %316 = vector.load %arg8[%c32_322, %c0_323] : memref<800x108xf32, #tpu.memory_space<vmem>>, vector<32x108xf32>
    %cst_324 = arith.constant dense<0.000000e+00> : vector<1x108xf32>
    %317 = tpu.matmul %315, %316, %cst_324 {dimension_numbers = #tpu.dot_dimension_numbers<[1], [0], [0], [1], [0, 0, 1, 1], [], []>} : vector<1x32xf32>, vector<32x108xf32>, vector<1x108xf32> -> vector<1x108xf32>
    %318 = arith.addf %314, %317 : vector<1x108xf32>
    %c50 = arith.constant 50 : index
    %c0_325 = arith.constant 0 : index
    %319 = vector.load %arg23[%c50, %c0_325] : memref<96x32xf32, #tpu.memory_space<vmem>>, vector<1x32xf32>
    %c64_326 = arith.constant 64 : index
    %c0_327 = arith.constant 0 : index
    %320 = vector.load %arg8[%c64_326, %c0_327] : memref<800x108xf32, #tpu.memory_space<vmem>>, vector<32x108xf32>
    %cst_328 = arith.constant dense<0.000000e+00> : vector<1x108xf32>
    %321 = tpu.matmul %319, %320, %cst_328 {dimension_numbers = #tpu.dot_dimension_numbers<[1], [0], [0], [1], [0, 0, 1, 1], [], []>} : vector<1x32xf32>, vector<32x108xf32>, vector<1x108xf32> -> vector<1x108xf32>
    %322 = arith.addf %318, %321 : vector<1x108xf32>
    %c51 = arith.constant 51 : index
    %c0_329 = arith.constant 0 : index
    %323 = vector.load %arg23[%c51, %c0_329] : memref<96x32xf32, #tpu.memory_space<vmem>>, vector<1x32xf32>
    %c96_330 = arith.constant 96 : index
    %c0_331 = arith.constant 0 : index
    %324 = vector.load %arg8[%c96_330, %c0_331] : memref<800x108xf32, #tpu.memory_space<vmem>>, vector<32x108xf32>
    %cst_332 = arith.constant dense<0.000000e+00> : vector<1x108xf32>
    %325 = tpu.matmul %323, %324, %cst_332 {dimension_numbers = #tpu.dot_dimension_numbers<[1], [0], [0], [1], [0, 0, 1, 1], [], []>} : vector<1x32xf32>, vector<32x108xf32>, vector<1x108xf32> -> vector<1x108xf32>
    %326 = arith.addf %322, %325 : vector<1x108xf32>
    %c52 = arith.constant 52 : index
    %c0_333 = arith.constant 0 : index
    %327 = vector.load %arg23[%c52, %c0_333] : memref<96x32xf32, #tpu.memory_space<vmem>>, vector<1x32xf32>
    %c128_334 = arith.constant 128 : index
    %c0_335 = arith.constant 0 : index
    %328 = vector.load %arg8[%c128_334, %c0_335] : memref<800x108xf32, #tpu.memory_space<vmem>>, vector<32x108xf32>
    %cst_336 = arith.constant dense<0.000000e+00> : vector<1x108xf32>
    %329 = tpu.matmul %327, %328, %cst_336 {dimension_numbers = #tpu.dot_dimension_numbers<[1], [0], [0], [1], [0, 0, 1, 1], [], []>} : vector<1x32xf32>, vector<32x108xf32>, vector<1x108xf32> -> vector<1x108xf32>
    %330 = arith.addf %326, %329 : vector<1x108xf32>
    %c56 = arith.constant 56 : index
    %c0_337 = arith.constant 0 : index
    %331 = vector.load %arg23[%c56, %c0_337] : memref<96x32xf32, #tpu.memory_space<vmem>>, vector<1x32xf32>
    %c160_338 = arith.constant 160 : index
    %c0_339 = arith.constant 0 : index
    %332 = vector.load %arg8[%c160_338, %c0_339] : memref<800x108xf32, #tpu.memory_space<vmem>>, vector<32x108xf32>
    %cst_340 = arith.constant dense<0.000000e+00> : vector<1x108xf32>
    %333 = tpu.matmul %331, %332, %cst_340 {dimension_numbers = #tpu.dot_dimension_numbers<[1], [0], [0], [1], [0, 0, 1, 1], [], []>} : vector<1x32xf32>, vector<32x108xf32>, vector<1x108xf32> -> vector<1x108xf32>
    %334 = arith.addf %330, %333 : vector<1x108xf32>
    %c57 = arith.constant 57 : index
    %c0_341 = arith.constant 0 : index
    %335 = vector.load %arg23[%c57, %c0_341] : memref<96x32xf32, #tpu.memory_space<vmem>>, vector<1x32xf32>
    %c192_342 = arith.constant 192 : index
    %c0_343 = arith.constant 0 : index
    %336 = vector.load %arg8[%c192_342, %c0_343] : memref<800x108xf32, #tpu.memory_space<vmem>>, vector<32x108xf32>
    %cst_344 = arith.constant dense<0.000000e+00> : vector<1x108xf32>
    %337 = tpu.matmul %335, %336, %cst_344 {dimension_numbers = #tpu.dot_dimension_numbers<[1], [0], [0], [1], [0, 0, 1, 1], [], []>} : vector<1x32xf32>, vector<32x108xf32>, vector<1x108xf32> -> vector<1x108xf32>
    %338 = arith.addf %334, %337 : vector<1x108xf32>
    %c58 = arith.constant 58 : index
    %c0_345 = arith.constant 0 : index
    %339 = vector.load %arg23[%c58, %c0_345] : memref<96x32xf32, #tpu.memory_space<vmem>>, vector<1x32xf32>
    %c224_346 = arith.constant 224 : index
    %c0_347 = arith.constant 0 : index
    %340 = vector.load %arg8[%c224_346, %c0_347] : memref<800x108xf32, #tpu.memory_space<vmem>>, vector<32x108xf32>
    %cst_348 = arith.constant dense<0.000000e+00> : vector<1x108xf32>
    %341 = tpu.matmul %339, %340, %cst_348 {dimension_numbers = #tpu.dot_dimension_numbers<[1], [0], [0], [1], [0, 0, 1, 1], [], []>} : vector<1x32xf32>, vector<32x108xf32>, vector<1x108xf32> -> vector<1x108xf32>
    %342 = arith.addf %338, %341 : vector<1x108xf32>
    %c59 = arith.constant 59 : index
    %c0_349 = arith.constant 0 : index
    %343 = vector.load %arg23[%c59, %c0_349] : memref<96x32xf32, #tpu.memory_space<vmem>>, vector<1x32xf32>
    %c256_350 = arith.constant 256 : index
    %c0_351 = arith.constant 0 : index
    %344 = vector.load %arg8[%c256_350, %c0_351] : memref<800x108xf32, #tpu.memory_space<vmem>>, vector<32x108xf32>
    %cst_352 = arith.constant dense<0.000000e+00> : vector<1x108xf32>
    %345 = tpu.matmul %343, %344, %cst_352 {dimension_numbers = #tpu.dot_dimension_numbers<[1], [0], [0], [1], [0, 0, 1, 1], [], []>} : vector<1x32xf32>, vector<32x108xf32>, vector<1x108xf32> -> vector<1x108xf32>
    %346 = arith.addf %342, %345 : vector<1x108xf32>
    %c60_353 = arith.constant 60 : index
    %c0_354 = arith.constant 0 : index
    %347 = vector.load %arg23[%c60_353, %c0_354] : memref<96x32xf32, #tpu.memory_space<vmem>>, vector<1x32xf32>
    %c288_355 = arith.constant 288 : index
    %c0_356 = arith.constant 0 : index
    %348 = vector.load %arg8[%c288_355, %c0_356] : memref<800x108xf32, #tpu.memory_space<vmem>>, vector<32x108xf32>
    %cst_357 = arith.constant dense<0.000000e+00> : vector<1x108xf32>
    %349 = tpu.matmul %347, %348, %cst_357 {dimension_numbers = #tpu.dot_dimension_numbers<[1], [0], [0], [1], [0, 0, 1, 1], [], []>} : vector<1x32xf32>, vector<32x108xf32>, vector<1x108xf32> -> vector<1x108xf32>
    %350 = arith.addf %346, %349 : vector<1x108xf32>
    %c64_358 = arith.constant 64 : index
    %c0_359 = arith.constant 0 : index
    %351 = vector.load %arg23[%c64_358, %c0_359] : memref<96x32xf32, #tpu.memory_space<vmem>>, vector<1x32xf32>
    %c320_360 = arith.constant 320 : index
    %c0_361 = arith.constant 0 : index
    %352 = vector.load %arg8[%c320_360, %c0_361] : memref<800x108xf32, #tpu.memory_space<vmem>>, vector<32x108xf32>
    %cst_362 = arith.constant dense<0.000000e+00> : vector<1x108xf32>
    %353 = tpu.matmul %351, %352, %cst_362 {dimension_numbers = #tpu.dot_dimension_numbers<[1], [0], [0], [1], [0, 0, 1, 1], [], []>} : vector<1x32xf32>, vector<32x108xf32>, vector<1x108xf32> -> vector<1x108xf32>
    %354 = arith.addf %350, %353 : vector<1x108xf32>
    %c65 = arith.constant 65 : index
    %c0_363 = arith.constant 0 : index
    %355 = vector.load %arg23[%c65, %c0_363] : memref<96x32xf32, #tpu.memory_space<vmem>>, vector<1x32xf32>
    %c352_364 = arith.constant 352 : index
    %c0_365 = arith.constant 0 : index
    %356 = vector.load %arg8[%c352_364, %c0_365] : memref<800x108xf32, #tpu.memory_space<vmem>>, vector<32x108xf32>
    %cst_366 = arith.constant dense<0.000000e+00> : vector<1x108xf32>
    %357 = tpu.matmul %355, %356, %cst_366 {dimension_numbers = #tpu.dot_dimension_numbers<[1], [0], [0], [1], [0, 0, 1, 1], [], []>} : vector<1x32xf32>, vector<32x108xf32>, vector<1x108xf32> -> vector<1x108xf32>
    %358 = arith.addf %354, %357 : vector<1x108xf32>
    %c66 = arith.constant 66 : index
    %c0_367 = arith.constant 0 : index
    %359 = vector.load %arg23[%c66, %c0_367] : memref<96x32xf32, #tpu.memory_space<vmem>>, vector<1x32xf32>
    %c384_368 = arith.constant 384 : index
    %c0_369 = arith.constant 0 : index
    %360 = vector.load %arg8[%c384_368, %c0_369] : memref<800x108xf32, #tpu.memory_space<vmem>>, vector<32x108xf32>
    %cst_370 = arith.constant dense<0.000000e+00> : vector<1x108xf32>
    %361 = tpu.matmul %359, %360, %cst_370 {dimension_numbers = #tpu.dot_dimension_numbers<[1], [0], [0], [1], [0, 0, 1, 1], [], []>} : vector<1x32xf32>, vector<32x108xf32>, vector<1x108xf32> -> vector<1x108xf32>
    %362 = arith.addf %358, %361 : vector<1x108xf32>
    %c67 = arith.constant 67 : index
    %c0_371 = arith.constant 0 : index
    %363 = vector.load %arg23[%c67, %c0_371] : memref<96x32xf32, #tpu.memory_space<vmem>>, vector<1x32xf32>
    %c416_372 = arith.constant 416 : index
    %c0_373 = arith.constant 0 : index
    %364 = vector.load %arg8[%c416_372, %c0_373] : memref<800x108xf32, #tpu.memory_space<vmem>>, vector<32x108xf32>
    %cst_374 = arith.constant dense<0.000000e+00> : vector<1x108xf32>
    %365 = tpu.matmul %363, %364, %cst_374 {dimension_numbers = #tpu.dot_dimension_numbers<[1], [0], [0], [1], [0, 0, 1, 1], [], []>} : vector<1x32xf32>, vector<32x108xf32>, vector<1x108xf32> -> vector<1x108xf32>
    %366 = arith.addf %362, %365 : vector<1x108xf32>
    %c68 = arith.constant 68 : index
    %c0_375 = arith.constant 0 : index
    %367 = vector.load %arg23[%c68, %c0_375] : memref<96x32xf32, #tpu.memory_space<vmem>>, vector<1x32xf32>
    %c448_376 = arith.constant 448 : index
    %c0_377 = arith.constant 0 : index
    %368 = vector.load %arg8[%c448_376, %c0_377] : memref<800x108xf32, #tpu.memory_space<vmem>>, vector<32x108xf32>
    %cst_378 = arith.constant dense<0.000000e+00> : vector<1x108xf32>
    %369 = tpu.matmul %367, %368, %cst_378 {dimension_numbers = #tpu.dot_dimension_numbers<[1], [0], [0], [1], [0, 0, 1, 1], [], []>} : vector<1x32xf32>, vector<32x108xf32>, vector<1x108xf32> -> vector<1x108xf32>
    %370 = arith.addf %366, %369 : vector<1x108xf32>
    %c72_379 = arith.constant 72 : index
    %c0_380 = arith.constant 0 : index
    %371 = vector.load %arg23[%c72_379, %c0_380] : memref<96x32xf32, #tpu.memory_space<vmem>>, vector<1x32xf32>
    %c480_381 = arith.constant 480 : index
    %c0_382 = arith.constant 0 : index
    %372 = vector.load %arg8[%c480_381, %c0_382] : memref<800x108xf32, #tpu.memory_space<vmem>>, vector<32x108xf32>
    %cst_383 = arith.constant dense<0.000000e+00> : vector<1x108xf32>
    %373 = tpu.matmul %371, %372, %cst_383 {dimension_numbers = #tpu.dot_dimension_numbers<[1], [0], [0], [1], [0, 0, 1, 1], [], []>} : vector<1x32xf32>, vector<32x108xf32>, vector<1x108xf32> -> vector<1x108xf32>
    %374 = arith.addf %370, %373 : vector<1x108xf32>
    %c73 = arith.constant 73 : index
    %c0_384 = arith.constant 0 : index
    %375 = vector.load %arg23[%c73, %c0_384] : memref<96x32xf32, #tpu.memory_space<vmem>>, vector<1x32xf32>
    %c512_385 = arith.constant 512 : index
    %c0_386 = arith.constant 0 : index
    %376 = vector.load %arg8[%c512_385, %c0_386] : memref<800x108xf32, #tpu.memory_space<vmem>>, vector<32x108xf32>
    %cst_387 = arith.constant dense<0.000000e+00> : vector<1x108xf32>
    %377 = tpu.matmul %375, %376, %cst_387 {dimension_numbers = #tpu.dot_dimension_numbers<[1], [0], [0], [1], [0, 0, 1, 1], [], []>} : vector<1x32xf32>, vector<32x108xf32>, vector<1x108xf32> -> vector<1x108xf32>
    %378 = arith.addf %374, %377 : vector<1x108xf32>
    %c74 = arith.constant 74 : index
    %c0_388 = arith.constant 0 : index
    %379 = vector.load %arg23[%c74, %c0_388] : memref<96x32xf32, #tpu.memory_space<vmem>>, vector<1x32xf32>
    %c544_389 = arith.constant 544 : index
    %c0_390 = arith.constant 0 : index
    %380 = vector.load %arg8[%c544_389, %c0_390] : memref<800x108xf32, #tpu.memory_space<vmem>>, vector<32x108xf32>
    %cst_391 = arith.constant dense<0.000000e+00> : vector<1x108xf32>
    %381 = tpu.matmul %379, %380, %cst_391 {dimension_numbers = #tpu.dot_dimension_numbers<[1], [0], [0], [1], [0, 0, 1, 1], [], []>} : vector<1x32xf32>, vector<32x108xf32>, vector<1x108xf32> -> vector<1x108xf32>
    %382 = arith.addf %378, %381 : vector<1x108xf32>
    %c75 = arith.constant 75 : index
    %c0_392 = arith.constant 0 : index
    %383 = vector.load %arg23[%c75, %c0_392] : memref<96x32xf32, #tpu.memory_space<vmem>>, vector<1x32xf32>
    %c576_393 = arith.constant 576 : index
    %c0_394 = arith.constant 0 : index
    %384 = vector.load %arg8[%c576_393, %c0_394] : memref<800x108xf32, #tpu.memory_space<vmem>>, vector<32x108xf32>
    %cst_395 = arith.constant dense<0.000000e+00> : vector<1x108xf32>
    %385 = tpu.matmul %383, %384, %cst_395 {dimension_numbers = #tpu.dot_dimension_numbers<[1], [0], [0], [1], [0, 0, 1, 1], [], []>} : vector<1x32xf32>, vector<32x108xf32>, vector<1x108xf32> -> vector<1x108xf32>
    %386 = arith.addf %382, %385 : vector<1x108xf32>
    %c76 = arith.constant 76 : index
    %c0_396 = arith.constant 0 : index
    %387 = vector.load %arg23[%c76, %c0_396] : memref<96x32xf32, #tpu.memory_space<vmem>>, vector<1x32xf32>
    %c608_397 = arith.constant 608 : index
    %c0_398 = arith.constant 0 : index
    %388 = vector.load %arg8[%c608_397, %c0_398] : memref<800x108xf32, #tpu.memory_space<vmem>>, vector<32x108xf32>
    %cst_399 = arith.constant dense<0.000000e+00> : vector<1x108xf32>
    %389 = tpu.matmul %387, %388, %cst_399 {dimension_numbers = #tpu.dot_dimension_numbers<[1], [0], [0], [1], [0, 0, 1, 1], [], []>} : vector<1x32xf32>, vector<32x108xf32>, vector<1x108xf32> -> vector<1x108xf32>
    %390 = arith.addf %386, %389 : vector<1x108xf32>
    %c80 = arith.constant 80 : index
    %c0_400 = arith.constant 0 : index
    %391 = vector.load %arg23[%c80, %c0_400] : memref<96x32xf32, #tpu.memory_space<vmem>>, vector<1x32xf32>
    %c640_401 = arith.constant 640 : index
    %c0_402 = arith.constant 0 : index
    %392 = vector.load %arg8[%c640_401, %c0_402] : memref<800x108xf32, #tpu.memory_space<vmem>>, vector<32x108xf32>
    %cst_403 = arith.constant dense<0.000000e+00> : vector<1x108xf32>
    %393 = tpu.matmul %391, %392, %cst_403 {dimension_numbers = #tpu.dot_dimension_numbers<[1], [0], [0], [1], [0, 0, 1, 1], [], []>} : vector<1x32xf32>, vector<32x108xf32>, vector<1x108xf32> -> vector<1x108xf32>
    %394 = arith.addf %390, %393 : vector<1x108xf32>
    %c81 = arith.constant 81 : index
    %c0_404 = arith.constant 0 : index
    %395 = vector.load %arg23[%c81, %c0_404] : memref<96x32xf32, #tpu.memory_space<vmem>>, vector<1x32xf32>
    %c672_405 = arith.constant 672 : index
    %c0_406 = arith.constant 0 : index
    %396 = vector.load %arg8[%c672_405, %c0_406] : memref<800x108xf32, #tpu.memory_space<vmem>>, vector<32x108xf32>
    %cst_407 = arith.constant dense<0.000000e+00> : vector<1x108xf32>
    %397 = tpu.matmul %395, %396, %cst_407 {dimension_numbers = #tpu.dot_dimension_numbers<[1], [0], [0], [1], [0, 0, 1, 1], [], []>} : vector<1x32xf32>, vector<32x108xf32>, vector<1x108xf32> -> vector<1x108xf32>
    %398 = arith.addf %394, %397 : vector<1x108xf32>
    %c82 = arith.constant 82 : index
    %c0_408 = arith.constant 0 : index
    %399 = vector.load %arg23[%c82, %c0_408] : memref<96x32xf32, #tpu.memory_space<vmem>>, vector<1x32xf32>
    %c704_409 = arith.constant 704 : index
    %c0_410 = arith.constant 0 : index
    %400 = vector.load %arg8[%c704_409, %c0_410] : memref<800x108xf32, #tpu.memory_space<vmem>>, vector<32x108xf32>
    %cst_411 = arith.constant dense<0.000000e+00> : vector<1x108xf32>
    %401 = tpu.matmul %399, %400, %cst_411 {dimension_numbers = #tpu.dot_dimension_numbers<[1], [0], [0], [1], [0, 0, 1, 1], [], []>} : vector<1x32xf32>, vector<32x108xf32>, vector<1x108xf32> -> vector<1x108xf32>
    %402 = arith.addf %398, %401 : vector<1x108xf32>
    %c83 = arith.constant 83 : index
    %c0_412 = arith.constant 0 : index
    %403 = vector.load %arg23[%c83, %c0_412] : memref<96x32xf32, #tpu.memory_space<vmem>>, vector<1x32xf32>
    %c736_413 = arith.constant 736 : index
    %c0_414 = arith.constant 0 : index
    %404 = vector.load %arg8[%c736_413, %c0_414] : memref<800x108xf32, #tpu.memory_space<vmem>>, vector<32x108xf32>
    %cst_415 = arith.constant dense<0.000000e+00> : vector<1x108xf32>
    %405 = tpu.matmul %403, %404, %cst_415 {dimension_numbers = #tpu.dot_dimension_numbers<[1], [0], [0], [1], [0, 0, 1, 1], [], []>} : vector<1x32xf32>, vector<32x108xf32>, vector<1x108xf32> -> vector<1x108xf32>
    %406 = arith.addf %402, %405 : vector<1x108xf32>
    %c84_416 = arith.constant 84 : index
    %c0_417 = arith.constant 0 : index
    %407 = vector.load %arg23[%c84_416, %c0_417] : memref<96x32xf32, #tpu.memory_space<vmem>>, vector<1x32xf32>
    %c768_418 = arith.constant 768 : index
    %c0_419 = arith.constant 0 : index
    %408 = vector.load %arg8[%c768_418, %c0_419] : memref<800x108xf32, #tpu.memory_space<vmem>>, vector<32x108xf32>
    %cst_420 = arith.constant dense<0.000000e+00> : vector<1x108xf32>
    %409 = tpu.matmul %407, %408, %cst_420 {dimension_numbers = #tpu.dot_dimension_numbers<[1], [0], [0], [1], [0, 0, 1, 1], [], []>} : vector<1x32xf32>, vector<32x108xf32>, vector<1x108xf32> -> vector<1x108xf32>
    %410 = arith.addf %406, %409 : vector<1x108xf32>
    %411 = arith.addf %410, %196 : vector<1x108xf32>
    %cst_421 = arith.constant 0.000000e+00 : f32
    %412 = vector.broadcast %cst_421 : f32 to vector<1x108xf32>
    %413 = arith.maximumf %411, %412 : vector<1x108xf32>
    %cst_422 = arith.constant dense<0.000000e+00> : vector<1x84xf32>
    %414 = tpu.matmul %413, %199, %cst_422 {dimension_numbers = #tpu.dot_dimension_numbers<[1], [0], [0], [1], [0, 0, 1, 1], [], []>} : vector<1x108xf32>, vector<108x84xf32>, vector<1x84xf32> -> vector<1x84xf32>
    %415 = arith.addf %414, %197 : vector<1x84xf32>
    %cst_423 = arith.constant 0.000000e+00 : f32
    %416 = vector.broadcast %cst_423 : f32 to vector<1x84xf32>
    %417 = arith.maximumf %415, %416 : vector<1x84xf32>
    %cst_424 = arith.constant dense<0.000000e+00> : vector<1x10xf32>
    %418 = tpu.matmul %417, %200, %cst_424 {dimension_numbers = #tpu.dot_dimension_numbers<[1], [0], [0], [1], [0, 0, 1, 1], [], []>} : vector<1x84xf32>, vector<84x10xf32>, vector<1x10xf32> -> vector<1x10xf32>
    %419 = arith.addf %418, %198 : vector<1x10xf32>
    %cst_425 = arith.constant 0.000000e+00 : f32
    %420 = vector.broadcast %cst_425 : f32 to vector<1x10xf32>
    %421 = arith.maximumf %419, %420 : vector<1x10xf32>
    %c1_426 = arith.constant 1 : index
    %c0_427 = arith.constant 0 : index
    %422 = vector.load %arg18[%c1_426, %c0_427] : memref<2x10xf32, #tpu.memory_space<vmem>>, vector<1x10xf32>
    tpu.vector_store %arg18[%c1_426, %c0_427], %421 {strides = array<i32>} : memref<2x10xf32, #tpu.memory_space<vmem>>, vector<1x10xf32>,
    return
  }
  func.func @transform_0(%arg0: i32) -> (i32, i32) {
    %c0_i32 = arith.constant 0 : i32
    %c0_i32_0 = arith.constant 0 : i32
    %c0_i32_1 = arith.constant 0 : i32
    return %c0_i32, %c0_i32_0 : i32, i32
  }
  func.func @transform_1(%arg0: i32) -> (i32, i32) {
    %c0_i32 = arith.constant 0 : i32
    %c0_i32_0 = arith.constant 0 : i32
    %c0_i32_1 = arith.constant 0 : i32
    return %c0_i32, %c0_i32_0 : i32, i32
  }
  func.func @transform_2(%arg0: i32) -> (i32, i32) {
    %c0_i32 = arith.constant 0 : i32
    %c0_i32_0 = arith.constant 0 : i32
    %c0_i32_1 = arith.constant 0 : i32
    return %c0_i32, %c0_i32_0 : i32, i32
  }
  func.func @transform_3(%arg0: i32) -> (i32, i32) {
    %c0_i32 = arith.constant 0 : i32
    %c0_i32_0 = arith.constant 0 : i32
    %c0_i32_1 = arith.constant 0 : i32
    return %c0_i32, %c0_i32_0 : i32, i32
  }
  func.func @transform_4(%arg0: i32) -> (i32, i32) {
    %c0_i32 = arith.constant 0 : i32
    %c0_i32_0 = arith.constant 0 : i32
    %c0_i32_1 = arith.constant 0 : i32
    return %c0_i32, %c0_i32_0 : i32, i32
  }
  func.func @transform_5(%arg0: i32) -> (i32, i32) {
    %c0_i32 = arith.constant 0 : i32
    %c0_i32_0 = arith.constant 0 : i32
    %c0_i32_1 = arith.constant 0 : i32
    return %c0_i32, %c0_i32_0 : i32, i32
  }
  func.func @transform_6(%arg0: i32) -> (i32, i32) {
    %c0_i32 = arith.constant 0 : i32
    %c0_i32_0 = arith.constant 0 : i32
    %c0_i32_1 = arith.constant 0 : i32
    return %c0_i32, %c0_i32_0 : i32, i32
  }
  func.func @transform_7(%arg0: i32) -> (i32, i32) {
    %c0_i32 = arith.constant 0 : i32
    %c0_i32_0 = arith.constant 0 : i32
    %c0_i32_1 = arith.constant 0 : i32
    return %c0_i32, %c0_i32_0 : i32, i32
  }
  func.func @transform_8(%arg0: i32) -> (i32, i32) {
    %c0_i32 = arith.constant 0 : i32
    %c0_i32_0 = arith.constant 0 : i32
    %c0_i32_1 = arith.constant 0 : i32
    return %c0_i32, %c0_i32_0 : i32, i32
  }
  func.func @transform_9(%arg0: i32) -> (i32, i32) {
    %c0_i32 = arith.constant 0 : i32
    %c0_i32_0 = arith.constant 0 : i32
    %c0_i32_1 = arith.constant 0 : i32
    return %c0_i32, %c0_i32_0 : i32, i32
  }
  func.func @transform_10(%arg0: i32) -> (i32, i32) {
    %c0_i32 = arith.constant 0 : i32
    %c0_i32_0 = arith.constant 0 : i32
    %c0_i32_1 = arith.constant 0 : i32
    return %c0_i32, %c0_i32_0 : i32, i32
  }
  func.func @transform_11(%arg0: i32) -> (i32, i32) {
    %c0_i32 = arith.constant 0 : i32
    %c0_i32_0 = arith.constant 0 : i32
    %c0_i32_1 = arith.constant 0 : i32
    return %c0_i32, %c0_i32_0 : i32, i32
  }
  func.func @transform_12(%arg0: i32) -> (i32, i32) {
    %c0_i32 = arith.constant 0 : i32
    %c0_i32_0 = arith.constant 0 : i32
    %c0_i32_1 = arith.constant 0 : i32
    return %c0_i32, %c0_i32_0 : i32, i32
  }
  func.func @transform_13(%arg0: i32) -> (i32, i32) {
    %c0_i32 = arith.constant 0 : i32
    %c0_i32_0 = arith.constant 0 : i32
    %c0_i32_1 = arith.constant 0 : i32
    return %c0_i32, %c0_i32_0 : i32, i32
  }
  func.func @transform_14(%arg0: i32) -> (i32, i32) {
    %c0_i32 = arith.constant 0 : i32
    %c0_i32_0 = arith.constant 0 : i32
    %c0_i32_1 = arith.constant 0 : i32
    return %c0_i32, %c0_i32_0 : i32, i32
  }
  func.func @transform_15(%arg0: i32) -> (i32, i32) {
    %c0_i32 = arith.constant 0 : i32
    %c0_i32_0 = arith.constant 0 : i32
    %c0_i32_1 = arith.constant 0 : i32
    return %c0_i32, %c0_i32_0 : i32, i32
  }
  func.func @transform_16(%arg0: i32) -> (i32, i32) {
    %c0_i32 = arith.constant 0 : i32
    %c0_i32_0 = arith.constant 0 : i32
    %c0_i32_1 = arith.constant 0 : i32
    return %c0_i32, %c0_i32_0 : i32, i32
  }
  func.func @transform_17(%arg0: i32) -> (i32, i32) {
    %c0_i32 = arith.constant 0 : i32
    %c0_i32_0 = arith.constant 0 : i32
    %c0_i32_1 = arith.constant 0 : i32
    return %c0_i32, %c0_i32_0 : i32, i32
  }
}

</mosaic_0001>

<llo_original>
// kernel: mynet_forward.1
$region0: #{mynet_forward.1}
  #allocation0 [shape = 'u32[]', space=smem, size = 0x4, offset = 0x4, fixed_abs, tag = 'smem constant byte address 0x4 - core index']
  #allocation1 [shape = 'u32[72,128]{1,0:T(1,128)}', space=vmem, size = 0x9000, scoped, tag = 'internal scratch']
  #allocation2 [shape = 'f32[2048,12]{1,0:T(8,128)}', space=vmem, size = 0x100000, scoped, tag = 'scratch operand']
  #allocation3 [shape = 'f32[488,12]{1,0:T(8,128)}', space=vmem, size = 0x3d000, scoped, tag = 'scratch operand']
  #allocation4 [shape = 'f32[448,24]{1,0:T(8,128)}', space=vmem, size = 0x38000, scoped, tag = 'scratch operand']
  #allocation5 [shape = 'f32[112,24]{1,0:T(8,128)}', space=vmem, size = 0xe000, scoped, tag = 'scratch operand']
  #allocation6 [shape = 'f32[96,32]{1,0:T(8,128)}', space=vmem, size = 0xc000, scoped, tag = 'scratch operand']
  %s0 = inlined_call_operand.vmem [shape: f32[2176,15], index: 0, kind: input, shape index: {}]
  %s1 = inlined_call_operand.vmem [shape: f32[75,12], index: 1, kind: input, shape index: {}]
  %s2 = inlined_call_operand.vmem [shape: f32[1,12], index: 2, kind: input, shape index: {}]
  %s3 = inlined_call_operand.vmem [shape: f32[108,24], index: 3, kind: input, shape index: {}]
  %s4 = inlined_call_operand.vmem [shape: f32[1,24], index: 4, kind: input, shape index: {}]
  %s5 = inlined_call_operand.vmem [shape: f32[96,32], index: 5, kind: input, shape index: {}]
  %s6 = inlined_call_operand.vmem [shape: f32[1,32], index: 6, kind: input, shape index: {}]
  %s7 = inlined_call_operand.vmem [shape: f32[800,108], index: 7, kind: input, shape index: {}]
  %s8 = inlined_call_operand.vmem [shape: f32[1,108], index: 8, kind: input, shape index: {}]
  %s9 = inlined_call_operand.vmem [shape: f32[108,84], index: 9, kind: input, shape index: {}]
  %s10 = inlined_call_operand.vmem [shape: f32[1,84], index: 10, kind: input, shape index: {}]
  %s11 = inlined_call_operand.vmem [shape: f32[84,10], index: 11, kind: input, shape index: {}]
  %s12 = inlined_call_operand.vmem [shape: f32[1,10], index: 12, kind: input, shape index: {}]
  %s13 = inlined_call_operand.vmem [shape: f32[14,28], index: 13, kind: input, shape index: {}]
  %s14 = inlined_call_operand.vmem [shape: f32[14,28], index: 14, kind: input, shape index: {}]
  %s15 = inlined_call_operand.vmem [shape: f32[6,12], index: 15, kind: input, shape index: {}]
  %s16 = inlined_call_operand.vmem [shape: f32[6,12], index: 16, kind: input, shape index: {}]
  %s17 = inlined_call_operand.hbm [shape: f32[2,10], index: 17, kind: output, shape index: {}]
  %s18 = sld [smem:[#allocation0]]
  $region113: #{mynet_forward.1} parent=0
    _
  %s20 = ssub.s32 1, %s18
  %s21 = scalar_select 0, %s20, %s18
  $region1: #{mynet_forward.1} parent=0
    #allocation7 [shape = 'u8[1024]{0}', space=vmem, size = 0x400, scoped, tag = 'output window, operand 0, single buffered']
    #allocation8 [shape = 's32[1]{0}', space=sflag, size = 0x4, scoped, tag = 'scoped memory for mynet_forward.1']
    %22 = vsyncpa [#allocation8], 0
    // Predicated region
    $region2: #{mynet_forward.1} parent=1 // pred_check
      _
    $region3: #{mynet_forward.1} parent=1 // pred_check_branch
      %24 = sbr.rel (0) target = $region5
    $region4: #{mynet_forward.1} parent=1 // pred_region
      _
    $region5: #{mynet_forward.1} parent=1 // pred_fallthru
      _
    // Predicated region
    $region6: #{mynet_forward.1} parent=1 // pred_check
      _
    $region7: #{mynet_forward.1} parent=1 // pred_check_branch
      %26 = sbr.rel (0) target = $region9
    $region8: #{mynet_forward.1} parent=1 // pred_region
      _
    $region9: #{mynet_forward.1} parent=1 // pred_fallthru
      _
    // Predicated region
    $region10: #{mynet_forward.1} parent=1 // pred_check
      _
    $region11: #{mynet_forward.1} parent=1 // pred_check_branch
      %28 = sbr.rel (0) target = $region13
    $region12: #{mynet_forward.1} parent=1 // pred_region
      _
    $region13: #{mynet_forward.1} parent=1 // pred_fallthru
      _
    // Predicated region
    $region14: #{mynet_forward.1} parent=1 // pred_check
      _
    $region15: #{mynet_forward.1} parent=1 // pred_check_branch
      %30 = sbr.rel (0) target = $region17
    $region16: #{mynet_forward.1} parent=1 // pred_region
      _
    $region17: #{mynet_forward.1} parent=1 // pred_fallthru
      _
    // Predicated region
    $region18: #{mynet_forward.1} parent=1 // pred_check
      _
    $region19: #{mynet_forward.1} parent=1 // pred_check_branch
      %32 = sbr.rel (0) target = $region21
    $region20: #{mynet_forward.1} parent=1 // pred_region
      _
    $region21: #{mynet_forward.1} parent=1 // pred_fallthru
      _
    // Predicated region
    $region22: #{mynet_forward.1} parent=1 // pred_check
      _
    $region23: #{mynet_forward.1} parent=1 // pred_check_branch
      %34 = sbr.rel (0) target = $region25
    $region24: #{mynet_forward.1} parent=1 // pred_region
      _
    $region25: #{mynet_forward.1} parent=1 // pred_fallthru
      _
    // Predicated region
    $region26: #{mynet_forward.1} parent=1 // pred_check
      _
    $region27: #{mynet_forward.1} parent=1 // pred_check_branch
      %36 = sbr.rel (0) target = $region29
    $region28: #{mynet_forward.1} parent=1 // pred_region
      _
    $region29: #{mynet_forward.1} parent=1 // pred_fallthru
      _
    // Predicated region
    $region30: #{mynet_forward.1} parent=1 // pred_check
      _
    $region31: #{mynet_forward.1} parent=1 // pred_check_branch
      %38 = sbr.rel (0) target = $region33
    $region32: #{mynet_forward.1} parent=1 // pred_region
      _
    $region33: #{mynet_forward.1} parent=1 // pred_fallthru
      _
    // Predicated region
    $region34: #{mynet_forward.1} parent=1 // pred_check
      _
    $region35: #{mynet_forward.1} parent=1 // pred_check_branch
      %40 = sbr.rel (0) target = $region37
    $region36: #{mynet_forward.1} parent=1 // pred_region
      _
    $region37: #{mynet_forward.1} parent=1 // pred_fallthru
      _
    // Predicated region
    $region38: #{mynet_forward.1} parent=1 // pred_check
      _
    $region39: #{mynet_forward.1} parent=1 // pred_check_branch
      %42 = sbr.rel (0) target = $region41
    $region40: #{mynet_forward.1} parent=1 // pred_region
      _
    $region41: #{mynet_forward.1} parent=1 // pred_fallthru
      _
    // Predicated region
    $region42: #{mynet_forward.1} parent=1 // pred_check
      _
    $region43: #{mynet_forward.1} parent=1 // pred_check_branch
      %44 = sbr.rel (0) target = $region45
    $region44: #{mynet_forward.1} parent=1 // pred_region
      _
    $region45: #{mynet_forward.1} parent=1 // pred_fallthru
      _
    // Predicated region
    $region46: #{mynet_forward.1} parent=1 // pred_check
      _
    $region47: #{mynet_forward.1} parent=1 // pred_check_branch
      %46 = sbr.rel (0) target = $region49
    $region48: #{mynet_forward.1} parent=1 // pred_region
      _
    $region49: #{mynet_forward.1} parent=1 // pred_fallthru
      _
    // Predicated region
    $region50: #{mynet_forward.1} parent=1 // pred_check
      _
    $region51: #{mynet_forward.1} parent=1 // pred_check_branch
      %48 = sbr.rel (0) target = $region53
    $region52: #{mynet_forward.1} parent=1 // pred_region
      _
    $region53: #{mynet_forward.1} parent=1 // pred_fallthru
      _
    // Predicated region
    $region54: #{mynet_forward.1} parent=1 // pred_check
      _
    $region55: #{mynet_forward.1} parent=1 // pred_check_branch
      %50 = sbr.rel (0) target = $region57
    $region56: #{mynet_forward.1} parent=1 // pred_region
      _
    $region57: #{mynet_forward.1} parent=1 // pred_fallthru
      _
    // Predicated region
    $region58: #{mynet_forward.1} parent=1 // pred_check
      _
    $region59: #{mynet_forward.1} parent=1 // pred_check_branch
      %52 = sbr.rel (0) target = $region61
    $region60: #{mynet_forward.1} parent=1 // pred_region
      _
    $region61: #{mynet_forward.1} parent=1 // pred_fallthru
      _
    // Predicated region
    $region62: #{mynet_forward.1} parent=1 // pred_check
      _
    $region63: #{mynet_forward.1} parent=1 // pred_check_branch
      %54 = sbr.rel (0) target = $region65
    $region64: #{mynet_forward.1} parent=1 // pred_region
      _
    $region65: #{mynet_forward.1} parent=1 // pred_fallthru
      _
    // Predicated region
    $region66: #{mynet_forward.1} parent=1 // pred_check
      _
    $region67: #{mynet_forward.1} parent=1 // pred_check_branch
      %56 = sbr.rel (0) target = $region69
    $region68: #{mynet_forward.1} parent=1 // pred_region
      _
    $region69: #{mynet_forward.1} parent=1 // pred_fallthru
      _
    %vm57 = vcmask 97280
    %58 = vst.msk [vmem:[#allocation3] sm:$0xff] %vm57, 0.0
    %59 = vst.msk [vmem:[#allocation3 + $0x8] sm:$0xff] %vm57, 0.0
    %60 = vst.msk [vmem:[#allocation3 + $0x10] sm:$0xff] %vm57, 0.0
    %61 = vst.msk [vmem:[#allocation3 + $0x18] sm:$0xff] %vm57, 0.0
    %62 = vst.msk [vmem:[#allocation3 + $0x20] sm:$0xff] %vm57, 0.0
    %63 = vst.msk [vmem:[#allocation3 + $0x28] sm:$0xff] %vm57, 0.0
    %64 = vst.msk [vmem:[#allocation3 + $0x30] sm:$0xff] %vm57, 0.0
    %65 = vst.msk [vmem:[#allocation3 + $0x38] sm:$0xff] %vm57, 0.0
    %66 = vst.msk [vmem:[#allocation3 + $0x40] sm:$0xff] %vm57, 0.0
    %67 = vst.msk [vmem:[#allocation3 + $0x48] sm:$0xff] %vm57, 0.0
    %68 = vst.msk [vmem:[#allocation3 + $0x50] sm:$0xff] %vm57, 0.0
    %69 = vst.msk [vmem:[#allocation3 + $0x58] sm:$0xff] %vm57, 0.0
    %70 = vst.msk [vmem:[#allocation3 + $0x60] sm:$0xff] %vm57, 0.0
    %71 = vst.msk [vmem:[#allocation3 + $0x68] sm:$0xff] %vm57, 0.0
    %72 = vst.msk [vmem:[#allocation3 + $0x70] sm:$0xff] %vm57, 0.0
    %73 = vst.msk [vmem:[#allocation3 + $0x78] sm:$0xff] %vm57, 0.0
    %74 = vst.msk [vmem:[#allocation3 + $0x80] sm:$0xff] %vm57, 0.0
    %75 = vst.msk [vmem:[#allocation3 + $0x88] sm:$0xff] %vm57, 0.0
    %76 = vst.msk [vmem:[#allocation3 + $0x90] sm:$0xff] %vm57, 0.0
    %77 = vst.msk [vmem:[#allocation3 + $0x98] sm:$0xff] %vm57, 0.0
    %78 = vst.msk [vmem:[#allocation3 + $0xa0] sm:$0xff] %vm57, 0.0
    %79 = vst.msk [vmem:[#allocation3 + $0xa8] sm:$0xff] %vm57, 0.0
    %80 = vst.msk [vmem:[#allocation3 + $0xb0] sm:$0xff] %vm57, 0.0
    %81 = vst.msk [vmem:[#allocation3 + $0xb8] sm:$0xff] %vm57, 0.0
    %82 = vst.msk [vmem:[#allocation3 + $0xc0] sm:$0xff] %vm57, 0.0
    %83 = vst.msk [vmem:[#allocation3 + $0xc8] sm:$0xff] %vm57, 0.0
    %84 = vst.msk [vmem:[#allocation3 + $0xd0] sm:$0xff] %vm57, 0.0
    %85 = vst.msk [vmem:[#allocation3 + $0xd8] sm:$0xff] %vm57, 0.0
    %86 = vst.msk [vmem:[#allocation3 + $0xe0] sm:$0xff] %vm57, 0.0
    %87 = vst.msk [vmem:[#allocation3 + $0xe8] sm:$0xff] %vm57, 0.0
    %88 = vst.msk [vmem:[#allocation3 + $0xf0] sm:$0xff] %vm57, 0.0
    %89 = vst.msk [vmem:[#allocation3 + $0xf8] sm:$0xff] %vm57, 0.0
    %90 = vst.msk [vmem:[#allocation3 + $0x100] sm:$0xff] %vm57, 0.0
    %91 = vst.msk [vmem:[#allocation3 + $0x108] sm:$0xff] %vm57, 0.0
    %92 = vst.msk [vmem:[#allocation3 + $0x110] sm:$0xff] %vm57, 0.0
    %93 = vst.msk [vmem:[#allocation3 + $0x118] sm:$0xff] %vm57, 0.0
    %94 = vst.msk [vmem:[#allocation3 + $0x120] sm:$0xff] %vm57, 0.0
    %95 = vst.msk [vmem:[#allocation3 + $0x128] sm:$0xff] %vm57, 0.0
    %96 = vst.msk [vmem:[#allocation3 + $0x130] sm:$0xff] %vm57, 0.0
    %97 = vst.msk [vmem:[#allocation3 + $0x138] sm:$0xff] %vm57, 0.0
    %98 = vst.msk [vmem:[#allocation3 + $0x140] sm:$0xff] %vm57, 0.0
    %99 = vst.msk [vmem:[#allocation3 + $0x148] sm:$0xff] %vm57, 0.0
    %100 = vst.msk [vmem:[#allocation3 + $0x150] sm:$0xff] %vm57, 0.0
    %101 = vst.msk [vmem:[#allocation3 + $0x158] sm:$0xff] %vm57, 0.0
    %102 = vst.msk [vmem:[#allocation3 + $0x160] sm:$0xff] %vm57, 0.0
    %103 = vst.msk [vmem:[#allocation3 + $0x168] sm:$0xff] %vm57, 0.0
    %104 = vst.msk [vmem:[#allocation3 + $0x170] sm:$0xff] %vm57, 0.0
    %105 = vst.msk [vmem:[#allocation3 + $0x178] sm:$0xff] %vm57, 0.0
    %106 = vst.msk [vmem:[#allocation3 + $0x180] sm:$0xff] %vm57, 0.0
    %107 = vst.msk [vmem:[#allocation3 + $0x188] sm:$0xff] %vm57, 0.0
    %108 = vst.msk [vmem:[#allocation3 + $0x190] sm:$0xff] %vm57, 0.0
    %109 = vst.msk [vmem:[#allocation3 + $0x198] sm:$0xff] %vm57, 0.0
    %110 = vst.msk [vmem:[#allocation3 + $0x1a0] sm:$0xff] %vm57, 0.0
    %111 = vst.msk [vmem:[#allocation3 + $0x1a8] sm:$0xff] %vm57, 0.0
    %112 = vst.msk [vmem:[#allocation3 + $0x1b0] sm:$0xff] %vm57, 0.0
    %113 = vst.msk [vmem:[#allocation3 + $0x1b8] sm:$0xff] %vm57, 0.0
    %114 = vst.msk [vmem:[#allocation3 + $0x1c0] sm:$0xff] %vm57, 0.0
    %115 = vst.msk [vmem:[#allocation3 + $0x1c8] sm:$0xff] %vm57, 0.0
    %116 = vst.msk [vmem:[#allocation3 + $0x1d0] sm:$0xff] %vm57, 0.0
    %117 = vst.msk [vmem:[#allocation3 + $0x1d8] sm:$0xff] %vm57, 0.0
    %118 = vst.msk [vmem:[#allocation3 + $0x1e0] sm:$0xff] %vm57, 0.0
    %vm119 = vcmask 195584
    %120 = vst.msk [vmem:[#allocation5] sm:$0xff] %vm119, 0.0
    %121 = vst.msk [vmem:[#allocation5 + $0x8] sm:$0xff] %vm119, 0.0
    %122 = vst.msk [vmem:[#allocation5 + $0x10] sm:$0xff] %vm119, 0.0
    %123 = vst.msk [vmem:[#allocation5 + $0x18] sm:$0xff] %vm119, 0.0
    %124 = vst.msk [vmem:[#allocation5 + $0x20] sm:$0xff] %vm119, 0.0
    %125 = vst.msk [vmem:[#allocation5 + $0x28] sm:$0xff] %vm119, 0.0
    %126 = vst.msk [vmem:[#allocation5 + $0x30] sm:$0xff] %vm119, 0.0
    %127 = vst.msk [vmem:[#allocation5 + $0x38] sm:$0xff] %vm119, 0.0
    %128 = vst.msk [vmem:[#allocation5 + $0x40] sm:$0xff] %vm119, 0.0
    %129 = vst.msk [vmem:[#allocation5 + $0x48] sm:$0xff] %vm119, 0.0
    %130 = vst.msk [vmem:[#allocation5 + $0x50] sm:$0xff] %vm119, 0.0
    %131 = vst.msk [vmem:[#allocation5 + $0x58] sm:$0xff] %vm119, 0.0
    %132 = vst.msk [vmem:[#allocation5 + $0x60] sm:$0xff] %vm119, 0.0
    %133 = vst.msk [vmem:[#allocation5 + $0x68] sm:$0xff] %vm119, 0.0
    %v134 = vld [vmem:[%s2] sm:$0x1]
    loop: start=0, step=1, limit=16
    $region70: #{mynet_forward.1} parent=1 // loop_pre_header
      _
    $region71: #{mynet_forward.1} parent=1 // loop_header
      %s136 = sphi 0, %s140
      %p137 = scmp.ge.s32.totalorder %s136, 16
    $region72: #{mynet_forward.1} parent=1 // loop_header_branch
      %139 = sbr.rel (%p137) target = $region76
    $region73: #{mynet_forward.1} parent=1 // loop_body
      %s141 = smul.u32 %s136, 128
      %s142 = scalar_lea.vmem %s0, %s141
      %v143 = vld [vmem:[%s142] sm:$0xff]
      %v144 = vld [vmem:[%s142 + $0x8] sm:$0xff]
      %v145 = vld [vmem:[%s142 + $0x10] sm:$0xff]
      %v146 = vld [vmem:[%s142 + $0x18] sm:$0xff]
      %v147 = vld [vmem:[%s142 + $0x20] sm:$0xff]
      %v148 = vld [vmem:[%s142 + $0x28] sm:$0xff]
      %v149 = vld [vmem:[%s142 + $0x30] sm:$0xff]
      %v150 = vld [vmem:[%s142 + $0x38] sm:$0xff]
      %v151 = vld [vmem:[%s142 + $0x40] sm:$0xff]
      %v152 = vld [vmem:[%s142 + $0x48] sm:$0xff]
      %v153 = vld [vmem:[%s142 + $0x50] sm:$0xff]
      %v154 = vld [vmem:[%s142 + $0x58] sm:$0xff]
      %v155 = vld [vmem:[%s142 + $0x60] sm:$0xff]
      %v156 = vld [vmem:[%s142 + $0x68] sm:$0xff]
      %v157 = vld [vmem:[%s142 + $0x70] sm:$0xff]
      %v158 = vld [vmem:[%s142 + $0x78] sm:$0xff]
      %v159 = vld [vmem:[%s1] sm:$0xff]
      %v160 = vld [vmem:[%s1 + $0x8] sm:$0x7f]
      %s161 = sadd.s32 %s141, 32
      %s162 = scalar_lea.vmem %s0, %s161
      %v163 = vld [vmem:[%s162] sm:$0xff]
      %v164 = vld [vmem:[%s162 + $0x8] sm:$0xff]
      %v165 = vld [vmem:[%s162 + $0x10] sm:$0xff]
      %v166 = vld [vmem:[%s162 + $0x18] sm:$0xff]
      %v167 = vld [vmem:[%s162 + $0x20] sm:$0xff]
      %v168 = vld [vmem:[%s162 + $0x28] sm:$0xff]
      %v169 = vld [vmem:[%s162 + $0x30] sm:$0xff]
      %v170 = vld [vmem:[%s162 + $0x38] sm:$0xff]
      %v171 = vld [vmem:[%s162 + $0x40] sm:$0xff]
      %v172 = vld [vmem:[%s162 + $0x48] sm:$0xff]
      %v173 = vld [vmem:[%s162 + $0x50] sm:$0xff]
      %v174 = vld [vmem:[%s162 + $0x58] sm:$0xff]
      %v175 = vld [vmem:[%s162 + $0x60] sm:$0xff]
      %v176 = vld [vmem:[%s162 + $0x68] sm:$0xff]
      %v177 = vld [vmem:[%s162 + $0x70] sm:$0xff]
      %v178 = vld [vmem:[%s162 + $0x78] sm:$0xff]
      %v179 = vld [vmem:[%s1 + $0xf] sm:$0xff]
      %v180 = vld [vmem:[%s1 + $0x17] sm:$0x7f]
      %vm181 = vcmask 121856
      %v183 = vsel %vm181, %v163, 0
      %v186 = vsel %vm181, %v164, 0
      %v189 = vsel %vm181, %v165, 0
      %v192 = vsel %vm181, %v166, 0
      %v195 = vsel %vm181, %v167, 0
      %v198 = vsel %vm181, %v168, 0
      %v201 = vsel %vm181, %v169, 0
      %v204 = vsel %vm181, %v170, 0
      %v207 = vsel %vm181, %v171, 0
      %v210 = vsel %vm181, %v172, 0
      %v213 = vsel %vm181, %v173, 0
      %v216 = vsel %vm181, %v174, 0
      %v219 = vsel %vm181, %v175, 0
      %v222 = vsel %vm181, %v176, 0
      %v225 = vsel %vm181, %v177, 0
      %v228 = vsel %vm181, %v178, 0
      %vm230 = vcmask 1046528
      %v232 = vsel %vm230, %v180, 0
      %234 = vmatpush.msra.mxu0 0.0
      %235 = vmatpush.msra.mxu0 0.0
      %236 = vmatpush.msra.mxu0 0.0
      %237 = vmatpush.msra.mxu0 0.0
      %238 = vmatpush.msra.mxu0 0.0
      %239 = vmatpush.msra.mxu0 0.0
      %240 = vmatpush.msra.mxu0 0.0
      %241 = vmatpush.msra.mxu0 0.0
      %242 = vmatpush.msra.mxu0 0.0
      %243 = vmatpush.msra.mxu0 0.0
      %244 = vmatpush.msra.mxu0 0.0
      %245 = vmatpush.msra.mxu0 0.0
      %246 = vmatpush.msra.mxu0 0.0
      %247 = vmatpush.msra.mxu0 0.0
      %248 = vmatpush.msra.mxu0 %v232
      %249 = vmatpush.msra.mxu0 %v179
      %250 = vmatmul.f32.gmra.mxu0 %v183
      %v251 = vpop.f32.mrf.mxu0
      %v252 = vadd.f32 0.0, %v251
      %253 = vmatmul.f32.gmra.mxu0 %v186
      %v254 = vpop.f32.mrf.mxu0
      %v255 = vadd.f32 0.0, %v254
      %256 = vmatmul.f32.gmra.mxu0 %v189
      %v257 = vpop.f32.mrf.mxu0
      %v258 = vadd.f32 0.0, %v257
      %259 = vmatmul.f32.gmra.mxu0 %v192
      %v260 = vpop.f32.mrf.mxu0
      %v261 = vadd.f32 0.0, %v260
      %262 = vmatmul.f32.gmra.mxu0 %v195
      %v263 = vpop.f32.mrf.mxu0
      %v264 = vadd.f32 0.0, %v263
      %265 = vmatmul.f32.gmra.mxu0 %v198
      %v266 = vpop.f32.mrf.mxu0
      %v267 = vadd.f32 0.0, %v266
      %268 = vmatmul.f32.gmra.mxu0 %v201
      %v269 = vpop.f32.mrf.mxu0
      %v270 = vadd.f32 0.0, %v269
      %271 = vmatmul.f32.gmra.mxu0 %v204
      %v272 = vpop.f32.mrf.mxu0
      %v273 = vadd.f32 0.0, %v272
      %274 = vmatmul.f32.gmra.mxu0 %v207
      %v275 = vpop.f32.mrf.mxu0
      %v276 = vadd.f32 0.0, %v275
      %277 = vmatmul.f32.gmra.mxu0 %v210
      %v278 = vpop.f32.mrf.mxu0
      %v279 = vadd.f32 0.0, %v278
      %280 = vmatmul.f32.gmra.mxu0 %v213
      %v281 = vpop.f32.mrf.mxu0
      %v282 = vadd.f32 0.0, %v281
      %283 = vmatmul.f32.gmra.mxu0 %v216
      %v284 = vpop.f32.mrf.mxu0
      %v285 = vadd.f32 0.0, %v284
      %286 = vmatmul.f32.gmra.mxu0 %v219
      %v287 = vpop.f32.mrf.mxu0
      %v288 = vadd.f32 0.0, %v287
      %289 = vmatmul.f32.gmra.mxu0 %v222
      %v290 = vpop.f32.mrf.mxu0
      %v291 = vadd.f32 0.0, %v290
      %292 = vmatmul.f32.gmra.mxu0 %v225
      %v293 = vpop.f32.mrf.mxu0
      %v294 = vadd.f32 0.0, %v293
      %295 = vmatmul.f32.gmra.mxu0 %v228
      %v296 = vpop.f32.mrf.mxu0
      %v297 = vadd.f32 0.0, %v296
      %298 = vdwg.mxu0
      %v300 = vsel %vm181, %v143, 0
      %v303 = vsel %vm181, %v144, 0
      %v306 = vsel %vm181, %v145, 0
      %v309 = vsel %vm181, %v146, 0
      %v312 = vsel %vm181, %v147, 0
      %v315 = vsel %vm181, %v148, 0
      %v318 = vsel %vm181, %v149, 0
      %v321 = vsel %vm181, %v150, 0
      %v324 = vsel %vm181, %v151, 0
      %v327 = vsel %vm181, %v152, 0
      %v330 = vsel %vm181, %v153, 0
      %v333 = vsel %vm181, %v154, 0
      %v336 = vsel %vm181, %v155, 0
      %v339 = vsel %vm181, %v156, 0
      %v342 = vsel %vm181, %v157, 0
      %v345 = vsel %vm181, %v158, 0
      %v348 = vsel %vm230, %v160, 0
      %350 = vmatpush.msra.mxu0 0.0
      %351 = vmatpush.msra.mxu0 0.0
      %352 = vmatpush.msra.mxu0 0.0
      %353 = vmatpush.msra.mxu0 0.0
      %354 = vmatpush.msra.mxu0 0.0
      %355 = vmatpush.msra.mxu0 0.0
      %356 = vmatpush.msra.mxu0 0.0
      %357 = vmatpush.msra.mxu0 0.0
      %358 = vmatpush.msra.mxu0 0.0
      %359 = vmatpush.msra.mxu0 0.0
      %360 = vmatpush.msra.mxu0 0.0
      %361 = vmatpush.msra.mxu0 0.0
      %362 = vmatpush.msra.mxu0 0.0
      %363 = vmatpush.msra.mxu0 0.0
      %364 = vmatpush.msra.mxu0 %v348
      %365 = vmatpush.msra.mxu0 %v159
      %366 = vmatmul.f32.gmra.mxu0 %v300
      %v367 = vpop.f32.mrf.mxu0
      %v368 = vadd.f32 %v252, %v367
      %369 = vmatmul.f32.gmra.mxu0 %v303
      %v370 = vpop.f32.mrf.mxu0
      %v371 = vadd.f32 %v255, %v370
      %372 = vmatmul.f32.gmra.mxu0 %v306
      %v373 = vpop.f32.mrf.mxu0
      %v374 = vadd.f32 %v258, %v373
      %375 = vmatmul.f32.gmra.mxu0 %v309
      %v376 = vpop.f32.mrf.mxu0
      %v377 = vadd.f32 %v261, %v376
      %378 = vmatmul.f32.gmra.mxu0 %v312
      %v379 = vpop.f32.mrf.mxu0
      %v380 = vadd.f32 %v264, %v379
      %381 = vmatmul.f32.gmra.mxu0 %v315
      %v382 = vpop.f32.mrf.mxu0
      %v383 = vadd.f32 %v267, %v382
      %384 = vmatmul.f32.gmra.mxu0 %v318
      %v385 = vpop.f32.mrf.mxu0
      %v386 = vadd.f32 %v270, %v385
      %387 = vmatmul.f32.gmra.mxu0 %v321
      %v388 = vpop.f32.mrf.mxu0
      %v389 = vadd.f32 %v273, %v388
      %390 = vmatmul.f32.gmra.mxu0 %v324
      %v391 = vpop.f32.mrf.mxu0
      %v392 = vadd.f32 %v276, %v391
      %393 = vmatmul.f32.gmra.mxu0 %v327
      %v394 = vpop.f32.mrf.mxu0
      %v395 = vadd.f32 %v279, %v394
      %396 = vmatmul.f32.gmra.mxu0 %v330
      %v397 = vpop.f32.mrf.mxu0
      %v398 = vadd.f32 %v282, %v397
      %399 = vmatmul.f32.gmra.mxu0 %v333
      %v400 = vpop.f32.mrf.mxu0
      %v401 = vadd.f32 %v285, %v400
      %402 = vmatmul.f32.gmra.mxu0 %v336
      %v403 = vpop.f32.mrf.mxu0
      %v404 = vadd.f32 %v288, %v403
      %405 = vmatmul.f32.gmra.mxu0 %v339
      %v406 = vpop.f32.mrf.mxu0
      %v407 = vadd.f32 %v291, %v406
      %408 = vmatmul.f32.gmra.mxu0 %v342
      %v409 = vpop.f32.mrf.mxu0
      %v410 = vadd.f32 %v294, %v409
      %411 = vmatmul.f32.gmra.mxu0 %v345
      %v412 = vpop.f32.mrf.mxu0
      %v413 = vadd.f32 %v297, %v412
      %414 = vdwg.mxu0
      %s415 = sadd.s32 %s141, 64
      %s416 = scalar_lea.vmem %s0, %s415
      %v417 = vld [vmem:[%s416] sm:$0xff]
      %v418 = vld [vmem:[%s416 + $0x8] sm:$0xff]
      %v419 = vld [vmem:[%s416 + $0x10] sm:$0xff]
      %v420 = vld [vmem:[%s416 + $0x18] sm:$0xff]
      %v421 = vld [vmem:[%s416 + $0x20] sm:$0xff]
      %v422 = vld [vmem:[%s416 + $0x28] sm:$0xff]
      %v423 = vld [vmem:[%s416 + $0x30] sm:$0xff]
      %v424 = vld [vmem:[%s416 + $0x38] sm:$0xff]
      %v425 = vld [vmem:[%s416 + $0x40] sm:$0xff]
      %v426 = vld [vmem:[%s416 + $0x48] sm:$0xff]
      %v427 = vld [vmem:[%s416 + $0x50] sm:$0xff]
      %v428 = vld [vmem:[%s416 + $0x58] sm:$0xff]
      %v429 = vld [vmem:[%s416 + $0x60] sm:$0xff]
      %v430 = vld [vmem:[%s416 + $0x68] sm:$0xff]
      %v431 = vld [vmem:[%s416 + $0x70] sm:$0xff]
      %v432 = vld [vmem:[%s416 + $0x78] sm:$0xff]
      %v433 = vld [vmem:[%s1 + $0x1e] sm:$0xff]
      %v434 = vld [vmem:[%s1 + $0x26] sm:$0x7f]
      %v436 = vsel %vm181, %v417, 0
      %v439 = vsel %vm181, %v418, 0
      %v442 = vsel %vm181, %v419, 0
      %v445 = vsel %vm181, %v420, 0
      %v448 = vsel %vm181, %v421, 0
      %v451 = vsel %vm181, %v422, 0
      %v454 = vsel %vm181, %v423, 0
      %v457 = vsel %vm181, %v424, 0
      %v460 = vsel %vm181, %v425, 0
      %v463 = vsel %vm181, %v426, 0
      %v466 = vsel %vm181, %v427, 0
      %v469 = vsel %vm181, %v428, 0
      %v472 = vsel %vm181, %v429, 0
      %v475 = vsel %vm181, %v430, 0
      %v478 = vsel %vm181, %v431, 0
      %v481 = vsel %vm181, %v432, 0
      %v484 = vsel %vm230, %v434, 0
      %486 = vmatpush.msra.mxu0 0.0
      %487 = vmatpush.msra.mxu0 0.0
      %488 = vmatpush.msra.mxu0 0.0
      %489 = vmatpush.msra.mxu0 0.0
      %490 = vmatpush.msra.mxu0 0.0
      %491 = vmatpush.msra.mxu0 0.0
      %492 = vmatpush.msra.mxu0 0.0
      %493 = vmatpush.msra.mxu0 0.0
      %494 = vmatpush.msra.mxu0 0.0
      %495 = vmatpush.msra.mxu0 0.0
      %496 = vmatpush.msra.mxu0 0.0
      %497 = vmatpush.msra.mxu0 0.0
      %498 = vmatpush.msra.mxu0 0.0
      %499 = vmatpush.msra.mxu0 0.0
      %500 = vmatpush.msra.mxu0 %v484
      %501 = vmatpush.msra.mxu0 %v433
      %502 = vmatmul.f32.gmra.mxu0 %v436
      %v503 = vpop.f32.mrf.mxu0
      %v504 = vadd.f32 0.0, %v503
      %505 = vmatmul.f32.gmra.mxu0 %v439
      %v506 = vpop.f32.mrf.mxu0
      %v507 = vadd.f32 0.0, %v506
      %508 = vmatmul.f32.gmra.mxu0 %v442
      %v509 = vpop.f32.mrf.mxu0
      %v510 = vadd.f32 0.0, %v509
      %511 = vmatmul.f32.gmra.mxu0 %v445
      %v512 = vpop.f32.mrf.mxu0
      %v513 = vadd.f32 0.0, %v512
      %514 = vmatmul.f32.gmra.mxu0 %v448
      %v515 = vpop.f32.mrf.mxu0
      %v516 = vadd.f32 0.0, %v515
      %517 = vmatmul.f32.gmra.mxu0 %v451
      %v518 = vpop.f32.mrf.mxu0
      %v519 = vadd.f32 0.0, %v518
      %520 = vmatmul.f32.gmra.mxu0 %v454
      %v521 = vpop.f32.mrf.mxu0
      %v522 = vadd.f32 0.0, %v521
      %523 = vmatmul.f32.gmra.mxu0 %v457
      %v524 = vpop.f32.mrf.mxu0
      %v525 = vadd.f32 0.0, %v524
      %526 = vmatmul.f32.gmra.mxu0 %v460
      %v527 = vpop.f32.mrf.mxu0
      %v528 = vadd.f32 0.0, %v527
      %529 = vmatmul.f32.gmra.mxu0 %v463
      %v530 = vpop.f32.mrf.mxu0
      %v531 = vadd.f32 0.0, %v530
      %532 = vmatmul.f32.gmra.mxu0 %v466
      %v533 = vpop.f32.mrf.mxu0
      %v534 = vadd.f32 0.0, %v533
      %535 = vmatmul.f32.gmra.mxu0 %v469
      %v536 = vpop.f32.mrf.mxu0
      %v537 = vadd.f32 0.0, %v536
      %538 = vmatmul.f32.gmra.mxu0 %v472
      %v539 = vpop.f32.mrf.mxu0
      %v540 = vadd.f32 0.0, %v539
      %541 = vmatmul.f32.gmra.mxu0 %v475
      %v542 = vpop.f32.mrf.mxu0
      %v543 = vadd.f32 0.0, %v542
      %544 = vmatmul.f32.gmra.mxu0 %v478
      %v545 = vpop.f32.mrf.mxu0
      %v546 = vadd.f32 0.0, %v545
      %547 = vmatmul.f32.gmra.mxu0 %v481
      %v548 = vpop.f32.mrf.mxu0
      %v549 = vadd.f32 0.0, %v548
      %550 = vdwg.mxu0
      %v551 = vadd.f32 %v368, %v504
      %v552 = vadd.f32 %v371, %v507
      %v553 = vadd.f32 %v374, %v510
      %v554 = vadd.f32 %v377, %v513
      %v555 = vadd.f32 %v380, %v516
      %v556 = vadd.f32 %v383, %v519
      %v557 = vadd.f32 %v386, %v522
      %v558 = vadd.f32 %v389, %v525
      %v559 = vadd.f32 %v392, %v528
      %v560 = vadd.f32 %v395, %v531
      %v561 = vadd.f32 %v398, %v534
      %v562 = vadd.f32 %v401, %v537
      %v563 = vadd.f32 %v404, %v540
      %v564 = vadd.f32 %v407, %v543
      %v565 = vadd.f32 %v410, %v546
      %v566 = vadd.f32 %v413, %v549
      %s567 = sadd.s32 %s141, 96
      %s568 = scalar_lea.vmem %s0, %s567
      %v569 = vld [vmem:[%s568] sm:$0xff]
      %v570 = vld [vmem:[%s568 + $0x8] sm:$0xff]
      %v571 = vld [vmem:[%s568 + $0x10] sm:$0xff]
      %v572 = vld [vmem:[%s568 + $0x18] sm:$0xff]
      %v573 = vld [vmem:[%s568 + $0x20] sm:$0xff]
      %v574 = vld [vmem:[%s568 + $0x28] sm:$0xff]
      %v575 = vld [vmem:[%s568 + $0x30] sm:$0xff]
      %v576 = vld [vmem:[%s568 + $0x38] sm:$0xff]
      %v577 = vld [vmem:[%s568 + $0x40] sm:$0xff]
      %v578 = vld [vmem:[%s568 + $0x48] sm:$0xff]
      %v579 = vld [vmem:[%s568 + $0x50] sm:$0xff]
      %v580 = vld [vmem:[%s568 + $0x58] sm:$0xff]
      %v581 = vld [vmem:[%s568 + $0x60] sm:$0xff]
      %v582 = vld [vmem:[%s568 + $0x68] sm:$0xff]
      %v583 = vld [vmem:[%s568 + $0x70] sm:$0xff]
      %v584 = vld [vmem:[%s568 + $0x78] sm:$0xff]
      %v585 = vld [vmem:[%s1 + $0x2d] sm:$0xff]
      %v586 = vld [vmem:[%s1 + $0x35] sm:$0x7f]
      %v588 = vsel %vm181, %v569, 0
      %v591 = vsel %vm181, %v570, 0
      %v594 = vsel %vm181, %v571, 0
      %v597 = vsel %vm181, %v572, 0
      %v600 = vsel %vm181, %v573, 0
      %v603 = vsel %vm181, %v574, 0
      %v606 = vsel %vm181, %v575, 0
      %v609 = vsel %vm181, %v576, 0
      %v612 = vsel %vm181, %v577, 0
      %v615 = vsel %vm181, %v578, 0
      %v618 = vsel %vm181, %v579, 0
      %v621 = vsel %vm181, %v580, 0
      %v624 = vsel %vm181, %v581, 0
      %v627 = vsel %vm181, %v582, 0
      %v630 = vsel %vm181, %v583, 0
      %v633 = vsel %vm181, %v584, 0
      %v636 = vsel %vm230, %v586, 0
      %638 = vmatpush.msra.mxu0 0.0
      %639 = vmatpush.msra.mxu0 0.0
      %640 = vmatpush.msra.mxu0 0.0
      %641 = vmatpush.msra.mxu0 0.0
      %642 = vmatpush.msra.mxu0 0.0
      %643 = vmatpush.msra.mxu0 0.0
      %644 = vmatpush.msra.mxu0 0.0
      %645 = vmatpush.msra.mxu0 0.0
      %646 = vmatpush.msra.mxu0 0.0
      %647 = vmatpush.msra.mxu0 0.0
      %648 = vmatpush.msra.mxu0 0.0
      %649 = vmatpush.msra.mxu0 0.0
      %650 = vmatpush.msra.mxu0 0.0
      %651 = vmatpush.msra.mxu0 0.0
      %652 = vmatpush.msra.mxu0 %v636
      %653 = vmatpush.msra.mxu0 %v585
      %654 = vmatmul.f32.gmra.mxu0 %v588
      %v655 = vpop.f32.mrf.mxu0
      %v656 = vadd.f32 0.0, %v655
      %657 = vmatmul.f32.gmra.mxu0 %v591
      %v658 = vpop.f32.mrf.mxu0
      %v659 = vadd.f32 0.0, %v658
      %660 = vmatmul.f32.gmra.mxu0 %v594
      %v661 = vpop.f32.mrf.mxu0
      %v662 = vadd.f32 0.0, %v661
      %663 = vmatmul.f32.gmra.mxu0 %v597
      %v664 = vpop.f32.mrf.mxu0
      %v665 = vadd.f32 0.0, %v664
      %666 = vmatmul.f32.gmra.mxu0 %v600
      %v667 = vpop.f32.mrf.mxu0
      %v668 = vadd.f32 0.0, %v667
      %669 = vmatmul.f32.gmra.mxu0 %v603
      %v670 = vpop.f32.mrf.mxu0
      %v671 = vadd.f32 0.0, %v670
      %672 = vmatmul.f32.gmra.mxu0 %v606
      %v673 = vpop.f32.mrf.mxu0
      %v674 = vadd.f32 0.0, %v673
      %675 = vmatmul.f32.gmra.mxu0 %v609
      %v676 = vpop.f32.mrf.mxu0
      %v677 = vadd.f32 0.0, %v676
      %678 = vmatmul.f32.gmra.mxu0 %v612
      %v679 = vpop.f32.mrf.mxu0
      %v680 = vadd.f32 0.0, %v679
      %681 = vmatmul.f32.gmra.mxu0 %v615
      %v682 = vpop.f32.mrf.mxu0
      %v683 = vadd.f32 0.0, %v682
      %684 = vmatmul.f32.gmra.mxu0 %v618
      %v685 = vpop.f32.mrf.mxu0
      %v686 = vadd.f32 0.0, %v685
      %687 = vmatmul.f32.gmra.mxu0 %v621
      %v688 = vpop.f32.mrf.mxu0
      %v689 = vadd.f32 0.0, %v688
      %690 = vmatmul.f32.gmra.mxu0 %v624
      %v691 = vpop.f32.mrf.mxu0
      %v692 = vadd.f32 0.0, %v691
      %693 = vmatmul.f32.gmra.mxu0 %v627
      %v694 = vpop.f32.mrf.mxu0
      %v695 = vadd.f32 0.0, %v694
      %696 = vmatmul.f32.gmra.mxu0 %v630
      %v697 = vpop.f32.mrf.mxu0
      %v698 = vadd.f32 0.0, %v697
      %699 = vmatmul.f32.gmra.mxu0 %v633
      %v700 = vpop.f32.mrf.mxu0
      %v701 = vadd.f32 0.0, %v700
      %702 = vdwg.mxu0
      %v703 = vadd.f32 %v551, %v656
      %v704 = vadd.f32 %v552, %v659
      %v705 = vadd.f32 %v553, %v662
      %v706 = vadd.f32 %v554, %v665
      %v707 = vadd.f32 %v555, %v668
      %v708 = vadd.f32 %v556, %v671
      %v709 = vadd.f32 %v557, %v674
      %v710 = vadd.f32 %v558, %v677
      %v711 = vadd.f32 %v559, %v680
      %v712 = vadd.f32 %v560, %v683
      %v713 = vadd.f32 %v561, %v686
      %v714 = vadd.f32 %v562, %v689
      %v715 = vadd.f32 %v563, %v692
      %v716 = vadd.f32 %v564, %v695
      %v717 = vadd.f32 %v565, %v698
      %v718 = vadd.f32 %v566, %v701
      %s719 = sadd.s32 %s141, 128
      %s720 = scalar_lea.vmem %s0, %s719
      %v721 = vld [vmem:[%s720] sm:$0xff]
      %v722 = vld [vmem:[%s720 + $0x8] sm:$0xff]
      %v723 = vld [vmem:[%s720 + $0x10] sm:$0xff]
      %v724 = vld [vmem:[%s720 + $0x18] sm:$0xff]
      %v725 = vld [vmem:[%s720 + $0x20] sm:$0xff]
      %v726 = vld [vmem:[%s720 + $0x28] sm:$0xff]
      %v727 = vld [vmem:[%s720 + $0x30] sm:$0xff]
      %v728 = vld [vmem:[%s720 + $0x38] sm:$0xff]
      %v729 = vld [vmem:[%s720 + $0x40] sm:$0xff]
      %v730 = vld [vmem:[%s720 + $0x48] sm:$0xff]
      %v731 = vld [vmem:[%s720 + $0x50] sm:$0xff]
      %v732 = vld [vmem:[%s720 + $0x58] sm:$0xff]
      %v733 = vld [vmem:[%s720 + $0x60] sm:$0xff]
      %v734 = vld [vmem:[%s720 + $0x68] sm:$0xff]
      %v735 = vld [vmem:[%s720 + $0x70] sm:$0xff]
      %v736 = vld [vmem:[%s720 + $0x78] sm:$0xff]
      %v737 = vld [vmem:[%s1 + $0x3c] sm:$0xff]
      %v738 = vld [vmem:[%s1 + $0x44] sm:$0x7f]
      %v740 = vsel %vm181, %v721, 0
      %v743 = vsel %vm181, %v722, 0
      %v746 = vsel %vm181, %v723, 0
      %v749 = vsel %vm181, %v724, 0
      %v752 = vsel %vm181, %v725, 0
      %v755 = vsel %vm181, %v726, 0
      %v758 = vsel %vm181, %v727, 0
      %v761 = vsel %vm181, %v728, 0
      %v764 = vsel %vm181, %v729, 0
      %v767 = vsel %vm181, %v730, 0
      %v770 = vsel %vm181, %v731, 0
      %v773 = vsel %vm181, %v732, 0
      %v776 = vsel %vm181, %v733, 0
      %v779 = vsel %vm181, %v734, 0
      %v782 = vsel %vm181, %v735, 0
      %v785 = vsel %vm181, %v736, 0
      %v788 = vsel %vm230, %v738, 0
      %790 = vmatpush.msra.mxu0 0.0
      %791 = vmatpush.msra.mxu0 0.0
      %792 = vmatpush.msra.mxu0 0.0
      %793 = vmatpush.msra.mxu0 0.0
      %794 = vmatpush.msra.mxu0 0.0
      %795 = vmatpush.msra.mxu0 0.0
      %796 = vmatpush.msra.mxu0 0.0
      %797 = vmatpush.msra.mxu0 0.0
      %798 = vmatpush.msra.mxu0 0.0
      %799 = vmatpush.msra.mxu0 0.0
      %800 = vmatpush.msra.mxu0 0.0
      %801 = vmatpush.msra.mxu0 0.0
      %802 = vmatpush.msra.mxu0 0.0
      %803 = vmatpush.msra.mxu0 0.0
      %804 = vmatpush.msra.mxu0 %v788
      %805 = vmatpush.msra.mxu0 %v737
      %806 = vmatmul.f32.gmra.mxu0 %v740
      %v807 = vpop.f32.mrf.mxu0
      %v808 = vadd.f32 0.0, %v807
      %809 = vmatmul.f32.gmra.mxu0 %v743
      %v810 = vpop.f32.mrf.mxu0
      %v811 = vadd.f32 0.0, %v810
      %812 = vmatmul.f32.gmra.mxu0 %v746
      %v813 = vpop.f32.mrf.mxu0
      %v814 = vadd.f32 0.0, %v813
      %815 = vmatmul.f32.gmra.mxu0 %v749
      %v816 = vpop.f32.mrf.mxu0
      %v817 = vadd.f32 0.0, %v816
      %818 = vmatmul.f32.gmra.mxu0 %v752
      %v819 = vpop.f32.mrf.mxu0
      %v820 = vadd.f32 0.0, %v819
      %821 = vmatmul.f32.gmra.mxu0 %v755
      %v822 = vpop.f32.mrf.mxu0
      %v823 = vadd.f32 0.0, %v822
      %824 = vmatmul.f32.gmra.mxu0 %v758
      %v825 = vpop.f32.mrf.mxu0
      %v826 = vadd.f32 0.0, %v825
      %827 = vmatmul.f32.gmra.mxu0 %v761
      %v828 = vpop.f32.mrf.mxu0
      %v829 = vadd.f32 0.0, %v828
      %830 = vmatmul.f32.gmra.mxu0 %v764
      %v831 = vpop.f32.mrf.mxu0
      %v832 = vadd.f32 0.0, %v831
      %833 = vmatmul.f32.gmra.mxu0 %v767
      %v834 = vpop.f32.mrf.mxu0
      %v835 = vadd.f32 0.0, %v834
      %836 = vmatmul.f32.gmra.mxu0 %v770
      %v837 = vpop.f32.mrf.mxu0
      %v838 = vadd.f32 0.0, %v837
      %839 = vmatmul.f32.gmra.mxu0 %v773
      %v840 = vpop.f32.mrf.mxu0
      %v841 = vadd.f32 0.0, %v840
      %842 = vmatmul.f32.gmra.mxu0 %v776
      %v843 = vpop.f32.mrf.mxu0
      %v844 = vadd.f32 0.0, %v843
      %845 = vmatmul.f32.gmra.mxu0 %v779
      %v846 = vpop.f32.mrf.mxu0
      %v847 = vadd.f32 0.0, %v846
      %848 = vmatmul.f32.gmra.mxu0 %v782
      %v849 = vpop.f32.mrf.mxu0
      %v850 = vadd.f32 0.0, %v849
      %851 = vmatmul.f32.gmra.mxu0 %v785
      %v852 = vpop.f32.mrf.mxu0
      %v853 = vadd.f32 0.0, %v852
      %854 = vdwg.mxu0
      %v855 = vadd.f32 %v703, %v808
      %v856 = vadd.f32 %v704, %v811
      %v857 = vadd.f32 %v705, %v814
      %v858 = vadd.f32 %v706, %v817
      %v859 = vadd.f32 %v707, %v820
      %v860 = vadd.f32 %v708, %v823
      %v861 = vadd.f32 %v709, %v826
      %v862 = vadd.f32 %v710, %v829
      %v863 = vadd.f32 %v711, %v832
      %v864 = vadd.f32 %v712, %v835
      %v865 = vadd.f32 %v713, %v838
      %v866 = vadd.f32 %v714, %v841
      %v867 = vadd.f32 %v715, %v844
      %v868 = vadd.f32 %v716, %v847
      %v869 = vadd.f32 %v717, %v850
      %v870 = vadd.f32 %v718, %v853
      %v872 = vperm.slane %v134, 0
      %v874 = vadd.f32 %v855, %v872
      %v875 = vadd.f32 %v856, %v872
      %v876 = vadd.f32 %v857, %v872
      %v877 = vadd.f32 %v858, %v872
      %v878 = vadd.f32 %v859, %v872
      %v879 = vadd.f32 %v860, %v872
      %v880 = vadd.f32 %v861, %v872
      %v881 = vadd.f32 %v862, %v872
      %v882 = vadd.f32 %v863, %v872
      %v883 = vadd.f32 %v864, %v872
      %v884 = vadd.f32 %v865, %v872
      %v885 = vadd.f32 %v866, %v872
      %v886 = vadd.f32 %v867, %v872
      %v887 = vadd.f32 %v868, %v872
      %v888 = vadd.f32 %v869, %v872
      %v889 = vadd.f32 %v870, %v872
      %v890 = vmax.f32 %v874, 0.0
      %v891 = vmax.f32 %v875, 0.0
      %v892 = vmax.f32 %v876, 0.0
      %v893 = vmax.f32 %v877, 0.0
      %v894 = vmax.f32 %v878, 0.0
      %v895 = vmax.f32 %v879, 0.0
      %v896 = vmax.f32 %v880, 0.0
      %v897 = vmax.f32 %v881, 0.0
      %v898 = vmax.f32 %v882, 0.0
      %v899 = vmax.f32 %v883, 0.0
      %v900 = vmax.f32 %v884, 0.0
      %v901 = vmax.f32 %v885, 0.0
      %v902 = vmax.f32 %v886, 0.0
      %v903 = vmax.f32 %v887, 0.0
      %v904 = vmax.f32 %v888, 0.0
      %v905 = vmax.f32 %v889, 0.0
      %s906 = scalar_lea.vmem [#allocation2], %s141
      %907 = vst.msk [vmem:[%s906] sm:$0xff] %vm57, %v890
      %908 = vst.msk [vmem:[%s906 + $0x8] sm:$0xff] %vm57, %v891
      %909 = vst.msk [vmem:[%s906 + $0x10] sm:$0xff] %vm57, %v892
      %910 = vst.msk [vmem:[%s906 + $0x18] sm:$0xff] %vm57, %v893
      %911 = vst.msk [vmem:[%s906 + $0x20] sm:$0xff] %vm57, %v894
      %912 = vst.msk [vmem:[%s906 + $0x28] sm:$0xff] %vm57, %v895
      %913 = vst.msk [vmem:[%s906 + $0x30] sm:$0xff] %vm57, %v896
      %914 = vst.msk [vmem:[%s906 + $0x38] sm:$0xff] %vm57, %v897
      %915 = vst.msk [vmem:[%s906 + $0x40] sm:$0xff] %vm57, %v898
      %916 = vst.msk [vmem:[%s906 + $0x48] sm:$0xff] %vm57, %v899
      %917 = vst.msk [vmem:[%s906 + $0x50] sm:$0xff] %vm57, %v900
      %918 = vst.msk [vmem:[%s906 + $0x58] sm:$0xff] %vm57, %v901
      %919 = vst.msk [vmem:[%s906 + $0x60] sm:$0xff] %vm57, %v902
      %920 = vst.msk [vmem:[%s906 + $0x68] sm:$0xff] %vm57, %v903
      %921 = vst.msk [vmem:[%s906 + $0x70] sm:$0xff] %vm57, %v904
      %922 = vst.msk [vmem:[%s906 + $0x78] sm:$0xff] %vm57, %v905
    $region74: #{mynet_forward.1} parent=1 // loop_footer
      %s140 = sadd.s32 1, %s136
    $region75: #{mynet_forward.1} parent=1 // loop_footer_branch
      %135 = sbr.rel target = $region71
    $region76: #{mynet_forward.1} parent=1 // loop_exit
      _
    %v923 = vld [vmem:[%s13] sm:$0xff]
    %v924 = vld [vmem:[%s13 + $0x8] sm:$0x3f]
    %v925 = vld [vmem:[%s14] sm:$0xff]
    %v926 = vld [vmem:[%s14 + $0x8] sm:$0x3f]
    loop: start=0, step=1, limit=14
    $region77: #{mynet_forward.1} parent=1 // loop_pre_header
      _
    $region78: #{mynet_forward.1} parent=1 // loop_header
      %s928 = sphi 0, %s932
      %p929 = scmp.ge.s32.totalorder %s928, 14
    $region79: #{mynet_forward.1} parent=1 // loop_header_branch
      %931 = sbr.rel (%p929) target = $region83
    $region80: #{mynet_forward.1} parent=1 // loop_body
      %s933 = smul.u32 %s928, 64
      %s934 = sadd.s32 %s933, 32
      %s935 = scalar_lea.vmem [#allocation2], %s933
      %v936 = vld [vmem:[%s935] sm:$0xff]
      %v937 = vld [vmem:[%s935 + $0x8] sm:$0xff]
      %v938 = vld [vmem:[%s935 + $0x10] sm:$0xff]
      %v939 = vld [vmem:[%s935 + $0x18] sm:$0xf]
      %s940 = scalar_lea.vmem [#allocation2], %s934
      %v941 = vld [vmem:[%s940] sm:$0xff]
      %v942 = vld [vmem:[%s940 + $0x8] sm:$0xff]
      %v943 = vld [vmem:[%s940 + $0x10] sm:$0xff]
      %v944 = vld [vmem:[%s940 + $0x18] sm:$0xf]
      %vm945 = vcmask 228352
      %v947 = vsel %vm945, %v923, 0
      %v950 = vsel %vm945, %v924, 0
      %vm952 = vcmask 1043456
      %v954 = vsel %vm952, %v939, 0
      %956 = vmatpush.msra.mxu0 0.0
      %957 = vmatpush.msra.mxu0 0.0
      %958 = vmatpush.msra.mxu0 0.0
      %959 = vmatpush.msra.mxu0 0.0
      %960 = vmatpush.msra.mxu0 0.0
      %961 = vmatpush.msra.mxu0 0.0
      %962 = vmatpush.msra.mxu0 0.0
      %963 = vmatpush.msra.mxu0 0.0
      %964 = vmatpush.msra.mxu0 0.0
      %965 = vmatpush.msra.mxu0 0.0
      %966 = vmatpush.msra.mxu0 0.0
      %967 = vmatpush.msra.mxu0 0.0
      %968 = vmatpush.msra.mxu0 %v954
      %969 = vmatpush.msra.mxu0 %v938
      %970 = vmatpush.msra.mxu0 %v937
      %971 = vmatpush.msra.mxu0 %v936
      %972 = vmatmul.f32.gmra.mxu0 %v947
      %v973 = vpop.f32.mrf.mxu0
      %v974 = vadd.f32 0.0, %v973
      %975 = vmatmul.f32.gmra.mxu0 %v950
      %v976 = vpop.f32.mrf.mxu0
      %v977 = vadd.f32 0.0, %v976
      %978 = vdwg.mxu0
      %v980 = vsel %vm945, %v925, 0
      %v983 = vsel %vm945, %v926, 0
      %985 = vmatpush.msra.mxu0 0.0
      %986 = vmatpush.msra.mxu0 0.0
      %987 = vmatpush.msra.mxu0 0.0
      %988 = vmatpush.msra.mxu0 0.0
      %989 = vmatpush.msra.mxu0 0.0
      %990 = vmatpush.msra.mxu0 0.0
      %991 = vmatpush.msra.mxu0 0.0
      %992 = vmatpush.msra.mxu0 0.0
      %993 = vmatpush.msra.mxu0 0.0
      %994 = vmatpush.msra.mxu0 0.0
      %995 = vmatpush.msra.mxu0 0.0
      %996 = vmatpush.msra.mxu0 0.0
      %997 = vmatpush.msra.mxu0 %v954
      %998 = vmatpush.msra.mxu0 %v938
      %999 = vmatpush.msra.mxu0 %v937
      %1000 = vmatpush.msra.mxu0 %v936
      %1001 = vmatmul.f32.gmra.mxu0 %v980
      %v1002 = vpop.f32.mrf.mxu0
      %v1003 = vadd.f32 0.0, %v1002
      %1004 = vmatmul.f32.gmra.mxu0 %v983
      %v1005 = vpop.f32.mrf.mxu0
      %v1006 = vadd.f32 0.0, %v1005
      %1007 = vdwg.mxu0
      %v1008 = vmax.f32 %v974, %v1003
      %v1009 = vmax.f32 %v977, %v1006
      %v1011 = vsel %vm952, %v944, 0
      %1013 = vmatpush.msra.mxu0 0.0
      %1014 = vmatpush.msra.mxu0 0.0
      %1015 = vmatpush.msra.mxu0 0.0
      %1016 = vmatpush.msra.mxu0 0.0
      %1017 = vmatpush.msra.mxu0 0.0
      %1018 = vmatpush.msra.mxu0 0.0
      %1019 = vmatpush.msra.mxu0 0.0
      %1020 = vmatpush.msra.mxu0 0.0
      %1021 = vmatpush.msra.mxu0 0.0
      %1022 = vmatpush.msra.mxu0 0.0
      %1023 = vmatpush.msra.mxu0 0.0
      %1024 = vmatpush.msra.mxu0 0.0
      %1025 = vmatpush.msra.mxu0 %v1011
      %1026 = vmatpush.msra.mxu0 %v943
      %1027 = vmatpush.msra.mxu0 %v942
      %1028 = vmatpush.msra.mxu0 %v941
      %1029 = vmatmul.f32.gmra.mxu0 %v947
      %v1030 = vpop.f32.mrf.mxu0
      %v1031 = vadd.f32 0.0, %v1030
      %1032 = vmatmul.f32.gmra.mxu0 %v950
      %v1033 = vpop.f32.mrf.mxu0
      %v1034 = vadd.f32 0.0, %v1033
      %1035 = vdwg.mxu0
      %1036 = vmatpush.msra.mxu0 0.0
      %1037 = vmatpush.msra.mxu0 0.0
      %1038 = vmatpush.msra.mxu0 0.0
      %1039 = vmatpush.msra.mxu0 0.0
      %1040 = vmatpush.msra.mxu0 0.0
      %1041 = vmatpush.msra.mxu0 0.0
      %1042 = vmatpush.msra.mxu0 0.0
      %1043 = vmatpush.msra.mxu0 0.0
      %1044 = vmatpush.msra.mxu0 0.0
      %1045 = vmatpush.msra.mxu0 0.0
      %1046 = vmatpush.msra.mxu0 0.0
      %1047 = vmatpush.msra.mxu0 0.0
      %1048 = vmatpush.msra.mxu0 %v1011
      %1049 = vmatpush.msra.mxu0 %v943
      %1050 = vmatpush.msra.mxu0 %v942
      %1051 = vmatpush.msra.mxu0 %v941
      %1052 = vmatmul.f32.gmra.mxu0 %v980
      %v1053 = vpop.f32.mrf.mxu0
      %v1054 = vadd.f32 0.0, %v1053
      %1055 = vmatmul.f32.gmra.mxu0 %v983
      %v1056 = vpop.f32.mrf.mxu0
      %v1057 = vadd.f32 0.0, %v1056
      %1058 = vdwg.mxu0
      %v1059 = vmax.f32 %v1031, %v1054
      %v1060 = vmax.f32 %v1034, %v1057
      %v1061 = vmax.f32 %v1008, %v1059
      %v1062 = vmax.f32 %v1009, %v1060
      %s1063 = smul.u32 %s928, 16
      %s1064 = scalar_lea.vmem [#allocation3], %s1063
      %1065 = vst.msk [vmem:[%s1064] sm:$0xff] %vm57, %v1061
      %vm1066 = vcmask 95232
      %1067 = vst.msk [vmem:[%s1064 + $0x8] sm:$0x3f] %vm1066, %v1062
    $region81: #{mynet_forward.1} parent=1 // loop_footer
      %s932 = sadd.s32 1, %s928
    $region82: #{mynet_forward.1} parent=1 // loop_footer_branch
      %927 = sbr.rel target = $region78
    $region83: #{mynet_forward.1} parent=1 // loop_exit
      _
    loop: start=0, step=1, limit=14
    $region84: #{mynet_forward.1} parent=1 // loop_pre_header
      _
    $region85: #{mynet_forward.1} parent=1 // loop_header
      %s1069 = sphi 0, %s1073
      %p1070 = scmp.ge.s32.totalorder %s1069, 14
    $region86: #{mynet_forward.1} parent=1 // loop_header_branch
      %1072 = sbr.rel (%p1070) target = $region90
    $region87: #{mynet_forward.1} parent=1 // loop_body
      %s1074 = smul.u32 %s1069, 64
      %s1075 = sadd.s32 %s1074, 1024
      %s1076 = sadd.s32 %s1075, 32
      %s1077 = scalar_lea.vmem [#allocation2], %s1075
      %v1078 = vld [vmem:[%s1077] sm:$0xff]
      %v1079 = vld [vmem:[%s1077 + $0x8] sm:$0xff]
      %v1080 = vld [vmem:[%s1077 + $0x10] sm:$0xff]
      %v1081 = vld [vmem:[%s1077 + $0x18] sm:$0xf]
      %s1082 = scalar_lea.vmem [#allocation2], %s1076
      %v1083 = vld [vmem:[%s1082] sm:$0xff]
      %v1084 = vld [vmem:[%s1082 + $0x8] sm:$0xff]
      %v1085 = vld [vmem:[%s1082 + $0x10] sm:$0xff]
      %v1086 = vld [vmem:[%s1082 + $0x18] sm:$0xf]
      %vm1087 = vcmask 228352
      %v1089 = vsel %vm1087, %v923, 0
      %v1092 = vsel %vm1087, %v924, 0
      %vm1094 = vcmask 1043456
      %v1096 = vsel %vm1094, %v1081, 0
      %1098 = vmatpush.msra.mxu0 0.0
      %1099 = vmatpush.msra.mxu0 0.0
      %1100 = vmatpush.msra.mxu0 0.0
      %1101 = vmatpush.msra.mxu0 0.0
      %1102 = vmatpush.msra.mxu0 0.0
      %1103 = vmatpush.msra.mxu0 0.0
      %1104 = vmatpush.msra.mxu0 0.0
      %1105 = vmatpush.msra.mxu0 0.0
      %1106 = vmatpush.msra.mxu0 0.0
      %1107 = vmatpush.msra.mxu0 0.0
      %1108 = vmatpush.msra.mxu0 0.0
      %1109 = vmatpush.msra.mxu0 0.0
      %1110 = vmatpush.msra.mxu0 %v1096
      %1111 = vmatpush.msra.mxu0 %v1080
      %1112 = vmatpush.msra.mxu0 %v1079
      %1113 = vmatpush.msra.mxu0 %v1078
      %1114 = vmatmul.f32.gmra.mxu0 %v1089
      %v1115 = vpop.f32.mrf.mxu0
      %v1116 = vadd.f32 0.0, %v1115
      %1117 = vmatmul.f32.gmra.mxu0 %v1092
      %v1118 = vpop.f32.mrf.mxu0
      %v1119 = vadd.f32 0.0, %v1118
      %1120 = vdwg.mxu0
      %v1122 = vsel %vm1087, %v925, 0
      %v1125 = vsel %vm1087, %v926, 0
      %1127 = vmatpush.msra.mxu0 0.0
      %1128 = vmatpush.msra.mxu0 0.0
      %1129 = vmatpush.msra.mxu0 0.0
      %1130 = vmatpush.msra.mxu0 0.0
      %1131 = vmatpush.msra.mxu0 0.0
      %1132 = vmatpush.msra.mxu0 0.0
      %1133 = vmatpush.msra.mxu0 0.0
      %1134 = vmatpush.msra.mxu0 0.0
      %1135 = vmatpush.msra.mxu0 0.0
      %1136 = vmatpush.msra.mxu0 0.0
      %1137 = vmatpush.msra.mxu0 0.0
      %1138 = vmatpush.msra.mxu0 0.0
      %1139 = vmatpush.msra.mxu0 %v1096
      %1140 = vmatpush.msra.mxu0 %v1080
      %1141 = vmatpush.msra.mxu0 %v1079
      %1142 = vmatpush.msra.mxu0 %v1078
      %1143 = vmatmul.f32.gmra.mxu0 %v1122
      %v1144 = vpop.f32.mrf.mxu0
      %v1145 = vadd.f32 0.0, %v1144
      %1146 = vmatmul.f32.gmra.mxu0 %v1125
      %v1147 = vpop.f32.mrf.mxu0
      %v1148 = vadd.f32 0.0, %v1147
      %1149 = vdwg.mxu0
      %v1150 = vmax.f32 %v1116, %v1145
      %v1151 = vmax.f32 %v1119, %v1148
      %v1153 = vsel %vm1094, %v1086, 0
      %1155 = vmatpush.msra.mxu0 0.0
      %1156 = vmatpush.msra.mxu0 0.0
      %1157 = vmatpush.msra.mxu0 0.0
      %1158 = vmatpush.msra.mxu0 0.0
      %1159 = vmatpush.msra.mxu0 0.0
      %1160 = vmatpush.msra.mxu0 0.0
      %1161 = vmatpush.msra.mxu0 0.0
      %1162 = vmatpush.msra.mxu0 0.0
      %1163 = vmatpush.msra.mxu0 0.0
      %1164 = vmatpush.msra.mxu0 0.0
      %1165 = vmatpush.msra.mxu0 0.0
      %1166 = vmatpush.msra.mxu0 0.0
      %1167 = vmatpush.msra.mxu0 %v1153
      %1168 = vmatpush.msra.mxu0 %v1085
      %1169 = vmatpush.msra.mxu0 %v1084
      %1170 = vmatpush.msra.mxu0 %v1083
      %1171 = vmatmul.f32.gmra.mxu0 %v1089
      %v1172 = vpop.f32.mrf.mxu0
      %v1173 = vadd.f32 0.0, %v1172
      %1174 = vmatmul.f32.gmra.mxu0 %v1092
      %v1175 = vpop.f32.mrf.mxu0
      %v1176 = vadd.f32 0.0, %v1175
      %1177 = vdwg.mxu0
      %1178 = vmatpush.msra.mxu0 0.0
      %1179 = vmatpush.msra.mxu0 0.0
      %1180 = vmatpush.msra.mxu0 0.0
      %1181 = vmatpush.msra.mxu0 0.0
      %1182 = vmatpush.msra.mxu0 0.0
      %1183 = vmatpush.msra.mxu0 0.0
      %1184 = vmatpush.msra.mxu0 0.0
      %1185 = vmatpush.msra.mxu0 0.0
      %1186 = vmatpush.msra.mxu0 0.0
      %1187 = vmatpush.msra.mxu0 0.0
      %1188 = vmatpush.msra.mxu0 0.0
      %1189 = vmatpush.msra.mxu0 0.0
      %1190 = vmatpush.msra.mxu0 %v1153
      %1191 = vmatpush.msra.mxu0 %v1085
      %1192 = vmatpush.msra.mxu0 %v1084
      %1193 = vmatpush.msra.mxu0 %v1083
      %1194 = vmatmul.f32.gmra.mxu0 %v1122
      %v1195 = vpop.f32.mrf.mxu0
      %v1196 = vadd.f32 0.0, %v1195
      %1197 = vmatmul.f32.gmra.mxu0 %v1125
      %v1198 = vpop.f32.mrf.mxu0
      %v1199 = vadd.f32 0.0, %v1198
      %1200 = vdwg.mxu0
      %v1201 = vmax.f32 %v1173, %v1196
      %v1202 = vmax.f32 %v1176, %v1199
      %v1203 = vmax.f32 %v1150, %v1201
      %v1204 = vmax.f32 %v1151, %v1202
      %s1205 = smul.u32 %s1069, 16
      %s1206 = sadd.s32 %s1205, 224
      %s1207 = scalar_lea.vmem [#allocation3], %s1206
      %1208 = vst.msk [vmem:[%s1207] sm:$0xff] %vm57, %v1203
      %vm1209 = vcmask 95232
      %1210 = vst.msk [vmem:[%s1207 + $0x8] sm:$0x3f] %vm1209, %v1204
    $region88: #{mynet_forward.1} parent=1 // loop_footer
      %s1073 = sadd.s32 1, %s1069
    $region89: #{mynet_forward.1} parent=1 // loop_footer_branch
      %1068 = sbr.rel target = $region85
    $region90: #{mynet_forward.1} parent=1 // loop_exit
      _
    %v1211 = vld [vmem:[%s4] sm:$0x1]
    %v1212 = vld [vmem:[#allocation3] sm:$0xff]
    %v1213 = vld [vmem:[#allocation3 + $0x8] sm:$0xff]
    %v1214 = vld [vmem:[#allocation3 + $0x10] sm:$0xff]
    %v1215 = vld [vmem:[#allocation3 + $0x18] sm:$0xff]
    %v1216 = vld [vmem:[#allocation3 + $0x20] sm:$0xff]
    %v1217 = vld [vmem:[#allocation3 + $0x28] sm:$0xff]
    %v1218 = vld [vmem:[#allocation3 + $0x30] sm:$0xff]
    %v1219 = vld [vmem:[#allocation3 + $0x38] sm:$0xff]
    %v1220 = vld [vmem:[#allocation3 + $0x40] sm:$0xff]
    %v1221 = vld [vmem:[#allocation3 + $0x48] sm:$0xff]
    %v1222 = vld [vmem:[#allocation3 + $0x50] sm:$0xff]
    %v1223 = vld [vmem:[#allocation3 + $0x58] sm:$0xff]
    %v1224 = vld [vmem:[#allocation3 + $0x60] sm:$0xff]
    %v1225 = vld [vmem:[#allocation3 + $0x68] sm:$0xff]
    %v1226 = vld [vmem:[%s3] sm:$0xff]
    %v1227 = vld [vmem:[%s3 + $0x8] sm:$0xf]
    %v1228 = vld [vmem:[#allocation3 + $0x1] sm:$0xff]
    %v1229 = vld [vmem:[#allocation3 + $0x9] sm:$0xff]
    %v1230 = vld [vmem:[#allocation3 + $0x11] sm:$0xff]
    %v1231 = vld [vmem:[#allocation3 + $0x19] sm:$0xff]
    %v1232 = vld [vmem:[#allocation3 + $0x21] sm:$0xff]
    %v1233 = vld [vmem:[#allocation3 + $0x29] sm:$0xff]
    %v1234 = vld [vmem:[#allocation3 + $0x31] sm:$0xff]
    %v1235 = vld [vmem:[#allocation3 + $0x39] sm:$0xff]
    %v1236 = vld [vmem:[#allocation3 + $0x41] sm:$0xff]
    %v1237 = vld [vmem:[#allocation3 + $0x49] sm:$0xff]
    %v1238 = vld [vmem:[#allocation3 + $0x51] sm:$0xff]
    %v1239 = vld [vmem:[#allocation3 + $0x59] sm:$0xff]
    %v1240 = vld [vmem:[#allocation3 + $0x61] sm:$0xff]
    %v1241 = vld [vmem:[#allocation3 + $0x69] sm:$0xff]
    %v1242 = vld [vmem:[%s3 + $0xc] sm:$0xff]
    %v1243 = vld [vmem:[%s3 + $0x14] sm:$0xf]
    %v1245 = vsel %vm57, %v1228, 0
    %v1248 = vsel %vm57, %v1229, 0
    %v1251 = vsel %vm57, %v1230, 0
    %v1254 = vsel %vm57, %v1231, 0
    %v1257 = vsel %vm57, %v1232, 0
    %v1260 = vsel %vm57, %v1233, 0
    %v1263 = vsel %vm57, %v1234, 0
    %v1266 = vsel %vm57, %v1235, 0
    %v1269 = vsel %vm57, %v1236, 0
    %v1272 = vsel %vm57, %v1237, 0
    %v1275 = vsel %vm57, %v1238, 0
    %v1278 = vsel %vm57, %v1239, 0
    %v1281 = vsel %vm57, %v1240, 0
    %v1284 = vsel %vm57, %v1241, 0
    %vm1286 = vcmask 1043456
    %v1288 = vsel %vm1286, %v1243, 0
    %1290 = vmatpush.msra.mxu0 0.0
    %1291 = vmatpush.msra.mxu0 0.0
    %1292 = vmatpush.msra.mxu0 0.0
    %1293 = vmatpush.msra.mxu0 0.0
    %1294 = vmatpush.msra.mxu0 0.0
    %1295 = vmatpush.msra.mxu0 0.0
    %1296 = vmatpush.msra.mxu0 0.0
    %1297 = vmatpush.msra.mxu0 0.0
    %1298 = vmatpush.msra.mxu0 0.0
    %1299 = vmatpush.msra.mxu0 0.0
    %1300 = vmatpush.msra.mxu0 0.0
    %1301 = vmatpush.msra.mxu0 0.0
    %1302 = vmatpush.msra.mxu0 0.0
    %1303 = vmatpush.msra.mxu0 0.0
    %1304 = vmatpush.msra.mxu0 %v1288
    %1305 = vmatpush.msra.mxu0 %v1242
    %1306 = vmatmul.f32.gmra.mxu0 %v1245
    %v1307 = vpop.f32.mrf.mxu0
    %v1308 = vadd.f32 0.0, %v1307
    %1309 = vmatmul.f32.gmra.mxu0 %v1248
    %v1310 = vpop.f32.mrf.mxu0
    %v1311 = vadd.f32 0.0, %v1310
    %1312 = vmatmul.f32.gmra.mxu0 %v1251
    %v1313 = vpop.f32.mrf.mxu0
    %v1314 = vadd.f32 0.0, %v1313
    %1315 = vmatmul.f32.gmra.mxu0 %v1254
    %v1316 = vpop.f32.mrf.mxu0
    %v1317 = vadd.f32 0.0, %v1316
    %1318 = vmatmul.f32.gmra.mxu0 %v1257
    %v1319 = vpop.f32.mrf.mxu0
    %v1320 = vadd.f32 0.0, %v1319
    %1321 = vmatmul.f32.gmra.mxu0 %v1260
    %v1322 = vpop.f32.mrf.mxu0
    %v1323 = vadd.f32 0.0, %v1322
    %1324 = vmatmul.f32.gmra.mxu0 %v1263
    %v1325 = vpop.f32.mrf.mxu0
    %v1326 = vadd.f32 0.0, %v1325
    %1327 = vmatmul.f32.gmra.mxu0 %v1266
    %v1328 = vpop.f32.mrf.mxu0
    %v1329 = vadd.f32 0.0, %v1328
    %1330 = vmatmul.f32.gmra.mxu0 %v1269
    %v1331 = vpop.f32.mrf.mxu0
    %v1332 = vadd.f32 0.0, %v1331
    %1333 = vmatmul.f32.gmra.mxu0 %v1272
    %v1334 = vpop.f32.mrf.mxu0
    %v1335 = vadd.f32 0.0, %v1334
    %1336 = vmatmul.f32.gmra.mxu0 %v1275
    %v1337 = vpop.f32.mrf.mxu0
    %v1338 = vadd.f32 0.0, %v1337
    %1339 = vmatmul.f32.gmra.mxu0 %v1278
    %v1340 = vpop.f32.mrf.mxu0
    %v1341 = vadd.f32 0.0, %v1340
    %1342 = vmatmul.f32.gmra.mxu0 %v1281
    %v1343 = vpop.f32.mrf.mxu0
    %v1344 = vadd.f32 0.0, %v1343
    %1345 = vmatmul.f32.gmra.mxu0 %v1284
    %v1346 = vpop.f32.mrf.mxu0
    %v1347 = vadd.f32 0.0, %v1346
    %1348 = vdwg.mxu0
    %v1350 = vsel %vm57, %v1212, 0
    %v1353 = vsel %vm57, %v1213, 0
    %v1356 = vsel %vm57, %v1214, 0
    %v1359 = vsel %vm57, %v1215, 0
    %v1362 = vsel %vm57, %v1216, 0
    %v1365 = vsel %vm57, %v1217, 0
    %v1368 = vsel %vm57, %v1218, 0
    %v1371 = vsel %vm57, %v1219, 0
    %v1374 = vsel %vm57, %v1220, 0
    %v1377 = vsel %vm57, %v1221, 0
    %v1380 = vsel %vm57, %v1222, 0
    %v1383 = vsel %vm57, %v1223, 0
    %v1386 = vsel %vm57, %v1224, 0
    %v1389 = vsel %vm57, %v1225, 0
    %v1392 = vsel %vm1286, %v1227, 0
    %1394 = vmatpush.msra.mxu0 0.0
    %1395 = vmatpush.msra.mxu0 0.0
    %1396 = vmatpush.msra.mxu0 0.0
    %1397 = vmatpush.msra.mxu0 0.0
    %1398 = vmatpush.msra.mxu0 0.0
    %1399 = vmatpush.msra.mxu0 0.0
    %1400 = vmatpush.msra.mxu0 0.0
    %1401 = vmatpush.msra.mxu0 0.0
    %1402 = vmatpush.msra.mxu0 0.0
    %1403 = vmatpush.msra.mxu0 0.0
    %1404 = vmatpush.msra.mxu0 0.0
    %1405 = vmatpush.msra.mxu0 0.0
    %1406 = vmatpush.msra.mxu0 0.0
    %1407 = vmatpush.msra.mxu0 0.0
    %1408 = vmatpush.msra.mxu0 %v1392
    %1409 = vmatpush.msra.mxu0 %v1226
    %1410 = vmatmul.f32.gmra.mxu0 %v1350
    %v1411 = vpop.f32.mrf.mxu0
    %v1412 = vadd.f32 %v1308, %v1411
    %1413 = vmatmul.f32.gmra.mxu0 %v1353
    %v1414 = vpop.f32.mrf.mxu0
    %v1415 = vadd.f32 %v1311, %v1414
    %1416 = vmatmul.f32.gmra.mxu0 %v1356
    %v1417 = vpop.f32.mrf.mxu0
    %v1418 = vadd.f32 %v1314, %v1417
    %1419 = vmatmul.f32.gmra.mxu0 %v1359
    %v1420 = vpop.f32.mrf.mxu0
    %v1421 = vadd.f32 %v1317, %v1420
    %1422 = vmatmul.f32.gmra.mxu0 %v1362
    %v1423 = vpop.f32.mrf.mxu0
    %v1424 = vadd.f32 %v1320, %v1423
    %1425 = vmatmul.f32.gmra.mxu0 %v1365
    %v1426 = vpop.f32.mrf.mxu0
    %v1427 = vadd.f32 %v1323, %v1426
    %1428 = vmatmul.f32.gmra.mxu0 %v1368
    %v1429 = vpop.f32.mrf.mxu0
    %v1430 = vadd.f32 %v1326, %v1429
    %1431 = vmatmul.f32.gmra.mxu0 %v1371
    %v1432 = vpop.f32.mrf.mxu0
    %v1433 = vadd.f32 %v1329, %v1432
    %1434 = vmatmul.f32.gmra.mxu0 %v1374
    %v1435 = vpop.f32.mrf.mxu0
    %v1436 = vadd.f32 %v1332, %v1435
    %1437 = vmatmul.f32.gmra.mxu0 %v1377
    %v1438 = vpop.f32.mrf.mxu0
    %v1439 = vadd.f32 %v1335, %v1438
    %1440 = vmatmul.f32.gmra.mxu0 %v1380
    %v1441 = vpop.f32.mrf.mxu0
    %v1442 = vadd.f32 %v1338, %v1441
    %1443 = vmatmul.f32.gmra.mxu0 %v1383
    %v1444 = vpop.f32.mrf.mxu0
    %v1445 = vadd.f32 %v1341, %v1444
    %1446 = vmatmul.f32.gmra.mxu0 %v1386
    %v1447 = vpop.f32.mrf.mxu0
    %v1448 = vadd.f32 %v1344, %v1447
    %1449 = vmatmul.f32.gmra.mxu0 %v1389
    %v1450 = vpop.f32.mrf.mxu0
    %v1451 = vadd.f32 %v1347, %v1450
    %1452 = vdwg.mxu0
    %v1453 = vld [vmem:[#allocation3 + $0x2] sm:$0xff]
    %v1454 = vld [vmem:[#allocation3 + $0xa] sm:$0xff]
    %v1455 = vld [vmem:[#allocation3 + $0x12] sm:$0xff]
    %v1456 = vld [vmem:[#allocation3 + $0x1a] sm:$0xff]
    %v1457 = vld [vmem:[#allocation3 + $0x22] sm:$0xff]
    %v1458 = vld [vmem:[#allocation3 + $0x2a] sm:$0xff]
    %v1459 = vld [vmem:[#allocation3 + $0x32] sm:$0xff]
    %v1460 = vld [vmem:[#allocation3 + $0x3a] sm:$0xff]
    %v1461 = vld [vmem:[#allocation3 + $0x42] sm:$0xff]
    %v1462 = vld [vmem:[#allocation3 + $0x4a] sm:$0xff]
    %v1463 = vld [vmem:[#allocation3 + $0x52] sm:$0xff]
    %v1464 = vld [vmem:[#allocation3 + $0x5a] sm:$0xff]
    %v1465 = vld [vmem:[#allocation3 + $0x62] sm:$0xff]
    %v1466 = vld [vmem:[#allocation3 + $0x6a] sm:$0xff]
    %v1467 = vld [vmem:[%s3 + $0x18] sm:$0xff]
    %v1468 = vld [vmem:[%s3 + $0x20] sm:$0xf]
    %v1470 = vsel %vm57, %v1453, 0
    %v1473 = vsel %vm57, %v1454, 0
    %v1476 = vsel %vm57, %v1455, 0
    %v1479 = vsel %vm57, %v1456, 0
    %v1482 = vsel %vm57, %v1457, 0
    %v1485 = vsel %vm57, %v1458, 0
    %v1488 = vsel %vm57, %v1459, 0
    %v1491 = vsel %vm57, %v1460, 0
    %v1494 = vsel %vm57, %v1461, 0
    %v1497 = vsel %vm57, %v1462, 0
    %v1500 = vsel %vm57, %v1463, 0
    %v1503 = vsel %vm57, %v1464, 0
    %v1506 = vsel %vm57, %v1465, 0
    %v1509 = vsel %vm57, %v1466, 0
    %v1512 = vsel %vm1286, %v1468, 0
    %1514 = vmatpush.msra.mxu0 0.0
    %1515 = vmatpush.msra.mxu0 0.0
    %1516 = vmatpush.msra.mxu0 0.0
    %1517 = vmatpush.msra.mxu0 0.0
    %1518 = vmatpush.msra.mxu0 0.0
    %1519 = vmatpush.msra.mxu0 0.0
    %1520 = vmatpush.msra.mxu0 0.0
    %1521 = vmatpush.msra.mxu0 0.0
    %1522 = vmatpush.msra.mxu0 0.0
    %1523 = vmatpush.msra.mxu0 0.0
    %1524 = vmatpush.msra.mxu0 0.0
    %1525 = vmatpush.msra.mxu0 0.0
    %1526 = vmatpush.msra.mxu0 0.0
    %1527 = vmatpush.msra.mxu0 0.0
    %1528 = vmatpush.msra.mxu0 %v1512
    %1529 = vmatpush.msra.mxu0 %v1467
    %1530 = vmatmul.f32.gmra.mxu0 %v1470
    %v1531 = vpop.f32.mrf.mxu0
    %v1532 = vadd.f32 0.0, %v1531
    %1533 = vmatmul.f32.gmra.mxu0 %v1473
    %v1534 = vpop.f32.mrf.mxu0
    %v1535 = vadd.f32 0.0, %v1534
    %1536 = vmatmul.f32.gmra.mxu0 %v1476
    %v1537 = vpop.f32.mrf.mxu0
    %v1538 = vadd.f32 0.0, %v1537
    %1539 = vmatmul.f32.gmra.mxu0 %v1479
    %v1540 = vpop.f32.mrf.mxu0
    %v1541 = vadd.f32 0.0, %v1540
    %1542 = vmatmul.f32.gmra.mxu0 %v1482
    %v1543 = vpop.f32.mrf.mxu0
    %v1544 = vadd.f32 0.0, %v1543
    %1545 = vmatmul.f32.gmra.mxu0 %v1485
    %v1546 = vpop.f32.mrf.mxu0
    %v1547 = vadd.f32 0.0, %v1546
    %1548 = vmatmul.f32.gmra.mxu0 %v1488
    %v1549 = vpop.f32.mrf.mxu0
    %v1550 = vadd.f32 0.0, %v1549
    %1551 = vmatmul.f32.gmra.mxu0 %v1491
    %v1552 = vpop.f32.mrf.mxu0
    %v1553 = vadd.f32 0.0, %v1552
    %1554 = vmatmul.f32.gmra.mxu0 %v1494
    %v1555 = vpop.f32.mrf.mxu0
    %v1556 = vadd.f32 0.0, %v1555
    %1557 = vmatmul.f32.gmra.mxu0 %v1497
    %v1558 = vpop.f32.mrf.mxu0
    %v1559 = vadd.f32 0.0, %v1558
    %1560 = vmatmul.f32.gmra.mxu0 %v1500
    %v1561 = vpop.f32.mrf.mxu0
    %v1562 = vadd.f32 0.0, %v1561
    %1563 = vmatmul.f32.gmra.mxu0 %v1503
    %v1564 = vpop.f32.mrf.mxu0
    %v1565 = vadd.f32 0.0, %v1564
    %1566 = vmatmul.f32.gmra.mxu0 %v1506
    %v1567 = vpop.f32.mrf.mxu0
    %v1568 = vadd.f32 0.0, %v1567
    %1569 = vmatmul.f32.gmra.mxu0 %v1509
    %v1570 = vpop.f32.mrf.mxu0
    %v1571 = vadd.f32 0.0, %v1570
    %1572 = vdwg.mxu0
    %v1573 = vadd.f32 %v1412, %v1532
    %v1574 = vadd.f32 %v1415, %v1535
    %v1575 = vadd.f32 %v1418, %v1538
    %v1576 = vadd.f32 %v1421, %v1541
    %v1577 = vadd.f32 %v1424, %v1544
    %v1578 = vadd.f32 %v1427, %v1547
    %v1579 = vadd.f32 %v1430, %v1550
    %v1580 = vadd.f32 %v1433, %v1553
    %v1581 = vadd.f32 %v1436, %v1556
    %v1582 = vadd.f32 %v1439, %v1559
    %v1583 = vadd.f32 %v1442, %v1562
    %v1584 = vadd.f32 %v1445, %v1565
    %v1585 = vadd.f32 %v1448, %v1568
    %v1586 = vadd.f32 %v1451, %v1571
    %v1587 = vld [vmem:[#allocation3 + $0x10] sm:$0xff]
    %v1588 = vld [vmem:[#allocation3 + $0x18] sm:$0xff]
    %v1589 = vld [vmem:[#allocation3 + $0x20] sm:$0xff]
    %v1590 = vld [vmem:[#allocation3 + $0x28] sm:$0xff]
    %v1591 = vld [vmem:[#allocation3 + $0x30] sm:$0xff]
    %v1592 = vld [vmem:[#allocation3 + $0x38] sm:$0xff]
    %v1593 = vld [vmem:[#allocation3 + $0x40] sm:$0xff]
    %v1594 = vld [vmem:[#allocation3 + $0x48] sm:$0xff]
    %v1595 = vld [vmem:[#allocation3 + $0x50] sm:$0xff]
    %v1596 = vld [vmem:[#allocation3 + $0x58] sm:$0xff]
    %v1597 = vld [vmem:[#allocation3 + $0x60] sm:$0xff]
    %v1598 = vld [vmem:[#allocation3 + $0x68] sm:$0xff]
    %v1599 = vld [vmem:[#allocation3 + $0x70] sm:$0xff]
    %v1600 = vld [vmem:[#allocation3 + $0x78] sm:$0xff]
    %v1601 = vld [vmem:[%s3 + $0x24] sm:$0xff]
    %v1602 = vld [vmem:[%s3 + $0x2c] sm:$0xf]
    %v1604 = vsel %vm57, %v1587, 0
    %v1607 = vsel %vm57, %v1588, 0
    %v1610 = vsel %vm57, %v1589, 0
    %v1613 = vsel %vm57, %v1590, 0
    %v1616 = vsel %vm57, %v1591, 0
    %v1619 = vsel %vm57, %v1592, 0
    %v1622 = vsel %vm57, %v1593, 0
    %v1625 = vsel %vm57, %v1594, 0
    %v1628 = vsel %vm57, %v1595, 0
    %v1631 = vsel %vm57, %v1596, 0
    %v1634 = vsel %vm57, %v1597, 0
    %v1637 = vsel %vm57, %v1598, 0
    %v1640 = vsel %vm57, %v1599, 0
    %v1643 = vsel %vm57, %v1600, 0
    %v1646 = vsel %vm1286, %v1602, 0
    %1648 = vmatpush.msra.mxu0 0.0
    %1649 = vmatpush.msra.mxu0 0.0
    %1650 = vmatpush.msra.mxu0 0.0
    %1651 = vmatpush.msra.mxu0 0.0
    %1652 = vmatpush.msra.mxu0 0.0
    %1653 = vmatpush.msra.mxu0 0.0
    %1654 = vmatpush.msra.mxu0 0.0
    %1655 = vmatpush.msra.mxu0 0.0
    %1656 = vmatpush.msra.mxu0 0.0
    %1657 = vmatpush.msra.mxu0 0.0
    %1658 = vmatpush.msra.mxu0 0.0
    %1659 = vmatpush.msra.mxu0 0.0
    %1660 = vmatpush.msra.mxu0 0.0
    %1661 = vmatpush.msra.mxu0 0.0
    %1662 = vmatpush.msra.mxu0 %v1646
    %1663 = vmatpush.msra.mxu0 %v1601
    %1664 = vmatmul.f32.gmra.mxu0 %v1604
    %v1665 = vpop.f32.mrf.mxu0
    %v1666 = vadd.f32 0.0, %v1665
    %1667 = vmatmul.f32.gmra.mxu0 %v1607
    %v1668 = vpop.f32.mrf.mxu0
    %v1669 = vadd.f32 0.0, %v1668
    %1670 = vmatmul.f32.gmra.mxu0 %v1610
    %v1671 = vpop.f32.mrf.mxu0
    %v1672 = vadd.f32 0.0, %v1671
    %1673 = vmatmul.f32.gmra.mxu0 %v1613
    %v1674 = vpop.f32.mrf.mxu0
    %v1675 = vadd.f32 0.0, %v1674
    %1676 = vmatmul.f32.gmra.mxu0 %v1616
    %v1677 = vpop.f32.mrf.mxu0
    %v1678 = vadd.f32 0.0, %v1677
    %1679 = vmatmul.f32.gmra.mxu0 %v1619
    %v1680 = vpop.f32.mrf.mxu0
    %v1681 = vadd.f32 0.0, %v1680
    %1682 = vmatmul.f32.gmra.mxu0 %v1622
    %v1683 = vpop.f32.mrf.mxu0
    %v1684 = vadd.f32 0.0, %v1683
    %1685 = vmatmul.f32.gmra.mxu0 %v1625
    %v1686 = vpop.f32.mrf.mxu0
    %v1687 = vadd.f32 0.0, %v1686
    %1688 = vmatmul.f32.gmra.mxu0 %v1628
    %v1689 = vpop.f32.mrf.mxu0
    %v1690 = vadd.f32 0.0, %v1689
    %1691 = vmatmul.f32.gmra.mxu0 %v1631
    %v1692 = vpop.f32.mrf.mxu0
    %v1693 = vadd.f32 0.0, %v1692
    %1694 = vmatmul.f32.gmra.mxu0 %v1634
    %v1695 = vpop.f32.mrf.mxu0
    %v1696 = vadd.f32 0.0, %v1695
    %1697 = vmatmul.f32.gmra.mxu0 %v1637
    %v1698 = vpop.f32.mrf.mxu0
    %v1699 = vadd.f32 0.0, %v1698
    %1700 = vmatmul.f32.gmra.mxu0 %v1640
    %v1701 = vpop.f32.mrf.mxu0
    %v1702 = vadd.f32 0.0, %v1701
    %1703 = vmatmul.f32.gmra.mxu0 %v1643
    %v1704 = vpop.f32.mrf.mxu0
    %v1705 = vadd.f32 0.0, %v1704
    %1706 = vdwg.mxu0
    %v1707 = vadd.f32 %v1573, %v1666
    %v1708 = vadd.f32 %v1574, %v1669
    %v1709 = vadd.f32 %v1575, %v1672
    %v1710 = vadd.f32 %v1576, %v1675
    %v1711 = vadd.f32 %v1577, %v1678
    %v1712 = vadd.f32 %v1578, %v1681
    %v1713 = vadd.f32 %v1579, %v1684
    %v1714 = vadd.f32 %v1580, %v1687
    %v1715 = vadd.f32 %v1581, %v1690
    %v1716 = vadd.f32 %v1582, %v1693
    %v1717 = vadd.f32 %v1583, %v1696
    %v1718 = vadd.f32 %v1584, %v1699
    %v1719 = vadd.f32 %v1585, %v1702
    %v1720 = vadd.f32 %v1586, %v1705
    %v1721 = vld [vmem:[#allocation3 + $0x11] sm:$0xff]
    %v1722 = vld [vmem:[#allocation3 + $0x19] sm:$0xff]
    %v1723 = vld [vmem:[#allocation3 + $0x21] sm:$0xff]
    %v1724 = vld [vmem:[#allocation3 + $0x29] sm:$0xff]
    %v1725 = vld [vmem:[#allocation3 + $0x31] sm:$0xff]
    %v1726 = vld [vmem:[#allocation3 + $0x39] sm:$0xff]
    %v1727 = vld [vmem:[#allocation3 + $0x41] sm:$0xff]
    %v1728 = vld [vmem:[#allocation3 + $0x49] sm:$0xff]
    %v1729 = vld [vmem:[#allocation3 + $0x51] sm:$0xff]
    %v1730 = vld [vmem:[#allocation3 + $0x59] sm:$0xff]
    %v1731 = vld [vmem:[#allocation3 + $0x61] sm:$0xff]
    %v1732 = vld [vmem:[#allocation3 + $0x69] sm:$0xff]
    %v1733 = vld [vmem:[#allocation3 + $0x71] sm:$0xff]
    %v1734 = vld [vmem:[#allocation3 + $0x79] sm:$0xff]
    %v1735 = vld [vmem:[%s3 + $0x30] sm:$0xff]
    %v1736 = vld [vmem:[%s3 + $0x38] sm:$0xf]
    %v1738 = vsel %vm57, %v1721, 0
    %v1741 = vsel %vm57, %v1722, 0
    %v1744 = vsel %vm57, %v1723, 0
    %v1747 = vsel %vm57, %v1724, 0
    %v1750 = vsel %vm57, %v1725, 0
    %v1753 = vsel %vm57, %v1726, 0
    %v1756 = vsel %vm57, %v1727, 0
    %v1759 = vsel %vm57, %v1728, 0
    %v1762 = vsel %vm57, %v1729, 0
    %v1765 = vsel %vm57, %v1730, 0
    %v1768 = vsel %vm57, %v1731, 0
    %v1771 = vsel %vm57, %v1732, 0
    %v1774 = vsel %vm57, %v1733, 0
    %v1777 = vsel %vm57, %v1734, 0
    %v1780 = vsel %vm1286, %v1736, 0
    %1782 = vmatpush.msra.mxu0 0.0
    %1783 = vmatpush.msra.mxu0 0.0
    %1784 = vmatpush.msra.mxu0 0.0
    %1785 = vmatpush.msra.mxu0 0.0
    %1786 = vmatpush.msra.mxu0 0.0
    %1787 = vmatpush.msra.mxu0 0.0
    %1788 = vmatpush.msra.mxu0 0.0
    %1789 = vmatpush.msra.mxu0 0.0
    %1790 = vmatpush.msra.mxu0 0.0
    %1791 = vmatpush.msra.mxu0 0.0
    %1792 = vmatpush.msra.mxu0 0.0
    %1793 = vmatpush.msra.mxu0 0.0
    %1794 = vmatpush.msra.mxu0 0.0
    %1795 = vmatpush.msra.mxu0 0.0
    %1796 = vmatpush.msra.mxu0 %v1780
    %1797 = vmatpush.msra.mxu0 %v1735
    %1798 = vmatmul.f32.gmra.mxu0 %v1738
    %v1799 = vpop.f32.mrf.mxu0
    %v1800 = vadd.f32 0.0, %v1799
    %1801 = vmatmul.f32.gmra.mxu0 %v1741
    %v1802 = vpop.f32.mrf.mxu0
    %v1803 = vadd.f32 0.0, %v1802
    %1804 = vmatmul.f32.gmra.mxu0 %v1744
    %v1805 = vpop.f32.mrf.mxu0
    %v1806 = vadd.f32 0.0, %v1805
    %1807 = vmatmul.f32.gmra.mxu0 %v1747
    %v1808 = vpop.f32.mrf.mxu0
    %v1809 = vadd.f32 0.0, %v1808
    %1810 = vmatmul.f32.gmra.mxu0 %v1750
    %v1811 = vpop.f32.mrf.mxu0
    %v1812 = vadd.f32 0.0, %v1811
    %1813 = vmatmul.f32.gmra.mxu0 %v1753
    %v1814 = vpop.f32.mrf.mxu0
    %v1815 = vadd.f32 0.0, %v1814
    %1816 = vmatmul.f32.gmra.mxu0 %v1756
    %v1817 = vpop.f32.mrf.mxu0
    %v1818 = vadd.f32 0.0, %v1817
    %1819 = vmatmul.f32.gmra.mxu0 %v1759
    %v1820 = vpop.f32.mrf.mxu0
    %v1821 = vadd.f32 0.0, %v1820
    %1822 = vmatmul.f32.gmra.mxu0 %v1762
    %v1823 = vpop.f32.mrf.mxu0
    %v1824 = vadd.f32 0.0, %v1823
    %1825 = vmatmul.f32.gmra.mxu0 %v1765
    %v1826 = vpop.f32.mrf.mxu0
    %v1827 = vadd.f32 0.0, %v1826
    %1828 = vmatmul.f32.gmra.mxu0 %v1768
    %v1829 = vpop.f32.mrf.mxu0
    %v1830 = vadd.f32 0.0, %v1829
    %1831 = vmatmul.f32.gmra.mxu0 %v1771
    %v1832 = vpop.f32.mrf.mxu0
    %v1833 = vadd.f32 0.0, %v1832
    %1834 = vmatmul.f32.gmra.mxu0 %v1774
    %v1835 = vpop.f32.mrf.mxu0
    %v1836 = vadd.f32 0.0, %v1835
    %1837 = vmatmul.f32.gmra.mxu0 %v1777
    %v1838 = vpop.f32.mrf.mxu0
    %v1839 = vadd.f32 0.0, %v1838
    %1840 = vdwg.mxu0
    %v1841 = vadd.f32 %v1707, %v1800
    %v1842 = vadd.f32 %v1708, %v1803
    %v1843 = vadd.f32 %v1709, %v1806
    %v1844 = vadd.f32 %v1710, %v1809
    %v1845 = vadd.f32 %v1711, %v1812
    %v1846 = vadd.f32 %v1712, %v1815
    %v1847 = vadd.f32 %v1713, %v1818
    %v1848 = vadd.f32 %v1714, %v1821
    %v1849 = vadd.f32 %v1715, %v1824
    %v1850 = vadd.f32 %v1716, %v1827
    %v1851 = vadd.f32 %v1717, %v1830
    %v1852 = vadd.f32 %v1718, %v1833
    %v1853 = vadd.f32 %v1719, %v1836
    %v1854 = vadd.f32 %v1720, %v1839
    %v1855 = vld [vmem:[#allocation3 + $0x12] sm:$0xff]
    %v1856 = vld [vmem:[#allocation3 + $0x1a] sm:$0xff]
    %v1857 = vld [vmem:[#allocation3 + $0x22] sm:$0xff]
    %v1858 = vld [vmem:[#allocation3 + $0x2a] sm:$0xff]
    %v1859 = vld [vmem:[#allocation3 + $0x32] sm:$0xff]
    %v1860 = vld [vmem:[#allocation3 + $0x3a] sm:$0xff]
    %v1861 = vld [vmem:[#allocation3 + $0x42] sm:$0xff]
    %v1862 = vld [vmem:[#allocation3 + $0x4a] sm:$0xff]
    %v1863 = vld [vmem:[#allocation3 + $0x52] sm:$0xff]
    %v1864 = vld [vmem:[#allocation3 + $0x5a] sm:$0xff]
    %v1865 = vld [vmem:[#allocation3 + $0x62] sm:$0xff]
    %v1866 = vld [vmem:[#allocation3 + $0x6a] sm:$0xff]
    %v1867 = vld [vmem:[#allocation3 + $0x72] sm:$0xff]
    %v1868 = vld [vmem:[#allocation3 + $0x7a] sm:$0xff]
    %v1869 = vld [vmem:[%s3 + $0x3c] sm:$0xff]
    %v1870 = vld [vmem:[%s3 + $0x44] sm:$0xf]
    %v1872 = vsel %vm57, %v1855, 0
    %v1875 = vsel %vm57, %v1856, 0
    %v1878 = vsel %vm57, %v1857, 0
    %v1881 = vsel %vm57, %v1858, 0
    %v1884 = vsel %vm57, %v1859, 0
    %v1887 = vsel %vm57, %v1860, 0
    %v1890 = vsel %vm57, %v1861, 0
    %v1893 = vsel %vm57, %v1862, 0
    %v1896 = vsel %vm57, %v1863, 0
    %v1899 = vsel %vm57, %v1864, 0
    %v1902 = vsel %vm57, %v1865, 0
    %v1905 = vsel %vm57, %v1866, 0
    %v1908 = vsel %vm57, %v1867, 0
    %v1911 = vsel %vm57, %v1868, 0
    %v1914 = vsel %vm1286, %v1870, 0
    %1916 = vmatpush.msra.mxu0 0.0
    %1917 = vmatpush.msra.mxu0 0.0
    %1918 = vmatpush.msra.mxu0 0.0
    %1919 = vmatpush.msra.mxu0 0.0
    %1920 = vmatpush.msra.mxu0 0.0
    %1921 = vmatpush.msra.mxu0 0.0
    %1922 = vmatpush.msra.mxu0 0.0
    %1923 = vmatpush.msra.mxu0 0.0
    %1924 = vmatpush.msra.mxu0 0.0
    %1925 = vmatpush.msra.mxu0 0.0
    %1926 = vmatpush.msra.mxu0 0.0
    %1927 = vmatpush.msra.mxu0 0.0
    %1928 = vmatpush.msra.mxu0 0.0
    %1929 = vmatpush.msra.mxu0 0.0
    %1930 = vmatpush.msra.mxu0 %v1914
    %1931 = vmatpush.msra.mxu0 %v1869
    %1932 = vmatmul.f32.gmra.mxu0 %v1872
    %v1933 = vpop.f32.mrf.mxu0
    %v1934 = vadd.f32 0.0, %v1933
    %1935 = vmatmul.f32.gmra.mxu0 %v1875
    %v1936 = vpop.f32.mrf.mxu0
    %v1937 = vadd.f32 0.0, %v1936
    %1938 = vmatmul.f32.gmra.mxu0 %v1878
    %v1939 = vpop.f32.mrf.mxu0
    %v1940 = vadd.f32 0.0, %v1939
    %1941 = vmatmul.f32.gmra.mxu0 %v1881
    %v1942 = vpop.f32.mrf.mxu0
    %v1943 = vadd.f32 0.0, %v1942
    %1944 = vmatmul.f32.gmra.mxu0 %v1884
    %v1945 = vpop.f32.mrf.mxu0
    %v1946 = vadd.f32 0.0, %v1945
    %1947 = vmatmul.f32.gmra.mxu0 %v1887
    %v1948 = vpop.f32.mrf.mxu0
    %v1949 = vadd.f32 0.0, %v1948
    %1950 = vmatmul.f32.gmra.mxu0 %v1890
    %v1951 = vpop.f32.mrf.mxu0
    %v1952 = vadd.f32 0.0, %v1951
    %1953 = vmatmul.f32.gmra.mxu0 %v1893
    %v1954 = vpop.f32.mrf.mxu0
    %v1955 = vadd.f32 0.0, %v1954
    %1956 = vmatmul.f32.gmra.mxu0 %v1896
    %v1957 = vpop.f32.mrf.mxu0
    %v1958 = vadd.f32 0.0, %v1957
    %1959 = vmatmul.f32.gmra.mxu0 %v1899
    %v1960 = vpop.f32.mrf.mxu0
    %v1961 = vadd.f32 0.0, %v1960
    %1962 = vmatmul.f32.gmra.mxu0 %v1902
    %v1963 = vpop.f32.mrf.mxu0
    %v1964 = vadd.f32 0.0, %v1963
    %1965 = vmatmul.f32.gmra.mxu0 %v1905
    %v1966 = vpop.f32.mrf.mxu0
    %v1967 = vadd.f32 0.0, %v1966
    %1968 = vmatmul.f32.gmra.mxu0 %v1908
    %v1969 = vpop.f32.mrf.mxu0
    %v1970 = vadd.f32 0.0, %v1969
    %1971 = vmatmul.f32.gmra.mxu0 %v1911
    %v1972 = vpop.f32.mrf.mxu0
    %v1973 = vadd.f32 0.0, %v1972
    %1974 = vdwg.mxu0
    %v1975 = vadd.f32 %v1841, %v1934
    %v1976 = vadd.f32 %v1842, %v1937
    %v1977 = vadd.f32 %v1843, %v1940
    %v1978 = vadd.f32 %v1844, %v1943
    %v1979 = vadd.f32 %v1845, %v1946
    %v1980 = vadd.f32 %v1846, %v1949
    %v1981 = vadd.f32 %v1847, %v1952
    %v1982 = vadd.f32 %v1848, %v1955
    %v1983 = vadd.f32 %v1849, %v1958
    %v1984 = vadd.f32 %v1850, %v1961
    %v1985 = vadd.f32 %v1851, %v1964
    %v1986 = vadd.f32 %v1852, %v1967
    %v1987 = vadd.f32 %v1853, %v1970
    %v1988 = vadd.f32 %v1854, %v1973
    %v1989 = vld [vmem:[#allocation3 + $0x20] sm:$0xff]
    %v1990 = vld [vmem:[#allocation3 + $0x28] sm:$0xff]
    %v1991 = vld [vmem:[#allocation3 + $0x30] sm:$0xff]
    %v1992 = vld [vmem:[#allocation3 + $0x38] sm:$0xff]
    %v1993 = vld [vmem:[#allocation3 + $0x40] sm:$0xff]
    %v1994 = vld [vmem:[#allocation3 + $0x48] sm:$0xff]
    %v1995 = vld [vmem:[#allocation3 + $0x50] sm:$0xff]
    %v1996 = vld [vmem:[#allocation3 + $0x58] sm:$0xff]
    %v1997 = vld [vmem:[#allocation3 + $0x60] sm:$0xff]
    %v1998 = vld [vmem:[#allocation3 + $0x68] sm:$0xff]
    %v1999 = vld [vmem:[#allocation3 + $0x70] sm:$0xff]
    %v2000 = vld [vmem:[#allocation3 + $0x78] sm:$0xff]
    %v2001 = vld [vmem:[#allocation3 + $0x80] sm:$0xff]
    %v2002 = vld [vmem:[#allocation3 + $0x88] sm:$0xff]
    %v2003 = vld [vmem:[%s3 + $0x48] sm:$0xff]
    %v2004 = vld [vmem:[%s3 + $0x50] sm:$0xf]
    %v2006 = vsel %vm57, %v1989, 0
    %v2009 = vsel %vm57, %v1990, 0
    %v2012 = vsel %vm57, %v1991, 0
    %v2015 = vsel %vm57, %v1992, 0
    %v2018 = vsel %vm57, %v1993, 0
    %v2021 = vsel %vm57, %v1994, 0
    %v2024 = vsel %vm57, %v1995, 0
    %v2027 = vsel %vm57, %v1996, 0
    %v2030 = vsel %vm57, %v1997, 0
    %v2033 = vsel %vm57, %v1998, 0
    %v2036 = vsel %vm57, %v1999, 0
    %v2039 = vsel %vm57, %v2000, 0
    %v2042 = vsel %vm57, %v2001, 0
    %v2045 = vsel %vm57, %v2002, 0
    %v2048 = vsel %vm1286, %v2004, 0
    %2050 = vmatpush.msra.mxu0 0.0
    %2051 = vmatpush.msra.mxu0 0.0
    %2052 = vmatpush.msra.mxu0 0.0
    %2053 = vmatpush.msra.mxu0 0.0
    %2054 = vmatpush.msra.mxu0 0.0
    %2055 = vmatpush.msra.mxu0 0.0
    %2056 = vmatpush.msra.mxu0 0.0
    %2057 = vmatpush.msra.mxu0 0.0
    %2058 = vmatpush.msra.mxu0 0.0
    %2059 = vmatpush.msra.mxu0 0.0
    %2060 = vmatpush.msra.mxu0 0.0
    %2061 = vmatpush.msra.mxu0 0.0
    %2062 = vmatpush.msra.mxu0 0.0
    %2063 = vmatpush.msra.mxu0 0.0
    %2064 = vmatpush.msra.mxu0 %v2048
    %2065 = vmatpush.msra.mxu0 %v2003
    %2066 = vmatmul.f32.gmra.mxu0 %v2006
    %v2067 = vpop.f32.mrf.mxu0
    %v2068 = vadd.f32 0.0, %v2067
    %2069 = vmatmul.f32.gmra.mxu0 %v2009
    %v2070 = vpop.f32.mrf.mxu0
    %v2071 = vadd.f32 0.0, %v2070
    %2072 = vmatmul.f32.gmra.mxu0 %v2012
    %v2073 = vpop.f32.mrf.mxu0
    %v2074 = vadd.f32 0.0, %v2073
    %2075 = vmatmul.f32.gmra.mxu0 %v2015
    %v2076 = vpop.f32.mrf.mxu0
    %v2077 = vadd.f32 0.0, %v2076
    %2078 = vmatmul.f32.gmra.mxu0 %v2018
    %v2079 = vpop.f32.mrf.mxu0
    %v2080 = vadd.f32 0.0, %v2079
    %2081 = vmatmul.f32.gmra.mxu0 %v2021
    %v2082 = vpop.f32.mrf.mxu0
    %v2083 = vadd.f32 0.0, %v2082
    %2084 = vmatmul.f32.gmra.mxu0 %v2024
    %v2085 = vpop.f32.mrf.mxu0
    %v2086 = vadd.f32 0.0, %v2085
    %2087 = vmatmul.f32.gmra.mxu0 %v2027
    %v2088 = vpop.f32.mrf.mxu0
    %v2089 = vadd.f32 0.0, %v2088
    %2090 = vmatmul.f32.gmra.mxu0 %v2030
    %v2091 = vpop.f32.mrf.mxu0
    %v2092 = vadd.f32 0.0, %v2091
    %2093 = vmatmul.f32.gmra.mxu0 %v2033
    %v2094 = vpop.f32.mrf.mxu0
    %v2095 = vadd.f32 0.0, %v2094
    %2096 = vmatmul.f32.gmra.mxu0 %v2036
    %v2097 = vpop.f32.mrf.mxu0
    %v2098 = vadd.f32 0.0, %v2097
    %2099 = vmatmul.f32.gmra.mxu0 %v2039
    %v2100 = vpop.f32.mrf.mxu0
    %v2101 = vadd.f32 0.0, %v2100
    %2102 = vmatmul.f32.gmra.mxu0 %v2042
    %v2103 = vpop.f32.mrf.mxu0
    %v2104 = vadd.f32 0.0, %v2103
    %2105 = vmatmul.f32.gmra.mxu0 %v2045
    %v2106 = vpop.f32.mrf.mxu0
    %v2107 = vadd.f32 0.0, %v2106
    %2108 = vdwg.mxu0
    %v2109 = vadd.f32 %v1975, %v2068
    %v2110 = vadd.f32 %v1976, %v2071
    %v2111 = vadd.f32 %v1977, %v2074
    %v2112 = vadd.f32 %v1978, %v2077
    %v2113 = vadd.f32 %v1979, %v2080
    %v2114 = vadd.f32 %v1980, %v2083
    %v2115 = vadd.f32 %v1981, %v2086
    %v2116 = vadd.f32 %v1982, %v2089
    %v2117 = vadd.f32 %v1983, %v2092
    %v2118 = vadd.f32 %v1984, %v2095
    %v2119 = vadd.f32 %v1985, %v2098
    %v2120 = vadd.f32 %v1986, %v2101
    %v2121 = vadd.f32 %v1987, %v2104
    %v2122 = vadd.f32 %v1988, %v2107
    %v2123 = vld [vmem:[#allocation3 + $0x21] sm:$0xff]
    %v2124 = vld [vmem:[#allocation3 + $0x29] sm:$0xff]
    %v2125 = vld [vmem:[#allocation3 + $0x31] sm:$0xff]
    %v2126 = vld [vmem:[#allocation3 + $0x39] sm:$0xff]
    %v2127 = vld [vmem:[#allocation3 + $0x41] sm:$0xff]
    %v2128 = vld [vmem:[#allocation3 + $0x49] sm:$0xff]
    %v2129 = vld [vmem:[#allocation3 + $0x51] sm:$0xff]
    %v2130 = vld [vmem:[#allocation3 + $0x59] sm:$0xff]
    %v2131 = vld [vmem:[#allocation3 + $0x61] sm:$0xff]
    %v2132 = vld [vmem:[#allocation3 + $0x69] sm:$0xff]
    %v2133 = vld [vmem:[#allocation3 + $0x71] sm:$0xff]
    %v2134 = vld [vmem:[#allocation3 + $0x79] sm:$0xff]
    %v2135 = vld [vmem:[#allocation3 + $0x81] sm:$0xff]
    %v2136 = vld [vmem:[#allocation3 + $0x89] sm:$0xff]
    %v2137 = vld [vmem:[%s3 + $0x54] sm:$0xff]
    %v2138 = vld [vmem:[%s3 + $0x5c] sm:$0xf]
    %v2140 = vsel %vm57, %v2123, 0
    %v2143 = vsel %vm57, %v2124, 0
    %v2146 = vsel %vm57, %v2125, 0
    %v2149 = vsel %vm57, %v2126, 0
    %v2152 = vsel %vm57, %v2127, 0
    %v2155 = vsel %vm57, %v2128, 0
    %v2158 = vsel %vm57, %v2129, 0
    %v2161 = vsel %vm57, %v2130, 0
    %v2164 = vsel %vm57, %v2131, 0
    %v2167 = vsel %vm57, %v2132, 0
    %v2170 = vsel %vm57, %v2133, 0
    %v2173 = vsel %vm57, %v2134, 0
    %v2176 = vsel %vm57, %v2135, 0
    %v2179 = vsel %vm57, %v2136, 0
    %v2182 = vsel %vm1286, %v2138, 0
    %2184 = vmatpush.msra.mxu0 0.0
    %2185 = vmatpush.msra.mxu0 0.0
    %2186 = vmatpush.msra.mxu0 0.0
    %2187 = vmatpush.msra.mxu0 0.0
    %2188 = vmatpush.msra.mxu0 0.0
    %2189 = vmatpush.msra.mxu0 0.0
    %2190 = vmatpush.msra.mxu0 0.0
    %2191 = vmatpush.msra.mxu0 0.0
    %2192 = vmatpush.msra.mxu0 0.0
    %2193 = vmatpush.msra.mxu0 0.0
    %2194 = vmatpush.msra.mxu0 0.0
    %2195 = vmatpush.msra.mxu0 0.0
    %2196 = vmatpush.msra.mxu0 0.0
    %2197 = vmatpush.msra.mxu0 0.0
    %2198 = vmatpush.msra.mxu0 %v2182
    %2199 = vmatpush.msra.mxu0 %v2137
    %2200 = vmatmul.f32.gmra.mxu0 %v2140
    %v2201 = vpop.f32.mrf.mxu0
    %v2202 = vadd.f32 0.0, %v2201
    %2203 = vmatmul.f32.gmra.mxu0 %v2143
    %v2204 = vpop.f32.mrf.mxu0
    %v2205 = vadd.f32 0.0, %v2204
    %2206 = vmatmul.f32.gmra.mxu0 %v2146
    %v2207 = vpop.f32.mrf.mxu0
    %v2208 = vadd.f32 0.0, %v2207
    %2209 = vmatmul.f32.gmra.mxu0 %v2149
    %v2210 = vpop.f32.mrf.mxu0
    %v2211 = vadd.f32 0.0, %v2210
    %2212 = vmatmul.f32.gmra.mxu0 %v2152
    %v2213 = vpop.f32.mrf.mxu0
    %v2214 = vadd.f32 0.0, %v2213
    %2215 = vmatmul.f32.gmra.mxu0 %v2155
    %v2216 = vpop.f32.mrf.mxu0
    %v2217 = vadd.f32 0.0, %v2216
    %2218 = vmatmul.f32.gmra.mxu0 %v2158
    %v2219 = vpop.f32.mrf.mxu0
    %v2220 = vadd.f32 0.0, %v2219
    %2221 = vmatmul.f32.gmra.mxu0 %v2161
    %v2222 = vpop.f32.mrf.mxu0
    %v2223 = vadd.f32 0.0, %v2222
    %2224 = vmatmul.f32.gmra.mxu0 %v2164
    %v2225 = vpop.f32.mrf.mxu0
    %v2226 = vadd.f32 0.0, %v2225
    %2227 = vmatmul.f32.gmra.mxu0 %v2167
    %v2228 = vpop.f32.mrf.mxu0
    %v2229 = vadd.f32 0.0, %v2228
    %2230 = vmatmul.f32.gmra.mxu0 %v2170
    %v2231 = vpop.f32.mrf.mxu0
    %v2232 = vadd.f32 0.0, %v2231
    %2233 = vmatmul.f32.gmra.mxu0 %v2173
    %v2234 = vpop.f32.mrf.mxu0
    %v2235 = vadd.f32 0.0, %v2234
    %2236 = vmatmul.f32.gmra.mxu0 %v2176
    %v2237 = vpop.f32.mrf.mxu0
    %v2238 = vadd.f32 0.0, %v2237
    %2239 = vmatmul.f32.gmra.mxu0 %v2179
    %v2240 = vpop.f32.mrf.mxu0
    %v2241 = vadd.f32 0.0, %v2240
    %2242 = vdwg.mxu0
    %v2243 = vadd.f32 %v2109, %v2202
    %v2244 = vadd.f32 %v2110, %v2205
    %v2245 = vadd.f32 %v2111, %v2208
    %v2246 = vadd.f32 %v2112, %v2211
    %v2247 = vadd.f32 %v2113, %v2214
    %v2248 = vadd.f32 %v2114, %v2217
    %v2249 = vadd.f32 %v2115, %v2220
    %v2250 = vadd.f32 %v2116, %v2223
    %v2251 = vadd.f32 %v2117, %v2226
    %v2252 = vadd.f32 %v2118, %v2229
    %v2253 = vadd.f32 %v2119, %v2232
    %v2254 = vadd.f32 %v2120, %v2235
    %v2255 = vadd.f32 %v2121, %v2238
    %v2256 = vadd.f32 %v2122, %v2241
    %v2257 = vld [vmem:[#allocation3 + $0x22] sm:$0xff]
    %v2258 = vld [vmem:[#allocation3 + $0x2a] sm:$0xff]
    %v2259 = vld [vmem:[#allocation3 + $0x32] sm:$0xff]
    %v2260 = vld [vmem:[#allocation3 + $0x3a] sm:$0xff]
    %v2261 = vld [vmem:[#allocation3 + $0x42] sm:$0xff]
    %v2262 = vld [vmem:[#allocation3 + $0x4a] sm:$0xff]
    %v2263 = vld [vmem:[#allocation3 + $0x52] sm:$0xff]
    %v2264 = vld [vmem:[#allocation3 + $0x5a] sm:$0xff]
    %v2265 = vld [vmem:[#allocation3 + $0x62] sm:$0xff]
    %v2266 = vld [vmem:[#allocation3 + $0x6a] sm:$0xff]
    %v2267 = vld [vmem:[#allocation3 + $0x72] sm:$0xff]
    %v2268 = vld [vmem:[#allocation3 + $0x7a] sm:$0xff]
    %v2269 = vld [vmem:[#allocation3 + $0x82] sm:$0xff]
    %v2270 = vld [vmem:[#allocation3 + $0x8a] sm:$0xff]
    %v2271 = vld [vmem:[%s3 + $0x60] sm:$0xff]
    %v2272 = vld [vmem:[%s3 + $0x68] sm:$0xf]
    %v2274 = vsel %vm57, %v2257, 0
    %v2277 = vsel %vm57, %v2258, 0
    %v2280 = vsel %vm57, %v2259, 0
    %v2283 = vsel %vm57, %v2260, 0
    %v2286 = vsel %vm57, %v2261, 0
    %v2289 = vsel %vm57, %v2262, 0
    %v2292 = vsel %vm57, %v2263, 0
    %v2295 = vsel %vm57, %v2264, 0
    %v2298 = vsel %vm57, %v2265, 0
    %v2301 = vsel %vm57, %v2266, 0
    %v2304 = vsel %vm57, %v2267, 0
    %v2307 = vsel %vm57, %v2268, 0
    %v2310 = vsel %vm57, %v2269, 0
    %v2313 = vsel %vm57, %v2270, 0
    %v2316 = vsel %vm1286, %v2272, 0
    %2318 = vmatpush.msra.mxu0 0.0
    %2319 = vmatpush.msra.mxu0 0.0
    %2320 = vmatpush.msra.mxu0 0.0
    %2321 = vmatpush.msra.mxu0 0.0
    %2322 = vmatpush.msra.mxu0 0.0
    %2323 = vmatpush.msra.mxu0 0.0
    %2324 = vmatpush.msra.mxu0 0.0
    %2325 = vmatpush.msra.mxu0 0.0
    %2326 = vmatpush.msra.mxu0 0.0
    %2327 = vmatpush.msra.mxu0 0.0
    %2328 = vmatpush.msra.mxu0 0.0
    %2329 = vmatpush.msra.mxu0 0.0
    %2330 = vmatpush.msra.mxu0 0.0
    %2331 = vmatpush.msra.mxu0 0.0
    %2332 = vmatpush.msra.mxu0 %v2316
    %2333 = vmatpush.msra.mxu0 %v2271
    %2334 = vmatmul.f32.gmra.mxu0 %v2274
    %v2335 = vpop.f32.mrf.mxu0
    %v2336 = vadd.f32 0.0, %v2335
    %2337 = vmatmul.f32.gmra.mxu0 %v2277
    %v2338 = vpop.f32.mrf.mxu0
    %v2339 = vadd.f32 0.0, %v2338
    %2340 = vmatmul.f32.gmra.mxu0 %v2280
    %v2341 = vpop.f32.mrf.mxu0
    %v2342 = vadd.f32 0.0, %v2341
    %2343 = vmatmul.f32.gmra.mxu0 %v2283
    %v2344 = vpop.f32.mrf.mxu0
    %v2345 = vadd.f32 0.0, %v2344
    %2346 = vmatmul.f32.gmra.mxu0 %v2286
    %v2347 = vpop.f32.mrf.mxu0
    %v2348 = vadd.f32 0.0, %v2347
    %2349 = vmatmul.f32.gmra.mxu0 %v2289
    %v2350 = vpop.f32.mrf.mxu0
    %v2351 = vadd.f32 0.0, %v2350
    %2352 = vmatmul.f32.gmra.mxu0 %v2292
    %v2353 = vpop.f32.mrf.mxu0
    %v2354 = vadd.f32 0.0, %v2353
    %2355 = vmatmul.f32.gmra.mxu0 %v2295
    %v2356 = vpop.f32.mrf.mxu0
    %v2357 = vadd.f32 0.0, %v2356
    %2358 = vmatmul.f32.gmra.mxu0 %v2298
    %v2359 = vpop.f32.mrf.mxu0
    %v2360 = vadd.f32 0.0, %v2359
    %2361 = vmatmul.f32.gmra.mxu0 %v2301
    %v2362 = vpop.f32.mrf.mxu0
    %v2363 = vadd.f32 0.0, %v2362
    %2364 = vmatmul.f32.gmra.mxu0 %v2304
    %v2365 = vpop.f32.mrf.mxu0
    %v2366 = vadd.f32 0.0, %v2365
    %2367 = vmatmul.f32.gmra.mxu0 %v2307
    %v2368 = vpop.f32.mrf.mxu0
    %v2369 = vadd.f32 0.0, %v2368
    %2370 = vmatmul.f32.gmra.mxu0 %v2310
    %v2371 = vpop.f32.mrf.mxu0
    %v2372 = vadd.f32 0.0, %v2371
    %2373 = vmatmul.f32.gmra.mxu0 %v2313
    %v2374 = vpop.f32.mrf.mxu0
    %v2375 = vadd.f32 0.0, %v2374
    %2376 = vdwg.mxu0
    %v2377 = vadd.f32 %v2243, %v2336
    %v2378 = vadd.f32 %v2244, %v2339
    %v2379 = vadd.f32 %v2245, %v2342
    %v2380 = vadd.f32 %v2246, %v2345
    %v2381 = vadd.f32 %v2247, %v2348
    %v2382 = vadd.f32 %v2248, %v2351
    %v2383 = vadd.f32 %v2249, %v2354
    %v2384 = vadd.f32 %v2250, %v2357
    %v2385 = vadd.f32 %v2251, %v2360
    %v2386 = vadd.f32 %v2252, %v2363
    %v2387 = vadd.f32 %v2253, %v2366
    %v2388 = vadd.f32 %v2254, %v2369
    %v2389 = vadd.f32 %v2255, %v2372
    %v2390 = vadd.f32 %v2256, %v2375
    %v2392 = vperm.slane %v1211, 0
    %v2394 = vadd.f32 %v2377, %v2392
    %v2395 = vadd.f32 %v2378, %v2392
    %v2396 = vadd.f32 %v2379, %v2392
    %v2397 = vadd.f32 %v2380, %v2392
    %v2398 = vadd.f32 %v2381, %v2392
    %v2399 = vadd.f32 %v2382, %v2392
    %v2400 = vadd.f32 %v2383, %v2392
    %v2401 = vadd.f32 %v2384, %v2392
    %v2402 = vadd.f32 %v2385, %v2392
    %v2403 = vadd.f32 %v2386, %v2392
    %v2404 = vadd.f32 %v2387, %v2392
    %v2405 = vadd.f32 %v2388, %v2392
    %v2406 = vadd.f32 %v2389, %v2392
    %v2407 = vadd.f32 %v2390, %v2392
    %v2408 = vmax.f32 %v2394, 0.0
    %v2409 = vmax.f32 %v2395, 0.0
    %v2410 = vmax.f32 %v2396, 0.0
    %v2411 = vmax.f32 %v2397, 0.0
    %v2412 = vmax.f32 %v2398, 0.0
    %v2413 = vmax.f32 %v2399, 0.0
    %v2414 = vmax.f32 %v2400, 0.0
    %v2415 = vmax.f32 %v2401, 0.0
    %v2416 = vmax.f32 %v2402, 0.0
    %v2417 = vmax.f32 %v2403, 0.0
    %v2418 = vmax.f32 %v2404, 0.0
    %v2419 = vmax.f32 %v2405, 0.0
    %v2420 = vmax.f32 %v2406, 0.0
    %v2421 = vmax.f32 %v2407, 0.0
    %2422 = vst.msk [vmem:[#allocation4] sm:$0xff] %vm119, %v2408
    %2423 = vst.msk [vmem:[#allocation4 + $0x8] sm:$0xff] %vm119, %v2409
    %2424 = vst.msk [vmem:[#allocation4 + $0x10] sm:$0xff] %vm119, %v2410
    %2425 = vst.msk [vmem:[#allocation4 + $0x18] sm:$0xff] %vm119, %v2411
    %2426 = vst.msk [vmem:[#allocation4 + $0x20] sm:$0xff] %vm119, %v2412
    %2427 = vst.msk [vmem:[#allocation4 + $0x28] sm:$0xff] %vm119, %v2413
    %2428 = vst.msk [vmem:[#allocation4 + $0x30] sm:$0xff] %vm119, %v2414
    %2429 = vst.msk [vmem:[#allocation4 + $0x38] sm:$0xff] %vm119, %v2415
    %2430 = vst.msk [vmem:[#allocation4 + $0x40] sm:$0xff] %vm119, %v2416
    %2431 = vst.msk [vmem:[#allocation4 + $0x48] sm:$0xff] %vm119, %v2417
    %2432 = vst.msk [vmem:[#allocation4 + $0x50] sm:$0xff] %vm119, %v2418
    %2433 = vst.msk [vmem:[#allocation4 + $0x58] sm:$0xff] %vm119, %v2419
    %2434 = vst.msk [vmem:[#allocation4 + $0x60] sm:$0xff] %vm119, %v2420
    %2435 = vst.msk [vmem:[#allocation4 + $0x68] sm:$0xff] %vm119, %v2421
    %v2436 = vld [vmem:[#allocation3 + $0x70] sm:$0xff]
    %v2437 = vld [vmem:[#allocation3 + $0x78] sm:$0xff]
    %v2438 = vld [vmem:[#allocation3 + $0x80] sm:$0xff]
    %v2439 = vld [vmem:[#allocation3 + $0x88] sm:$0xff]
    %v2440 = vld [vmem:[#allocation3 + $0x90] sm:$0xff]
    %v2441 = vld [vmem:[#allocation3 + $0x98] sm:$0xff]
    %v2442 = vld [vmem:[#allocation3 + $0xa0] sm:$0xff]
    %v2443 = vld [vmem:[#allocation3 + $0xa8] sm:$0xff]
    %v2444 = vld [vmem:[#allocation3 + $0xb0] sm:$0xff]
    %v2445 = vld [vmem:[#allocation3 + $0xb8] sm:$0xff]
    %v2446 = vld [vmem:[#allocation3 + $0xc0] sm:$0xff]
    %v2447 = vld [vmem:[#allocation3 + $0xc8] sm:$0xff]
    %v2448 = vld [vmem:[#allocation3 + $0xd0] sm:$0xff]
    %v2449 = vld [vmem:[#allocation3 + $0xd8] sm:$0xff]
    %v2450 = vld [vmem:[%s3] sm:$0xff]
    %v2451 = vld [vmem:[%s3 + $0x8] sm:$0xf]
    %v2452 = vld [vmem:[#allocation3 + $0x71] sm:$0xff]
    %v2453 = vld [vmem:[#allocation3 + $0x79] sm:$0xff]
    %v2454 = vld [vmem:[#allocation3 + $0x81] sm:$0xff]
    %v2455 = vld [vmem:[#allocation3 + $0x89] sm:$0xff]
    %v2456 = vld [vmem:[#allocation3 + $0x91] sm:$0xff]
    %v2457 = vld [vmem:[#allocation3 + $0x99] sm:$0xff]
    %v2458 = vld [vmem:[#allocation3 + $0xa1] sm:$0xff]
    %v2459 = vld [vmem:[#allocation3 + $0xa9] sm:$0xff]
    %v2460 = vld [vmem:[#allocation3 + $0xb1] sm:$0xff]
    %v2461 = vld [vmem:[#allocation3 + $0xb9] sm:$0xff]
    %v2462 = vld [vmem:[#allocation3 + $0xc1] sm:$0xff]
    %v2463 = vld [vmem:[#allocation3 + $0xc9] sm:$0xff]
    %v2464 = vld [vmem:[#allocation3 + $0xd1] sm:$0xff]
    %v2465 = vld [vmem:[#allocation3 + $0xd9] sm:$0xff]
    %v2466 = vld [vmem:[%s3 + $0xc] sm:$0xff]
    %v2467 = vld [vmem:[%s3 + $0x14] sm:$0xf]
    %v2469 = vsel %vm57, %v2452, 0
    %v2472 = vsel %vm57, %v2453, 0
    %v2475 = vsel %vm57, %v2454, 0
    %v2478 = vsel %vm57, %v2455, 0
    %v2481 = vsel %vm57, %v2456, 0
    %v2484 = vsel %vm57, %v2457, 0
    %v2487 = vsel %vm57, %v2458, 0
    %v2490 = vsel %vm57, %v2459, 0
    %v2493 = vsel %vm57, %v2460, 0
    %v2496 = vsel %vm57, %v2461, 0
    %v2499 = vsel %vm57, %v2462, 0
    %v2502 = vsel %vm57, %v2463, 0
    %v2505 = vsel %vm57, %v2464, 0
    %v2508 = vsel %vm57, %v2465, 0
    %v2511 = vsel %vm1286, %v2467, 0
    %2513 = vmatpush.msra.mxu0 0.0
    %2514 = vmatpush.msra.mxu0 0.0
    %2515 = vmatpush.msra.mxu0 0.0
    %2516 = vmatpush.msra.mxu0 0.0
    %2517 = vmatpush.msra.mxu0 0.0
    %2518 = vmatpush.msra.mxu0 0.0
    %2519 = vmatpush.msra.mxu0 0.0
    %2520 = vmatpush.msra.mxu0 0.0
    %2521 = vmatpush.msra.mxu0 0.0
    %2522 = vmatpush.msra.mxu0 0.0
    %2523 = vmatpush.msra.mxu0 0.0
    %2524 = vmatpush.msra.mxu0 0.0
    %2525 = vmatpush.msra.mxu0 0.0
    %2526 = vmatpush.msra.mxu0 0.0
    %2527 = vmatpush.msra.mxu0 %v2511
    %2528 = vmatpush.msra.mxu0 %v2466
    %2529 = vmatmul.f32.gmra.mxu0 %v2469
    %v2530 = vpop.f32.mrf.mxu0
    %v2531 = vadd.f32 0.0, %v2530
    %2532 = vmatmul.f32.gmra.mxu0 %v2472
    %v2533 = vpop.f32.mrf.mxu0
    %v2534 = vadd.f32 0.0, %v2533
    %2535 = vmatmul.f32.gmra.mxu0 %v2475
    %v2536 = vpop.f32.mrf.mxu0
    %v2537 = vadd.f32 0.0, %v2536
    %2538 = vmatmul.f32.gmra.mxu0 %v2478
    %v2539 = vpop.f32.mrf.mxu0
    %v2540 = vadd.f32 0.0, %v2539
    %2541 = vmatmul.f32.gmra.mxu0 %v2481
    %v2542 = vpop.f32.mrf.mxu0
    %v2543 = vadd.f32 0.0, %v2542
    %2544 = vmatmul.f32.gmra.mxu0 %v2484
    %v2545 = vpop.f32.mrf.mxu0
    %v2546 = vadd.f32 0.0, %v2545
    %2547 = vmatmul.f32.gmra.mxu0 %v2487
    %v2548 = vpop.f32.mrf.mxu0
    %v2549 = vadd.f32 0.0, %v2548
    %2550 = vmatmul.f32.gmra.mxu0 %v2490
    %v2551 = vpop.f32.mrf.mxu0
    %v2552 = vadd.f32 0.0, %v2551
    %2553 = vmatmul.f32.gmra.mxu0 %v2493
    %v2554 = vpop.f32.mrf.mxu0
    %v2555 = vadd.f32 0.0, %v2554
    %2556 = vmatmul.f32.gmra.mxu0 %v2496
    %v2557 = vpop.f32.mrf.mxu0
    %v2558 = vadd.f32 0.0, %v2557
    %2559 = vmatmul.f32.gmra.mxu0 %v2499
    %v2560 = vpop.f32.mrf.mxu0
    %v2561 = vadd.f32 0.0, %v2560
    %2562 = vmatmul.f32.gmra.mxu0 %v2502
    %v2563 = vpop.f32.mrf.mxu0
    %v2564 = vadd.f32 0.0, %v2563
    %2565 = vmatmul.f32.gmra.mxu0 %v2505
    %v2566 = vpop.f32.mrf.mxu0
    %v2567 = vadd.f32 0.0, %v2566
    %2568 = vmatmul.f32.gmra.mxu0 %v2508
    %v2569 = vpop.f32.mrf.mxu0
    %v2570 = vadd.f32 0.0, %v2569
    %2571 = vdwg.mxu0
    %v2573 = vsel %vm57, %v2436, 0
    %v2576 = vsel %vm57, %v2437, 0
    %v2579 = vsel %vm57, %v2438, 0
    %v2582 = vsel %vm57, %v2439, 0
    %v2585 = vsel %vm57, %v2440, 0
    %v2588 = vsel %vm57, %v2441, 0
    %v2591 = vsel %vm57, %v2442, 0
    %v2594 = vsel %vm57, %v2443, 0
    %v2597 = vsel %vm57, %v2444, 0
    %v2600 = vsel %vm57, %v2445, 0
    %v2603 = vsel %vm57, %v2446, 0
    %v2606 = vsel %vm57, %v2447, 0
    %v2609 = vsel %vm57, %v2448, 0
    %v2612 = vsel %vm57, %v2449, 0
    %v2615 = vsel %vm1286, %v2451, 0
    %2617 = vmatpush.msra.mxu0 0.0
    %2618 = vmatpush.msra.mxu0 0.0
    %2619 = vmatpush.msra.mxu0 0.0
    %2620 = vmatpush.msra.mxu0 0.0
    %2621 = vmatpush.msra.mxu0 0.0
    %2622 = vmatpush.msra.mxu0 0.0
    %2623 = vmatpush.msra.mxu0 0.0
    %2624 = vmatpush.msra.mxu0 0.0
    %2625 = vmatpush.msra.mxu0 0.0
    %2626 = vmatpush.msra.mxu0 0.0
    %2627 = vmatpush.msra.mxu0 0.0
    %2628 = vmatpush.msra.mxu0 0.0
    %2629 = vmatpush.msra.mxu0 0.0
    %2630 = vmatpush.msra.mxu0 0.0
    %2631 = vmatpush.msra.mxu0 %v2615
    %2632 = vmatpush.msra.mxu0 %v2450
    %2633 = vmatmul.f32.gmra.mxu0 %v2573
    %v2634 = vpop.f32.mrf.mxu0
    %v2635 = vadd.f32 %v2531, %v2634
    %2636 = vmatmul.f32.gmra.mxu0 %v2576
    %v2637 = vpop.f32.mrf.mxu0
    %v2638 = vadd.f32 %v2534, %v2637
    %2639 = vmatmul.f32.gmra.mxu0 %v2579
    %v2640 = vpop.f32.mrf.mxu0
    %v2641 = vadd.f32 %v2537, %v2640
    %2642 = vmatmul.f32.gmra.mxu0 %v2582
    %v2643 = vpop.f32.mrf.mxu0
    %v2644 = vadd.f32 %v2540, %v2643
    %2645 = vmatmul.f32.gmra.mxu0 %v2585
    %v2646 = vpop.f32.mrf.mxu0
    %v2647 = vadd.f32 %v2543, %v2646
    %2648 = vmatmul.f32.gmra.mxu0 %v2588
    %v2649 = vpop.f32.mrf.mxu0
    %v2650 = vadd.f32 %v2546, %v2649
    %2651 = vmatmul.f32.gmra.mxu0 %v2591
    %v2652 = vpop.f32.mrf.mxu0
    %v2653 = vadd.f32 %v2549, %v2652
    %2654 = vmatmul.f32.gmra.mxu0 %v2594
    %v2655 = vpop.f32.mrf.mxu0
    %v2656 = vadd.f32 %v2552, %v2655
    %2657 = vmatmul.f32.gmra.mxu0 %v2597
    %v2658 = vpop.f32.mrf.mxu0
    %v2659 = vadd.f32 %v2555, %v2658
    %2660 = vmatmul.f32.gmra.mxu0 %v2600
    %v2661 = vpop.f32.mrf.mxu0
    %v2662 = vadd.f32 %v2558, %v2661
    %2663 = vmatmul.f32.gmra.mxu0 %v2603
    %v2664 = vpop.f32.mrf.mxu0
    %v2665 = vadd.f32 %v2561, %v2664
    %2666 = vmatmul.f32.gmra.mxu0 %v2606
    %v2667 = vpop.f32.mrf.mxu0
    %v2668 = vadd.f32 %v2564, %v2667
    %2669 = vmatmul.f32.gmra.mxu0 %v2609
    %v2670 = vpop.f32.mrf.mxu0
    %v2671 = vadd.f32 %v2567, %v2670
    %2672 = vmatmul.f32.gmra.mxu0 %v2612
    %v2673 = vpop.f32.mrf.mxu0
    %v2674 = vadd.f32 %v2570, %v2673
    %2675 = vdwg.mxu0
    %v2676 = vld [vmem:[#allocation3 + $0x72] sm:$0xff]
    %v2677 = vld [vmem:[#allocation3 + $0x7a] sm:$0xff]
    %v2678 = vld [vmem:[#allocation3 + $0x82] sm:$0xff]
    %v2679 = vld [vmem:[#allocation3 + $0x8a] sm:$0xff]
    %v2680 = vld [vmem:[#allocation3 + $0x92] sm:$0xff]
    %v2681 = vld [vmem:[#allocation3 + $0x9a] sm:$0xff]
    %v2682 = vld [vmem:[#allocation3 + $0xa2] sm:$0xff]
    %v2683 = vld [vmem:[#allocation3 + $0xaa] sm:$0xff]
    %v2684 = vld [vmem:[#allocation3 + $0xb2] sm:$0xff]
    %v2685 = vld [vmem:[#allocation3 + $0xba] sm:$0xff]
    %v2686 = vld [vmem:[#allocation3 + $0xc2] sm:$0xff]
    %v2687 = vld [vmem:[#allocation3 + $0xca] sm:$0xff]
    %v2688 = vld [vmem:[#allocation3 + $0xd2] sm:$0xff]
    %v2689 = vld [vmem:[#allocation3 + $0xda] sm:$0xff]
    %v2690 = vld [vmem:[%s3 + $0x18] sm:$0xff]
    %v2691 = vld [vmem:[%s3 + $0x20] sm:$0xf]
    %v2693 = vsel %vm57, %v2676, 0
    %v2696 = vsel %vm57, %v2677, 0
    %v2699 = vsel %vm57, %v2678, 0
    %v2702 = vsel %vm57, %v2679, 0
    %v2705 = vsel %vm57, %v2680, 0
    %v2708 = vsel %vm57, %v2681, 0
    %v2711 = vsel %vm57, %v2682, 0
    %v2714 = vsel %vm57, %v2683, 0
    %v2717 = vsel %vm57, %v2684, 0
    %v2720 = vsel %vm57, %v2685, 0
    %v2723 = vsel %vm57, %v2686, 0
    %v2726 = vsel %vm57, %v2687, 0
    %v2729 = vsel %vm57, %v2688, 0
    %v2732 = vsel %vm57, %v2689, 0
    %v2735 = vsel %vm1286, %v2691, 0
    %2737 = vmatpush.msra.mxu0 0.0
    %2738 = vmatpush.msra.mxu0 0.0
    %2739 = vmatpush.msra.mxu0 0.0
    %2740 = vmatpush.msra.mxu0 0.0
    %2741 = vmatpush.msra.mxu0 0.0
    %2742 = vmatpush.msra.mxu0 0.0
    %2743 = vmatpush.msra.mxu0 0.0
    %2744 = vmatpush.msra.mxu0 0.0
    %2745 = vmatpush.msra.mxu0 0.0
    %2746 = vmatpush.msra.mxu0 0.0
    %2747 = vmatpush.msra.mxu0 0.0
    %2748 = vmatpush.msra.mxu0 0.0
    %2749 = vmatpush.msra.mxu0 0.0
    %2750 = vmatpush.msra.mxu0 0.0
    %2751 = vmatpush.msra.mxu0 %v2735
    %2752 = vmatpush.msra.mxu0 %v2690
    %2753 = vmatmul.f32.gmra.mxu0 %v2693
    %v2754 = vpop.f32.mrf.mxu0
    %v2755 = vadd.f32 0.0, %v2754
    %2756 = vmatmul.f32.gmra.mxu0 %v2696
    %v2757 = vpop.f32.mrf.mxu0
    %v2758 = vadd.f32 0.0, %v2757
    %2759 = vmatmul.f32.gmra.mxu0 %v2699
    %v2760 = vpop.f32.mrf.mxu0
    %v2761 = vadd.f32 0.0, %v2760
    %2762 = vmatmul.f32.gmra.mxu0 %v2702
    %v2763 = vpop.f32.mrf.mxu0
    %v2764 = vadd.f32 0.0, %v2763
    %2765 = vmatmul.f32.gmra.mxu0 %v2705
    %v2766 = vpop.f32.mrf.mxu0
    %v2767 = vadd.f32 0.0, %v2766
    %2768 = vmatmul.f32.gmra.mxu0 %v2708
    %v2769 = vpop.f32.mrf.mxu0
    %v2770 = vadd.f32 0.0, %v2769
    %2771 = vmatmul.f32.gmra.mxu0 %v2711
    %v2772 = vpop.f32.mrf.mxu0
    %v2773 = vadd.f32 0.0, %v2772
    %2774 = vmatmul.f32.gmra.mxu0 %v2714
    %v2775 = vpop.f32.mrf.mxu0
    %v2776 = vadd.f32 0.0, %v2775
    %2777 = vmatmul.f32.gmra.mxu0 %v2717
    %v2778 = vpop.f32.mrf.mxu0
    %v2779 = vadd.f32 0.0, %v2778
    %2780 = vmatmul.f32.gmra.mxu0 %v2720
    %v2781 = vpop.f32.mrf.mxu0
    %v2782 = vadd.f32 0.0, %v2781
    %2783 = vmatmul.f32.gmra.mxu0 %v2723
    %v2784 = vpop.f32.mrf.mxu0
    %v2785 = vadd.f32 0.0, %v2784
    %2786 = vmatmul.f32.gmra.mxu0 %v2726
    %v2787 = vpop.f32.mrf.mxu0
    %v2788 = vadd.f32 0.0, %v2787
    %2789 = vmatmul.f32.gmra.mxu0 %v2729
    %v2790 = vpop.f32.mrf.mxu0
    %v2791 = vadd.f32 0.0, %v2790
    %2792 = vmatmul.f32.gmra.mxu0 %v2732
    %v2793 = vpop.f32.mrf.mxu0
    %v2794 = vadd.f32 0.0, %v2793
    %2795 = vdwg.mxu0
    %v2796 = vadd.f32 %v2635, %v2755
    %v2797 = vadd.f32 %v2638, %v2758
    %v2798 = vadd.f32 %v2641, %v2761
    %v2799 = vadd.f32 %v2644, %v2764
    %v2800 = vadd.f32 %v2647, %v2767
    %v2801 = vadd.f32 %v2650, %v2770
    %v2802 = vadd.f32 %v2653, %v2773
    %v2803 = vadd.f32 %v2656, %v2776
    %v2804 = vadd.f32 %v2659, %v2779
    %v2805 = vadd.f32 %v2662, %v2782
    %v2806 = vadd.f32 %v2665, %v2785
    %v2807 = vadd.f32 %v2668, %v2788
    %v2808 = vadd.f32 %v2671, %v2791
    %v2809 = vadd.f32 %v2674, %v2794
    %v2810 = vld [vmem:[#allocation3 + $0x80] sm:$0xff]
    %v2811 = vld [vmem:[#allocation3 + $0x88] sm:$0xff]
    %v2812 = vld [vmem:[#allocation3 + $0x90] sm:$0xff]
    %v2813 = vld [vmem:[#allocation3 + $0x98] sm:$0xff]
    %v2814 = vld [vmem:[#allocation3 + $0xa0] sm:$0xff]
    %v2815 = vld [vmem:[#allocation3 + $0xa8] sm:$0xff]
    %v2816 = vld [vmem:[#allocation3 + $0xb0] sm:$0xff]
    %v2817 = vld [vmem:[#allocation3 + $0xb8] sm:$0xff]
    %v2818 = vld [vmem:[#allocation3 + $0xc0] sm:$0xff]
    %v2819 = vld [vmem:[#allocation3 + $0xc8] sm:$0xff]
    %v2820 = vld [vmem:[#allocation3 + $0xd0] sm:$0xff]
    %v2821 = vld [vmem:[#allocation3 + $0xd8] sm:$0xff]
    %v2822 = vld [vmem:[#allocation3 + $0xe0] sm:$0xff]
    %v2823 = vld [vmem:[#allocation3 + $0xe8] sm:$0xff]
    %v2824 = vld [vmem:[%s3 + $0x24] sm:$0xff]
    %v2825 = vld [vmem:[%s3 + $0x2c] sm:$0xf]
    %v2827 = vsel %vm57, %v2810, 0
    %v2830 = vsel %vm57, %v2811, 0
    %v2833 = vsel %vm57, %v2812, 0
    %v2836 = vsel %vm57, %v2813, 0
    %v2839 = vsel %vm57, %v2814, 0
    %v2842 = vsel %vm57, %v2815, 0
    %v2845 = vsel %vm57, %v2816, 0
    %v2848 = vsel %vm57, %v2817, 0
    %v2851 = vsel %vm57, %v2818, 0
    %v2854 = vsel %vm57, %v2819, 0
    %v2857 = vsel %vm57, %v2820, 0
    %v2860 = vsel %vm57, %v2821, 0
    %v2863 = vsel %vm57, %v2822, 0
    %v2866 = vsel %vm57, %v2823, 0
    %v2869 = vsel %vm1286, %v2825, 0
    %2871 = vmatpush.msra.mxu0 0.0
    %2872 = vmatpush.msra.mxu0 0.0
    %2873 = vmatpush.msra.mxu0 0.0
    %2874 = vmatpush.msra.mxu0 0.0
    %2875 = vmatpush.msra.mxu0 0.0
    %2876 = vmatpush.msra.mxu0 0.0
    %2877 = vmatpush.msra.mxu0 0.0
    %2878 = vmatpush.msra.mxu0 0.0
    %2879 = vmatpush.msra.mxu0 0.0
    %2880 = vmatpush.msra.mxu0 0.0
    %2881 = vmatpush.msra.mxu0 0.0
    %2882 = vmatpush.msra.mxu0 0.0
    %2883 = vmatpush.msra.mxu0 0.0
    %2884 = vmatpush.msra.mxu0 0.0
    %2885 = vmatpush.msra.mxu0 %v2869
    %2886 = vmatpush.msra.mxu0 %v2824
    %2887 = vmatmul.f32.gmra.mxu0 %v2827
    %v2888 = vpop.f32.mrf.mxu0
    %v2889 = vadd.f32 0.0, %v2888
    %2890 = vmatmul.f32.gmra.mxu0 %v2830
    %v2891 = vpop.f32.mrf.mxu0
    %v2892 = vadd.f32 0.0, %v2891
    %2893 = vmatmul.f32.gmra.mxu0 %v2833
    %v2894 = vpop.f32.mrf.mxu0
    %v2895 = vadd.f32 0.0, %v2894
    %2896 = vmatmul.f32.gmra.mxu0 %v2836
    %v2897 = vpop.f32.mrf.mxu0
    %v2898 = vadd.f32 0.0, %v2897
    %2899 = vmatmul.f32.gmra.mxu0 %v2839
    %v2900 = vpop.f32.mrf.mxu0
    %v2901 = vadd.f32 0.0, %v2900
    %2902 = vmatmul.f32.gmra.mxu0 %v2842
    %v2903 = vpop.f32.mrf.mxu0
    %v2904 = vadd.f32 0.0, %v2903
    %2905 = vmatmul.f32.gmra.mxu0 %v2845
    %v2906 = vpop.f32.mrf.mxu0
    %v2907 = vadd.f32 0.0, %v2906
    %2908 = vmatmul.f32.gmra.mxu0 %v2848
    %v2909 = vpop.f32.mrf.mxu0
    %v2910 = vadd.f32 0.0, %v2909
    %2911 = vmatmul.f32.gmra.mxu0 %v2851
    %v2912 = vpop.f32.mrf.mxu0
    %v2913 = vadd.f32 0.0, %v2912
    %2914 = vmatmul.f32.gmra.mxu0 %v2854
    %v2915 = vpop.f32.mrf.mxu0
    %v2916 = vadd.f32 0.0, %v2915
    %2917 = vmatmul.f32.gmra.mxu0 %v2857
    %v2918 = vpop.f32.mrf.mxu0
    %v2919 = vadd.f32 0.0, %v2918
    %2920 = vmatmul.f32.gmra.mxu0 %v2860
    %v2921 = vpop.f32.mrf.mxu0
    %v2922 = vadd.f32 0.0, %v2921
    %2923 = vmatmul.f32.gmra.mxu0 %v2863
    %v2924 = vpop.f32.mrf.mxu0
    %v2925 = vadd.f32 0.0, %v2924
    %2926 = vmatmul.f32.gmra.mxu0 %v2866
    %v2927 = vpop.f32.mrf.mxu0
    %v2928 = vadd.f32 0.0, %v2927
    %2929 = vdwg.mxu0
    %v2930 = vadd.f32 %v2796, %v2889
    %v2931 = vadd.f32 %v2797, %v2892
    %v2932 = vadd.f32 %v2798, %v2895
    %v2933 = vadd.f32 %v2799, %v2898
    %v2934 = vadd.f32 %v2800, %v2901
    %v2935 = vadd.f32 %v2801, %v2904
    %v2936 = vadd.f32 %v2802, %v2907
    %v2937 = vadd.f32 %v2803, %v2910
    %v2938 = vadd.f32 %v2804, %v2913
    %v2939 = vadd.f32 %v2805, %v2916
    %v2940 = vadd.f32 %v2806, %v2919
    %v2941 = vadd.f32 %v2807, %v2922
    %v2942 = vadd.f32 %v2808, %v2925
    %v2943 = vadd.f32 %v2809, %v2928
    %v2944 = vld [vmem:[#allocation3 + $0x81] sm:$0xff]
    %v2945 = vld [vmem:[#allocation3 + $0x89] sm:$0xff]
    %v2946 = vld [vmem:[#allocation3 + $0x91] sm:$0xff]
    %v2947 = vld [vmem:[#allocation3 + $0x99] sm:$0xff]
    %v2948 = vld [vmem:[#allocation3 + $0xa1] sm:$0xff]
    %v2949 = vld [vmem:[#allocation3 + $0xa9] sm:$0xff]
    %v2950 = vld [vmem:[#allocation3 + $0xb1] sm:$0xff]
    %v2951 = vld [vmem:[#allocation3 + $0xb9] sm:$0xff]
    %v2952 = vld [vmem:[#allocation3 + $0xc1] sm:$0xff]
    %v2953 = vld [vmem:[#allocation3 + $0xc9] sm:$0xff]
    %v2954 = vld [vmem:[#allocation3 + $0xd1] sm:$0xff]
    %v2955 = vld [vmem:[#allocation3 + $0xd9] sm:$0xff]
    %v2956 = vld [vmem:[#allocation3 + $0xe1] sm:$0xff]
    %v2957 = vld [vmem:[#allocation3 + $0xe9] sm:$0xff]
    %v2958 = vld [vmem:[%s3 + $0x30] sm:$0xff]
    %v2959 = vld [vmem:[%s3 + $0x38] sm:$0xf]
    %v2961 = vsel %vm57, %v2944, 0
    %v2964 = vsel %vm57, %v2945, 0
    %v2967 = vsel %vm57, %v2946, 0
    %v2970 = vsel %vm57, %v2947, 0
    %v2973 = vsel %vm57, %v2948, 0
    %v2976 = vsel %vm57, %v2949, 0
    %v2979 = vsel %vm57, %v2950, 0
    %v2982 = vsel %vm57, %v2951, 0
    %v2985 = vsel %vm57, %v2952, 0
    %v2988 = vsel %vm57, %v2953, 0
    %v2991 = vsel %vm57, %v2954, 0
    %v2994 = vsel %vm57, %v2955, 0
    %v2997 = vsel %vm57, %v2956, 0
    %v3000 = vsel %vm57, %v2957, 0
    %v3003 = vsel %vm1286, %v2959, 0
    %3005 = vmatpush.msra.mxu0 0.0
    %3006 = vmatpush.msra.mxu0 0.0
    %3007 = vmatpush.msra.mxu0 0.0
    %3008 = vmatpush.msra.mxu0 0.0
    %3009 = vmatpush.msra.mxu0 0.0
    %3010 = vmatpush.msra.mxu0 0.0
    %3011 = vmatpush.msra.mxu0 0.0
    %3012 = vmatpush.msra.mxu0 0.0
    %3013 = vmatpush.msra.mxu0 0.0
    %3014 = vmatpush.msra.mxu0 0.0
    %3015 = vmatpush.msra.mxu0 0.0
    %3016 = vmatpush.msra.mxu0 0.0
    %3017 = vmatpush.msra.mxu0 0.0
    %3018 = vmatpush.msra.mxu0 0.0
    %3019 = vmatpush.msra.mxu0 %v3003
    %3020 = vmatpush.msra.mxu0 %v2958
    %3021 = vmatmul.f32.gmra.mxu0 %v2961
    %v3022 = vpop.f32.mrf.mxu0
    %v3023 = vadd.f32 0.0, %v3022
    %3024 = vmatmul.f32.gmra.mxu0 %v2964
    %v3025 = vpop.f32.mrf.mxu0
    %v3026 = vadd.f32 0.0, %v3025
    %3027 = vmatmul.f32.gmra.mxu0 %v2967
    %v3028 = vpop.f32.mrf.mxu0
    %v3029 = vadd.f32 0.0, %v3028
    %3030 = vmatmul.f32.gmra.mxu0 %v2970
    %v3031 = vpop.f32.mrf.mxu0
    %v3032 = vadd.f32 0.0, %v3031
    %3033 = vmatmul.f32.gmra.mxu0 %v2973
    %v3034 = vpop.f32.mrf.mxu0
    %v3035 = vadd.f32 0.0, %v3034
    %3036 = vmatmul.f32.gmra.mxu0 %v2976
    %v3037 = vpop.f32.mrf.mxu0
    %v3038 = vadd.f32 0.0, %v3037
    %3039 = vmatmul.f32.gmra.mxu0 %v2979
    %v3040 = vpop.f32.mrf.mxu0
    %v3041 = vadd.f32 0.0, %v3040
    %3042 = vmatmul.f32.gmra.mxu0 %v2982
    %v3043 = vpop.f32.mrf.mxu0
    %v3044 = vadd.f32 0.0, %v3043
    %3045 = vmatmul.f32.gmra.mxu0 %v2985
    %v3046 = vpop.f32.mrf.mxu0
    %v3047 = vadd.f32 0.0, %v3046
    %3048 = vmatmul.f32.gmra.mxu0 %v2988
    %v3049 = vpop.f32.mrf.mxu0
    %v3050 = vadd.f32 0.0, %v3049
    %3051 = vmatmul.f32.gmra.mxu0 %v2991
    %v3052 = vpop.f32.mrf.mxu0
    %v3053 = vadd.f32 0.0, %v3052
    %3054 = vmatmul.f32.gmra.mxu0 %v2994
    %v3055 = vpop.f32.mrf.mxu0
    %v3056 = vadd.f32 0.0, %v3055
    %3057 = vmatmul.f32.gmra.mxu0 %v2997
    %v3058 = vpop.f32.mrf.mxu0
    %v3059 = vadd.f32 0.0, %v3058
    %3060 = vmatmul.f32.gmra.mxu0 %v3000
    %v3061 = vpop.f32.mrf.mxu0
    %v3062 = vadd.f32 0.0, %v3061
    %3063 = vdwg.mxu0
    %v3064 = vadd.f32 %v2930, %v3023
    %v3065 = vadd.f32 %v2931, %v3026
    %v3066 = vadd.f32 %v2932, %v3029
    %v3067 = vadd.f32 %v2933, %v3032
    %v3068 = vadd.f32 %v2934, %v3035
    %v3069 = vadd.f32 %v2935, %v3038
    %v3070 = vadd.f32 %v2936, %v3041
    %v3071 = vadd.f32 %v2937, %v3044
    %v3072 = vadd.f32 %v2938, %v3047
    %v3073 = vadd.f32 %v2939, %v3050
    %v3074 = vadd.f32 %v2940, %v3053
    %v3075 = vadd.f32 %v2941, %v3056
    %v3076 = vadd.f32 %v2942, %v3059
    %v3077 = vadd.f32 %v2943, %v3062
    %v3078 = vld [vmem:[#allocation3 + $0x82] sm:$0xff]
    %v3079 = vld [vmem:[#allocation3 + $0x8a] sm:$0xff]
    %v3080 = vld [vmem:[#allocation3 + $0x92] sm:$0xff]
    %v3081 = vld [vmem:[#allocation3 + $0x9a] sm:$0xff]
    %v3082 = vld [vmem:[#allocation3 + $0xa2] sm:$0xff]
    %v3083 = vld [vmem:[#allocation3 + $0xaa] sm:$0xff]
    %v3084 = vld [vmem:[#allocation3 + $0xb2] sm:$0xff]
    %v3085 = vld [vmem:[#allocation3 + $0xba] sm:$0xff]
    %v3086 = vld [vmem:[#allocation3 + $0xc2] sm:$0xff]
    %v3087 = vld [vmem:[#allocation3 + $0xca] sm:$0xff]
    %v3088 = vld [vmem:[#allocation3 + $0xd2] sm:$0xff]
    %v3089 = vld [vmem:[#allocation3 + $0xda] sm:$0xff]
    %v3090 = vld [vmem:[#allocation3 + $0xe2] sm:$0xff]
    %v3091 = vld [vmem:[#allocation3 + $0xea] sm:$0xff]
    %v3092 = vld [vmem:[%s3 + $0x3c] sm:$0xff]
    %v3093 = vld [vmem:[%s3 + $0x44] sm:$0xf]
    %v3095 = vsel %vm57, %v3078, 0
    %v3098 = vsel %vm57, %v3079, 0
    %v3101 = vsel %vm57, %v3080, 0
    %v3104 = vsel %vm57, %v3081, 0
    %v3107 = vsel %vm57, %v3082, 0
    %v3110 = vsel %vm57, %v3083, 0
    %v3113 = vsel %vm57, %v3084, 0
    %v3116 = vsel %vm57, %v3085, 0
    %v3119 = vsel %vm57, %v3086, 0
    %v3122 = vsel %vm57, %v3087, 0
    %v3125 = vsel %vm57, %v3088, 0
    %v3128 = vsel %vm57, %v3089, 0
    %v3131 = vsel %vm57, %v3090, 0
    %v3134 = vsel %vm57, %v3091, 0
    %v3137 = vsel %vm1286, %v3093, 0
    %3139 = vmatpush.msra.mxu0 0.0
    %3140 = vmatpush.msra.mxu0 0.0
    %3141 = vmatpush.msra.mxu0 0.0
    %3142 = vmatpush.msra.mxu0 0.0
    %3143 = vmatpush.msra.mxu0 0.0
    %3144 = vmatpush.msra.mxu0 0.0
    %3145 = vmatpush.msra.mxu0 0.0
    %3146 = vmatpush.msra.mxu0 0.0
    %3147 = vmatpush.msra.mxu0 0.0
    %3148 = vmatpush.msra.mxu0 0.0
    %3149 = vmatpush.msra.mxu0 0.0
    %3150 = vmatpush.msra.mxu0 0.0
    %3151 = vmatpush.msra.mxu0 0.0
    %3152 = vmatpush.msra.mxu0 0.0
    %3153 = vmatpush.msra.mxu0 %v3137
    %3154 = vmatpush.msra.mxu0 %v3092
    %3155 = vmatmul.f32.gmra.mxu0 %v3095
    %v3156 = vpop.f32.mrf.mxu0
    %v3157 = vadd.f32 0.0, %v3156
    %3158 = vmatmul.f32.gmra.mxu0 %v3098
    %v3159 = vpop.f32.mrf.mxu0
    %v3160 = vadd.f32 0.0, %v3159
    %3161 = vmatmul.f32.gmra.mxu0 %v3101
    %v3162 = vpop.f32.mrf.mxu0
    %v3163 = vadd.f32 0.0, %v3162
    %3164 = vmatmul.f32.gmra.mxu0 %v3104
    %v3165 = vpop.f32.mrf.mxu0
    %v3166 = vadd.f32 0.0, %v3165
    %3167 = vmatmul.f32.gmra.mxu0 %v3107
    %v3168 = vpop.f32.mrf.mxu0
    %v3169 = vadd.f32 0.0, %v3168
    %3170 = vmatmul.f32.gmra.mxu0 %v3110
    %v3171 = vpop.f32.mrf.mxu0
    %v3172 = vadd.f32 0.0, %v3171
    %3173 = vmatmul.f32.gmra.mxu0 %v3113
    %v3174 = vpop.f32.mrf.mxu0
    %v3175 = vadd.f32 0.0, %v3174
    %3176 = vmatmul.f32.gmra.mxu0 %v3116
    %v3177 = vpop.f32.mrf.mxu0
    %v3178 = vadd.f32 0.0, %v3177
    %3179 = vmatmul.f32.gmra.mxu0 %v3119
    %v3180 = vpop.f32.mrf.mxu0
    %v3181 = vadd.f32 0.0, %v3180
    %3182 = vmatmul.f32.gmra.mxu0 %v3122
    %v3183 = vpop.f32.mrf.mxu0
    %v3184 = vadd.f32 0.0, %v3183
    %3185 = vmatmul.f32.gmra.mxu0 %v3125
    %v3186 = vpop.f32.mrf.mxu0
    %v3187 = vadd.f32 0.0, %v3186
    %3188 = vmatmul.f32.gmra.mxu0 %v3128
    %v3189 = vpop.f32.mrf.mxu0
    %v3190 = vadd.f32 0.0, %v3189
    %3191 = vmatmul.f32.gmra.mxu0 %v3131
    %v3192 = vpop.f32.mrf.mxu0
    %v3193 = vadd.f32 0.0, %v3192
    %3194 = vmatmul.f32.gmra.mxu0 %v3134
    %v3195 = vpop.f32.mrf.mxu0
    %v3196 = vadd.f32 0.0, %v3195
    %3197 = vdwg.mxu0
    %v3198 = vadd.f32 %v3064, %v3157
    %v3199 = vadd.f32 %v3065, %v3160
    %v3200 = vadd.f32 %v3066, %v3163
    %v3201 = vadd.f32 %v3067, %v3166
    %v3202 = vadd.f32 %v3068, %v3169
    %v3203 = vadd.f32 %v3069, %v3172
    %v3204 = vadd.f32 %v3070, %v3175
    %v3205 = vadd.f32 %v3071, %v3178
    %v3206 = vadd.f32 %v3072, %v3181
    %v3207 = vadd.f32 %v3073, %v3184
    %v3208 = vadd.f32 %v3074, %v3187
    %v3209 = vadd.f32 %v3075, %v3190
    %v3210 = vadd.f32 %v3076, %v3193
    %v3211 = vadd.f32 %v3077, %v3196
    %v3212 = vld [vmem:[#allocation3 + $0x90] sm:$0xff]
    %v3213 = vld [vmem:[#allocation3 + $0x98] sm:$0xff]
    %v3214 = vld [vmem:[#allocation3 + $0xa0] sm:$0xff]
    %v3215 = vld [vmem:[#allocation3 + $0xa8] sm:$0xff]
    %v3216 = vld [vmem:[#allocation3 + $0xb0] sm:$0xff]
    %v3217 = vld [vmem:[#allocation3 + $0xb8] sm:$0xff]
    %v3218 = vld [vmem:[#allocation3 + $0xc0] sm:$0xff]
    %v3219 = vld [vmem:[#allocation3 + $0xc8] sm:$0xff]
    %v3220 = vld [vmem:[#allocation3 + $0xd0] sm:$0xff]
    %v3221 = vld [vmem:[#allocation3 + $0xd8] sm:$0xff]
    %v3222 = vld [vmem:[#allocation3 + $0xe0] sm:$0xff]
    %v3223 = vld [vmem:[#allocation3 + $0xe8] sm:$0xff]
    %v3224 = vld [vmem:[#allocation3 + $0xf0] sm:$0xff]
    %v3225 = vld [vmem:[#allocation3 + $0xf8] sm:$0xff]
    %v3226 = vld [vmem:[%s3 + $0x48] sm:$0xff]
    %v3227 = vld [vmem:[%s3 + $0x50] sm:$0xf]
    %v3229 = vsel %vm57, %v3212, 0
    %v3232 = vsel %vm57, %v3213, 0
    %v3235 = vsel %vm57, %v3214, 0
    %v3238 = vsel %vm57, %v3215, 0
    %v3241 = vsel %vm57, %v3216, 0
    %v3244 = vsel %vm57, %v3217, 0
    %v3247 = vsel %vm57, %v3218, 0
    %v3250 = vsel %vm57, %v3219, 0
    %v3253 = vsel %vm57, %v3220, 0
    %v3256 = vsel %vm57, %v3221, 0
    %v3259 = vsel %vm57, %v3222, 0
    %v3262 = vsel %vm57, %v3223, 0
    %v3265 = vsel %vm57, %v3224, 0
    %v3268 = vsel %vm57, %v3225, 0
    %v3271 = vsel %vm1286, %v3227, 0
    %3273 = vmatpush.msra.mxu0 0.0
    %3274 = vmatpush.msra.mxu0 0.0
    %3275 = vmatpush.msra.mxu0 0.0
    %3276 = vmatpush.msra.mxu0 0.0
    %3277 = vmatpush.msra.mxu0 0.0
    %3278 = vmatpush.msra.mxu0 0.0
    %3279 = vmatpush.msra.mxu0 0.0
    %3280 = vmatpush.msra.mxu0 0.0
    %3281 = vmatpush.msra.mxu0 0.0
    %3282 = vmatpush.msra.mxu0 0.0
    %3283 = vmatpush.msra.mxu0 0.0
    %3284 = vmatpush.msra.mxu0 0.0
    %3285 = vmatpush.msra.mxu0 0.0
    %3286 = vmatpush.msra.mxu0 0.0
    %3287 = vmatpush.msra.mxu0 %v3271
    %3288 = vmatpush.msra.mxu0 %v3226
    %3289 = vmatmul.f32.gmra.mxu0 %v3229
    %v3290 = vpop.f32.mrf.mxu0
    %v3291 = vadd.f32 0.0, %v3290
    %3292 = vmatmul.f32.gmra.mxu0 %v3232
    %v3293 = vpop.f32.mrf.mxu0
    %v3294 = vadd.f32 0.0, %v3293
    %3295 = vmatmul.f32.gmra.mxu0 %v3235
    %v3296 = vpop.f32.mrf.mxu0
    %v3297 = vadd.f32 0.0, %v3296
    %3298 = vmatmul.f32.gmra.mxu0 %v3238
    %v3299 = vpop.f32.mrf.mxu0
    %v3300 = vadd.f32 0.0, %v3299
    %3301 = vmatmul.f32.gmra.mxu0 %v3241
    %v3302 = vpop.f32.mrf.mxu0
    %v3303 = vadd.f32 0.0, %v3302
    %3304 = vmatmul.f32.gmra.mxu0 %v3244
    %v3305 = vpop.f32.mrf.mxu0
    %v3306 = vadd.f32 0.0, %v3305
    %3307 = vmatmul.f32.gmra.mxu0 %v3247
    %v3308 = vpop.f32.mrf.mxu0
    %v3309 = vadd.f32 0.0, %v3308
    %3310 = vmatmul.f32.gmra.mxu0 %v3250
    %v3311 = vpop.f32.mrf.mxu0
    %v3312 = vadd.f32 0.0, %v3311
    %3313 = vmatmul.f32.gmra.mxu0 %v3253
    %v3314 = vpop.f32.mrf.mxu0
    %v3315 = vadd.f32 0.0, %v3314
    %3316 = vmatmul.f32.gmra.mxu0 %v3256
    %v3317 = vpop.f32.mrf.mxu0
    %v3318 = vadd.f32 0.0, %v3317
    %3319 = vmatmul.f32.gmra.mxu0 %v3259
    %v3320 = vpop.f32.mrf.mxu0
    %v3321 = vadd.f32 0.0, %v3320
    %3322 = vmatmul.f32.gmra.mxu0 %v3262
    %v3323 = vpop.f32.mrf.mxu0
    %v3324 = vadd.f32 0.0, %v3323
    %3325 = vmatmul.f32.gmra.mxu0 %v3265
    %v3326 = vpop.f32.mrf.mxu0
    %v3327 = vadd.f32 0.0, %v3326
    %3328 = vmatmul.f32.gmra.mxu0 %v3268
    %v3329 = vpop.f32.mrf.mxu0
    %v3330 = vadd.f32 0.0, %v3329
    %3331 = vdwg.mxu0
    %v3332 = vadd.f32 %v3198, %v3291
    %v3333 = vadd.f32 %v3199, %v3294
    %v3334 = vadd.f32 %v3200, %v3297
    %v3335 = vadd.f32 %v3201, %v3300
    %v3336 = vadd.f32 %v3202, %v3303
    %v3337 = vadd.f32 %v3203, %v3306
    %v3338 = vadd.f32 %v3204, %v3309
    %v3339 = vadd.f32 %v3205, %v3312
    %v3340 = vadd.f32 %v3206, %v3315
    %v3341 = vadd.f32 %v3207, %v3318
    %v3342 = vadd.f32 %v3208, %v3321
    %v3343 = vadd.f32 %v3209, %v3324
    %v3344 = vadd.f32 %v3210, %v3327
    %v3345 = vadd.f32 %v3211, %v3330
    %v3346 = vld [vmem:[#allocation3 + $0x91] sm:$0xff]
    %v3347 = vld [vmem:[#allocation3 + $0x99] sm:$0xff]
    %v3348 = vld [vmem:[#allocation3 + $0xa1] sm:$0xff]
    %v3349 = vld [vmem:[#allocation3 + $0xa9] sm:$0xff]
    %v3350 = vld [vmem:[#allocation3 + $0xb1] sm:$0xff]
    %v3351 = vld [vmem:[#allocation3 + $0xb9] sm:$0xff]
    %v3352 = vld [vmem:[#allocation3 + $0xc1] sm:$0xff]
    %v3353 = vld [vmem:[#allocation3 + $0xc9] sm:$0xff]
    %v3354 = vld [vmem:[#allocation3 + $0xd1] sm:$0xff]
    %v3355 = vld [vmem:[#allocation3 + $0xd9] sm:$0xff]
    %v3356 = vld [vmem:[#allocation3 + $0xe1] sm:$0xff]
    %v3357 = vld [vmem:[#allocation3 + $0xe9] sm:$0xff]
    %v3358 = vld [vmem:[#allocation3 + $0xf1] sm:$0xff]
    %v3359 = vld [vmem:[#allocation3 + $0xf9] sm:$0xff]
    %v3360 = vld [vmem:[%s3 + $0x54] sm:$0xff]
    %v3361 = vld [vmem:[%s3 + $0x5c] sm:$0xf]
    %v3363 = vsel %vm57, %v3346, 0
    %v3366 = vsel %vm57, %v3347, 0
    %v3369 = vsel %vm57, %v3348, 0
    %v3372 = vsel %vm57, %v3349, 0
    %v3375 = vsel %vm57, %v3350, 0
    %v3378 = vsel %vm57, %v3351, 0
    %v3381 = vsel %vm57, %v3352, 0
    %v3384 = vsel %vm57, %v3353, 0
    %v3387 = vsel %vm57, %v3354, 0
    %v3390 = vsel %vm57, %v3355, 0
    %v3393 = vsel %vm57, %v3356, 0
    %v3396 = vsel %vm57, %v3357, 0
    %v3399 = vsel %vm57, %v3358, 0
    %v3402 = vsel %vm57, %v3359, 0
    %v3405 = vsel %vm1286, %v3361, 0
    %3407 = vmatpush.msra.mxu0 0.0
    %3408 = vmatpush.msra.mxu0 0.0
    %3409 = vmatpush.msra.mxu0 0.0
    %3410 = vmatpush.msra.mxu0 0.0
    %3411 = vmatpush.msra.mxu0 0.0
    %3412 = vmatpush.msra.mxu0 0.0
    %3413 = vmatpush.msra.mxu0 0.0
    %3414 = vmatpush.msra.mxu0 0.0
    %3415 = vmatpush.msra.mxu0 0.0
    %3416 = vmatpush.msra.mxu0 0.0
    %3417 = vmatpush.msra.mxu0 0.0
    %3418 = vmatpush.msra.mxu0 0.0
    %3419 = vmatpush.msra.mxu0 0.0
    %3420 = vmatpush.msra.mxu0 0.0
    %3421 = vmatpush.msra.mxu0 %v3405
    %3422 = vmatpush.msra.mxu0 %v3360
    %3423 = vmatmul.f32.gmra.mxu0 %v3363
    %v3424 = vpop.f32.mrf.mxu0
    %v3425 = vadd.f32 0.0, %v3424
    %3426 = vmatmul.f32.gmra.mxu0 %v3366
    %v3427 = vpop.f32.mrf.mxu0
    %v3428 = vadd.f32 0.0, %v3427
    %3429 = vmatmul.f32.gmra.mxu0 %v3369
    %v3430 = vpop.f32.mrf.mxu0
    %v3431 = vadd.f32 0.0, %v3430
    %3432 = vmatmul.f32.gmra.mxu0 %v3372
    %v3433 = vpop.f32.mrf.mxu0
    %v3434 = vadd.f32 0.0, %v3433
    %3435 = vmatmul.f32.gmra.mxu0 %v3375
    %v3436 = vpop.f32.mrf.mxu0
    %v3437 = vadd.f32 0.0, %v3436
    %3438 = vmatmul.f32.gmra.mxu0 %v3378
    %v3439 = vpop.f32.mrf.mxu0
    %v3440 = vadd.f32 0.0, %v3439
    %3441 = vmatmul.f32.gmra.mxu0 %v3381
    %v3442 = vpop.f32.mrf.mxu0
    %v3443 = vadd.f32 0.0, %v3442
    %3444 = vmatmul.f32.gmra.mxu0 %v3384
    %v3445 = vpop.f32.mrf.mxu0
    %v3446 = vadd.f32 0.0, %v3445
    %3447 = vmatmul.f32.gmra.mxu0 %v3387
    %v3448 = vpop.f32.mrf.mxu0
    %v3449 = vadd.f32 0.0, %v3448
    %3450 = vmatmul.f32.gmra.mxu0 %v3390
    %v3451 = vpop.f32.mrf.mxu0
    %v3452 = vadd.f32 0.0, %v3451
    %3453 = vmatmul.f32.gmra.mxu0 %v3393
    %v3454 = vpop.f32.mrf.mxu0
    %v3455 = vadd.f32 0.0, %v3454
    %3456 = vmatmul.f32.gmra.mxu0 %v3396
    %v3457 = vpop.f32.mrf.mxu0
    %v3458 = vadd.f32 0.0, %v3457
    %3459 = vmatmul.f32.gmra.mxu0 %v3399
    %v3460 = vpop.f32.mrf.mxu0
    %v3461 = vadd.f32 0.0, %v3460
    %3462 = vmatmul.f32.gmra.mxu0 %v3402
    %v3463 = vpop.f32.mrf.mxu0
    %v3464 = vadd.f32 0.0, %v3463
    %3465 = vdwg.mxu0
    %v3466 = vadd.f32 %v3332, %v3425
    %v3467 = vadd.f32 %v3333, %v3428
    %v3468 = vadd.f32 %v3334, %v3431
    %v3469 = vadd.f32 %v3335, %v3434
    %v3470 = vadd.f32 %v3336, %v3437
    %v3471 = vadd.f32 %v3337, %v3440
    %v3472 = vadd.f32 %v3338, %v3443
    %v3473 = vadd.f32 %v3339, %v3446
    %v3474 = vadd.f32 %v3340, %v3449
    %v3475 = vadd.f32 %v3341, %v3452
    %v3476 = vadd.f32 %v3342, %v3455
    %v3477 = vadd.f32 %v3343, %v3458
    %v3478 = vadd.f32 %v3344, %v3461
    %v3479 = vadd.f32 %v3345, %v3464
    %v3480 = vld [vmem:[#allocation3 + $0x92] sm:$0xff]
    %v3481 = vld [vmem:[#allocation3 + $0x9a] sm:$0xff]
    %v3482 = vld [vmem:[#allocation3 + $0xa2] sm:$0xff]
    %v3483 = vld [vmem:[#allocation3 + $0xaa] sm:$0xff]
    %v3484 = vld [vmem:[#allocation3 + $0xb2] sm:$0xff]
    %v3485 = vld [vmem:[#allocation3 + $0xba] sm:$0xff]
    %v3486 = vld [vmem:[#allocation3 + $0xc2] sm:$0xff]
    %v3487 = vld [vmem:[#allocation3 + $0xca] sm:$0xff]
    %v3488 = vld [vmem:[#allocation3 + $0xd2] sm:$0xff]
    %v3489 = vld [vmem:[#allocation3 + $0xda] sm:$0xff]
    %v3490 = vld [vmem:[#allocation3 + $0xe2] sm:$0xff]
    %v3491 = vld [vmem:[#allocation3 + $0xea] sm:$0xff]
    %v3492 = vld [vmem:[#allocation3 + $0xf2] sm:$0xff]
    %v3493 = vld [vmem:[#allocation3 + $0xfa] sm:$0xff]
    %v3494 = vld [vmem:[%s3 + $0x60] sm:$0xff]
    %v3495 = vld [vmem:[%s3 + $0x68] sm:$0xf]
    %v3497 = vsel %vm57, %v3480, 0
    %v3500 = vsel %vm57, %v3481, 0
    %v3503 = vsel %vm57, %v3482, 0
    %v3506 = vsel %vm57, %v3483, 0
    %v3509 = vsel %vm57, %v3484, 0
    %v3512 = vsel %vm57, %v3485, 0
    %v3515 = vsel %vm57, %v3486, 0
    %v3518 = vsel %vm57, %v3487, 0
    %v3521 = vsel %vm57, %v3488, 0
    %v3524 = vsel %vm57, %v3489, 0
    %v3527 = vsel %vm57, %v3490, 0
    %v3530 = vsel %vm57, %v3491, 0
    %v3533 = vsel %vm57, %v3492, 0
    %v3536 = vsel %vm57, %v3493, 0
    %v3539 = vsel %vm1286, %v3495, 0
    %3541 = vmatpush.msra.mxu0 0.0
    %3542 = vmatpush.msra.mxu0 0.0
    %3543 = vmatpush.msra.mxu0 0.0
    %3544 = vmatpush.msra.mxu0 0.0
    %3545 = vmatpush.msra.mxu0 0.0
    %3546 = vmatpush.msra.mxu0 0.0
    %3547 = vmatpush.msra.mxu0 0.0
    %3548 = vmatpush.msra.mxu0 0.0
    %3549 = vmatpush.msra.mxu0 0.0
    %3550 = vmatpush.msra.mxu0 0.0
    %3551 = vmatpush.msra.mxu0 0.0
    %3552 = vmatpush.msra.mxu0 0.0
    %3553 = vmatpush.msra.mxu0 0.0
    %3554 = vmatpush.msra.mxu0 0.0
    %3555 = vmatpush.msra.mxu0 %v3539
    %3556 = vmatpush.msra.mxu0 %v3494
    %3557 = vmatmul.f32.gmra.mxu0 %v3497
    %v3558 = vpop.f32.mrf.mxu0
    %v3559 = vadd.f32 0.0, %v3558
    %3560 = vmatmul.f32.gmra.mxu0 %v3500
    %v3561 = vpop.f32.mrf.mxu0
    %v3562 = vadd.f32 0.0, %v3561
    %3563 = vmatmul.f32.gmra.mxu0 %v3503
    %v3564 = vpop.f32.mrf.mxu0
    %v3565 = vadd.f32 0.0, %v3564
    %3566 = vmatmul.f32.gmra.mxu0 %v3506
    %v3567 = vpop.f32.mrf.mxu0
    %v3568 = vadd.f32 0.0, %v3567
    %3569 = vmatmul.f32.gmra.mxu0 %v3509
    %v3570 = vpop.f32.mrf.mxu0
    %v3571 = vadd.f32 0.0, %v3570
    %3572 = vmatmul.f32.gmra.mxu0 %v3512
    %v3573 = vpop.f32.mrf.mxu0
    %v3574 = vadd.f32 0.0, %v3573
    %3575 = vmatmul.f32.gmra.mxu0 %v3515
    %v3576 = vpop.f32.mrf.mxu0
    %v3577 = vadd.f32 0.0, %v3576
    %3578 = vmatmul.f32.gmra.mxu0 %v3518
    %v3579 = vpop.f32.mrf.mxu0
    %v3580 = vadd.f32 0.0, %v3579
    %3581 = vmatmul.f32.gmra.mxu0 %v3521
    %v3582 = vpop.f32.mrf.mxu0
    %v3583 = vadd.f32 0.0, %v3582
    %3584 = vmatmul.f32.gmra.mxu0 %v3524
    %v3585 = vpop.f32.mrf.mxu0
    %v3586 = vadd.f32 0.0, %v3585
    %3587 = vmatmul.f32.gmra.mxu0 %v3527
    %v3588 = vpop.f32.mrf.mxu0
    %v3589 = vadd.f32 0.0, %v3588
    %3590 = vmatmul.f32.gmra.mxu0 %v3530
    %v3591 = vpop.f32.mrf.mxu0
    %v3592 = vadd.f32 0.0, %v3591
    %3593 = vmatmul.f32.gmra.mxu0 %v3533
    %v3594 = vpop.f32.mrf.mxu0
    %v3595 = vadd.f32 0.0, %v3594
    %3596 = vmatmul.f32.gmra.mxu0 %v3536
    %v3597 = vpop.f32.mrf.mxu0
    %v3598 = vadd.f32 0.0, %v3597
    %3599 = vdwg.mxu0
    %v3600 = vadd.f32 %v3466, %v3559
    %v3601 = vadd.f32 %v3467, %v3562
    %v3602 = vadd.f32 %v3468, %v3565
    %v3603 = vadd.f32 %v3469, %v3568
    %v3604 = vadd.f32 %v3470, %v3571
    %v3605 = vadd.f32 %v3471, %v3574
    %v3606 = vadd.f32 %v3472, %v3577
    %v3607 = vadd.f32 %v3473, %v3580
    %v3608 = vadd.f32 %v3474, %v3583
    %v3609 = vadd.f32 %v3475, %v3586
    %v3610 = vadd.f32 %v3476, %v3589
    %v3611 = vadd.f32 %v3477, %v3592
    %v3612 = vadd.f32 %v3478, %v3595
    %v3613 = vadd.f32 %v3479, %v3598
    %v3614 = vadd.f32 %v3600, %v2392
    %v3615 = vadd.f32 %v3601, %v2392
    %v3616 = vadd.f32 %v3602, %v2392
    %v3617 = vadd.f32 %v3603, %v2392
    %v3618 = vadd.f32 %v3604, %v2392
    %v3619 = vadd.f32 %v3605, %v2392
    %v3620 = vadd.f32 %v3606, %v2392
    %v3621 = vadd.f32 %v3607, %v2392
    %v3622 = vadd.f32 %v3608, %v2392
    %v3623 = vadd.f32 %v3609, %v2392
    %v3624 = vadd.f32 %v3610, %v2392
    %v3625 = vadd.f32 %v3611, %v2392
    %v3626 = vadd.f32 %v3612, %v2392
    %v3627 = vadd.f32 %v3613, %v2392
    %v3628 = vmax.f32 %v3614, 0.0
    %v3629 = vmax.f32 %v3615, 0.0
    %v3630 = vmax.f32 %v3616, 0.0
    %v3631 = vmax.f32 %v3617, 0.0
    %v3632 = vmax.f32 %v3618, 0.0
    %v3633 = vmax.f32 %v3619, 0.0
    %v3634 = vmax.f32 %v3620, 0.0
    %v3635 = vmax.f32 %v3621, 0.0
    %v3636 = vmax.f32 %v3622, 0.0
    %v3637 = vmax.f32 %v3623, 0.0
    %v3638 = vmax.f32 %v3624, 0.0
    %v3639 = vmax.f32 %v3625, 0.0
    %v3640 = vmax.f32 %v3626, 0.0
    %v3641 = vmax.f32 %v3627, 0.0
    %3642 = vst.msk [vmem:[#allocation4 + $0x70] sm:$0xff] %vm119, %v3628
    %3643 = vst.msk [vmem:[#allocation4 + $0x78] sm:$0xff] %vm119, %v3629
    %3644 = vst.msk [vmem:[#allocation4 + $0x80] sm:$0xff] %vm119, %v3630
    %3645 = vst.msk [vmem:[#allocation4 + $0x88] sm:$0xff] %vm119, %v3631
    %3646 = vst.msk [vmem:[#allocation4 + $0x90] sm:$0xff] %vm119, %v3632
    %3647 = vst.msk [vmem:[#allocation4 + $0x98] sm:$0xff] %vm119, %v3633
    %3648 = vst.msk [vmem:[#allocation4 + $0xa0] sm:$0xff] %vm119, %v3634
    %3649 = vst.msk [vmem:[#allocation4 + $0xa8] sm:$0xff] %vm119, %v3635
    %3650 = vst.msk [vmem:[#allocation4 + $0xb0] sm:$0xff] %vm119, %v3636
    %3651 = vst.msk [vmem:[#allocation4 + $0xb8] sm:$0xff] %vm119, %v3637
    %3652 = vst.msk [vmem:[#allocation4 + $0xc0] sm:$0xff] %vm119, %v3638
    %3653 = vst.msk [vmem:[#allocation4 + $0xc8] sm:$0xff] %vm119, %v3639
    %3654 = vst.msk [vmem:[#allocation4 + $0xd0] sm:$0xff] %vm119, %v3640
    %3655 = vst.msk [vmem:[#allocation4 + $0xd8] sm:$0xff] %vm119, %v3641
    %v3656 = vld [vmem:[#allocation3 + $0xe0] sm:$0xff]
    %v3657 = vld [vmem:[#allocation3 + $0xe8] sm:$0xff]
    %v3658 = vld [vmem:[#allocation3 + $0xf0] sm:$0xff]
    %v3659 = vld [vmem:[#allocation3 + $0xf8] sm:$0xff]
    %v3660 = vld [vmem:[#allocation3 + $0x100] sm:$0xff]
    %v3661 = vld [vmem:[#allocation3 + $0x108] sm:$0xff]
    %v3662 = vld [vmem:[#allocation3 + $0x110] sm:$0xff]
    %v3663 = vld [vmem:[#allocation3 + $0x118] sm:$0xff]
    %v3664 = vld [vmem:[#allocation3 + $0x120] sm:$0xff]
    %v3665 = vld [vmem:[#allocation3 + $0x128] sm:$0xff]
    %v3666 = vld [vmem:[#allocation3 + $0x130] sm:$0xff]
    %v3667 = vld [vmem:[#allocation3 + $0x138] sm:$0xff]
    %v3668 = vld [vmem:[#allocation3 + $0x140] sm:$0xff]
    %v3669 = vld [vmem:[#allocation3 + $0x148] sm:$0xff]
    %v3670 = vld [vmem:[%s3] sm:$0xff]
    %v3671 = vld [vmem:[%s3 + $0x8] sm:$0xf]
    %v3672 = vld [vmem:[#allocation3 + $0xe1] sm:$0xff]
    %v3673 = vld [vmem:[#allocation3 + $0xe9] sm:$0xff]
    %v3674 = vld [vmem:[#allocation3 + $0xf1] sm:$0xff]
    %v3675 = vld [vmem:[#allocation3 + $0xf9] sm:$0xff]
    %v3676 = vld [vmem:[#allocation3 + $0x101] sm:$0xff]
    %v3677 = vld [vmem:[#allocation3 + $0x109] sm:$0xff]
    %v3678 = vld [vmem:[#allocation3 + $0x111] sm:$0xff]
    %v3679 = vld [vmem:[#allocation3 + $0x119] sm:$0xff]
    %v3680 = vld [vmem:[#allocation3 + $0x121] sm:$0xff]
    %v3681 = vld [vmem:[#allocation3 + $0x129] sm:$0xff]
    %v3682 = vld [vmem:[#allocation3 + $0x131] sm:$0xff]
    %v3683 = vld [vmem:[#allocation3 + $0x139] sm:$0xff]
    %v3684 = vld [vmem:[#allocation3 + $0x141] sm:$0xff]
    %v3685 = vld [vmem:[#allocation3 + $0x149] sm:$0xff]
    %v3686 = vld [vmem:[%s3 + $0xc] sm:$0xff]
    %v3687 = vld [vmem:[%s3 + $0x14] sm:$0xf]
    %v3689 = vsel %vm57, %v3672, 0
    %v3692 = vsel %vm57, %v3673, 0
    %v3695 = vsel %vm57, %v3674, 0
    %v3698 = vsel %vm57, %v3675, 0
    %v3701 = vsel %vm57, %v3676, 0
    %v3704 = vsel %vm57, %v3677, 0
    %v3707 = vsel %vm57, %v3678, 0
    %v3710 = vsel %vm57, %v3679, 0
    %v3713 = vsel %vm57, %v3680, 0
    %v3716 = vsel %vm57, %v3681, 0
    %v3719 = vsel %vm57, %v3682, 0
    %v3722 = vsel %vm57, %v3683, 0
    %v3725 = vsel %vm57, %v3684, 0
    %v3728 = vsel %vm57, %v3685, 0
    %v3731 = vsel %vm1286, %v3687, 0
    %3733 = vmatpush.msra.mxu0 0.0
    %3734 = vmatpush.msra.mxu0 0.0
    %3735 = vmatpush.msra.mxu0 0.0
    %3736 = vmatpush.msra.mxu0 0.0
    %3737 = vmatpush.msra.mxu0 0.0
    %3738 = vmatpush.msra.mxu0 0.0
    %3739 = vmatpush.msra.mxu0 0.0
    %3740 = vmatpush.msra.mxu0 0.0
    %3741 = vmatpush.msra.mxu0 0.0
    %3742 = vmatpush.msra.mxu0 0.0
    %3743 = vmatpush.msra.mxu0 0.0
    %3744 = vmatpush.msra.mxu0 0.0
    %3745 = vmatpush.msra.mxu0 0.0
    %3746 = vmatpush.msra.mxu0 0.0
    %3747 = vmatpush.msra.mxu0 %v3731
    %3748 = vmatpush.msra.mxu0 %v3686
    %3749 = vmatmul.f32.gmra.mxu0 %v3689
    %v3750 = vpop.f32.mrf.mxu0
    %v3751 = vadd.f32 0.0, %v3750
    %3752 = vmatmul.f32.gmra.mxu0 %v3692
    %v3753 = vpop.f32.mrf.mxu0
    %v3754 = vadd.f32 0.0, %v3753
    %3755 = vmatmul.f32.gmra.mxu0 %v3695
    %v3756 = vpop.f32.mrf.mxu0
    %v3757 = vadd.f32 0.0, %v3756
    %3758 = vmatmul.f32.gmra.mxu0 %v3698
    %v3759 = vpop.f32.mrf.mxu0
    %v3760 = vadd.f32 0.0, %v3759
    %3761 = vmatmul.f32.gmra.mxu0 %v3701
    %v3762 = vpop.f32.mrf.mxu0
    %v3763 = vadd.f32 0.0, %v3762
    %3764 = vmatmul.f32.gmra.mxu0 %v3704
    %v3765 = vpop.f32.mrf.mxu0
    %v3766 = vadd.f32 0.0, %v3765
    %3767 = vmatmul.f32.gmra.mxu0 %v3707
    %v3768 = vpop.f32.mrf.mxu0
    %v3769 = vadd.f32 0.0, %v3768
    %3770 = vmatmul.f32.gmra.mxu0 %v3710
    %v3771 = vpop.f32.mrf.mxu0
    %v3772 = vadd.f32 0.0, %v3771
    %3773 = vmatmul.f32.gmra.mxu0 %v3713
    %v3774 = vpop.f32.mrf.mxu0
    %v3775 = vadd.f32 0.0, %v3774
    %3776 = vmatmul.f32.gmra.mxu0 %v3716
    %v3777 = vpop.f32.mrf.mxu0
    %v3778 = vadd.f32 0.0, %v3777
    %3779 = vmatmul.f32.gmra.mxu0 %v3719
    %v3780 = vpop.f32.mrf.mxu0
    %v3781 = vadd.f32 0.0, %v3780
    %3782 = vmatmul.f32.gmra.mxu0 %v3722
    %v3783 = vpop.f32.mrf.mxu0
    %v3784 = vadd.f32 0.0, %v3783
    %3785 = vmatmul.f32.gmra.mxu0 %v3725
    %v3786 = vpop.f32.mrf.mxu0
    %v3787 = vadd.f32 0.0, %v3786
    %3788 = vmatmul.f32.gmra.mxu0 %v3728
    %v3789 = vpop.f32.mrf.mxu0
    %v3790 = vadd.f32 0.0, %v3789
    %3791 = vdwg.mxu0
    %v3793 = vsel %vm57, %v3656, 0
    %v3796 = vsel %vm57, %v3657, 0
    %v3799 = vsel %vm57, %v3658, 0
    %v3802 = vsel %vm57, %v3659, 0
    %v3805 = vsel %vm57, %v3660, 0
    %v3808 = vsel %vm57, %v3661, 0
    %v3811 = vsel %vm57, %v3662, 0
    %v3814 = vsel %vm57, %v3663, 0
    %v3817 = vsel %vm57, %v3664, 0
    %v3820 = vsel %vm57, %v3665, 0
    %v3823 = vsel %vm57, %v3666, 0
    %v3826 = vsel %vm57, %v3667, 0
    %v3829 = vsel %vm57, %v3668, 0
    %v3832 = vsel %vm57, %v3669, 0
    %v3835 = vsel %vm1286, %v3671, 0
    %3837 = vmatpush.msra.mxu0 0.0
    %3838 = vmatpush.msra.mxu0 0.0
    %3839 = vmatpush.msra.mxu0 0.0
    %3840 = vmatpush.msra.mxu0 0.0
    %3841 = vmatpush.msra.mxu0 0.0
    %3842 = vmatpush.msra.mxu0 0.0
    %3843 = vmatpush.msra.mxu0 0.0
    %3844 = vmatpush.msra.mxu0 0.0
    %3845 = vmatpush.msra.mxu0 0.0
    %3846 = vmatpush.msra.mxu0 0.0
    %3847 = vmatpush.msra.mxu0 0.0
    %3848 = vmatpush.msra.mxu0 0.0
    %3849 = vmatpush.msra.mxu0 0.0
    %3850 = vmatpush.msra.mxu0 0.0
    %3851 = vmatpush.msra.mxu0 %v3835
    %3852 = vmatpush.msra.mxu0 %v3670
    %3853 = vmatmul.f32.gmra.mxu0 %v3793
    %v3854 = vpop.f32.mrf.mxu0
    %v3855 = vadd.f32 %v3751, %v3854
    %3856 = vmatmul.f32.gmra.mxu0 %v3796
    %v3857 = vpop.f32.mrf.mxu0
    %v3858 = vadd.f32 %v3754, %v3857
    %3859 = vmatmul.f32.gmra.mxu0 %v3799
    %v3860 = vpop.f32.mrf.mxu0
    %v3861 = vadd.f32 %v3757, %v3860
    %3862 = vmatmul.f32.gmra.mxu0 %v3802
    %v3863 = vpop.f32.mrf.mxu0
    %v3864 = vadd.f32 %v3760, %v3863
    %3865 = vmatmul.f32.gmra.mxu0 %v3805
    %v3866 = vpop.f32.mrf.mxu0
    %v3867 = vadd.f32 %v3763, %v3866
    %3868 = vmatmul.f32.gmra.mxu0 %v3808
    %v3869 = vpop.f32.mrf.mxu0
    %v3870 = vadd.f32 %v3766, %v3869
    %3871 = vmatmul.f32.gmra.mxu0 %v3811
    %v3872 = vpop.f32.mrf.mxu0
    %v3873 = vadd.f32 %v3769, %v3872
    %3874 = vmatmul.f32.gmra.mxu0 %v3814
    %v3875 = vpop.f32.mrf.mxu0
    %v3876 = vadd.f32 %v3772, %v3875
    %3877 = vmatmul.f32.gmra.mxu0 %v3817
    %v3878 = vpop.f32.mrf.mxu0
    %v3879 = vadd.f32 %v3775, %v3878
    %3880 = vmatmul.f32.gmra.mxu0 %v3820
    %v3881 = vpop.f32.mrf.mxu0
    %v3882 = vadd.f32 %v3778, %v3881
    %3883 = vmatmul.f32.gmra.mxu0 %v3823
    %v3884 = vpop.f32.mrf.mxu0
    %v3885 = vadd.f32 %v3781, %v3884
    %3886 = vmatmul.f32.gmra.mxu0 %v3826
    %v3887 = vpop.f32.mrf.mxu0
    %v3888 = vadd.f32 %v3784, %v3887
    %3889 = vmatmul.f32.gmra.mxu0 %v3829
    %v3890 = vpop.f32.mrf.mxu0
    %v3891 = vadd.f32 %v3787, %v3890
    %3892 = vmatmul.f32.gmra.mxu0 %v3832
    %v3893 = vpop.f32.mrf.mxu0
    %v3894 = vadd.f32 %v3790, %v3893
    %3895 = vdwg.mxu0
    %v3896 = vld [vmem:[#allocation3 + $0xe2] sm:$0xff]
    %v3897 = vld [vmem:[#allocation3 + $0xea] sm:$0xff]
    %v3898 = vld [vmem:[#allocation3 + $0xf2] sm:$0xff]
    %v3899 = vld [vmem:[#allocation3 + $0xfa] sm:$0xff]
    %v3900 = vld [vmem:[#allocation3 + $0x102] sm:$0xff]
    %v3901 = vld [vmem:[#allocation3 + $0x10a] sm:$0xff]
    %v3902 = vld [vmem:[#allocation3 + $0x112] sm:$0xff]
    %v3903 = vld [vmem:[#allocation3 + $0x11a] sm:$0xff]
    %v3904 = vld [vmem:[#allocation3 + $0x122] sm:$0xff]
    %v3905 = vld [vmem:[#allocation3 + $0x12a] sm:$0xff]
    %v3906 = vld [vmem:[#allocation3 + $0x132] sm:$0xff]
    %v3907 = vld [vmem:[#allocation3 + $0x13a] sm:$0xff]
    %v3908 = vld [vmem:[#allocation3 + $0x142] sm:$0xff]
    %v3909 = vld [vmem:[#allocation3 + $0x14a] sm:$0xff]
    %v3910 = vld [vmem:[%s3 + $0x18] sm:$0xff]
    %v3911 = vld [vmem:[%s3 + $0x20] sm:$0xf]
    %v3913 = vsel %vm57, %v3896, 0
    %v3916 = vsel %vm57, %v3897, 0
    %v3919 = vsel %vm57, %v3898, 0
    %v3922 = vsel %vm57, %v3899, 0
    %v3925 = vsel %vm57, %v3900, 0
    %v3928 = vsel %vm57, %v3901, 0
    %v3931 = vsel %vm57, %v3902, 0
    %v3934 = vsel %vm57, %v3903, 0
    %v3937 = vsel %vm57, %v3904, 0
    %v3940 = vsel %vm57, %v3905, 0
    %v3943 = vsel %vm57, %v3906, 0
    %v3946 = vsel %vm57, %v3907, 0
    %v3949 = vsel %vm57, %v3908, 0
    %v3952 = vsel %vm57, %v3909, 0
    %v3955 = vsel %vm1286, %v3911, 0
    %3957 = vmatpush.msra.mxu0 0.0
    %3958 = vmatpush.msra.mxu0 0.0
    %3959 = vmatpush.msra.mxu0 0.0
    %3960 = vmatpush.msra.mxu0 0.0
    %3961 = vmatpush.msra.mxu0 0.0
    %3962 = vmatpush.msra.mxu0 0.0
    %3963 = vmatpush.msra.mxu0 0.0
    %3964 = vmatpush.msra.mxu0 0.0
    %3965 = vmatpush.msra.mxu0 0.0
    %3966 = vmatpush.msra.mxu0 0.0
    %3967 = vmatpush.msra.mxu0 0.0
    %3968 = vmatpush.msra.mxu0 0.0
    %3969 = vmatpush.msra.mxu0 0.0
    %3970 = vmatpush.msra.mxu0 0.0
    %3971 = vmatpush.msra.mxu0 %v3955
    %3972 = vmatpush.msra.mxu0 %v3910
    %3973 = vmatmul.f32.gmra.mxu0 %v3913
    %v3974 = vpop.f32.mrf.mxu0
    %v3975 = vadd.f32 0.0, %v3974
    %3976 = vmatmul.f32.gmra.mxu0 %v3916
    %v3977 = vpop.f32.mrf.mxu0
    %v3978 = vadd.f32 0.0, %v3977
    %3979 = vmatmul.f32.gmra.mxu0 %v3919
    %v3980 = vpop.f32.mrf.mxu0
    %v3981 = vadd.f32 0.0, %v3980
    %3982 = vmatmul.f32.gmra.mxu0 %v3922
    %v3983 = vpop.f32.mrf.mxu0
    %v3984 = vadd.f32 0.0, %v3983
    %3985 = vmatmul.f32.gmra.mxu0 %v3925
    %v3986 = vpop.f32.mrf.mxu0
    %v3987 = vadd.f32 0.0, %v3986
    %3988 = vmatmul.f32.gmra.mxu0 %v3928
    %v3989 = vpop.f32.mrf.mxu0
    %v3990 = vadd.f32 0.0, %v3989
    %3991 = vmatmul.f32.gmra.mxu0 %v3931
    %v3992 = vpop.f32.mrf.mxu0
    %v3993 = vadd.f32 0.0, %v3992
    %3994 = vmatmul.f32.gmra.mxu0 %v3934
    %v3995 = vpop.f32.mrf.mxu0
    %v3996 = vadd.f32 0.0, %v3995
    %3997 = vmatmul.f32.gmra.mxu0 %v3937
    %v3998 = vpop.f32.mrf.mxu0
    %v3999 = vadd.f32 0.0, %v3998
    %4000 = vmatmul.f32.gmra.mxu0 %v3940
    %v4001 = vpop.f32.mrf.mxu0
    %v4002 = vadd.f32 0.0, %v4001
    %4003 = vmatmul.f32.gmra.mxu0 %v3943
    %v4004 = vpop.f32.mrf.mxu0
    %v4005 = vadd.f32 0.0, %v4004
    %4006 = vmatmul.f32.gmra.mxu0 %v3946
    %v4007 = vpop.f32.mrf.mxu0
    %v4008 = vadd.f32 0.0, %v4007
    %4009 = vmatmul.f32.gmra.mxu0 %v3949
    %v4010 = vpop.f32.mrf.mxu0
    %v4011 = vadd.f32 0.0, %v4010
    %4012 = vmatmul.f32.gmra.mxu0 %v3952
    %v4013 = vpop.f32.mrf.mxu0
    %v4014 = vadd.f32 0.0, %v4013
    %4015 = vdwg.mxu0
    %v4016 = vadd.f32 %v3855, %v3975
    %v4017 = vadd.f32 %v3858, %v3978
    %v4018 = vadd.f32 %v3861, %v3981
    %v4019 = vadd.f32 %v3864, %v3984
    %v4020 = vadd.f32 %v3867, %v3987
    %v4021 = vadd.f32 %v3870, %v3990
    %v4022 = vadd.f32 %v3873, %v3993
    %v4023 = vadd.f32 %v3876, %v3996
    %v4024 = vadd.f32 %v3879, %v3999
    %v4025 = vadd.f32 %v3882, %v4002
    %v4026 = vadd.f32 %v3885, %v4005
    %v4027 = vadd.f32 %v3888, %v4008
    %v4028 = vadd.f32 %v3891, %v4011
    %v4029 = vadd.f32 %v3894, %v4014
    %v4030 = vld [vmem:[#allocation3 + $0xf0] sm:$0xff]
    %v4031 = vld [vmem:[#allocation3 + $0xf8] sm:$0xff]
    %v4032 = vld [vmem:[#allocation3 + $0x100] sm:$0xff]
    %v4033 = vld [vmem:[#allocation3 + $0x108] sm:$0xff]
    %v4034 = vld [vmem:[#allocation3 + $0x110] sm:$0xff]
    %v4035 = vld [vmem:[#allocation3 + $0x118] sm:$0xff]
    %v4036 = vld [vmem:[#allocation3 + $0x120] sm:$0xff]
    %v4037 = vld [vmem:[#allocation3 + $0x128] sm:$0xff]
    %v4038 = vld [vmem:[#allocation3 + $0x130] sm:$0xff]
    %v4039 = vld [vmem:[#allocation3 + $0x138] sm:$0xff]
    %v4040 = vld [vmem:[#allocation3 + $0x140] sm:$0xff]
    %v4041 = vld [vmem:[#allocation3 + $0x148] sm:$0xff]
    %v4042 = vld [vmem:[#allocation3 + $0x150] sm:$0xff]
    %v4043 = vld [vmem:[#allocation3 + $0x158] sm:$0xff]
    %v4044 = vld [vmem:[%s3 + $0x24] sm:$0xff]
    %v4045 = vld [vmem:[%s3 + $0x2c] sm:$0xf]
    %v4047 = vsel %vm57, %v4030, 0
    %v4050 = vsel %vm57, %v4031, 0
    %v4053 = vsel %vm57, %v4032, 0
    %v4056 = vsel %vm57, %v4033, 0
    %v4059 = vsel %vm57, %v4034, 0
    %v4062 = vsel %vm57, %v4035, 0
    %v4065 = vsel %vm57, %v4036, 0
    %v4068 = vsel %vm57, %v4037, 0
    %v4071 = vsel %vm57, %v4038, 0
    %v4074 = vsel %vm57, %v4039, 0
    %v4077 = vsel %vm57, %v4040, 0
    %v4080 = vsel %vm57, %v4041, 0
    %v4083 = vsel %vm57, %v4042, 0
    %v4086 = vsel %vm57, %v4043, 0
    %v4089 = vsel %vm1286, %v4045, 0
    %4091 = vmatpush.msra.mxu0 0.0
    %4092 = vmatpush.msra.mxu0 0.0
    %4093 = vmatpush.msra.mxu0 0.0
    %4094 = vmatpush.msra.mxu0 0.0
    %4095 = vmatpush.msra.mxu0 0.0
    %4096 = vmatpush.msra.mxu0 0.0
    %4097 = vmatpush.msra.mxu0 0.0
    %4098 = vmatpush.msra.mxu0 0.0
    %4099 = vmatpush.msra.mxu0 0.0
    %4100 = vmatpush.msra.mxu0 0.0
    %4101 = vmatpush.msra.mxu0 0.0
    %4102 = vmatpush.msra.mxu0 0.0
    %4103 = vmatpush.msra.mxu0 0.0
    %4104 = vmatpush.msra.mxu0 0.0
    %4105 = vmatpush.msra.mxu0 %v4089
    %4106 = vmatpush.msra.mxu0 %v4044
    %4107 = vmatmul.f32.gmra.mxu0 %v4047
    %v4108 = vpop.f32.mrf.mxu0
    %v4109 = vadd.f32 0.0, %v4108
    %4110 = vmatmul.f32.gmra.mxu0 %v4050
    %v4111 = vpop.f32.mrf.mxu0
    %v4112 = vadd.f32 0.0, %v4111
    %4113 = vmatmul.f32.gmra.mxu0 %v4053
    %v4114 = vpop.f32.mrf.mxu0
    %v4115 = vadd.f32 0.0, %v4114
    %4116 = vmatmul.f32.gmra.mxu0 %v4056
    %v4117 = vpop.f32.mrf.mxu0
    %v4118 = vadd.f32 0.0, %v4117
    %4119 = vmatmul.f32.gmra.mxu0 %v4059
    %v4120 = vpop.f32.mrf.mxu0
    %v4121 = vadd.f32 0.0, %v4120
    %4122 = vmatmul.f32.gmra.mxu0 %v4062
    %v4123 = vpop.f32.mrf.mxu0
    %v4124 = vadd.f32 0.0, %v4123
    %4125 = vmatmul.f32.gmra.mxu0 %v4065
    %v4126 = vpop.f32.mrf.mxu0
    %v4127 = vadd.f32 0.0, %v4126
    %4128 = vmatmul.f32.gmra.mxu0 %v4068
    %v4129 = vpop.f32.mrf.mxu0
    %v4130 = vadd.f32 0.0, %v4129
    %4131 = vmatmul.f32.gmra.mxu0 %v4071
    %v4132 = vpop.f32.mrf.mxu0
    %v4133 = vadd.f32 0.0, %v4132
    %4134 = vmatmul.f32.gmra.mxu0 %v4074
    %v4135 = vpop.f32.mrf.mxu0
    %v4136 = vadd.f32 0.0, %v4135
    %4137 = vmatmul.f32.gmra.mxu0 %v4077
    %v4138 = vpop.f32.mrf.mxu0
    %v4139 = vadd.f32 0.0, %v4138
    %4140 = vmatmul.f32.gmra.mxu0 %v4080
    %v4141 = vpop.f32.mrf.mxu0
    %v4142 = vadd.f32 0.0, %v4141
    %4143 = vmatmul.f32.gmra.mxu0 %v4083
    %v4144 = vpop.f32.mrf.mxu0
    %v4145 = vadd.f32 0.0, %v4144
    %4146 = vmatmul.f32.gmra.mxu0 %v4086
    %v4147 = vpop.f32.mrf.mxu0
    %v4148 = vadd.f32 0.0, %v4147
    %4149 = vdwg.mxu0
    %v4150 = vadd.f32 %v4016, %v4109
    %v4151 = vadd.f32 %v4017, %v4112
    %v4152 = vadd.f32 %v4018, %v4115
    %v4153 = vadd.f32 %v4019, %v4118
    %v4154 = vadd.f32 %v4020, %v4121
    %v4155 = vadd.f32 %v4021, %v4124
    %v4156 = vadd.f32 %v4022, %v4127
    %v4157 = vadd.f32 %v4023, %v4130
    %v4158 = vadd.f32 %v4024, %v4133
    %v4159 = vadd.f32 %v4025, %v4136
    %v4160 = vadd.f32 %v4026, %v4139
    %v4161 = vadd.f32 %v4027, %v4142
    %v4162 = vadd.f32 %v4028, %v4145
    %v4163 = vadd.f32 %v4029, %v4148
    %v4164 = vld [vmem:[#allocation3 + $0xf1] sm:$0xff]
    %v4165 = vld [vmem:[#allocation3 + $0xf9] sm:$0xff]
    %v4166 = vld [vmem:[#allocation3 + $0x101] sm:$0xff]
    %v4167 = vld [vmem:[#allocation3 + $0x109] sm:$0xff]
    %v4168 = vld [vmem:[#allocation3 + $0x111] sm:$0xff]
    %v4169 = vld [vmem:[#allocation3 + $0x119] sm:$0xff]
    %v4170 = vld [vmem:[#allocation3 + $0x121] sm:$0xff]
    %v4171 = vld [vmem:[#allocation3 + $0x129] sm:$0xff]
    %v4172 = vld [vmem:[#allocation3 + $0x131] sm:$0xff]
    %v4173 = vld [vmem:[#allocation3 + $0x139] sm:$0xff]
    %v4174 = vld [vmem:[#allocation3 + $0x141] sm:$0xff]
    %v4175 = vld [vmem:[#allocation3 + $0x149] sm:$0xff]
    %v4176 = vld [vmem:[#allocation3 + $0x151] sm:$0xff]
    %v4177 = vld [vmem:[#allocation3 + $0x159] sm:$0xff]
    %v4178 = vld [vmem:[%s3 + $0x30] sm:$0xff]
    %v4179 = vld [vmem:[%s3 + $0x38] sm:$0xf]
    %v4181 = vsel %vm57, %v4164, 0
    %v4184 = vsel %vm57, %v4165, 0
    %v4187 = vsel %vm57, %v4166, 0
    %v4190 = vsel %vm57, %v4167, 0
    %v4193 = vsel %vm57, %v4168, 0
    %v4196 = vsel %vm57, %v4169, 0
    %v4199 = vsel %vm57, %v4170, 0
    %v4202 = vsel %vm57, %v4171, 0
    %v4205 = vsel %vm57, %v4172, 0
    %v4208 = vsel %vm57, %v4173, 0
    %v4211 = vsel %vm57, %v4174, 0
    %v4214 = vsel %vm57, %v4175, 0
    %v4217 = vsel %vm57, %v4176, 0
    %v4220 = vsel %vm57, %v4177, 0
    %v4223 = vsel %vm1286, %v4179, 0
    %4225 = vmatpush.msra.mxu0 0.0
    %4226 = vmatpush.msra.mxu0 0.0
    %4227 = vmatpush.msra.mxu0 0.0
    %4228 = vmatpush.msra.mxu0 0.0
    %4229 = vmatpush.msra.mxu0 0.0
    %4230 = vmatpush.msra.mxu0 0.0
    %4231 = vmatpush.msra.mxu0 0.0
    %4232 = vmatpush.msra.mxu0 0.0
    %4233 = vmatpush.msra.mxu0 0.0
    %4234 = vmatpush.msra.mxu0 0.0
    %4235 = vmatpush.msra.mxu0 0.0
    %4236 = vmatpush.msra.mxu0 0.0
    %4237 = vmatpush.msra.mxu0 0.0
    %4238 = vmatpush.msra.mxu0 0.0
    %4239 = vmatpush.msra.mxu0 %v4223
    %4240 = vmatpush.msra.mxu0 %v4178
    %4241 = vmatmul.f32.gmra.mxu0 %v4181
    %v4242 = vpop.f32.mrf.mxu0
    %v4243 = vadd.f32 0.0, %v4242
    %4244 = vmatmul.f32.gmra.mxu0 %v4184
    %v4245 = vpop.f32.mrf.mxu0
    %v4246 = vadd.f32 0.0, %v4245
    %4247 = vmatmul.f32.gmra.mxu0 %v4187
    %v4248 = vpop.f32.mrf.mxu0
    %v4249 = vadd.f32 0.0, %v4248
    %4250 = vmatmul.f32.gmra.mxu0 %v4190
    %v4251 = vpop.f32.mrf.mxu0
    %v4252 = vadd.f32 0.0, %v4251
    %4253 = vmatmul.f32.gmra.mxu0 %v4193
    %v4254 = vpop.f32.mrf.mxu0
    %v4255 = vadd.f32 0.0, %v4254
    %4256 = vmatmul.f32.gmra.mxu0 %v4196
    %v4257 = vpop.f32.mrf.mxu0
    %v4258 = vadd.f32 0.0, %v4257
    %4259 = vmatmul.f32.gmra.mxu0 %v4199
    %v4260 = vpop.f32.mrf.mxu0
    %v4261 = vadd.f32 0.0, %v4260
    %4262 = vmatmul.f32.gmra.mxu0 %v4202
    %v4263 = vpop.f32.mrf.mxu0
    %v4264 = vadd.f32 0.0, %v4263
    %4265 = vmatmul.f32.gmra.mxu0 %v4205
    %v4266 = vpop.f32.mrf.mxu0
    %v4267 = vadd.f32 0.0, %v4266
    %4268 = vmatmul.f32.gmra.mxu0 %v4208
    %v4269 = vpop.f32.mrf.mxu0
    %v4270 = vadd.f32 0.0, %v4269
    %4271 = vmatmul.f32.gmra.mxu0 %v4211
    %v4272 = vpop.f32.mrf.mxu0
    %v4273 = vadd.f32 0.0, %v4272
    %4274 = vmatmul.f32.gmra.mxu0 %v4214
    %v4275 = vpop.f32.mrf.mxu0
    %v4276 = vadd.f32 0.0, %v4275
    %4277 = vmatmul.f32.gmra.mxu0 %v4217
    %v4278 = vpop.f32.mrf.mxu0
    %v4279 = vadd.f32 0.0, %v4278
    %4280 = vmatmul.f32.gmra.mxu0 %v4220
    %v4281 = vpop.f32.mrf.mxu0
    %v4282 = vadd.f32 0.0, %v4281
    %4283 = vdwg.mxu0
    %v4284 = vadd.f32 %v4150, %v4243
    %v4285 = vadd.f32 %v4151, %v4246
    %v4286 = vadd.f32 %v4152, %v4249
    %v4287 = vadd.f32 %v4153, %v4252
    %v4288 = vadd.f32 %v4154, %v4255
    %v4289 = vadd.f32 %v4155, %v4258
    %v4290 = vadd.f32 %v4156, %v4261
    %v4291 = vadd.f32 %v4157, %v4264
    %v4292 = vadd.f32 %v4158, %v4267
    %v4293 = vadd.f32 %v4159, %v4270
    %v4294 = vadd.f32 %v4160, %v4273
    %v4295 = vadd.f32 %v4161, %v4276
    %v4296 = vadd.f32 %v4162, %v4279
    %v4297 = vadd.f32 %v4163, %v4282
    %v4298 = vld [vmem:[#allocation3 + $0xf2] sm:$0xff]
    %v4299 = vld [vmem:[#allocation3 + $0xfa] sm:$0xff]
    %v4300 = vld [vmem:[#allocation3 + $0x102] sm:$0xff]
    %v4301 = vld [vmem:[#allocation3 + $0x10a] sm:$0xff]
    %v4302 = vld [vmem:[#allocation3 + $0x112] sm:$0xff]
    %v4303 = vld [vmem:[#allocation3 + $0x11a] sm:$0xff]
    %v4304 = vld [vmem:[#allocation3 + $0x122] sm:$0xff]
    %v4305 = vld [vmem:[#allocation3 + $0x12a] sm:$0xff]
    %v4306 = vld [vmem:[#allocation3 + $0x132] sm:$0xff]
    %v4307 = vld [vmem:[#allocation3 + $0x13a] sm:$0xff]
    %v4308 = vld [vmem:[#allocation3 + $0x142] sm:$0xff]
    %v4309 = vld [vmem:[#allocation3 + $0x14a] sm:$0xff]
    %v4310 = vld [vmem:[#allocation3 + $0x152] sm:$0xff]
    %v4311 = vld [vmem:[#allocation3 + $0x15a] sm:$0xff]
    %v4312 = vld [vmem:[%s3 + $0x3c] sm:$0xff]
    %v4313 = vld [vmem:[%s3 + $0x44] sm:$0xf]
    %v4315 = vsel %vm57, %v4298, 0
    %v4318 = vsel %vm57, %v4299, 0
    %v4321 = vsel %vm57, %v4300, 0
    %v4324 = vsel %vm57, %v4301, 0
    %v4327 = vsel %vm57, %v4302, 0
    %v4330 = vsel %vm57, %v4303, 0
    %v4333 = vsel %vm57, %v4304, 0
    %v4336 = vsel %vm57, %v4305, 0
    %v4339 = vsel %vm57, %v4306, 0
    %v4342 = vsel %vm57, %v4307, 0
    %v4345 = vsel %vm57, %v4308, 0
    %v4348 = vsel %vm57, %v4309, 0
    %v4351 = vsel %vm57, %v4310, 0
    %v4354 = vsel %vm57, %v4311, 0
    %v4357 = vsel %vm1286, %v4313, 0
    %4359 = vmatpush.msra.mxu0 0.0
    %4360 = vmatpush.msra.mxu0 0.0
    %4361 = vmatpush.msra.mxu0 0.0
    %4362 = vmatpush.msra.mxu0 0.0
    %4363 = vmatpush.msra.mxu0 0.0
    %4364 = vmatpush.msra.mxu0 0.0
    %4365 = vmatpush.msra.mxu0 0.0
    %4366 = vmatpush.msra.mxu0 0.0
    %4367 = vmatpush.msra.mxu0 0.0
    %4368 = vmatpush.msra.mxu0 0.0
    %4369 = vmatpush.msra.mxu0 0.0
    %4370 = vmatpush.msra.mxu0 0.0
    %4371 = vmatpush.msra.mxu0 0.0
    %4372 = vmatpush.msra.mxu0 0.0
    %4373 = vmatpush.msra.mxu0 %v4357
    %4374 = vmatpush.msra.mxu0 %v4312
    %4375 = vmatmul.f32.gmra.mxu0 %v4315
    %v4376 = vpop.f32.mrf.mxu0
    %v4377 = vadd.f32 0.0, %v4376
    %4378 = vmatmul.f32.gmra.mxu0 %v4318
    %v4379 = vpop.f32.mrf.mxu0
    %v4380 = vadd.f32 0.0, %v4379
    %4381 = vmatmul.f32.gmra.mxu0 %v4321
    %v4382 = vpop.f32.mrf.mxu0
    %v4383 = vadd.f32 0.0, %v4382
    %4384 = vmatmul.f32.gmra.mxu0 %v4324
    %v4385 = vpop.f32.mrf.mxu0
    %v4386 = vadd.f32 0.0, %v4385
    %4387 = vmatmul.f32.gmra.mxu0 %v4327
    %v4388 = vpop.f32.mrf.mxu0
    %v4389 = vadd.f32 0.0, %v4388
    %4390 = vmatmul.f32.gmra.mxu0 %v4330
    %v4391 = vpop.f32.mrf.mxu0
    %v4392 = vadd.f32 0.0, %v4391
    %4393 = vmatmul.f32.gmra.mxu0 %v4333
    %v4394 = vpop.f32.mrf.mxu0
    %v4395 = vadd.f32 0.0, %v4394
    %4396 = vmatmul.f32.gmra.mxu0 %v4336
    %v4397 = vpop.f32.mrf.mxu0
    %v4398 = vadd.f32 0.0, %v4397
    %4399 = vmatmul.f32.gmra.mxu0 %v4339
    %v4400 = vpop.f32.mrf.mxu0
    %v4401 = vadd.f32 0.0, %v4400
    %4402 = vmatmul.f32.gmra.mxu0 %v4342
    %v4403 = vpop.f32.mrf.mxu0
    %v4404 = vadd.f32 0.0, %v4403
    %4405 = vmatmul.f32.gmra.mxu0 %v4345
    %v4406 = vpop.f32.mrf.mxu0
    %v4407 = vadd.f32 0.0, %v4406
    %4408 = vmatmul.f32.gmra.mxu0 %v4348
    %v4409 = vpop.f32.mrf.mxu0
    %v4410 = vadd.f32 0.0, %v4409
    %4411 = vmatmul.f32.gmra.mxu0 %v4351
    %v4412 = vpop.f32.mrf.mxu0
    %v4413 = vadd.f32 0.0, %v4412
    %4414 = vmatmul.f32.gmra.mxu0 %v4354
    %v4415 = vpop.f32.mrf.mxu0
    %v4416 = vadd.f32 0.0, %v4415
    %4417 = vdwg.mxu0
    %v4418 = vadd.f32 %v4284, %v4377
    %v4419 = vadd.f32 %v4285, %v4380
    %v4420 = vadd.f32 %v4286, %v4383
    %v4421 = vadd.f32 %v4287, %v4386
    %v4422 = vadd.f32 %v4288, %v4389
    %v4423 = vadd.f32 %v4289, %v4392
    %v4424 = vadd.f32 %v4290, %v4395
    %v4425 = vadd.f32 %v4291, %v4398
    %v4426 = vadd.f32 %v4292, %v4401
    %v4427 = vadd.f32 %v4293, %v4404
    %v4428 = vadd.f32 %v4294, %v4407
    %v4429 = vadd.f32 %v4295, %v4410
    %v4430 = vadd.f32 %v4296, %v4413
    %v4431 = vadd.f32 %v4297, %v4416
    %v4432 = vld [vmem:[#allocation3 + $0x100] sm:$0xff]
    %v4433 = vld [vmem:[#allocation3 + $0x108] sm:$0xff]
    %v4434 = vld [vmem:[#allocation3 + $0x110] sm:$0xff]
    %v4435 = vld [vmem:[#allocation3 + $0x118] sm:$0xff]
    %v4436 = vld [vmem:[#allocation3 + $0x120] sm:$0xff]
    %v4437 = vld [vmem:[#allocation3 + $0x128] sm:$0xff]
    %v4438 = vld [vmem:[#allocation3 + $0x130] sm:$0xff]
    %v4439 = vld [vmem:[#allocation3 + $0x138] sm:$0xff]
    %v4440 = vld [vmem:[#allocation3 + $0x140] sm:$0xff]
    %v4441 = vld [vmem:[#allocation3 + $0x148] sm:$0xff]
    %v4442 = vld [vmem:[#allocation3 + $0x150] sm:$0xff]
    %v4443 = vld [vmem:[#allocation3 + $0x158] sm:$0xff]
    %v4444 = vld [vmem:[#allocation3 + $0x160] sm:$0xff]
    %v4445 = vld [vmem:[#allocation3 + $0x168] sm:$0xff]
    %v4446 = vld [vmem:[%s3 + $0x48] sm:$0xff]
    %v4447 = vld [vmem:[%s3 + $0x50] sm:$0xf]
    %v4449 = vsel %vm57, %v4432, 0
    %v4452 = vsel %vm57, %v4433, 0
    %v4455 = vsel %vm57, %v4434, 0
    %v4458 = vsel %vm57, %v4435, 0
    %v4461 = vsel %vm57, %v4436, 0
    %v4464 = vsel %vm57, %v4437, 0
    %v4467 = vsel %vm57, %v4438, 0
    %v4470 = vsel %vm57, %v4439, 0
    %v4473 = vsel %vm57, %v4440, 0
    %v4476 = vsel %vm57, %v4441, 0
    %v4479 = vsel %vm57, %v4442, 0
    %v4482 = vsel %vm57, %v4443, 0
    %v4485 = vsel %vm57, %v4444, 0
    %v4488 = vsel %vm57, %v4445, 0
    %v4491 = vsel %vm1286, %v4447, 0
    %4493 = vmatpush.msra.mxu0 0.0
    %4494 = vmatpush.msra.mxu0 0.0
    %4495 = vmatpush.msra.mxu0 0.0
    %4496 = vmatpush.msra.mxu0 0.0
    %4497 = vmatpush.msra.mxu0 0.0
    %4498 = vmatpush.msra.mxu0 0.0
    %4499 = vmatpush.msra.mxu0 0.0
    %4500 = vmatpush.msra.mxu0 0.0
    %4501 = vmatpush.msra.mxu0 0.0
    %4502 = vmatpush.msra.mxu0 0.0
    %4503 = vmatpush.msra.mxu0 0.0
    %4504 = vmatpush.msra.mxu0 0.0
    %4505 = vmatpush.msra.mxu0 0.0
    %4506 = vmatpush.msra.mxu0 0.0
    %4507 = vmatpush.msra.mxu0 %v4491
    %4508 = vmatpush.msra.mxu0 %v4446
    %4509 = vmatmul.f32.gmra.mxu0 %v4449
    %v4510 = vpop.f32.mrf.mxu0
    %v4511 = vadd.f32 0.0, %v4510
    %4512 = vmatmul.f32.gmra.mxu0 %v4452
    %v4513 = vpop.f32.mrf.mxu0
    %v4514 = vadd.f32 0.0, %v4513
    %4515 = vmatmul.f32.gmra.mxu0 %v4455
    %v4516 = vpop.f32.mrf.mxu0
    %v4517 = vadd.f32 0.0, %v4516
    %4518 = vmatmul.f32.gmra.mxu0 %v4458
    %v4519 = vpop.f32.mrf.mxu0
    %v4520 = vadd.f32 0.0, %v4519
    %4521 = vmatmul.f32.gmra.mxu0 %v4461
    %v4522 = vpop.f32.mrf.mxu0
    %v4523 = vadd.f32 0.0, %v4522
    %4524 = vmatmul.f32.gmra.mxu0 %v4464
    %v4525 = vpop.f32.mrf.mxu0
    %v4526 = vadd.f32 0.0, %v4525
    %4527 = vmatmul.f32.gmra.mxu0 %v4467
    %v4528 = vpop.f32.mrf.mxu0
    %v4529 = vadd.f32 0.0, %v4528
    %4530 = vmatmul.f32.gmra.mxu0 %v4470
    %v4531 = vpop.f32.mrf.mxu0
    %v4532 = vadd.f32 0.0, %v4531
    %4533 = vmatmul.f32.gmra.mxu0 %v4473
    %v4534 = vpop.f32.mrf.mxu0
    %v4535 = vadd.f32 0.0, %v4534
    %4536 = vmatmul.f32.gmra.mxu0 %v4476
    %v4537 = vpop.f32.mrf.mxu0
    %v4538 = vadd.f32 0.0, %v4537
    %4539 = vmatmul.f32.gmra.mxu0 %v4479
    %v4540 = vpop.f32.mrf.mxu0
    %v4541 = vadd.f32 0.0, %v4540
    %4542 = vmatmul.f32.gmra.mxu0 %v4482
    %v4543 = vpop.f32.mrf.mxu0
    %v4544 = vadd.f32 0.0, %v4543
    %4545 = vmatmul.f32.gmra.mxu0 %v4485
    %v4546 = vpop.f32.mrf.mxu0
    %v4547 = vadd.f32 0.0, %v4546
    %4548 = vmatmul.f32.gmra.mxu0 %v4488
    %v4549 = vpop.f32.mrf.mxu0
    %v4550 = vadd.f32 0.0, %v4549
    %4551 = vdwg.mxu0
    %v4552 = vadd.f32 %v4418, %v4511
    %v4553 = vadd.f32 %v4419, %v4514
    %v4554 = vadd.f32 %v4420, %v4517
    %v4555 = vadd.f32 %v4421, %v4520
    %v4556 = vadd.f32 %v4422, %v4523
    %v4557 = vadd.f32 %v4423, %v4526
    %v4558 = vadd.f32 %v4424, %v4529
    %v4559 = vadd.f32 %v4425, %v4532
    %v4560 = vadd.f32 %v4426, %v4535
    %v4561 = vadd.f32 %v4427, %v4538
    %v4562 = vadd.f32 %v4428, %v4541
    %v4563 = vadd.f32 %v4429, %v4544
    %v4564 = vadd.f32 %v4430, %v4547
    %v4565 = vadd.f32 %v4431, %v4550
    %v4566 = vld [vmem:[#allocation3 + $0x101] sm:$0xff]
    %v4567 = vld [vmem:[#allocation3 + $0x109] sm:$0xff]
    %v4568 = vld [vmem:[#allocation3 + $0x111] sm:$0xff]
    %v4569 = vld [vmem:[#allocation3 + $0x119] sm:$0xff]
    %v4570 = vld [vmem:[#allocation3 + $0x121] sm:$0xff]
    %v4571 = vld [vmem:[#allocation3 + $0x129] sm:$0xff]
    %v4572 = vld [vmem:[#allocation3 + $0x131] sm:$0xff]
    %v4573 = vld [vmem:[#allocation3 + $0x139] sm:$0xff]
    %v4574 = vld [vmem:[#allocation3 + $0x141] sm:$0xff]
    %v4575 = vld [vmem:[#allocation3 + $0x149] sm:$0xff]
    %v4576 = vld [vmem:[#allocation3 + $0x151] sm:$0xff]
    %v4577 = vld [vmem:[#allocation3 + $0x159] sm:$0xff]
    %v4578 = vld [vmem:[#allocation3 + $0x161] sm:$0xff]
    %v4579 = vld [vmem:[#allocation3 + $0x169] sm:$0xff]
    %v4580 = vld [vmem:[%s3 + $0x54] sm:$0xff]
    %v4581 = vld [vmem:[%s3 + $0x5c] sm:$0xf]
    %v4583 = vsel %vm57, %v4566, 0
    %v4586 = vsel %vm57, %v4567, 0
    %v4589 = vsel %vm57, %v4568, 0
    %v4592 = vsel %vm57, %v4569, 0
    %v4595 = vsel %vm57, %v4570, 0
    %v4598 = vsel %vm57, %v4571, 0
    %v4601 = vsel %vm57, %v4572, 0
    %v4604 = vsel %vm57, %v4573, 0
    %v4607 = vsel %vm57, %v4574, 0
    %v4610 = vsel %vm57, %v4575, 0
    %v4613 = vsel %vm57, %v4576, 0
    %v4616 = vsel %vm57, %v4577, 0
    %v4619 = vsel %vm57, %v4578, 0
    %v4622 = vsel %vm57, %v4579, 0
    %v4625 = vsel %vm1286, %v4581, 0
    %4627 = vmatpush.msra.mxu0 0.0
    %4628 = vmatpush.msra.mxu0 0.0
    %4629 = vmatpush.msra.mxu0 0.0
    %4630 = vmatpush.msra.mxu0 0.0
    %4631 = vmatpush.msra.mxu0 0.0
    %4632 = vmatpush.msra.mxu0 0.0
    %4633 = vmatpush.msra.mxu0 0.0
    %4634 = vmatpush.msra.mxu0 0.0
    %4635 = vmatpush.msra.mxu0 0.0
    %4636 = vmatpush.msra.mxu0 0.0
    %4637 = vmatpush.msra.mxu0 0.0
    %4638 = vmatpush.msra.mxu0 0.0
    %4639 = vmatpush.msra.mxu0 0.0
    %4640 = vmatpush.msra.mxu0 0.0
    %4641 = vmatpush.msra.mxu0 %v4625
    %4642 = vmatpush.msra.mxu0 %v4580
    %4643 = vmatmul.f32.gmra.mxu0 %v4583
    %v4644 = vpop.f32.mrf.mxu0
    %v4645 = vadd.f32 0.0, %v4644
    %4646 = vmatmul.f32.gmra.mxu0 %v4586
    %v4647 = vpop.f32.mrf.mxu0
    %v4648 = vadd.f32 0.0, %v4647
    %4649 = vmatmul.f32.gmra.mxu0 %v4589
    %v4650 = vpop.f32.mrf.mxu0
    %v4651 = vadd.f32 0.0, %v4650
    %4652 = vmatmul.f32.gmra.mxu0 %v4592
    %v4653 = vpop.f32.mrf.mxu0
    %v4654 = vadd.f32 0.0, %v4653
    %4655 = vmatmul.f32.gmra.mxu0 %v4595
    %v4656 = vpop.f32.mrf.mxu0
    %v4657 = vadd.f32 0.0, %v4656
    %4658 = vmatmul.f32.gmra.mxu0 %v4598
    %v4659 = vpop.f32.mrf.mxu0
    %v4660 = vadd.f32 0.0, %v4659
    %4661 = vmatmul.f32.gmra.mxu0 %v4601
    %v4662 = vpop.f32.mrf.mxu0
    %v4663 = vadd.f32 0.0, %v4662
    %4664 = vmatmul.f32.gmra.mxu0 %v4604
    %v4665 = vpop.f32.mrf.mxu0
    %v4666 = vadd.f32 0.0, %v4665
    %4667 = vmatmul.f32.gmra.mxu0 %v4607
    %v4668 = vpop.f32.mrf.mxu0
    %v4669 = vadd.f32 0.0, %v4668
    %4670 = vmatmul.f32.gmra.mxu0 %v4610
    %v4671 = vpop.f32.mrf.mxu0
    %v4672 = vadd.f32 0.0, %v4671
    %4673 = vmatmul.f32.gmra.mxu0 %v4613
    %v4674 = vpop.f32.mrf.mxu0
    %v4675 = vadd.f32 0.0, %v4674
    %4676 = vmatmul.f32.gmra.mxu0 %v4616
    %v4677 = vpop.f32.mrf.mxu0
    %v4678 = vadd.f32 0.0, %v4677
    %4679 = vmatmul.f32.gmra.mxu0 %v4619
    %v4680 = vpop.f32.mrf.mxu0
    %v4681 = vadd.f32 0.0, %v4680
    %4682 = vmatmul.f32.gmra.mxu0 %v4622
    %v4683 = vpop.f32.mrf.mxu0
    %v4684 = vadd.f32 0.0, %v4683
    %4685 = vdwg.mxu0
    %v4686 = vadd.f32 %v4552, %v4645
    %v4687 = vadd.f32 %v4553, %v4648
    %v4688 = vadd.f32 %v4554, %v4651
    %v4689 = vadd.f32 %v4555, %v4654
    %v4690 = vadd.f32 %v4556, %v4657
    %v4691 = vadd.f32 %v4557, %v4660
    %v4692 = vadd.f32 %v4558, %v4663
    %v4693 = vadd.f32 %v4559, %v4666
    %v4694 = vadd.f32 %v4560, %v4669
    %v4695 = vadd.f32 %v4561, %v4672
    %v4696 = vadd.f32 %v4562, %v4675
    %v4697 = vadd.f32 %v4563, %v4678
    %v4698 = vadd.f32 %v4564, %v4681
    %v4699 = vadd.f32 %v4565, %v4684
    %v4700 = vld [vmem:[#allocation3 + $0x102] sm:$0xff]
    %v4701 = vld [vmem:[#allocation3 + $0x10a] sm:$0xff]
    %v4702 = vld [vmem:[#allocation3 + $0x112] sm:$0xff]
    %v4703 = vld [vmem:[#allocation3 + $0x11a] sm:$0xff]
    %v4704 = vld [vmem:[#allocation3 + $0x122] sm:$0xff]
    %v4705 = vld [vmem:[#allocation3 + $0x12a] sm:$0xff]
    %v4706 = vld [vmem:[#allocation3 + $0x132] sm:$0xff]
    %v4707 = vld [vmem:[#allocation3 + $0x13a] sm:$0xff]
    %v4708 = vld [vmem:[#allocation3 + $0x142] sm:$0xff]
    %v4709 = vld [vmem:[#allocation3 + $0x14a] sm:$0xff]
    %v4710 = vld [vmem:[#allocation3 + $0x152] sm:$0xff]
    %v4711 = vld [vmem:[#allocation3 + $0x15a] sm:$0xff]
    %v4712 = vld [vmem:[#allocation3 + $0x162] sm:$0xff]
    %v4713 = vld [vmem:[#allocation3 + $0x16a] sm:$0xff]
    %v4714 = vld [vmem:[%s3 + $0x60] sm:$0xff]
    %v4715 = vld [vmem:[%s3 + $0x68] sm:$0xf]
    %v4717 = vsel %vm57, %v4700, 0
    %v4720 = vsel %vm57, %v4701, 0
    %v4723 = vsel %vm57, %v4702, 0
    %v4726 = vsel %vm57, %v4703, 0
    %v4729 = vsel %vm57, %v4704, 0
    %v4732 = vsel %vm57, %v4705, 0
    %v4735 = vsel %vm57, %v4706, 0
    %v4738 = vsel %vm57, %v4707, 0
    %v4741 = vsel %vm57, %v4708, 0
    %v4744 = vsel %vm57, %v4709, 0
    %v4747 = vsel %vm57, %v4710, 0
    %v4750 = vsel %vm57, %v4711, 0
    %v4753 = vsel %vm57, %v4712, 0
    %v4756 = vsel %vm57, %v4713, 0
    %v4759 = vsel %vm1286, %v4715, 0
    %4761 = vmatpush.msra.mxu0 0.0
    %4762 = vmatpush.msra.mxu0 0.0
    %4763 = vmatpush.msra.mxu0 0.0
    %4764 = vmatpush.msra.mxu0 0.0
    %4765 = vmatpush.msra.mxu0 0.0
    %4766 = vmatpush.msra.mxu0 0.0
    %4767 = vmatpush.msra.mxu0 0.0
    %4768 = vmatpush.msra.mxu0 0.0
    %4769 = vmatpush.msra.mxu0 0.0
    %4770 = vmatpush.msra.mxu0 0.0
    %4771 = vmatpush.msra.mxu0 0.0
    %4772 = vmatpush.msra.mxu0 0.0
    %4773 = vmatpush.msra.mxu0 0.0
    %4774 = vmatpush.msra.mxu0 0.0
    %4775 = vmatpush.msra.mxu0 %v4759
    %4776 = vmatpush.msra.mxu0 %v4714
    %4777 = vmatmul.f32.gmra.mxu0 %v4717
    %v4778 = vpop.f32.mrf.mxu0
    %v4779 = vadd.f32 0.0, %v4778
    %4780 = vmatmul.f32.gmra.mxu0 %v4720
    %v4781 = vpop.f32.mrf.mxu0
    %v4782 = vadd.f32 0.0, %v4781
    %4783 = vmatmul.f32.gmra.mxu0 %v4723
    %v4784 = vpop.f32.mrf.mxu0
    %v4785 = vadd.f32 0.0, %v4784
    %4786 = vmatmul.f32.gmra.mxu0 %v4726
    %v4787 = vpop.f32.mrf.mxu0
    %v4788 = vadd.f32 0.0, %v4787
    %4789 = vmatmul.f32.gmra.mxu0 %v4729
    %v4790 = vpop.f32.mrf.mxu0
    %v4791 = vadd.f32 0.0, %v4790
    %4792 = vmatmul.f32.gmra.mxu0 %v4732
    %v4793 = vpop.f32.mrf.mxu0
    %v4794 = vadd.f32 0.0, %v4793
    %4795 = vmatmul.f32.gmra.mxu0 %v4735
    %v4796 = vpop.f32.mrf.mxu0
    %v4797 = vadd.f32 0.0, %v4796
    %4798 = vmatmul.f32.gmra.mxu0 %v4738
    %v4799 = vpop.f32.mrf.mxu0
    %v4800 = vadd.f32 0.0, %v4799
    %4801 = vmatmul.f32.gmra.mxu0 %v4741
    %v4802 = vpop.f32.mrf.mxu0
    %v4803 = vadd.f32 0.0, %v4802
    %4804 = vmatmul.f32.gmra.mxu0 %v4744
    %v4805 = vpop.f32.mrf.mxu0
    %v4806 = vadd.f32 0.0, %v4805
    %4807 = vmatmul.f32.gmra.mxu0 %v4747
    %v4808 = vpop.f32.mrf.mxu0
    %v4809 = vadd.f32 0.0, %v4808
    %4810 = vmatmul.f32.gmra.mxu0 %v4750
    %v4811 = vpop.f32.mrf.mxu0
    %v4812 = vadd.f32 0.0, %v4811
    %4813 = vmatmul.f32.gmra.mxu0 %v4753
    %v4814 = vpop.f32.mrf.mxu0
    %v4815 = vadd.f32 0.0, %v4814
    %4816 = vmatmul.f32.gmra.mxu0 %v4756
    %v4817 = vpop.f32.mrf.mxu0
    %v4818 = vadd.f32 0.0, %v4817
    %4819 = vdwg.mxu0
    %v4820 = vadd.f32 %v4686, %v4779
    %v4821 = vadd.f32 %v4687, %v4782
    %v4822 = vadd.f32 %v4688, %v4785
    %v4823 = vadd.f32 %v4689, %v4788
    %v4824 = vadd.f32 %v4690, %v4791
    %v4825 = vadd.f32 %v4691, %v4794
    %v4826 = vadd.f32 %v4692, %v4797
    %v4827 = vadd.f32 %v4693, %v4800
    %v4828 = vadd.f32 %v4694, %v4803
    %v4829 = vadd.f32 %v4695, %v4806
    %v4830 = vadd.f32 %v4696, %v4809
    %v4831 = vadd.f32 %v4697, %v4812
    %v4832 = vadd.f32 %v4698, %v4815
    %v4833 = vadd.f32 %v4699, %v4818
    %v4834 = vadd.f32 %v4820, %v2392
    %v4835 = vadd.f32 %v4821, %v2392
    %v4836 = vadd.f32 %v4822, %v2392
    %v4837 = vadd.f32 %v4823, %v2392
    %v4838 = vadd.f32 %v4824, %v2392
    %v4839 = vadd.f32 %v4825, %v2392
    %v4840 = vadd.f32 %v4826, %v2392
    %v4841 = vadd.f32 %v4827, %v2392
    %v4842 = vadd.f32 %v4828, %v2392
    %v4843 = vadd.f32 %v4829, %v2392
    %v4844 = vadd.f32 %v4830, %v2392
    %v4845 = vadd.f32 %v4831, %v2392
    %v4846 = vadd.f32 %v4832, %v2392
    %v4847 = vadd.f32 %v4833, %v2392
    %v4848 = vmax.f32 %v4834, 0.0
    %v4849 = vmax.f32 %v4835, 0.0
    %v4850 = vmax.f32 %v4836, 0.0
    %v4851 = vmax.f32 %v4837, 0.0
    %v4852 = vmax.f32 %v4838, 0.0
    %v4853 = vmax.f32 %v4839, 0.0
    %v4854 = vmax.f32 %v4840, 0.0
    %v4855 = vmax.f32 %v4841, 0.0
    %v4856 = vmax.f32 %v4842, 0.0
    %v4857 = vmax.f32 %v4843, 0.0
    %v4858 = vmax.f32 %v4844, 0.0
    %v4859 = vmax.f32 %v4845, 0.0
    %v4860 = vmax.f32 %v4846, 0.0
    %v4861 = vmax.f32 %v4847, 0.0
    %4862 = vst.msk [vmem:[#allocation4 + $0xe0] sm:$0xff] %vm119, %v4848
    %4863 = vst.msk [vmem:[#allocation4 + $0xe8] sm:$0xff] %vm119, %v4849
    %4864 = vst.msk [vmem:[#allocation4 + $0xf0] sm:$0xff] %vm119, %v4850
    %4865 = vst.msk [vmem:[#allocation4 + $0xf8] sm:$0xff] %vm119, %v4851
    %4866 = vst.msk [vmem:[#allocation4 + $0x100] sm:$0xff] %vm119, %v4852
    %4867 = vst.msk [vmem:[#allocation4 + $0x108] sm:$0xff] %vm119, %v4853
    %4868 = vst.msk [vmem:[#allocation4 + $0x110] sm:$0xff] %vm119, %v4854
    %4869 = vst.msk [vmem:[#allocation4 + $0x118] sm:$0xff] %vm119, %v4855
    %4870 = vst.msk [vmem:[#allocation4 + $0x120] sm:$0xff] %vm119, %v4856
    %4871 = vst.msk [vmem:[#allocation4 + $0x128] sm:$0xff] %vm119, %v4857
    %4872 = vst.msk [vmem:[#allocation4 + $0x130] sm:$0xff] %vm119, %v4858
    %4873 = vst.msk [vmem:[#allocation4 + $0x138] sm:$0xff] %vm119, %v4859
    %4874 = vst.msk [vmem:[#allocation4 + $0x140] sm:$0xff] %vm119, %v4860
    %4875 = vst.msk [vmem:[#allocation4 + $0x148] sm:$0xff] %vm119, %v4861
    %v4876 = vld [vmem:[#allocation3 + $0x150] sm:$0xff]
    %v4877 = vld [vmem:[#allocation3 + $0x158] sm:$0xff]
    %v4878 = vld [vmem:[#allocation3 + $0x160] sm:$0xff]
    %v4879 = vld [vmem:[#allocation3 + $0x168] sm:$0xff]
    %v4880 = vld [vmem:[#allocation3 + $0x170] sm:$0xff]
    %v4881 = vld [vmem:[#allocation3 + $0x178] sm:$0xff]
    %v4882 = vld [vmem:[#allocation3 + $0x180] sm:$0xff]
    %v4883 = vld [vmem:[#allocation3 + $0x188] sm:$0xff]
    %v4884 = vld [vmem:[#allocation3 + $0x190] sm:$0xff]
    %v4885 = vld [vmem:[#allocation3 + $0x198] sm:$0xff]
    %v4886 = vld [vmem:[#allocation3 + $0x1a0] sm:$0xff]
    %v4887 = vld [vmem:[#allocation3 + $0x1a8] sm:$0xff]
    %v4888 = vld [vmem:[#allocation3 + $0x1b0] sm:$0xff]
    %v4889 = vld [vmem:[#allocation3 + $0x1b8] sm:$0xff]
    %v4890 = vld [vmem:[%s3] sm:$0xff]
    %v4891 = vld [vmem:[%s3 + $0x8] sm:$0xf]
    %v4892 = vld [vmem:[#allocation3 + $0x151] sm:$0xff]
    %v4893 = vld [vmem:[#allocation3 + $0x159] sm:$0xff]
    %v4894 = vld [vmem:[#allocation3 + $0x161] sm:$0xff]
    %v4895 = vld [vmem:[#allocation3 + $0x169] sm:$0xff]
    %v4896 = vld [vmem:[#allocation3 + $0x171] sm:$0xff]
    %v4897 = vld [vmem:[#allocation3 + $0x179] sm:$0xff]
    %v4898 = vld [vmem:[#allocation3 + $0x181] sm:$0xff]
    %v4899 = vld [vmem:[#allocation3 + $0x189] sm:$0xff]
    %v4900 = vld [vmem:[#allocation3 + $0x191] sm:$0xff]
    %v4901 = vld [vmem:[#allocation3 + $0x199] sm:$0xff]
    %v4902 = vld [vmem:[#allocation3 + $0x1a1] sm:$0xff]
    %v4903 = vld [vmem:[#allocation3 + $0x1a9] sm:$0xff]
    %v4904 = vld [vmem:[#allocation3 + $0x1b1] sm:$0xff]
    %v4905 = vld [vmem:[#allocation3 + $0x1b9] sm:$0xff]
    %v4906 = vld [vmem:[%s3 + $0xc] sm:$0xff]
    %v4907 = vld [vmem:[%s3 + $0x14] sm:$0xf]
    %v4909 = vsel %vm57, %v4892, 0
    %v4912 = vsel %vm57, %v4893, 0
    %v4915 = vsel %vm57, %v4894, 0
    %v4918 = vsel %vm57, %v4895, 0
    %v4921 = vsel %vm57, %v4896, 0
    %v4924 = vsel %vm57, %v4897, 0
    %v4927 = vsel %vm57, %v4898, 0
    %v4930 = vsel %vm57, %v4899, 0
    %v4933 = vsel %vm57, %v4900, 0
    %v4936 = vsel %vm57, %v4901, 0
    %v4939 = vsel %vm57, %v4902, 0
    %v4942 = vsel %vm57, %v4903, 0
    %v4945 = vsel %vm57, %v4904, 0
    %v4948 = vsel %vm57, %v4905, 0
    %v4951 = vsel %vm1286, %v4907, 0
    %4953 = vmatpush.msra.mxu0 0.0
    %4954 = vmatpush.msra.mxu0 0.0
    %4955 = vmatpush.msra.mxu0 0.0
    %4956 = vmatpush.msra.mxu0 0.0
    %4957 = vmatpush.msra.mxu0 0.0
    %4958 = vmatpush.msra.mxu0 0.0
    %4959 = vmatpush.msra.mxu0 0.0
    %4960 = vmatpush.msra.mxu0 0.0
    %4961 = vmatpush.msra.mxu0 0.0
    %4962 = vmatpush.msra.mxu0 0.0
    %4963 = vmatpush.msra.mxu0 0.0
    %4964 = vmatpush.msra.mxu0 0.0
    %4965 = vmatpush.msra.mxu0 0.0
    %4966 = vmatpush.msra.mxu0 0.0
    %4967 = vmatpush.msra.mxu0 %v4951
    %4968 = vmatpush.msra.mxu0 %v4906
    %4969 = vmatmul.f32.gmra.mxu0 %v4909
    %v4970 = vpop.f32.mrf.mxu0
    %v4971 = vadd.f32 0.0, %v4970
    %4972 = vmatmul.f32.gmra.mxu0 %v4912
    %v4973 = vpop.f32.mrf.mxu0
    %v4974 = vadd.f32 0.0, %v4973
    %4975 = vmatmul.f32.gmra.mxu0 %v4915
    %v4976 = vpop.f32.mrf.mxu0
    %v4977 = vadd.f32 0.0, %v4976
    %4978 = vmatmul.f32.gmra.mxu0 %v4918
    %v4979 = vpop.f32.mrf.mxu0
    %v4980 = vadd.f32 0.0, %v4979
    %4981 = vmatmul.f32.gmra.mxu0 %v4921
    %v4982 = vpop.f32.mrf.mxu0
    %v4983 = vadd.f32 0.0, %v4982
    %4984 = vmatmul.f32.gmra.mxu0 %v4924
    %v4985 = vpop.f32.mrf.mxu0
    %v4986 = vadd.f32 0.0, %v4985
    %4987 = vmatmul.f32.gmra.mxu0 %v4927
    %v4988 = vpop.f32.mrf.mxu0
    %v4989 = vadd.f32 0.0, %v4988
    %4990 = vmatmul.f32.gmra.mxu0 %v4930
    %v4991 = vpop.f32.mrf.mxu0
    %v4992 = vadd.f32 0.0, %v4991
    %4993 = vmatmul.f32.gmra.mxu0 %v4933
    %v4994 = vpop.f32.mrf.mxu0
    %v4995 = vadd.f32 0.0, %v4994
    %4996 = vmatmul.f32.gmra.mxu0 %v4936
    %v4997 = vpop.f32.mrf.mxu0
    %v4998 = vadd.f32 0.0, %v4997
    %4999 = vmatmul.f32.gmra.mxu0 %v4939
    %v5000 = vpop.f32.mrf.mxu0
    %v5001 = vadd.f32 0.0, %v5000
    %5002 = vmatmul.f32.gmra.mxu0 %v4942
    %v5003 = vpop.f32.mrf.mxu0
    %v5004 = vadd.f32 0.0, %v5003
    %5005 = vmatmul.f32.gmra.mxu0 %v4945
    %v5006 = vpop.f32.mrf.mxu0
    %v5007 = vadd.f32 0.0, %v5006
    %5008 = vmatmul.f32.gmra.mxu0 %v4948
    %v5009 = vpop.f32.mrf.mxu0
    %v5010 = vadd.f32 0.0, %v5009
    %5011 = vdwg.mxu0
    %v5013 = vsel %vm57, %v4876, 0
    %v5016 = vsel %vm57, %v4877, 0
    %v5019 = vsel %vm57, %v4878, 0
    %v5022 = vsel %vm57, %v4879, 0
    %v5025 = vsel %vm57, %v4880, 0
    %v5028 = vsel %vm57, %v4881, 0
    %v5031 = vsel %vm57, %v4882, 0
    %v5034 = vsel %vm57, %v4883, 0
    %v5037 = vsel %vm57, %v4884, 0
    %v5040 = vsel %vm57, %v4885, 0
    %v5043 = vsel %vm57, %v4886, 0
    %v5046 = vsel %vm57, %v4887, 0
    %v5049 = vsel %vm57, %v4888, 0
    %v5052 = vsel %vm57, %v4889, 0
    %v5055 = vsel %vm1286, %v4891, 0
    %5057 = vmatpush.msra.mxu0 0.0
    %5058 = vmatpush.msra.mxu0 0.0
    %5059 = vmatpush.msra.mxu0 0.0
    %5060 = vmatpush.msra.mxu0 0.0
    %5061 = vmatpush.msra.mxu0 0.0
    %5062 = vmatpush.msra.mxu0 0.0
    %5063 = vmatpush.msra.mxu0 0.0
    %5064 = vmatpush.msra.mxu0 0.0
    %5065 = vmatpush.msra.mxu0 0.0
    %5066 = vmatpush.msra.mxu0 0.0
    %5067 = vmatpush.msra.mxu0 0.0
    %5068 = vmatpush.msra.mxu0 0.0
    %5069 = vmatpush.msra.mxu0 0.0
    %5070 = vmatpush.msra.mxu0 0.0
    %5071 = vmatpush.msra.mxu0 %v5055
    %5072 = vmatpush.msra.mxu0 %v4890
    %5073 = vmatmul.f32.gmra.mxu0 %v5013
    %v5074 = vpop.f32.mrf.mxu0
    %v5075 = vadd.f32 %v4971, %v5074
    %5076 = vmatmul.f32.gmra.mxu0 %v5016
    %v5077 = vpop.f32.mrf.mxu0
    %v5078 = vadd.f32 %v4974, %v5077
    %5079 = vmatmul.f32.gmra.mxu0 %v5019
    %v5080 = vpop.f32.mrf.mxu0
    %v5081 = vadd.f32 %v4977, %v5080
    %5082 = vmatmul.f32.gmra.mxu0 %v5022
    %v5083 = vpop.f32.mrf.mxu0
    %v5084 = vadd.f32 %v4980, %v5083
    %5085 = vmatmul.f32.gmra.mxu0 %v5025
    %v5086 = vpop.f32.mrf.mxu0
    %v5087 = vadd.f32 %v4983, %v5086
    %5088 = vmatmul.f32.gmra.mxu0 %v5028
    %v5089 = vpop.f32.mrf.mxu0
    %v5090 = vadd.f32 %v4986, %v5089
    %5091 = vmatmul.f32.gmra.mxu0 %v5031
    %v5092 = vpop.f32.mrf.mxu0
    %v5093 = vadd.f32 %v4989, %v5092
    %5094 = vmatmul.f32.gmra.mxu0 %v5034
    %v5095 = vpop.f32.mrf.mxu0
    %v5096 = vadd.f32 %v4992, %v5095
    %5097 = vmatmul.f32.gmra.mxu0 %v5037
    %v5098 = vpop.f32.mrf.mxu0
    %v5099 = vadd.f32 %v4995, %v5098
    %5100 = vmatmul.f32.gmra.mxu0 %v5040
    %v5101 = vpop.f32.mrf.mxu0
    %v5102 = vadd.f32 %v4998, %v5101
    %5103 = vmatmul.f32.gmra.mxu0 %v5043
    %v5104 = vpop.f32.mrf.mxu0
    %v5105 = vadd.f32 %v5001, %v5104
    %5106 = vmatmul.f32.gmra.mxu0 %v5046
    %v5107 = vpop.f32.mrf.mxu0
    %v5108 = vadd.f32 %v5004, %v5107
    %5109 = vmatmul.f32.gmra.mxu0 %v5049
    %v5110 = vpop.f32.mrf.mxu0
    %v5111 = vadd.f32 %v5007, %v5110
    %5112 = vmatmul.f32.gmra.mxu0 %v5052
    %v5113 = vpop.f32.mrf.mxu0
    %v5114 = vadd.f32 %v5010, %v5113
    %5115 = vdwg.mxu0
    %v5116 = vld [vmem:[#allocation3 + $0x152] sm:$0xff]
    %v5117 = vld [vmem:[#allocation3 + $0x15a] sm:$0xff]
    %v5118 = vld [vmem:[#allocation3 + $0x162] sm:$0xff]
    %v5119 = vld [vmem:[#allocation3 + $0x16a] sm:$0xff]
    %v5120 = vld [vmem:[#allocation3 + $0x172] sm:$0xff]
    %v5121 = vld [vmem:[#allocation3 + $0x17a] sm:$0xff]
    %v5122 = vld [vmem:[#allocation3 + $0x182] sm:$0xff]
    %v5123 = vld [vmem:[#allocation3 + $0x18a] sm:$0xff]
    %v5124 = vld [vmem:[#allocation3 + $0x192] sm:$0xff]
    %v5125 = vld [vmem:[#allocation3 + $0x19a] sm:$0xff]
    %v5126 = vld [vmem:[#allocation3 + $0x1a2] sm:$0xff]
    %v5127 = vld [vmem:[#allocation3 + $0x1aa] sm:$0xff]
    %v5128 = vld [vmem:[#allocation3 + $0x1b2] sm:$0xff]
    %v5129 = vld [vmem:[#allocation3 + $0x1ba] sm:$0xff]
    %v5130 = vld [vmem:[%s3 + $0x18] sm:$0xff]
    %v5131 = vld [vmem:[%s3 + $0x20] sm:$0xf]
    %v5133 = vsel %vm57, %v5116, 0
    %v5136 = vsel %vm57, %v5117, 0
    %v5139 = vsel %vm57, %v5118, 0
    %v5142 = vsel %vm57, %v5119, 0
    %v5145 = vsel %vm57, %v5120, 0
    %v5148 = vsel %vm57, %v5121, 0
    %v5151 = vsel %vm57, %v5122, 0
    %v5154 = vsel %vm57, %v5123, 0
    %v5157 = vsel %vm57, %v5124, 0
    %v5160 = vsel %vm57, %v5125, 0
    %v5163 = vsel %vm57, %v5126, 0
    %v5166 = vsel %vm57, %v5127, 0
    %v5169 = vsel %vm57, %v5128, 0
    %v5172 = vsel %vm57, %v5129, 0
    %v5175 = vsel %vm1286, %v5131, 0
    %5177 = vmatpush.msra.mxu0 0.0
    %5178 = vmatpush.msra.mxu0 0.0
    %5179 = vmatpush.msra.mxu0 0.0
    %5180 = vmatpush.msra.mxu0 0.0
    %5181 = vmatpush.msra.mxu0 0.0
    %5182 = vmatpush.msra.mxu0 0.0
    %5183 = vmatpush.msra.mxu0 0.0
    %5184 = vmatpush.msra.mxu0 0.0
    %5185 = vmatpush.msra.mxu0 0.0
    %5186 = vmatpush.msra.mxu0 0.0
    %5187 = vmatpush.msra.mxu0 0.0
    %5188 = vmatpush.msra.mxu0 0.0
    %5189 = vmatpush.msra.mxu0 0.0
    %5190 = vmatpush.msra.mxu0 0.0
    %5191 = vmatpush.msra.mxu0 %v5175
    %5192 = vmatpush.msra.mxu0 %v5130
    %5193 = vmatmul.f32.gmra.mxu0 %v5133
    %v5194 = vpop.f32.mrf.mxu0
    %v5195 = vadd.f32 0.0, %v5194
    %5196 = vmatmul.f32.gmra.mxu0 %v5136
    %v5197 = vpop.f32.mrf.mxu0
    %v5198 = vadd.f32 0.0, %v5197
    %5199 = vmatmul.f32.gmra.mxu0 %v5139
    %v5200 = vpop.f32.mrf.mxu0
    %v5201 = vadd.f32 0.0, %v5200
    %5202 = vmatmul.f32.gmra.mxu0 %v5142
    %v5203 = vpop.f32.mrf.mxu0
    %v5204 = vadd.f32 0.0, %v5203
    %5205 = vmatmul.f32.gmra.mxu0 %v5145
    %v5206 = vpop.f32.mrf.mxu0
    %v5207 = vadd.f32 0.0, %v5206
    %5208 = vmatmul.f32.gmra.mxu0 %v5148
    %v5209 = vpop.f32.mrf.mxu0
    %v5210 = vadd.f32 0.0, %v5209
    %5211 = vmatmul.f32.gmra.mxu0 %v5151
    %v5212 = vpop.f32.mrf.mxu0
    %v5213 = vadd.f32 0.0, %v5212
    %5214 = vmatmul.f32.gmra.mxu0 %v5154
    %v5215 = vpop.f32.mrf.mxu0
    %v5216 = vadd.f32 0.0, %v5215
    %5217 = vmatmul.f32.gmra.mxu0 %v5157
    %v5218 = vpop.f32.mrf.mxu0
    %v5219 = vadd.f32 0.0, %v5218
    %5220 = vmatmul.f32.gmra.mxu0 %v5160
    %v5221 = vpop.f32.mrf.mxu0
    %v5222 = vadd.f32 0.0, %v5221
    %5223 = vmatmul.f32.gmra.mxu0 %v5163
    %v5224 = vpop.f32.mrf.mxu0
    %v5225 = vadd.f32 0.0, %v5224
    %5226 = vmatmul.f32.gmra.mxu0 %v5166
    %v5227 = vpop.f32.mrf.mxu0
    %v5228 = vadd.f32 0.0, %v5227
    %5229 = vmatmul.f32.gmra.mxu0 %v5169
    %v5230 = vpop.f32.mrf.mxu0
    %v5231 = vadd.f32 0.0, %v5230
    %5232 = vmatmul.f32.gmra.mxu0 %v5172
    %v5233 = vpop.f32.mrf.mxu0
    %v5234 = vadd.f32 0.0, %v5233
    %5235 = vdwg.mxu0
    %v5236 = vadd.f32 %v5075, %v5195
    %v5237 = vadd.f32 %v5078, %v5198
    %v5238 = vadd.f32 %v5081, %v5201
    %v5239 = vadd.f32 %v5084, %v5204
    %v5240 = vadd.f32 %v5087, %v5207
    %v5241 = vadd.f32 %v5090, %v5210
    %v5242 = vadd.f32 %v5093, %v5213
    %v5243 = vadd.f32 %v5096, %v5216
    %v5244 = vadd.f32 %v5099, %v5219
    %v5245 = vadd.f32 %v5102, %v5222
    %v5246 = vadd.f32 %v5105, %v5225
    %v5247 = vadd.f32 %v5108, %v5228
    %v5248 = vadd.f32 %v5111, %v5231
    %v5249 = vadd.f32 %v5114, %v5234
    %v5250 = vld [vmem:[#allocation3 + $0x160] sm:$0xff]
    %v5251 = vld [vmem:[#allocation3 + $0x168] sm:$0xff]
    %v5252 = vld [vmem:[#allocation3 + $0x170] sm:$0xff]
    %v5253 = vld [vmem:[#allocation3 + $0x178] sm:$0xff]
    %v5254 = vld [vmem:[#allocation3 + $0x180] sm:$0xff]
    %v5255 = vld [vmem:[#allocation3 + $0x188] sm:$0xff]
    %v5256 = vld [vmem:[#allocation3 + $0x190] sm:$0xff]
    %v5257 = vld [vmem:[#allocation3 + $0x198] sm:$0xff]
    %v5258 = vld [vmem:[#allocation3 + $0x1a0] sm:$0xff]
    %v5259 = vld [vmem:[#allocation3 + $0x1a8] sm:$0xff]
    %v5260 = vld [vmem:[#allocation3 + $0x1b0] sm:$0xff]
    %v5261 = vld [vmem:[#allocation3 + $0x1b8] sm:$0xff]
    %v5262 = vld [vmem:[#allocation3 + $0x1c0] sm:$0xff]
    %v5263 = vld [vmem:[#allocation3 + $0x1c8] sm:$0xff]
    %v5264 = vld [vmem:[%s3 + $0x24] sm:$0xff]
    %v5265 = vld [vmem:[%s3 + $0x2c] sm:$0xf]
    %v5267 = vsel %vm57, %v5250, 0
    %v5270 = vsel %vm57, %v5251, 0
    %v5273 = vsel %vm57, %v5252, 0
    %v5276 = vsel %vm57, %v5253, 0
    %v5279 = vsel %vm57, %v5254, 0
    %v5282 = vsel %vm57, %v5255, 0
    %v5285 = vsel %vm57, %v5256, 0
    %v5288 = vsel %vm57, %v5257, 0
    %v5291 = vsel %vm57, %v5258, 0
    %v5294 = vsel %vm57, %v5259, 0
    %v5297 = vsel %vm57, %v5260, 0
    %v5300 = vsel %vm57, %v5261, 0
    %v5303 = vsel %vm57, %v5262, 0
    %v5306 = vsel %vm57, %v5263, 0
    %v5309 = vsel %vm1286, %v5265, 0
    %5311 = vmatpush.msra.mxu0 0.0
    %5312 = vmatpush.msra.mxu0 0.0
    %5313 = vmatpush.msra.mxu0 0.0
    %5314 = vmatpush.msra.mxu0 0.0
    %5315 = vmatpush.msra.mxu0 0.0
    %5316 = vmatpush.msra.mxu0 0.0
    %5317 = vmatpush.msra.mxu0 0.0
    %5318 = vmatpush.msra.mxu0 0.0
    %5319 = vmatpush.msra.mxu0 0.0
    %5320 = vmatpush.msra.mxu0 0.0
    %5321 = vmatpush.msra.mxu0 0.0
    %5322 = vmatpush.msra.mxu0 0.0
    %5323 = vmatpush.msra.mxu0 0.0
    %5324 = vmatpush.msra.mxu0 0.0
    %5325 = vmatpush.msra.mxu0 %v5309
    %5326 = vmatpush.msra.mxu0 %v5264
    %5327 = vmatmul.f32.gmra.mxu0 %v5267
    %v5328 = vpop.f32.mrf.mxu0
    %v5329 = vadd.f32 0.0, %v5328
    %5330 = vmatmul.f32.gmra.mxu0 %v5270
    %v5331 = vpop.f32.mrf.mxu0
    %v5332 = vadd.f32 0.0, %v5331
    %5333 = vmatmul.f32.gmra.mxu0 %v5273
    %v5334 = vpop.f32.mrf.mxu0
    %v5335 = vadd.f32 0.0, %v5334
    %5336 = vmatmul.f32.gmra.mxu0 %v5276
    %v5337 = vpop.f32.mrf.mxu0
    %v5338 = vadd.f32 0.0, %v5337
    %5339 = vmatmul.f32.gmra.mxu0 %v5279
    %v5340 = vpop.f32.mrf.mxu0
    %v5341 = vadd.f32 0.0, %v5340
    %5342 = vmatmul.f32.gmra.mxu0 %v5282
    %v5343 = vpop.f32.mrf.mxu0
    %v5344 = vadd.f32 0.0, %v5343
    %5345 = vmatmul.f32.gmra.mxu0 %v5285
    %v5346 = vpop.f32.mrf.mxu0
    %v5347 = vadd.f32 0.0, %v5346
    %5348 = vmatmul.f32.gmra.mxu0 %v5288
    %v5349 = vpop.f32.mrf.mxu0
    %v5350 = vadd.f32 0.0, %v5349
    %5351 = vmatmul.f32.gmra.mxu0 %v5291
    %v5352 = vpop.f32.mrf.mxu0
    %v5353 = vadd.f32 0.0, %v5352
    %5354 = vmatmul.f32.gmra.mxu0 %v5294
    %v5355 = vpop.f32.mrf.mxu0
    %v5356 = vadd.f32 0.0, %v5355
    %5357 = vmatmul.f32.gmra.mxu0 %v5297
    %v5358 = vpop.f32.mrf.mxu0
    %v5359 = vadd.f32 0.0, %v5358
    %5360 = vmatmul.f32.gmra.mxu0 %v5300
    %v5361 = vpop.f32.mrf.mxu0
    %v5362 = vadd.f32 0.0, %v5361
    %5363 = vmatmul.f32.gmra.mxu0 %v5303
    %v5364 = vpop.f32.mrf.mxu0
    %v5365 = vadd.f32 0.0, %v5364
    %5366 = vmatmul.f32.gmra.mxu0 %v5306
    %v5367 = vpop.f32.mrf.mxu0
    %v5368 = vadd.f32 0.0, %v5367
    %5369 = vdwg.mxu0
    %v5370 = vadd.f32 %v5236, %v5329
    %v5371 = vadd.f32 %v5237, %v5332
    %v5372 = vadd.f32 %v5238, %v5335
    %v5373 = vadd.f32 %v5239, %v5338
    %v5374 = vadd.f32 %v5240, %v5341
    %v5375 = vadd.f32 %v5241, %v5344
    %v5376 = vadd.f32 %v5242, %v5347
    %v5377 = vadd.f32 %v5243, %v5350
    %v5378 = vadd.f32 %v5244, %v5353
    %v5379 = vadd.f32 %v5245, %v5356
    %v5380 = vadd.f32 %v5246, %v5359
    %v5381 = vadd.f32 %v5247, %v5362
    %v5382 = vadd.f32 %v5248, %v5365
    %v5383 = vadd.f32 %v5249, %v5368
    %v5384 = vld [vmem:[#allocation3 + $0x161] sm:$0xff]
    %v5385 = vld [vmem:[#allocation3 + $0x169] sm:$0xff]
    %v5386 = vld [vmem:[#allocation3 + $0x171] sm:$0xff]
    %v5387 = vld [vmem:[#allocation3 + $0x179] sm:$0xff]
    %v5388 = vld [vmem:[#allocation3 + $0x181] sm:$0xff]
    %v5389 = vld [vmem:[#allocation3 + $0x189] sm:$0xff]
    %v5390 = vld [vmem:[#allocation3 + $0x191] sm:$0xff]
    %v5391 = vld [vmem:[#allocation3 + $0x199] sm:$0xff]
    %v5392 = vld [vmem:[#allocation3 + $0x1a1] sm:$0xff]
    %v5393 = vld [vmem:[#allocation3 + $0x1a9] sm:$0xff]
    %v5394 = vld [vmem:[#allocation3 + $0x1b1] sm:$0xff]
    %v5395 = vld [vmem:[#allocation3 + $0x1b9] sm:$0xff]
    %v5396 = vld [vmem:[#allocation3 + $0x1c1] sm:$0xff]
    %v5397 = vld [vmem:[#allocation3 + $0x1c9] sm:$0xff]
    %v5398 = vld [vmem:[%s3 + $0x30] sm:$0xff]
    %v5399 = vld [vmem:[%s3 + $0x38] sm:$0xf]
    %v5401 = vsel %vm57, %v5384, 0
    %v5404 = vsel %vm57, %v5385, 0
    %v5407 = vsel %vm57, %v5386, 0
    %v5410 = vsel %vm57, %v5387, 0
    %v5413 = vsel %vm57, %v5388, 0
    %v5416 = vsel %vm57, %v5389, 0
    %v5419 = vsel %vm57, %v5390, 0
    %v5422 = vsel %vm57, %v5391, 0
    %v5425 = vsel %vm57, %v5392, 0
    %v5428 = vsel %vm57, %v5393, 0
    %v5431 = vsel %vm57, %v5394, 0
    %v5434 = vsel %vm57, %v5395, 0
    %v5437 = vsel %vm57, %v5396, 0
    %v5440 = vsel %vm57, %v5397, 0
    %v5443 = vsel %vm1286, %v5399, 0
    %5445 = vmatpush.msra.mxu0 0.0
    %5446 = vmatpush.msra.mxu0 0.0
    %5447 = vmatpush.msra.mxu0 0.0
    %5448 = vmatpush.msra.mxu0 0.0
    %5449 = vmatpush.msra.mxu0 0.0
    %5450 = vmatpush.msra.mxu0 0.0
    %5451 = vmatpush.msra.mxu0 0.0
    %5452 = vmatpush.msra.mxu0 0.0
    %5453 = vmatpush.msra.mxu0 0.0
    %5454 = vmatpush.msra.mxu0 0.0
    %5455 = vmatpush.msra.mxu0 0.0
    %5456 = vmatpush.msra.mxu0 0.0
    %5457 = vmatpush.msra.mxu0 0.0
    %5458 = vmatpush.msra.mxu0 0.0
    %5459 = vmatpush.msra.mxu0 %v5443
    %5460 = vmatpush.msra.mxu0 %v5398
    %5461 = vmatmul.f32.gmra.mxu0 %v5401
    %v5462 = vpop.f32.mrf.mxu0
    %v5463 = vadd.f32 0.0, %v5462
    %5464 = vmatmul.f32.gmra.mxu0 %v5404
    %v5465 = vpop.f32.mrf.mxu0
    %v5466 = vadd.f32 0.0, %v5465
    %5467 = vmatmul.f32.gmra.mxu0 %v5407
    %v5468 = vpop.f32.mrf.mxu0
    %v5469 = vadd.f32 0.0, %v5468
    %5470 = vmatmul.f32.gmra.mxu0 %v5410
    %v5471 = vpop.f32.mrf.mxu0
    %v5472 = vadd.f32 0.0, %v5471
    %5473 = vmatmul.f32.gmra.mxu0 %v5413
    %v5474 = vpop.f32.mrf.mxu0
    %v5475 = vadd.f32 0.0, %v5474
    %5476 = vmatmul.f32.gmra.mxu0 %v5416
    %v5477 = vpop.f32.mrf.mxu0
    %v5478 = vadd.f32 0.0, %v5477
    %5479 = vmatmul.f32.gmra.mxu0 %v5419
    %v5480 = vpop.f32.mrf.mxu0
    %v5481 = vadd.f32 0.0, %v5480
    %5482 = vmatmul.f32.gmra.mxu0 %v5422
    %v5483 = vpop.f32.mrf.mxu0
    %v5484 = vadd.f32 0.0, %v5483
    %5485 = vmatmul.f32.gmra.mxu0 %v5425
    %v5486 = vpop.f32.mrf.mxu0
    %v5487 = vadd.f32 0.0, %v5486
    %5488 = vmatmul.f32.gmra.mxu0 %v5428
    %v5489 = vpop.f32.mrf.mxu0
    %v5490 = vadd.f32 0.0, %v5489
    %5491 = vmatmul.f32.gmra.mxu0 %v5431
    %v5492 = vpop.f32.mrf.mxu0
    %v5493 = vadd.f32 0.0, %v5492
    %5494 = vmatmul.f32.gmra.mxu0 %v5434
    %v5495 = vpop.f32.mrf.mxu0
    %v5496 = vadd.f32 0.0, %v5495
    %5497 = vmatmul.f32.gmra.mxu0 %v5437
    %v5498 = vpop.f32.mrf.mxu0
    %v5499 = vadd.f32 0.0, %v5498
    %5500 = vmatmul.f32.gmra.mxu0 %v5440
    %v5501 = vpop.f32.mrf.mxu0
    %v5502 = vadd.f32 0.0, %v5501
    %5503 = vdwg.mxu0
    %v5504 = vadd.f32 %v5370, %v5463
    %v5505 = vadd.f32 %v5371, %v5466
    %v5506 = vadd.f32 %v5372, %v5469
    %v5507 = vadd.f32 %v5373, %v5472
    %v5508 = vadd.f32 %v5374, %v5475
    %v5509 = vadd.f32 %v5375, %v5478
    %v5510 = vadd.f32 %v5376, %v5481
    %v5511 = vadd.f32 %v5377, %v5484
    %v5512 = vadd.f32 %v5378, %v5487
    %v5513 = vadd.f32 %v5379, %v5490
    %v5514 = vadd.f32 %v5380, %v5493
    %v5515 = vadd.f32 %v5381, %v5496
    %v5516 = vadd.f32 %v5382, %v5499
    %v5517 = vadd.f32 %v5383, %v5502
    %v5518 = vld [vmem:[#allocation3 + $0x162] sm:$0xff]
    %v5519 = vld [vmem:[#allocation3 + $0x16a] sm:$0xff]
    %v5520 = vld [vmem:[#allocation3 + $0x172] sm:$0xff]
    %v5521 = vld [vmem:[#allocation3 + $0x17a] sm:$0xff]
    %v5522 = vld [vmem:[#allocation3 + $0x182] sm:$0xff]
    %v5523 = vld [vmem:[#allocation3 + $0x18a] sm:$0xff]
    %v5524 = vld [vmem:[#allocation3 + $0x192] sm:$0xff]
    %v5525 = vld [vmem:[#allocation3 + $0x19a] sm:$0xff]
    %v5526 = vld [vmem:[#allocation3 + $0x1a2] sm:$0xff]
    %v5527 = vld [vmem:[#allocation3 + $0x1aa] sm:$0xff]
    %v5528 = vld [vmem:[#allocation3 + $0x1b2] sm:$0xff]
    %v5529 = vld [vmem:[#allocation3 + $0x1ba] sm:$0xff]
    %v5530 = vld [vmem:[#allocation3 + $0x1c2] sm:$0xff]
    %v5531 = vld [vmem:[#allocation3 + $0x1ca] sm:$0xff]
    %v5532 = vld [vmem:[%s3 + $0x3c] sm:$0xff]
    %v5533 = vld [vmem:[%s3 + $0x44] sm:$0xf]
    %v5535 = vsel %vm57, %v5518, 0
    %v5538 = vsel %vm57, %v5519, 0
    %v5541 = vsel %vm57, %v5520, 0
    %v5544 = vsel %vm57, %v5521, 0
    %v5547 = vsel %vm57, %v5522, 0
    %v5550 = vsel %vm57, %v5523, 0
    %v5553 = vsel %vm57, %v5524, 0
    %v5556 = vsel %vm57, %v5525, 0
    %v5559 = vsel %vm57, %v5526, 0
    %v5562 = vsel %vm57, %v5527, 0
    %v5565 = vsel %vm57, %v5528, 0
    %v5568 = vsel %vm57, %v5529, 0
    %v5571 = vsel %vm57, %v5530, 0
    %v5574 = vsel %vm57, %v5531, 0
    %v5577 = vsel %vm1286, %v5533, 0
    %5579 = vmatpush.msra.mxu0 0.0
    %5580 = vmatpush.msra.mxu0 0.0
    %5581 = vmatpush.msra.mxu0 0.0
    %5582 = vmatpush.msra.mxu0 0.0
    %5583 = vmatpush.msra.mxu0 0.0
    %5584 = vmatpush.msra.mxu0 0.0
    %5585 = vmatpush.msra.mxu0 0.0
    %5586 = vmatpush.msra.mxu0 0.0
    %5587 = vmatpush.msra.mxu0 0.0
    %5588 = vmatpush.msra.mxu0 0.0
    %5589 = vmatpush.msra.mxu0 0.0
    %5590 = vmatpush.msra.mxu0 0.0
    %5591 = vmatpush.msra.mxu0 0.0
    %5592 = vmatpush.msra.mxu0 0.0
    %5593 = vmatpush.msra.mxu0 %v5577
    %5594 = vmatpush.msra.mxu0 %v5532
    %5595 = vmatmul.f32.gmra.mxu0 %v5535
    %v5596 = vpop.f32.mrf.mxu0
    %v5597 = vadd.f32 0.0, %v5596
    %5598 = vmatmul.f32.gmra.mxu0 %v5538
    %v5599 = vpop.f32.mrf.mxu0
    %v5600 = vadd.f32 0.0, %v5599
    %5601 = vmatmul.f32.gmra.mxu0 %v5541
    %v5602 = vpop.f32.mrf.mxu0
    %v5603 = vadd.f32 0.0, %v5602
    %5604 = vmatmul.f32.gmra.mxu0 %v5544
    %v5605 = vpop.f32.mrf.mxu0
    %v5606 = vadd.f32 0.0, %v5605
    %5607 = vmatmul.f32.gmra.mxu0 %v5547
    %v5608 = vpop.f32.mrf.mxu0
    %v5609 = vadd.f32 0.0, %v5608
    %5610 = vmatmul.f32.gmra.mxu0 %v5550
    %v5611 = vpop.f32.mrf.mxu0
    %v5612 = vadd.f32 0.0, %v5611
    %5613 = vmatmul.f32.gmra.mxu0 %v5553
    %v5614 = vpop.f32.mrf.mxu0
    %v5615 = vadd.f32 0.0, %v5614
    %5616 = vmatmul.f32.gmra.mxu0 %v5556
    %v5617 = vpop.f32.mrf.mxu0
    %v5618 = vadd.f32 0.0, %v5617
    %5619 = vmatmul.f32.gmra.mxu0 %v5559
    %v5620 = vpop.f32.mrf.mxu0
    %v5621 = vadd.f32 0.0, %v5620
    %5622 = vmatmul.f32.gmra.mxu0 %v5562
    %v5623 = vpop.f32.mrf.mxu0
    %v5624 = vadd.f32 0.0, %v5623
    %5625 = vmatmul.f32.gmra.mxu0 %v5565
    %v5626 = vpop.f32.mrf.mxu0
    %v5627 = vadd.f32 0.0, %v5626
    %5628 = vmatmul.f32.gmra.mxu0 %v5568
    %v5629 = vpop.f32.mrf.mxu0
    %v5630 = vadd.f32 0.0, %v5629
    %5631 = vmatmul.f32.gmra.mxu0 %v5571
    %v5632 = vpop.f32.mrf.mxu0
    %v5633 = vadd.f32 0.0, %v5632
    %5634 = vmatmul.f32.gmra.mxu0 %v5574
    %v5635 = vpop.f32.mrf.mxu0
    %v5636 = vadd.f32 0.0, %v5635
    %5637 = vdwg.mxu0
    %v5638 = vadd.f32 %v5504, %v5597
    %v5639 = vadd.f32 %v5505, %v5600
    %v5640 = vadd.f32 %v5506, %v5603
    %v5641 = vadd.f32 %v5507, %v5606
    %v5642 = vadd.f32 %v5508, %v5609
    %v5643 = vadd.f32 %v5509, %v5612
    %v5644 = vadd.f32 %v5510, %v5615
    %v5645 = vadd.f32 %v5511, %v5618
    %v5646 = vadd.f32 %v5512, %v5621
    %v5647 = vadd.f32 %v5513, %v5624
    %v5648 = vadd.f32 %v5514, %v5627
    %v5649 = vadd.f32 %v5515, %v5630
    %v5650 = vadd.f32 %v5516, %v5633
    %v5651 = vadd.f32 %v5517, %v5636
    %v5652 = vld [vmem:[#allocation3 + $0x170] sm:$0xff]
    %v5653 = vld [vmem:[#allocation3 + $0x178] sm:$0xff]
    %v5654 = vld [vmem:[#allocation3 + $0x180] sm:$0xff]
    %v5655 = vld [vmem:[#allocation3 + $0x188] sm:$0xff]
    %v5656 = vld [vmem:[#allocation3 + $0x190] sm:$0xff]
    %v5657 = vld [vmem:[#allocation3 + $0x198] sm:$0xff]
    %v5658 = vld [vmem:[#allocation3 + $0x1a0] sm:$0xff]
    %v5659 = vld [vmem:[#allocation3 + $0x1a8] sm:$0xff]
    %v5660 = vld [vmem:[#allocation3 + $0x1b0] sm:$0xff]
    %v5661 = vld [vmem:[#allocation3 + $0x1b8] sm:$0xff]
    %v5662 = vld [vmem:[#allocation3 + $0x1c0] sm:$0xff]
    %v5663 = vld [vmem:[#allocation3 + $0x1c8] sm:$0xff]
    %v5664 = vld [vmem:[#allocation3 + $0x1d0] sm:$0xff]
    %v5665 = vld [vmem:[#allocation3 + $0x1d8] sm:$0xff]
    %v5666 = vld [vmem:[%s3 + $0x48] sm:$0xff]
    %v5667 = vld [vmem:[%s3 + $0x50] sm:$0xf]
    %v5669 = vsel %vm57, %v5652, 0
    %v5672 = vsel %vm57, %v5653, 0
    %v5675 = vsel %vm57, %v5654, 0
    %v5678 = vsel %vm57, %v5655, 0
    %v5681 = vsel %vm57, %v5656, 0
    %v5684 = vsel %vm57, %v5657, 0
    %v5687 = vsel %vm57, %v5658, 0
    %v5690 = vsel %vm57, %v5659, 0
    %v5693 = vsel %vm57, %v5660, 0
    %v5696 = vsel %vm57, %v5661, 0
    %v5699 = vsel %vm57, %v5662, 0
    %v5702 = vsel %vm57, %v5663, 0
    %v5705 = vsel %vm57, %v5664, 0
    %v5708 = vsel %vm57, %v5665, 0
    %v5711 = vsel %vm1286, %v5667, 0
    %5713 = vmatpush.msra.mxu0 0.0
    %5714 = vmatpush.msra.mxu0 0.0
    %5715 = vmatpush.msra.mxu0 0.0
    %5716 = vmatpush.msra.mxu0 0.0
    %5717 = vmatpush.msra.mxu0 0.0
    %5718 = vmatpush.msra.mxu0 0.0
    %5719 = vmatpush.msra.mxu0 0.0
    %5720 = vmatpush.msra.mxu0 0.0
    %5721 = vmatpush.msra.mxu0 0.0
    %5722 = vmatpush.msra.mxu0 0.0
    %5723 = vmatpush.msra.mxu0 0.0
    %5724 = vmatpush.msra.mxu0 0.0
    %5725 = vmatpush.msra.mxu0 0.0
    %5726 = vmatpush.msra.mxu0 0.0
    %5727 = vmatpush.msra.mxu0 %v5711
    %5728 = vmatpush.msra.mxu0 %v5666
    %5729 = vmatmul.f32.gmra.mxu0 %v5669
    %v5730 = vpop.f32.mrf.mxu0
    %v5731 = vadd.f32 0.0, %v5730
    %5732 = vmatmul.f32.gmra.mxu0 %v5672
    %v5733 = vpop.f32.mrf.mxu0
    %v5734 = vadd.f32 0.0, %v5733
    %5735 = vmatmul.f32.gmra.mxu0 %v5675
    %v5736 = vpop.f32.mrf.mxu0
    %v5737 = vadd.f32 0.0, %v5736
    %5738 = vmatmul.f32.gmra.mxu0 %v5678
    %v5739 = vpop.f32.mrf.mxu0
    %v5740 = vadd.f32 0.0, %v5739
    %5741 = vmatmul.f32.gmra.mxu0 %v5681
    %v5742 = vpop.f32.mrf.mxu0
    %v5743 = vadd.f32 0.0, %v5742
    %5744 = vmatmul.f32.gmra.mxu0 %v5684
    %v5745 = vpop.f32.mrf.mxu0
    %v5746 = vadd.f32 0.0, %v5745
    %5747 = vmatmul.f32.gmra.mxu0 %v5687
    %v5748 = vpop.f32.mrf.mxu0
    %v5749 = vadd.f32 0.0, %v5748
    %5750 = vmatmul.f32.gmra.mxu0 %v5690
    %v5751 = vpop.f32.mrf.mxu0
    %v5752 = vadd.f32 0.0, %v5751
    %5753 = vmatmul.f32.gmra.mxu0 %v5693
    %v5754 = vpop.f32.mrf.mxu0
    %v5755 = vadd.f32 0.0, %v5754
    %5756 = vmatmul.f32.gmra.mxu0 %v5696
    %v5757 = vpop.f32.mrf.mxu0
    %v5758 = vadd.f32 0.0, %v5757
    %5759 = vmatmul.f32.gmra.mxu0 %v5699
    %v5760 = vpop.f32.mrf.mxu0
    %v5761 = vadd.f32 0.0, %v5760
    %5762 = vmatmul.f32.gmra.mxu0 %v5702
    %v5763 = vpop.f32.mrf.mxu0
    %v5764 = vadd.f32 0.0, %v5763
    %5765 = vmatmul.f32.gmra.mxu0 %v5705
    %v5766 = vpop.f32.mrf.mxu0
    %v5767 = vadd.f32 0.0, %v5766
    %5768 = vmatmul.f32.gmra.mxu0 %v5708
    %v5769 = vpop.f32.mrf.mxu0
    %v5770 = vadd.f32 0.0, %v5769
    %5771 = vdwg.mxu0
    %v5772 = vadd.f32 %v5638, %v5731
    %v5773 = vadd.f32 %v5639, %v5734
    %v5774 = vadd.f32 %v5640, %v5737
    %v5775 = vadd.f32 %v5641, %v5740
    %v5776 = vadd.f32 %v5642, %v5743
    %v5777 = vadd.f32 %v5643, %v5746
    %v5778 = vadd.f32 %v5644, %v5749
    %v5779 = vadd.f32 %v5645, %v5752
    %v5780 = vadd.f32 %v5646, %v5755
    %v5781 = vadd.f32 %v5647, %v5758
    %v5782 = vadd.f32 %v5648, %v5761
    %v5783 = vadd.f32 %v5649, %v5764
    %v5784 = vadd.f32 %v5650, %v5767
    %v5785 = vadd.f32 %v5651, %v5770
    %v5786 = vld [vmem:[#allocation3 + $0x171] sm:$0xff]
    %v5787 = vld [vmem:[#allocation3 + $0x179] sm:$0xff]
    %v5788 = vld [vmem:[#allocation3 + $0x181] sm:$0xff]
    %v5789 = vld [vmem:[#allocation3 + $0x189] sm:$0xff]
    %v5790 = vld [vmem:[#allocation3 + $0x191] sm:$0xff]
    %v5791 = vld [vmem:[#allocation3 + $0x199] sm:$0xff]
    %v5792 = vld [vmem:[#allocation3 + $0x1a1] sm:$0xff]
    %v5793 = vld [vmem:[#allocation3 + $0x1a9] sm:$0xff]
    %v5794 = vld [vmem:[#allocation3 + $0x1b1] sm:$0xff]
    %v5795 = vld [vmem:[#allocation3 + $0x1b9] sm:$0xff]
    %v5796 = vld [vmem:[#allocation3 + $0x1c1] sm:$0xff]
    %v5797 = vld [vmem:[#allocation3 + $0x1c9] sm:$0xff]
    %v5798 = vld [vmem:[#allocation3 + $0x1d1] sm:$0xff]
    %v5799 = vld [vmem:[#allocation3 + $0x1d9] sm:$0xff]
    %v5800 = vld [vmem:[%s3 + $0x54] sm:$0xff]
    %v5801 = vld [vmem:[%s3 + $0x5c] sm:$0xf]
    %v5803 = vsel %vm57, %v5786, 0
    %v5806 = vsel %vm57, %v5787, 0
    %v5809 = vsel %vm57, %v5788, 0
    %v5812 = vsel %vm57, %v5789, 0
    %v5815 = vsel %vm57, %v5790, 0
    %v5818 = vsel %vm57, %v5791, 0
    %v5821 = vsel %vm57, %v5792, 0
    %v5824 = vsel %vm57, %v5793, 0
    %v5827 = vsel %vm57, %v5794, 0
    %v5830 = vsel %vm57, %v5795, 0
    %v5833 = vsel %vm57, %v5796, 0
    %v5836 = vsel %vm57, %v5797, 0
    %v5839 = vsel %vm57, %v5798, 0
    %v5842 = vsel %vm57, %v5799, 0
    %v5845 = vsel %vm1286, %v5801, 0
    %5847 = vmatpush.msra.mxu0 0.0
    %5848 = vmatpush.msra.mxu0 0.0
    %5849 = vmatpush.msra.mxu0 0.0
    %5850 = vmatpush.msra.mxu0 0.0
    %5851 = vmatpush.msra.mxu0 0.0
    %5852 = vmatpush.msra.mxu0 0.0
    %5853 = vmatpush.msra.mxu0 0.0
    %5854 = vmatpush.msra.mxu0 0.0
    %5855 = vmatpush.msra.mxu0 0.0
    %5856 = vmatpush.msra.mxu0 0.0
    %5857 = vmatpush.msra.mxu0 0.0
    %5858 = vmatpush.msra.mxu0 0.0
    %5859 = vmatpush.msra.mxu0 0.0
    %5860 = vmatpush.msra.mxu0 0.0
    %5861 = vmatpush.msra.mxu0 %v5845
    %5862 = vmatpush.msra.mxu0 %v5800
    %5863 = vmatmul.f32.gmra.mxu0 %v5803
    %v5864 = vpop.f32.mrf.mxu0
    %v5865 = vadd.f32 0.0, %v5864
    %5866 = vmatmul.f32.gmra.mxu0 %v5806
    %v5867 = vpop.f32.mrf.mxu0
    %v5868 = vadd.f32 0.0, %v5867
    %5869 = vmatmul.f32.gmra.mxu0 %v5809
    %v5870 = vpop.f32.mrf.mxu0
    %v5871 = vadd.f32 0.0, %v5870
    %5872 = vmatmul.f32.gmra.mxu0 %v5812
    %v5873 = vpop.f32.mrf.mxu0
    %v5874 = vadd.f32 0.0, %v5873
    %5875 = vmatmul.f32.gmra.mxu0 %v5815
    %v5876 = vpop.f32.mrf.mxu0
    %v5877 = vadd.f32 0.0, %v5876
    %5878 = vmatmul.f32.gmra.mxu0 %v5818
    %v5879 = vpop.f32.mrf.mxu0
    %v5880 = vadd.f32 0.0, %v5879
    %5881 = vmatmul.f32.gmra.mxu0 %v5821
    %v5882 = vpop.f32.mrf.mxu0
    %v5883 = vadd.f32 0.0, %v5882
    %5884 = vmatmul.f32.gmra.mxu0 %v5824
    %v5885 = vpop.f32.mrf.mxu0
    %v5886 = vadd.f32 0.0, %v5885
    %5887 = vmatmul.f32.gmra.mxu0 %v5827
    %v5888 = vpop.f32.mrf.mxu0
    %v5889 = vadd.f32 0.0, %v5888
    %5890 = vmatmul.f32.gmra.mxu0 %v5830
    %v5891 = vpop.f32.mrf.mxu0
    %v5892 = vadd.f32 0.0, %v5891
    %5893 = vmatmul.f32.gmra.mxu0 %v5833
    %v5894 = vpop.f32.mrf.mxu0
    %v5895 = vadd.f32 0.0, %v5894
    %5896 = vmatmul.f32.gmra.mxu0 %v5836
    %v5897 = vpop.f32.mrf.mxu0
    %v5898 = vadd.f32 0.0, %v5897
    %5899 = vmatmul.f32.gmra.mxu0 %v5839
    %v5900 = vpop.f32.mrf.mxu0
    %v5901 = vadd.f32 0.0, %v5900
    %5902 = vmatmul.f32.gmra.mxu0 %v5842
    %v5903 = vpop.f32.mrf.mxu0
    %v5904 = vadd.f32 0.0, %v5903
    %5905 = vdwg.mxu0
    %v5906 = vadd.f32 %v5772, %v5865
    %v5907 = vadd.f32 %v5773, %v5868
    %v5908 = vadd.f32 %v5774, %v5871
    %v5909 = vadd.f32 %v5775, %v5874
    %v5910 = vadd.f32 %v5776, %v5877
    %v5911 = vadd.f32 %v5777, %v5880
    %v5912 = vadd.f32 %v5778, %v5883
    %v5913 = vadd.f32 %v5779, %v5886
    %v5914 = vadd.f32 %v5780, %v5889
    %v5915 = vadd.f32 %v5781, %v5892
    %v5916 = vadd.f32 %v5782, %v5895
    %v5917 = vadd.f32 %v5783, %v5898
    %v5918 = vadd.f32 %v5784, %v5901
    %v5919 = vadd.f32 %v5785, %v5904
    %v5920 = vld [vmem:[#allocation3 + $0x172] sm:$0xff]
    %v5921 = vld [vmem:[#allocation3 + $0x17a] sm:$0xff]
    %v5922 = vld [vmem:[#allocation3 + $0x182] sm:$0xff]
    %v5923 = vld [vmem:[#allocation3 + $0x18a] sm:$0xff]
    %v5924 = vld [vmem:[#allocation3 + $0x192] sm:$0xff]
    %v5925 = vld [vmem:[#allocation3 + $0x19a] sm:$0xff]
    %v5926 = vld [vmem:[#allocation3 + $0x1a2] sm:$0xff]
    %v5927 = vld [vmem:[#allocation3 + $0x1aa] sm:$0xff]
    %v5928 = vld [vmem:[#allocation3 + $0x1b2] sm:$0xff]
    %v5929 = vld [vmem:[#allocation3 + $0x1ba] sm:$0xff]
    %v5930 = vld [vmem:[#allocation3 + $0x1c2] sm:$0xff]
    %v5931 = vld [vmem:[#allocation3 + $0x1ca] sm:$0xff]
    %v5932 = vld [vmem:[#allocation3 + $0x1d2] sm:$0xff]
    %v5933 = vld [vmem:[#allocation3 + $0x1da] sm:$0xff]
    %v5934 = vld [vmem:[%s3 + $0x60] sm:$0xff]
    %v5935 = vld [vmem:[%s3 + $0x68] sm:$0xf]
    %v5937 = vsel %vm57, %v5920, 0
    %v5940 = vsel %vm57, %v5921, 0
    %v5943 = vsel %vm57, %v5922, 0
    %v5946 = vsel %vm57, %v5923, 0
    %v5949 = vsel %vm57, %v5924, 0
    %v5952 = vsel %vm57, %v5925, 0
    %v5955 = vsel %vm57, %v5926, 0
    %v5958 = vsel %vm57, %v5927, 0
    %v5961 = vsel %vm57, %v5928, 0
    %v5964 = vsel %vm57, %v5929, 0
    %v5967 = vsel %vm57, %v5930, 0
    %v5970 = vsel %vm57, %v5931, 0
    %v5973 = vsel %vm57, %v5932, 0
    %v5976 = vsel %vm57, %v5933, 0
    %v5979 = vsel %vm1286, %v5935, 0
    %5981 = vmatpush.msra.mxu0 0.0
    %5982 = vmatpush.msra.mxu0 0.0
    %5983 = vmatpush.msra.mxu0 0.0
    %5984 = vmatpush.msra.mxu0 0.0
    %5985 = vmatpush.msra.mxu0 0.0
    %5986 = vmatpush.msra.mxu0 0.0
    %5987 = vmatpush.msra.mxu0 0.0
    %5988 = vmatpush.msra.mxu0 0.0
    %5989 = vmatpush.msra.mxu0 0.0
    %5990 = vmatpush.msra.mxu0 0.0
    %5991 = vmatpush.msra.mxu0 0.0
    %5992 = vmatpush.msra.mxu0 0.0
    %5993 = vmatpush.msra.mxu0 0.0
    %5994 = vmatpush.msra.mxu0 0.0
    %5995 = vmatpush.msra.mxu0 %v5979
    %5996 = vmatpush.msra.mxu0 %v5934
    %5997 = vmatmul.f32.gmra.mxu0 %v5937
    %v5998 = vpop.f32.mrf.mxu0
    %v5999 = vadd.f32 0.0, %v5998
    %6000 = vmatmul.f32.gmra.mxu0 %v5940
    %v6001 = vpop.f32.mrf.mxu0
    %v6002 = vadd.f32 0.0, %v6001
    %6003 = vmatmul.f32.gmra.mxu0 %v5943
    %v6004 = vpop.f32.mrf.mxu0
    %v6005 = vadd.f32 0.0, %v6004
    %6006 = vmatmul.f32.gmra.mxu0 %v5946
    %v6007 = vpop.f32.mrf.mxu0
    %v6008 = vadd.f32 0.0, %v6007
    %6009 = vmatmul.f32.gmra.mxu0 %v5949
    %v6010 = vpop.f32.mrf.mxu0
    %v6011 = vadd.f32 0.0, %v6010
    %6012 = vmatmul.f32.gmra.mxu0 %v5952
    %v6013 = vpop.f32.mrf.mxu0
    %v6014 = vadd.f32 0.0, %v6013
    %6015 = vmatmul.f32.gmra.mxu0 %v5955
    %v6016 = vpop.f32.mrf.mxu0
    %v6017 = vadd.f32 0.0, %v6016
    %6018 = vmatmul.f32.gmra.mxu0 %v5958
    %v6019 = vpop.f32.mrf.mxu0
    %v6020 = vadd.f32 0.0, %v6019
    %6021 = vmatmul.f32.gmra.mxu0 %v5961
    %v6022 = vpop.f32.mrf.mxu0
    %v6023 = vadd.f32 0.0, %v6022
    %6024 = vmatmul.f32.gmra.mxu0 %v5964
    %v6025 = vpop.f32.mrf.mxu0
    %v6026 = vadd.f32 0.0, %v6025
    %6027 = vmatmul.f32.gmra.mxu0 %v5967
    %v6028 = vpop.f32.mrf.mxu0
    %v6029 = vadd.f32 0.0, %v6028
    %6030 = vmatmul.f32.gmra.mxu0 %v5970
    %v6031 = vpop.f32.mrf.mxu0
    %v6032 = vadd.f32 0.0, %v6031
    %6033 = vmatmul.f32.gmra.mxu0 %v5973
    %v6034 = vpop.f32.mrf.mxu0
    %v6035 = vadd.f32 0.0, %v6034
    %6036 = vmatmul.f32.gmra.mxu0 %v5976
    %v6037 = vpop.f32.mrf.mxu0
    %v6038 = vadd.f32 0.0, %v6037
    %6039 = vdwg.mxu0
    %v6040 = vadd.f32 %v5906, %v5999
    %v6041 = vadd.f32 %v5907, %v6002
    %v6042 = vadd.f32 %v5908, %v6005
    %v6043 = vadd.f32 %v5909, %v6008
    %v6044 = vadd.f32 %v5910, %v6011
    %v6045 = vadd.f32 %v5911, %v6014
    %v6046 = vadd.f32 %v5912, %v6017
    %v6047 = vadd.f32 %v5913, %v6020
    %v6048 = vadd.f32 %v5914, %v6023
    %v6049 = vadd.f32 %v5915, %v6026
    %v6050 = vadd.f32 %v5916, %v6029
    %v6051 = vadd.f32 %v5917, %v6032
    %v6052 = vadd.f32 %v5918, %v6035
    %v6053 = vadd.f32 %v5919, %v6038
    %v6054 = vadd.f32 %v6040, %v2392
    %v6055 = vadd.f32 %v6041, %v2392
    %v6056 = vadd.f32 %v6042, %v2392
    %v6057 = vadd.f32 %v6043, %v2392
    %v6058 = vadd.f32 %v6044, %v2392
    %v6059 = vadd.f32 %v6045, %v2392
    %v6060 = vadd.f32 %v6046, %v2392
    %v6061 = vadd.f32 %v6047, %v2392
    %v6062 = vadd.f32 %v6048, %v2392
    %v6063 = vadd.f32 %v6049, %v2392
    %v6064 = vadd.f32 %v6050, %v2392
    %v6065 = vadd.f32 %v6051, %v2392
    %v6066 = vadd.f32 %v6052, %v2392
    %v6067 = vadd.f32 %v6053, %v2392
    %v6068 = vmax.f32 %v6054, 0.0
    %v6069 = vmax.f32 %v6055, 0.0
    %v6070 = vmax.f32 %v6056, 0.0
    %v6071 = vmax.f32 %v6057, 0.0
    %v6072 = vmax.f32 %v6058, 0.0
    %v6073 = vmax.f32 %v6059, 0.0
    %v6074 = vmax.f32 %v6060, 0.0
    %v6075 = vmax.f32 %v6061, 0.0
    %v6076 = vmax.f32 %v6062, 0.0
    %v6077 = vmax.f32 %v6063, 0.0
    %v6078 = vmax.f32 %v6064, 0.0
    %v6079 = vmax.f32 %v6065, 0.0
    %v6080 = vmax.f32 %v6066, 0.0
    %v6081 = vmax.f32 %v6067, 0.0
    %6082 = vst.msk [vmem:[#allocation4 + $0x150] sm:$0xff] %vm119, %v6068
    %6083 = vst.msk [vmem:[#allocation4 + $0x158] sm:$0xff] %vm119, %v6069
    %6084 = vst.msk [vmem:[#allocation4 + $0x160] sm:$0xff] %vm119, %v6070
    %6085 = vst.msk [vmem:[#allocation4 + $0x168] sm:$0xff] %vm119, %v6071
    %6086 = vst.msk [vmem:[#allocation4 + $0x170] sm:$0xff] %vm119, %v6072
    %6087 = vst.msk [vmem:[#allocation4 + $0x178] sm:$0xff] %vm119, %v6073
    %6088 = vst.msk [vmem:[#allocation4 + $0x180] sm:$0xff] %vm119, %v6074
    %6089 = vst.msk [vmem:[#allocation4 + $0x188] sm:$0xff] %vm119, %v6075
    %6090 = vst.msk [vmem:[#allocation4 + $0x190] sm:$0xff] %vm119, %v6076
    %6091 = vst.msk [vmem:[#allocation4 + $0x198] sm:$0xff] %vm119, %v6077
    %6092 = vst.msk [vmem:[#allocation4 + $0x1a0] sm:$0xff] %vm119, %v6078
    %6093 = vst.msk [vmem:[#allocation4 + $0x1a8] sm:$0xff] %vm119, %v6079
    %6094 = vst.msk [vmem:[#allocation4 + $0x1b0] sm:$0xff] %vm119, %v6080
    %6095 = vst.msk [vmem:[#allocation4 + $0x1b8] sm:$0xff] %vm119, %v6081
    %v6096 = vld [vmem:[%s15] sm:$0x3f]
    %v6097 = vld [vmem:[%s16] sm:$0x3f]
    loop: start=0, step=1, limit=6
    $region91: #{mynet_forward.1} parent=1 // loop_pre_header
      _
    $region92: #{mynet_forward.1} parent=1 // loop_header
      %s6099 = sphi 0, %s6103
      %p6100 = scmp.ge.s32.totalorder %s6099, 6
    $region93: #{mynet_forward.1} parent=1 // loop_header_branch
      %6102 = sbr.rel (%p6100) target = $region97
    $region94: #{mynet_forward.1} parent=1 // loop_body
      %s6104 = smul.u32 %s6099, 32
      %s6105 = sadd.s32 %s6104, 16
      %s6106 = scalar_lea.vmem [#allocation4], %s6104
      %v6107 = vld [vmem:[%s6106] sm:$0xff]
      %v6108 = vld [vmem:[%s6106 + $0x8] sm:$0xf]
      %s6109 = scalar_lea.vmem [#allocation4], %s6105
      %v6110 = vld [vmem:[%s6109] sm:$0xff]
      %v6111 = vld [vmem:[%s6109 + $0x8] sm:$0xf]
      %v6113 = vsel %vm57, %v6096, 0
      %v6116 = vsel %vm1286, %v6108, 0
      %6118 = vmatpush.msra.mxu0 0.0
      %6119 = vmatpush.msra.mxu0 0.0
      %6120 = vmatpush.msra.mxu0 0.0
      %6121 = vmatpush.msra.mxu0 0.0
      %6122 = vmatpush.msra.mxu0 0.0
      %6123 = vmatpush.msra.mxu0 0.0
      %6124 = vmatpush.msra.mxu0 0.0
      %6125 = vmatpush.msra.mxu0 0.0
      %6126 = vmatpush.msra.mxu0 0.0
      %6127 = vmatpush.msra.mxu0 0.0
      %6128 = vmatpush.msra.mxu0 0.0
      %6129 = vmatpush.msra.mxu0 0.0
      %6130 = vmatpush.msra.mxu0 0.0
      %6131 = vmatpush.msra.mxu0 0.0
      %6132 = vmatpush.msra.mxu0 %v6116
      %6133 = vmatpush.msra.mxu0 %v6107
      %6134 = vmatmul.f32.gmra.mxu0 %v6113
      %v6135 = vpop.f32.mrf.mxu0
      %v6136 = vadd.f32 0.0, %v6135
      %6137 = vdwg.mxu0
      %v6139 = vsel %vm57, %v6097, 0
      %6141 = vmatpush.msra.mxu0 0.0
      %6142 = vmatpush.msra.mxu0 0.0
      %6143 = vmatpush.msra.mxu0 0.0
      %6144 = vmatpush.msra.mxu0 0.0
      %6145 = vmatpush.msra.mxu0 0.0
      %6146 = vmatpush.msra.mxu0 0.0
      %6147 = vmatpush.msra.mxu0 0.0
      %6148 = vmatpush.msra.mxu0 0.0
      %6149 = vmatpush.msra.mxu0 0.0
      %6150 = vmatpush.msra.mxu0 0.0
      %6151 = vmatpush.msra.mxu0 0.0
      %6152 = vmatpush.msra.mxu0 0.0
      %6153 = vmatpush.msra.mxu0 0.0
      %6154 = vmatpush.msra.mxu0 0.0
      %6155 = vmatpush.msra.mxu0 %v6116
      %6156 = vmatpush.msra.mxu0 %v6107
      %6157 = vmatmul.f32.gmra.mxu0 %v6139
      %v6158 = vpop.f32.mrf.mxu0
      %v6159 = vadd.f32 0.0, %v6158
      %6160 = vdwg.mxu0
      %v6161 = vmax.f32 %v6136, %v6159
      %v6163 = vsel %vm1286, %v6111, 0
      %6165 = vmatpush.msra.mxu0 0.0
      %6166 = vmatpush.msra.mxu0 0.0
      %6167 = vmatpush.msra.mxu0 0.0
      %6168 = vmatpush.msra.mxu0 0.0
      %6169 = vmatpush.msra.mxu0 0.0
      %6170 = vmatpush.msra.mxu0 0.0
      %6171 = vmatpush.msra.mxu0 0.0
      %6172 = vmatpush.msra.mxu0 0.0
      %6173 = vmatpush.msra.mxu0 0.0
      %6174 = vmatpush.msra.mxu0 0.0
      %6175 = vmatpush.msra.mxu0 0.0
      %6176 = vmatpush.msra.mxu0 0.0
      %6177 = vmatpush.msra.mxu0 0.0
      %6178 = vmatpush.msra.mxu0 0.0
      %6179 = vmatpush.msra.mxu0 %v6163
      %6180 = vmatpush.msra.mxu0 %v6110
      %6181 = vmatmul.f32.gmra.mxu0 %v6113
      %v6182 = vpop.f32.mrf.mxu0
      %v6183 = vadd.f32 0.0, %v6182
      %6184 = vdwg.mxu0
      %6185 = vmatpush.msra.mxu0 0.0
      %6186 = vmatpush.msra.mxu0 0.0
      %6187 = vmatpush.msra.mxu0 0.0
      %6188 = vmatpush.msra.mxu0 0.0
      %6189 = vmatpush.msra.mxu0 0.0
      %6190 = vmatpush.msra.mxu0 0.0
      %6191 = vmatpush.msra.mxu0 0.0
      %6192 = vmatpush.msra.mxu0 0.0
      %6193 = vmatpush.msra.mxu0 0.0
      %6194 = vmatpush.msra.mxu0 0.0
      %6195 = vmatpush.msra.mxu0 0.0
      %6196 = vmatpush.msra.mxu0 0.0
      %6197 = vmatpush.msra.mxu0 0.0
      %6198 = vmatpush.msra.mxu0 0.0
      %6199 = vmatpush.msra.mxu0 %v6163
      %6200 = vmatpush.msra.mxu0 %v6110
      %6201 = vmatmul.f32.gmra.mxu0 %v6139
      %v6202 = vpop.f32.mrf.mxu0
      %v6203 = vadd.f32 0.0, %v6202
      %6204 = vdwg.mxu0
      %v6205 = vmax.f32 %v6183, %v6203
      %v6206 = vmax.f32 %v6161, %v6205
      %s6207 = smul.u32 %s6099, 8
      %s6208 = scalar_lea.vmem [#allocation5], %s6207
      %vm6209 = vcmask 193536
      %6210 = vst.msk [vmem:[%s6208] sm:$0x3f] %vm6209, %v6206
    $region95: #{mynet_forward.1} parent=1 // loop_footer
      %s6103 = sadd.s32 1, %s6099
    $region96: #{mynet_forward.1} parent=1 // loop_footer_branch
      %6098 = sbr.rel target = $region92
    $region97: #{mynet_forward.1} parent=1 // loop_exit
      _
    loop: start=0, step=1, limit=6
    $region98: #{mynet_forward.1} parent=1 // loop_pre_header
      _
    $region99: #{mynet_forward.1} parent=1 // loop_header
      %s6212 = sphi 0, %s6216
      %p6213 = scmp.ge.s32.totalorder %s6212, 6
    $region100: #{mynet_forward.1} parent=1 // loop_header_branch
      %6215 = sbr.rel (%p6213) target = $region104
    $region101: #{mynet_forward.1} parent=1 // loop_body
      %s6217 = smul.u32 %s6212, 32
      %s6218 = sadd.s32 %s6217, 224
      %s6219 = sadd.s32 %s6218, 16
      %s6220 = scalar_lea.vmem [#allocation4], %s6218
      %v6221 = vld [vmem:[%s6220] sm:$0xff]
      %v6222 = vld [vmem:[%s6220 + $0x8] sm:$0xf]
      %s6223 = scalar_lea.vmem [#allocation4], %s6219
      %v6224 = vld [vmem:[%s6223] sm:$0xff]
      %v6225 = vld [vmem:[%s6223 + $0x8] sm:$0xf]
      %v6227 = vsel %vm57, %v6096, 0
      %v6230 = vsel %vm1286, %v6222, 0
      %6232 = vmatpush.msra.mxu0 0.0
      %6233 = vmatpush.msra.mxu0 0.0
      %6234 = vmatpush.msra.mxu0 0.0
      %6235 = vmatpush.msra.mxu0 0.0
      %6236 = vmatpush.msra.mxu0 0.0
      %6237 = vmatpush.msra.mxu0 0.0
      %6238 = vmatpush.msra.mxu0 0.0
      %6239 = vmatpush.msra.mxu0 0.0
      %6240 = vmatpush.msra.mxu0 0.0
      %6241 = vmatpush.msra.mxu0 0.0
      %6242 = vmatpush.msra.mxu0 0.0
      %6243 = vmatpush.msra.mxu0 0.0
      %6244 = vmatpush.msra.mxu0 0.0
      %6245 = vmatpush.msra.mxu0 0.0
      %6246 = vmatpush.msra.mxu0 %v6230
      %6247 = vmatpush.msra.mxu0 %v6221
      %6248 = vmatmul.f32.gmra.mxu0 %v6227
      %v6249 = vpop.f32.mrf.mxu0
      %v6250 = vadd.f32 0.0, %v6249
      %6251 = vdwg.mxu0
      %v6253 = vsel %vm57, %v6097, 0
      %6255 = vmatpush.msra.mxu0 0.0
      %6256 = vmatpush.msra.mxu0 0.0
      %6257 = vmatpush.msra.mxu0 0.0
      %6258 = vmatpush.msra.mxu0 0.0
      %6259 = vmatpush.msra.mxu0 0.0
      %6260 = vmatpush.msra.mxu0 0.0
      %6261 = vmatpush.msra.mxu0 0.0
      %6262 = vmatpush.msra.mxu0 0.0
      %6263 = vmatpush.msra.mxu0 0.0
      %6264 = vmatpush.msra.mxu0 0.0
      %6265 = vmatpush.msra.mxu0 0.0
      %6266 = vmatpush.msra.mxu0 0.0
      %6267 = vmatpush.msra.mxu0 0.0
      %6268 = vmatpush.msra.mxu0 0.0
      %6269 = vmatpush.msra.mxu0 %v6230
      %6270 = vmatpush.msra.mxu0 %v6221
      %6271 = vmatmul.f32.gmra.mxu0 %v6253
      %v6272 = vpop.f32.mrf.mxu0
      %v6273 = vadd.f32 0.0, %v6272
      %6274 = vdwg.mxu0
      %v6275 = vmax.f32 %v6250, %v6273
      %v6277 = vsel %vm1286, %v6225, 0
      %6279 = vmatpush.msra.mxu0 0.0
      %6280 = vmatpush.msra.mxu0 0.0
      %6281 = vmatpush.msra.mxu0 0.0
      %6282 = vmatpush.msra.mxu0 0.0
      %6283 = vmatpush.msra.mxu0 0.0
      %6284 = vmatpush.msra.mxu0 0.0
      %6285 = vmatpush.msra.mxu0 0.0
      %6286 = vmatpush.msra.mxu0 0.0
      %6287 = vmatpush.msra.mxu0 0.0
      %6288 = vmatpush.msra.mxu0 0.0
      %6289 = vmatpush.msra.mxu0 0.0
      %6290 = vmatpush.msra.mxu0 0.0
      %6291 = vmatpush.msra.mxu0 0.0
      %6292 = vmatpush.msra.mxu0 0.0
      %6293 = vmatpush.msra.mxu0 %v6277
      %6294 = vmatpush.msra.mxu0 %v6224
      %6295 = vmatmul.f32.gmra.mxu0 %v6227
      %v6296 = vpop.f32.mrf.mxu0
      %v6297 = vadd.f32 0.0, %v6296
      %6298 = vdwg.mxu0
      %6299 = vmatpush.msra.mxu0 0.0
      %6300 = vmatpush.msra.mxu0 0.0
      %6301 = vmatpush.msra.mxu0 0.0
      %6302 = vmatpush.msra.mxu0 0.0
      %6303 = vmatpush.msra.mxu0 0.0
      %6304 = vmatpush.msra.mxu0 0.0
      %6305 = vmatpush.msra.mxu0 0.0
      %6306 = vmatpush.msra.mxu0 0.0
      %6307 = vmatpush.msra.mxu0 0.0
      %6308 = vmatpush.msra.mxu0 0.0
      %6309 = vmatpush.msra.mxu0 0.0
      %6310 = vmatpush.msra.mxu0 0.0
      %6311 = vmatpush.msra.mxu0 0.0
      %6312 = vmatpush.msra.mxu0 0.0
      %6313 = vmatpush.msra.mxu0 %v6277
      %6314 = vmatpush.msra.mxu0 %v6224
      %6315 = vmatmul.f32.gmra.mxu0 %v6253
      %v6316 = vpop.f32.mrf.mxu0
      %v6317 = vadd.f32 0.0, %v6316
      %6318 = vdwg.mxu0
      %v6319 = vmax.f32 %v6297, %v6317
      %v6320 = vmax.f32 %v6275, %v6319
      %s6321 = smul.u32 %s6212, 8
      %s6322 = sadd.s32 %s6321, 48
      %s6323 = scalar_lea.vmem [#allocation5], %s6322
      %vm6324 = vcmask 193536
      %6325 = vst.msk [vmem:[%s6323] sm:$0x3f] %vm6324, %v6320
    $region102: #{mynet_forward.1} parent=1 // loop_footer
      %s6216 = sadd.s32 1, %s6212
    $region103: #{mynet_forward.1} parent=1 // loop_footer_branch
      %6211 = sbr.rel target = $region99
    $region104: #{mynet_forward.1} parent=1 // loop_exit
      _
    %v6326 = vld [vmem:[%s6] sm:$0x1]
    %v6327 = vld [vmem:[#allocation5] sm:$0xff]
    %v6328 = vld [vmem:[#allocation5 + $0x8] sm:$0xff]
    %v6329 = vld [vmem:[#allocation5 + $0x10] sm:$0xff]
    %v6330 = vld [vmem:[#allocation5 + $0x18] sm:$0xff]
    %v6331 = vld [vmem:[#allocation5 + $0x20] sm:$0xff]
    %v6332 = vld [vmem:[#allocation5 + $0x28] sm:$0xff]
    %v6333 = vld [vmem:[#allocation5 + $0x30] sm:$0xff]
    %v6334 = vld [vmem:[#allocation5 + $0x38] sm:$0xff]
    %v6335 = vld [vmem:[#allocation5 + $0x40] sm:$0xff]
    %v6336 = vld [vmem:[#allocation5 + $0x48] sm:$0xff]
    %v6337 = vld [vmem:[#allocation5 + $0x50] sm:$0xff]
    %v6338 = vld [vmem:[#allocation5 + $0x58] sm:$0xff]
    %v6339 = vld [vmem:[%s5] sm:$0xff]
    %v6340 = vld [vmem:[%s5 + $0x8] sm:$0xff]
    %v6341 = vld [vmem:[%s5 + $0x10] sm:$0xff]
    %v6342 = vld [vmem:[#allocation5 + $0x1] sm:$0xff]
    %v6343 = vld [vmem:[#allocation5 + $0x9] sm:$0xff]
    %v6344 = vld [vmem:[#allocation5 + $0x11] sm:$0xff]
    %v6345 = vld [vmem:[#allocation5 + $0x19] sm:$0xff]
    %v6346 = vld [vmem:[#allocation5 + $0x21] sm:$0xff]
    %v6347 = vld [vmem:[#allocation5 + $0x29] sm:$0xff]
    %v6348 = vld [vmem:[#allocation5 + $0x31] sm:$0xff]
    %v6349 = vld [vmem:[#allocation5 + $0x39] sm:$0xff]
    %v6350 = vld [vmem:[#allocation5 + $0x41] sm:$0xff]
    %v6351 = vld [vmem:[#allocation5 + $0x49] sm:$0xff]
    %v6352 = vld [vmem:[#allocation5 + $0x51] sm:$0xff]
    %v6353 = vld [vmem:[#allocation5 + $0x59] sm:$0xff]
    %v6354 = vld [vmem:[%s5 + $0x18] sm:$0xff]
    %v6355 = vld [vmem:[%s5 + $0x20] sm:$0xff]
    %v6356 = vld [vmem:[%s5 + $0x28] sm:$0xff]
    %v6358 = vsel %vm119, %v6342, 0
    %v6361 = vsel %vm119, %v6343, 0
    %v6364 = vsel %vm119, %v6344, 0
    %v6367 = vsel %vm119, %v6345, 0
    %v6370 = vsel %vm119, %v6346, 0
    %v6373 = vsel %vm119, %v6347, 0
    %v6376 = vsel %vm119, %v6348, 0
    %v6379 = vsel %vm119, %v6349, 0
    %v6382 = vsel %vm119, %v6350, 0
    %v6385 = vsel %vm119, %v6351, 0
    %v6388 = vsel %vm119, %v6352, 0
    %v6391 = vsel %vm119, %v6353, 0
    %6393 = vmatpush.msra.mxu0 0.0
    %6394 = vmatpush.msra.mxu0 0.0
    %6395 = vmatpush.msra.mxu0 0.0
    %6396 = vmatpush.msra.mxu0 0.0
    %6397 = vmatpush.msra.mxu0 0.0
    %6398 = vmatpush.msra.mxu0 0.0
    %6399 = vmatpush.msra.mxu0 0.0
    %6400 = vmatpush.msra.mxu0 0.0
    %6401 = vmatpush.msra.mxu0 0.0
    %6402 = vmatpush.msra.mxu0 0.0
    %6403 = vmatpush.msra.mxu0 0.0
    %6404 = vmatpush.msra.mxu0 0.0
    %6405 = vmatpush.msra.mxu0 0.0
    %6406 = vmatpush.msra.mxu0 %v6356
    %6407 = vmatpush.msra.mxu0 %v6355
    %6408 = vmatpush.msra.mxu0 %v6354
    %6409 = vmatmul.f32.gmra.mxu0 %v6358
    %v6410 = vpop.f32.mrf.mxu0
    %v6411 = vadd.f32 0.0, %v6410
    %6412 = vmatmul.f32.gmra.mxu0 %v6361
    %v6413 = vpop.f32.mrf.mxu0
    %v6414 = vadd.f32 0.0, %v6413
    %6415 = vmatmul.f32.gmra.mxu0 %v6364
    %v6416 = vpop.f32.mrf.mxu0
    %v6417 = vadd.f32 0.0, %v6416
    %6418 = vmatmul.f32.gmra.mxu0 %v6367
    %v6419 = vpop.f32.mrf.mxu0
    %v6420 = vadd.f32 0.0, %v6419
    %6421 = vmatmul.f32.gmra.mxu0 %v6370
    %v6422 = vpop.f32.mrf.mxu0
    %v6423 = vadd.f32 0.0, %v6422
    %6424 = vmatmul.f32.gmra.mxu0 %v6373
    %v6425 = vpop.f32.mrf.mxu0
    %v6426 = vadd.f32 0.0, %v6425
    %6427 = vmatmul.f32.gmra.mxu0 %v6376
    %v6428 = vpop.f32.mrf.mxu0
    %v6429 = vadd.f32 0.0, %v6428
    %6430 = vmatmul.f32.gmra.mxu0 %v6379
    %v6431 = vpop.f32.mrf.mxu0
    %v6432 = vadd.f32 0.0, %v6431
    %6433 = vmatmul.f32.gmra.mxu0 %v6382
    %v6434 = vpop.f32.mrf.mxu0
    %v6435 = vadd.f32 0.0, %v6434
    %6436 = vmatmul.f32.gmra.mxu0 %v6385
    %v6437 = vpop.f32.mrf.mxu0
    %v6438 = vadd.f32 0.0, %v6437
    %6439 = vmatmul.f32.gmra.mxu0 %v6388
    %v6440 = vpop.f32.mrf.mxu0
    %v6441 = vadd.f32 0.0, %v6440
    %6442 = vmatmul.f32.gmra.mxu0 %v6391
    %v6443 = vpop.f32.mrf.mxu0
    %v6444 = vadd.f32 0.0, %v6443
    %6445 = vdwg.mxu0
    %v6447 = vsel %vm119, %v6327, 0
    %v6450 = vsel %vm119, %v6328, 0
    %v6453 = vsel %vm119, %v6329, 0
    %v6456 = vsel %vm119, %v6330, 0
    %v6459 = vsel %vm119, %v6331, 0
    %v6462 = vsel %vm119, %v6332, 0
    %v6465 = vsel %vm119, %v6333, 0
    %v6468 = vsel %vm119, %v6334, 0
    %v6471 = vsel %vm119, %v6335, 0
    %v6474 = vsel %vm119, %v6336, 0
    %v6477 = vsel %vm119, %v6337, 0
    %v6480 = vsel %vm119, %v6338, 0
    %6482 = vmatpush.msra.mxu0 0.0
    %6483 = vmatpush.msra.mxu0 0.0
    %6484 = vmatpush.msra.mxu0 0.0
    %6485 = vmatpush.msra.mxu0 0.0
    %6486 = vmatpush.msra.mxu0 0.0
    %6487 = vmatpush.msra.mxu0 0.0
    %6488 = vmatpush.msra.mxu0 0.0
    %6489 = vmatpush.msra.mxu0 0.0
    %6490 = vmatpush.msra.mxu0 0.0
    %6491 = vmatpush.msra.mxu0 0.0
    %6492 = vmatpush.msra.mxu0 0.0
    %6493 = vmatpush.msra.mxu0 0.0
    %6494 = vmatpush.msra.mxu0 0.0
    %6495 = vmatpush.msra.mxu0 %v6341
    %6496 = vmatpush.msra.mxu0 %v6340
    %6497 = vmatpush.msra.mxu0 %v6339
    %6498 = vmatmul.f32.gmra.mxu0 %v6447
    %v6499 = vpop.f32.mrf.mxu0
    %v6500 = vadd.f32 %v6411, %v6499
    %6501 = vmatmul.f32.gmra.mxu0 %v6450
    %v6502 = vpop.f32.mrf.mxu0
    %v6503 = vadd.f32 %v6414, %v6502
    %6504 = vmatmul.f32.gmra.mxu0 %v6453
    %v6505 = vpop.f32.mrf.mxu0
    %v6506 = vadd.f32 %v6417, %v6505
    %6507 = vmatmul.f32.gmra.mxu0 %v6456
    %v6508 = vpop.f32.mrf.mxu0
    %v6509 = vadd.f32 %v6420, %v6508
    %6510 = vmatmul.f32.gmra.mxu0 %v6459
    %v6511 = vpop.f32.mrf.mxu0
    %v6512 = vadd.f32 %v6423, %v6511
    %6513 = vmatmul.f32.gmra.mxu0 %v6462
    %v6514 = vpop.f32.mrf.mxu0
    %v6515 = vadd.f32 %v6426, %v6514
    %6516 = vmatmul.f32.gmra.mxu0 %v6465
    %v6517 = vpop.f32.mrf.mxu0
    %v6518 = vadd.f32 %v6429, %v6517
    %6519 = vmatmul.f32.gmra.mxu0 %v6468
    %v6520 = vpop.f32.mrf.mxu0
    %v6521 = vadd.f32 %v6432, %v6520
    %6522 = vmatmul.f32.gmra.mxu0 %v6471
    %v6523 = vpop.f32.mrf.mxu0
    %v6524 = vadd.f32 %v6435, %v6523
    %6525 = vmatmul.f32.gmra.mxu0 %v6474
    %v6526 = vpop.f32.mrf.mxu0
    %v6527 = vadd.f32 %v6438, %v6526
    %6528 = vmatmul.f32.gmra.mxu0 %v6477
    %v6529 = vpop.f32.mrf.mxu0
    %v6530 = vadd.f32 %v6441, %v6529
    %6531 = vmatmul.f32.gmra.mxu0 %v6480
    %v6532 = vpop.f32.mrf.mxu0
    %v6533 = vadd.f32 %v6444, %v6532
    %6534 = vdwg.mxu0
    %v6535 = vld [vmem:[#allocation5 + $0x8] sm:$0xff]
    %v6536 = vld [vmem:[#allocation5 + $0x10] sm:$0xff]
    %v6537 = vld [vmem:[#allocation5 + $0x18] sm:$0xff]
    %v6538 = vld [vmem:[#allocation5 + $0x20] sm:$0xff]
    %v6539 = vld [vmem:[#allocation5 + $0x28] sm:$0xff]
    %v6540 = vld [vmem:[#allocation5 + $0x30] sm:$0xff]
    %v6541 = vld [vmem:[#allocation5 + $0x38] sm:$0xff]
    %v6542 = vld [vmem:[#allocation5 + $0x40] sm:$0xff]
    %v6543 = vld [vmem:[#allocation5 + $0x48] sm:$0xff]
    %v6544 = vld [vmem:[#allocation5 + $0x50] sm:$0xff]
    %v6545 = vld [vmem:[#allocation5 + $0x58] sm:$0xff]
    %v6546 = vld [vmem:[#allocation5 + $0x60] sm:$0xff]
    %v6547 = vld [vmem:[%s5 + $0x30] sm:$0xff]
    %v6548 = vld [vmem:[%s5 + $0x38] sm:$0xff]
    %v6549 = vld [vmem:[%s5 + $0x40] sm:$0xff]
    %v6551 = vsel %vm119, %v6535, 0
    %v6554 = vsel %vm119, %v6536, 0
    %v6557 = vsel %vm119, %v6537, 0
    %v6560 = vsel %vm119, %v6538, 0
    %v6563 = vsel %vm119, %v6539, 0
    %v6566 = vsel %vm119, %v6540, 0
    %v6569 = vsel %vm119, %v6541, 0
    %v6572 = vsel %vm119, %v6542, 0
    %v6575 = vsel %vm119, %v6543, 0
    %v6578 = vsel %vm119, %v6544, 0
    %v6581 = vsel %vm119, %v6545, 0
    %v6584 = vsel %vm119, %v6546, 0
    %6586 = vmatpush.msra.mxu0 0.0
    %6587 = vmatpush.msra.mxu0 0.0
    %6588 = vmatpush.msra.mxu0 0.0
    %6589 = vmatpush.msra.mxu0 0.0
    %6590 = vmatpush.msra.mxu0 0.0
    %6591 = vmatpush.msra.mxu0 0.0
    %6592 = vmatpush.msra.mxu0 0.0
    %6593 = vmatpush.msra.mxu0 0.0
    %6594 = vmatpush.msra.mxu0 0.0
    %6595 = vmatpush.msra.mxu0 0.0
    %6596 = vmatpush.msra.mxu0 0.0
    %6597 = vmatpush.msra.mxu0 0.0
    %6598 = vmatpush.msra.mxu0 0.0
    %6599 = vmatpush.msra.mxu0 %v6549
    %6600 = vmatpush.msra.mxu0 %v6548
    %6601 = vmatpush.msra.mxu0 %v6547
    %6602 = vmatmul.f32.gmra.mxu0 %v6551
    %v6603 = vpop.f32.mrf.mxu0
    %v6604 = vadd.f32 0.0, %v6603
    %6605 = vmatmul.f32.gmra.mxu0 %v6554
    %v6606 = vpop.f32.mrf.mxu0
    %v6607 = vadd.f32 0.0, %v6606
    %6608 = vmatmul.f32.gmra.mxu0 %v6557
    %v6609 = vpop.f32.mrf.mxu0
    %v6610 = vadd.f32 0.0, %v6609
    %6611 = vmatmul.f32.gmra.mxu0 %v6560
    %v6612 = vpop.f32.mrf.mxu0
    %v6613 = vadd.f32 0.0, %v6612
    %6614 = vmatmul.f32.gmra.mxu0 %v6563
    %v6615 = vpop.f32.mrf.mxu0
    %v6616 = vadd.f32 0.0, %v6615
    %6617 = vmatmul.f32.gmra.mxu0 %v6566
    %v6618 = vpop.f32.mrf.mxu0
    %v6619 = vadd.f32 0.0, %v6618
    %6620 = vmatmul.f32.gmra.mxu0 %v6569
    %v6621 = vpop.f32.mrf.mxu0
    %v6622 = vadd.f32 0.0, %v6621
    %6623 = vmatmul.f32.gmra.mxu0 %v6572
    %v6624 = vpop.f32.mrf.mxu0
    %v6625 = vadd.f32 0.0, %v6624
    %6626 = vmatmul.f32.gmra.mxu0 %v6575
    %v6627 = vpop.f32.mrf.mxu0
    %v6628 = vadd.f32 0.0, %v6627
    %6629 = vmatmul.f32.gmra.mxu0 %v6578
    %v6630 = vpop.f32.mrf.mxu0
    %v6631 = vadd.f32 0.0, %v6630
    %6632 = vmatmul.f32.gmra.mxu0 %v6581
    %v6633 = vpop.f32.mrf.mxu0
    %v6634 = vadd.f32 0.0, %v6633
    %6635 = vmatmul.f32.gmra.mxu0 %v6584
    %v6636 = vpop.f32.mrf.mxu0
    %v6637 = vadd.f32 0.0, %v6636
    %6638 = vdwg.mxu0
    %v6639 = vadd.f32 %v6500, %v6604
    %v6640 = vadd.f32 %v6503, %v6607
    %v6641 = vadd.f32 %v6506, %v6610
    %v6642 = vadd.f32 %v6509, %v6613
    %v6643 = vadd.f32 %v6512, %v6616
    %v6644 = vadd.f32 %v6515, %v6619
    %v6645 = vadd.f32 %v6518, %v6622
    %v6646 = vadd.f32 %v6521, %v6625
    %v6647 = vadd.f32 %v6524, %v6628
    %v6648 = vadd.f32 %v6527, %v6631
    %v6649 = vadd.f32 %v6530, %v6634
    %v6650 = vadd.f32 %v6533, %v6637
    %v6651 = vld [vmem:[#allocation5 + $0x9] sm:$0xff]
    %v6652 = vld [vmem:[#allocation5 + $0x11] sm:$0xff]
    %v6653 = vld [vmem:[#allocation5 + $0x19] sm:$0xff]
    %v6654 = vld [vmem:[#allocation5 + $0x21] sm:$0xff]
    %v6655 = vld [vmem:[#allocation5 + $0x29] sm:$0xff]
    %v6656 = vld [vmem:[#allocation5 + $0x31] sm:$0xff]
    %v6657 = vld [vmem:[#allocation5 + $0x39] sm:$0xff]
    %v6658 = vld [vmem:[#allocation5 + $0x41] sm:$0xff]
    %v6659 = vld [vmem:[#allocation5 + $0x49] sm:$0xff]
    %v6660 = vld [vmem:[#allocation5 + $0x51] sm:$0xff]
    %v6661 = vld [vmem:[#allocation5 + $0x59] sm:$0xff]
    %v6662 = vld [vmem:[#allocation5 + $0x61] sm:$0xff]
    %v6663 = vld [vmem:[%s5 + $0x48] sm:$0xff]
    %v6664 = vld [vmem:[%s5 + $0x50] sm:$0xff]
    %v6665 = vld [vmem:[%s5 + $0x58] sm:$0xff]
    %v6667 = vsel %vm119, %v6651, 0
    %v6670 = vsel %vm119, %v6652, 0
    %v6673 = vsel %vm119, %v6653, 0
    %v6676 = vsel %vm119, %v6654, 0
    %v6679 = vsel %vm119, %v6655, 0
    %v6682 = vsel %vm119, %v6656, 0
    %v6685 = vsel %vm119, %v6657, 0
    %v6688 = vsel %vm119, %v6658, 0
    %v6691 = vsel %vm119, %v6659, 0
    %v6694 = vsel %vm119, %v6660, 0
    %v6697 = vsel %vm119, %v6661, 0
    %v6700 = vsel %vm119, %v6662, 0
    %6702 = vmatpush.msra.mxu0 0.0
    %6703 = vmatpush.msra.mxu0 0.0
    %6704 = vmatpush.msra.mxu0 0.0
    %6705 = vmatpush.msra.mxu0 0.0
    %6706 = vmatpush.msra.mxu0 0.0
    %6707 = vmatpush.msra.mxu0 0.0
    %6708 = vmatpush.msra.mxu0 0.0
    %6709 = vmatpush.msra.mxu0 0.0
    %6710 = vmatpush.msra.mxu0 0.0
    %6711 = vmatpush.msra.mxu0 0.0
    %6712 = vmatpush.msra.mxu0 0.0
    %6713 = vmatpush.msra.mxu0 0.0
    %6714 = vmatpush.msra.mxu0 0.0
    %6715 = vmatpush.msra.mxu0 %v6665
    %6716 = vmatpush.msra.mxu0 %v6664
    %6717 = vmatpush.msra.mxu0 %v6663
    %6718 = vmatmul.f32.gmra.mxu0 %v6667
    %v6719 = vpop.f32.mrf.mxu0
    %v6720 = vadd.f32 0.0, %v6719
    %6721 = vmatmul.f32.gmra.mxu0 %v6670
    %v6722 = vpop.f32.mrf.mxu0
    %v6723 = vadd.f32 0.0, %v6722
    %6724 = vmatmul.f32.gmra.mxu0 %v6673
    %v6725 = vpop.f32.mrf.mxu0
    %v6726 = vadd.f32 0.0, %v6725
    %6727 = vmatmul.f32.gmra.mxu0 %v6676
    %v6728 = vpop.f32.mrf.mxu0
    %v6729 = vadd.f32 0.0, %v6728
    %6730 = vmatmul.f32.gmra.mxu0 %v6679
    %v6731 = vpop.f32.mrf.mxu0
    %v6732 = vadd.f32 0.0, %v6731
    %6733 = vmatmul.f32.gmra.mxu0 %v6682
    %v6734 = vpop.f32.mrf.mxu0
    %v6735 = vadd.f32 0.0, %v6734
    %6736 = vmatmul.f32.gmra.mxu0 %v6685
    %v6737 = vpop.f32.mrf.mxu0
    %v6738 = vadd.f32 0.0, %v6737
    %6739 = vmatmul.f32.gmra.mxu0 %v6688
    %v6740 = vpop.f32.mrf.mxu0
    %v6741 = vadd.f32 0.0, %v6740
    %6742 = vmatmul.f32.gmra.mxu0 %v6691
    %v6743 = vpop.f32.mrf.mxu0
    %v6744 = vadd.f32 0.0, %v6743
    %6745 = vmatmul.f32.gmra.mxu0 %v6694
    %v6746 = vpop.f32.mrf.mxu0
    %v6747 = vadd.f32 0.0, %v6746
    %6748 = vmatmul.f32.gmra.mxu0 %v6697
    %v6749 = vpop.f32.mrf.mxu0
    %v6750 = vadd.f32 0.0, %v6749
    %6751 = vmatmul.f32.gmra.mxu0 %v6700
    %v6752 = vpop.f32.mrf.mxu0
    %v6753 = vadd.f32 0.0, %v6752
    %6754 = vdwg.mxu0
    %v6755 = vadd.f32 %v6639, %v6720
    %v6756 = vadd.f32 %v6640, %v6723
    %v6757 = vadd.f32 %v6641, %v6726
    %v6758 = vadd.f32 %v6642, %v6729
    %v6759 = vadd.f32 %v6643, %v6732
    %v6760 = vadd.f32 %v6644, %v6735
    %v6761 = vadd.f32 %v6645, %v6738
    %v6762 = vadd.f32 %v6646, %v6741
    %v6763 = vadd.f32 %v6647, %v6744
    %v6764 = vadd.f32 %v6648, %v6747
    %v6765 = vadd.f32 %v6649, %v6750
    %v6766 = vadd.f32 %v6650, %v6753
    %v6768 = vperm.slane %v6326, 0
    %v6770 = vadd.f32 %v6755, %v6768
    %v6771 = vadd.f32 %v6756, %v6768
    %v6772 = vadd.f32 %v6757, %v6768
    %v6773 = vadd.f32 %v6758, %v6768
    %v6774 = vadd.f32 %v6759, %v6768
    %v6775 = vadd.f32 %v6760, %v6768
    %v6776 = vadd.f32 %v6761, %v6768
    %v6777 = vadd.f32 %v6762, %v6768
    %v6778 = vadd.f32 %v6763, %v6768
    %v6779 = vadd.f32 %v6764, %v6768
    %v6780 = vadd.f32 %v6765, %v6768
    %v6781 = vadd.f32 %v6766, %v6768
    %v6782 = vmax.f32 %v6770, 0.0
    %v6783 = vmax.f32 %v6771, 0.0
    %v6784 = vmax.f32 %v6772, 0.0
    %v6785 = vmax.f32 %v6773, 0.0
    %v6786 = vmax.f32 %v6774, 0.0
    %v6787 = vmax.f32 %v6775, 0.0
    %v6788 = vmax.f32 %v6776, 0.0
    %v6789 = vmax.f32 %v6777, 0.0
    %v6790 = vmax.f32 %v6778, 0.0
    %v6791 = vmax.f32 %v6779, 0.0
    %v6792 = vmax.f32 %v6780, 0.0
    %v6793 = vmax.f32 %v6781, 0.0
    %vm6794 = vcmask 261120
    %6795 = vst.msk [vmem:[#allocation6] sm:$0xff] %vm6794, %v6782
    %6796 = vst.msk [vmem:[#allocation6 + $0x8] sm:$0xff] %vm6794, %v6783
    %6797 = vst.msk [vmem:[#allocation6 + $0x10] sm:$0xff] %vm6794, %v6784
    %6798 = vst.msk [vmem:[#allocation6 + $0x18] sm:$0xff] %vm6794, %v6785
    %6799 = vst.msk [vmem:[#allocation6 + $0x20] sm:$0xff] %vm6794, %v6786
    %6800 = vst.msk [vmem:[#allocation6 + $0x28] sm:$0xff] %vm6794, %v6787
    %6801 = vst.msk [vmem:[#allocation6 + $0x30] sm:$0xff] %vm6794, %v6788
    %6802 = vst.msk [vmem:[#allocation6 + $0x38] sm:$0xff] %vm6794, %v6789
    %6803 = vst.msk [vmem:[#allocation6 + $0x40] sm:$0xff] %vm6794, %v6790
    %6804 = vst.msk [vmem:[#allocation6 + $0x48] sm:$0xff] %vm6794, %v6791
    %6805 = vst.msk [vmem:[#allocation6 + $0x50] sm:$0xff] %vm6794, %v6792
    %6806 = vst.msk [vmem:[#allocation6 + $0x58] sm:$0xff] %vm6794, %v6793
    %v6807 = vld [vmem:[%s8] sm:$0x1]
    %v6808 = vld [vmem:[%s10] sm:$0x1]
    %v6809 = vld [vmem:[%s12] sm:$0x1]
    %v6810 = vld [vmem:[%s9] sm:$0xff]
    %v6811 = vld [vmem:[%s9 + $0x8] sm:$0xff]
    %v6812 = vld [vmem:[%s9 + $0x10] sm:$0xff]
    %v6813 = vld [vmem:[%s9 + $0x18] sm:$0xff]
    %v6814 = vld [vmem:[%s9 + $0x20] sm:$0xff]
    %v6815 = vld [vmem:[%s9 + $0x28] sm:$0xff]
    %v6816 = vld [vmem:[%s9 + $0x30] sm:$0xff]
    %v6817 = vld [vmem:[%s9 + $0x38] sm:$0xff]
    %v6818 = vld [vmem:[%s9 + $0x40] sm:$0xff]
    %v6819 = vld [vmem:[%s9 + $0x48] sm:$0xff]
    %v6820 = vld [vmem:[%s9 + $0x50] sm:$0xff]
    %v6821 = vld [vmem:[%s9 + $0x58] sm:$0xff]
    %v6822 = vld [vmem:[%s9 + $0x60] sm:$0xff]
    %v6823 = vld [vmem:[%s9 + $0x68] sm:$0xf]
    %v6824 = vld [vmem:[%s11] sm:$0xff]
    %v6825 = vld [vmem:[%s11 + $0x8] sm:$0xff]
    %v6826 = vld [vmem:[%s11 + $0x10] sm:$0xff]
    %v6827 = vld [vmem:[%s11 + $0x18] sm:$0xff]
    %v6828 = vld [vmem:[%s11 + $0x20] sm:$0xff]
    %v6829 = vld [vmem:[%s11 + $0x28] sm:$0xff]
    %v6830 = vld [vmem:[%s11 + $0x30] sm:$0xff]
    %v6831 = vld [vmem:[%s11 + $0x38] sm:$0xff]
    %v6832 = vld [vmem:[%s11 + $0x40] sm:$0xff]
    %v6833 = vld [vmem:[%s11 + $0x48] sm:$0xff]
    %v6834 = vld [vmem:[%s11 + $0x50] sm:$0xf]
    %v6835 = vld [vmem:[#allocation6] sm:$0x1]
    %v6836 = vld [vmem:[%s7] sm:$0xff]
    %v6837 = vld [vmem:[%s7 + $0x8] sm:$0xff]
    %v6838 = vld [vmem:[%s7 + $0x10] sm:$0xff]
    %v6839 = vld [vmem:[%s7 + $0x18] sm:$0xff]
    %v6840 = vld [vmem:[#allocation6 + $0x1] sm:$0x1]
    %v6841 = vld [vmem:[%s7 + $0x20] sm:$0xff]
    %v6842 = vld [vmem:[%s7 + $0x28] sm:$0xff]
    %v6843 = vld [vmem:[%s7 + $0x30] sm:$0xff]
    %v6844 = vld [vmem:[%s7 + $0x38] sm:$0xff]
    %v6846 = vsel %vm6794, %v6840, 0
    %6848 = vmatpush.msra.mxu0 0.0
    %6849 = vmatpush.msra.mxu0 0.0
    %6850 = vmatpush.msra.mxu0 0.0
    %6851 = vmatpush.msra.mxu0 0.0
    %6852 = vmatpush.msra.mxu0 0.0
    %6853 = vmatpush.msra.mxu0 0.0
    %6854 = vmatpush.msra.mxu0 0.0
    %6855 = vmatpush.msra.mxu0 0.0
    %6856 = vmatpush.msra.mxu0 0.0
    %6857 = vmatpush.msra.mxu0 0.0
    %6858 = vmatpush.msra.mxu0 0.0
    %6859 = vmatpush.msra.mxu0 0.0
    %6860 = vmatpush.msra.mxu0 %v6844
    %6861 = vmatpush.msra.mxu0 %v6843
    %6862 = vmatpush.msra.mxu0 %v6842
    %6863 = vmatpush.msra.mxu0 %v6841
    %6864 = vmatmul.f32.gmra.mxu0 %v6846
    %v6865 = vpop.f32.mrf.mxu0
    %v6866 = vadd.f32 0.0, %v6865
    %6867 = vdwg.mxu0
    %v6869 = vsel %vm6794, %v6835, 0
    %6871 = vmatpush.msra.mxu0 0.0
    %6872 = vmatpush.msra.mxu0 0.0
    %6873 = vmatpush.msra.mxu0 0.0
    %6874 = vmatpush.msra.mxu0 0.0
    %6875 = vmatpush.msra.mxu0 0.0
    %6876 = vmatpush.msra.mxu0 0.0
    %6877 = vmatpush.msra.mxu0 0.0
    %6878 = vmatpush.msra.mxu0 0.0
    %6879 = vmatpush.msra.mxu0 0.0
    %6880 = vmatpush.msra.mxu0 0.0
    %6881 = vmatpush.msra.mxu0 0.0
    %6882 = vmatpush.msra.mxu0 0.0
    %6883 = vmatpush.msra.mxu0 %v6839
    %6884 = vmatpush.msra.mxu0 %v6838
    %6885 = vmatpush.msra.mxu0 %v6837
    %6886 = vmatpush.msra.mxu0 %v6836
    %6887 = vmatmul.f32.gmra.mxu0 %v6869
    %v6888 = vpop.f32.mrf.mxu0
    %v6889 = vadd.f32 %v6866, %v6888
    %6890 = vdwg.mxu0
    %v6891 = vld [vmem:[#allocation6 + $0x2] sm:$0x1]
    %v6892 = vld [vmem:[%s7 + $0x40] sm:$0xff]
    %v6893 = vld [vmem:[%s7 + $0x48] sm:$0xff]
    %v6894 = vld [vmem:[%s7 + $0x50] sm:$0xff]
    %v6895 = vld [vmem:[%s7 + $0x58] sm:$0xff]
    %v6897 = vsel %vm6794, %v6891, 0
    %6899 = vmatpush.msra.mxu0 0.0
    %6900 = vmatpush.msra.mxu0 0.0
    %6901 = vmatpush.msra.mxu0 0.0
    %6902 = vmatpush.msra.mxu0 0.0
    %6903 = vmatpush.msra.mxu0 0.0
    %6904 = vmatpush.msra.mxu0 0.0
    %6905 = vmatpush.msra.mxu0 0.0
    %6906 = vmatpush.msra.mxu0 0.0
    %6907 = vmatpush.msra.mxu0 0.0
    %6908 = vmatpush.msra.mxu0 0.0
    %6909 = vmatpush.msra.mxu0 0.0
    %6910 = vmatpush.msra.mxu0 0.0
    %6911 = vmatpush.msra.mxu0 %v6895
    %6912 = vmatpush.msra.mxu0 %v6894
    %6913 = vmatpush.msra.mxu0 %v6893
    %6914 = vmatpush.msra.mxu0 %v6892
    %6915 = vmatmul.f32.gmra.mxu0 %v6897
    %v6916 = vpop.f32.mrf.mxu0
    %v6917 = vadd.f32 0.0, %v6916
    %6918 = vdwg.mxu0
    %v6919 = vadd.f32 %v6889, %v6917
    %v6920 = vld [vmem:[#allocation6 + $0x3] sm:$0x1]
    %v6921 = vld [vmem:[%s7 + $0x60] sm:$0xff]
    %v6922 = vld [vmem:[%s7 + $0x68] sm:$0xff]
    %v6923 = vld [vmem:[%s7 + $0x70] sm:$0xff]
    %v6924 = vld [vmem:[%s7 + $0x78] sm:$0xff]
    %v6926 = vsel %vm6794, %v6920, 0
    %6928 = vmatpush.msra.mxu0 0.0
    %6929 = vmatpush.msra.mxu0 0.0
    %6930 = vmatpush.msra.mxu0 0.0
    %6931 = vmatpush.msra.mxu0 0.0
    %6932 = vmatpush.msra.mxu0 0.0
    %6933 = vmatpush.msra.mxu0 0.0
    %6934 = vmatpush.msra.mxu0 0.0
    %6935 = vmatpush.msra.mxu0 0.0
    %6936 = vmatpush.msra.mxu0 0.0
    %6937 = vmatpush.msra.mxu0 0.0
    %6938 = vmatpush.msra.mxu0 0.0
    %6939 = vmatpush.msra.mxu0 0.0
    %6940 = vmatpush.msra.mxu0 %v6924
    %6941 = vmatpush.msra.mxu0 %v6923
    %6942 = vmatpush.msra.mxu0 %v6922
    %6943 = vmatpush.msra.mxu0 %v6921
    %6944 = vmatmul.f32.gmra.mxu0 %v6926
    %v6945 = vpop.f32.mrf.mxu0
    %v6946 = vadd.f32 0.0, %v6945
    %6947 = vdwg.mxu0
    %v6948 = vadd.f32 %v6919, %v6946
    %v6949 = vld [vmem:[#allocation6 + $0x4] sm:$0x1]
    %v6950 = vld [vmem:[%s7 + $0x80] sm:$0xff]
    %v6951 = vld [vmem:[%s7 + $0x88] sm:$0xff]
    %v6952 = vld [vmem:[%s7 + $0x90] sm:$0xff]
    %v6953 = vld [vmem:[%s7 + $0x98] sm:$0xff]
    %v6955 = vsel %vm6794, %v6949, 0
    %6957 = vmatpush.msra.mxu0 0.0
    %6958 = vmatpush.msra.mxu0 0.0
    %6959 = vmatpush.msra.mxu0 0.0
    %6960 = vmatpush.msra.mxu0 0.0
    %6961 = vmatpush.msra.mxu0 0.0
    %6962 = vmatpush.msra.mxu0 0.0
    %6963 = vmatpush.msra.mxu0 0.0
    %6964 = vmatpush.msra.mxu0 0.0
    %6965 = vmatpush.msra.mxu0 0.0
    %6966 = vmatpush.msra.mxu0 0.0
    %6967 = vmatpush.msra.mxu0 0.0
    %6968 = vmatpush.msra.mxu0 0.0
    %6969 = vmatpush.msra.mxu0 %v6953
    %6970 = vmatpush.msra.mxu0 %v6952
    %6971 = vmatpush.msra.mxu0 %v6951
    %6972 = vmatpush.msra.mxu0 %v6950
    %6973 = vmatmul.f32.gmra.mxu0 %v6955
    %v6974 = vpop.f32.mrf.mxu0
    %v6975 = vadd.f32 0.0, %v6974
    %6976 = vdwg.mxu0
    %v6977 = vadd.f32 %v6948, %v6975
    %v6978 = vld [vmem:[#allocation6 + $0x8] sm:$0x1]
    %v6979 = vld [vmem:[%s7 + $0xa0] sm:$0xff]
    %v6980 = vld [vmem:[%s7 + $0xa8] sm:$0xff]
    %v6981 = vld [vmem:[%s7 + $0xb0] sm:$0xff]
    %v6982 = vld [vmem:[%s7 + $0xb8] sm:$0xff]
    %v6984 = vsel %vm6794, %v6978, 0
    %6986 = vmatpush.msra.mxu0 0.0
    %6987 = vmatpush.msra.mxu0 0.0
    %6988 = vmatpush.msra.mxu0 0.0
    %6989 = vmatpush.msra.mxu0 0.0
    %6990 = vmatpush.msra.mxu0 0.0
    %6991 = vmatpush.msra.mxu0 0.0
    %6992 = vmatpush.msra.mxu0 0.0
    %6993 = vmatpush.msra.mxu0 0.0
    %6994 = vmatpush.msra.mxu0 0.0
    %6995 = vmatpush.msra.mxu0 0.0
    %6996 = vmatpush.msra.mxu0 0.0
    %6997 = vmatpush.msra.mxu0 0.0
    %6998 = vmatpush.msra.mxu0 %v6982
    %6999 = vmatpush.msra.mxu0 %v6981
    %7000 = vmatpush.msra.mxu0 %v6980
    %7001 = vmatpush.msra.mxu0 %v6979
    %7002 = vmatmul.f32.gmra.mxu0 %v6984
    %v7003 = vpop.f32.mrf.mxu0
    %v7004 = vadd.f32 0.0, %v7003
    %7005 = vdwg.mxu0
    %v7006 = vadd.f32 %v6977, %v7004
    %v7007 = vld [vmem:[#allocation6 + $0x9] sm:$0x1]
    %v7008 = vld [vmem:[%s7 + $0xc0] sm:$0xff]
    %v7009 = vld [vmem:[%s7 + $0xc8] sm:$0xff]
    %v7010 = vld [vmem:[%s7 + $0xd0] sm:$0xff]
    %v7011 = vld [vmem:[%s7 + $0xd8] sm:$0xff]
    %v7013 = vsel %vm6794, %v7007, 0
    %7015 = vmatpush.msra.mxu0 0.0
    %7016 = vmatpush.msra.mxu0 0.0
    %7017 = vmatpush.msra.mxu0 0.0
    %7018 = vmatpush.msra.mxu0 0.0
    %7019 = vmatpush.msra.mxu0 0.0
    %7020 = vmatpush.msra.mxu0 0.0
    %7021 = vmatpush.msra.mxu0 0.0
    %7022 = vmatpush.msra.mxu0 0.0
    %7023 = vmatpush.msra.mxu0 0.0
    %7024 = vmatpush.msra.mxu0 0.0
    %7025 = vmatpush.msra.mxu0 0.0
    %7026 = vmatpush.msra.mxu0 0.0
    %7027 = vmatpush.msra.mxu0 %v7011
    %7028 = vmatpush.msra.mxu0 %v7010
    %7029 = vmatpush.msra.mxu0 %v7009
    %7030 = vmatpush.msra.mxu0 %v7008
    %7031 = vmatmul.f32.gmra.mxu0 %v7013
    %v7032 = vpop.f32.mrf.mxu0
    %v7033 = vadd.f32 0.0, %v7032
    %7034 = vdwg.mxu0
    %v7035 = vadd.f32 %v7006, %v7033
    %v7036 = vld [vmem:[#allocation6 + $0xa] sm:$0x1]
    %v7037 = vld [vmem:[%s7 + $0xe0] sm:$0xff]
    %v7038 = vld [vmem:[%s7 + $0xe8] sm:$0xff]
    %v7039 = vld [vmem:[%s7 + $0xf0] sm:$0xff]
    %v7040 = vld [vmem:[%s7 + $0xf8] sm:$0xff]
    %v7042 = vsel %vm6794, %v7036, 0
    %7044 = vmatpush.msra.mxu0 0.0
    %7045 = vmatpush.msra.mxu0 0.0
    %7046 = vmatpush.msra.mxu0 0.0
    %7047 = vmatpush.msra.mxu0 0.0
    %7048 = vmatpush.msra.mxu0 0.0
    %7049 = vmatpush.msra.mxu0 0.0
    %7050 = vmatpush.msra.mxu0 0.0
    %7051 = vmatpush.msra.mxu0 0.0
    %7052 = vmatpush.msra.mxu0 0.0
    %7053 = vmatpush.msra.mxu0 0.0
    %7054 = vmatpush.msra.mxu0 0.0
    %7055 = vmatpush.msra.mxu0 0.0
    %7056 = vmatpush.msra.mxu0 %v7040
    %7057 = vmatpush.msra.mxu0 %v7039
    %7058 = vmatpush.msra.mxu0 %v7038
    %7059 = vmatpush.msra.mxu0 %v7037
    %7060 = vmatmul.f32.gmra.mxu0 %v7042
    %v7061 = vpop.f32.mrf.mxu0
    %v7062 = vadd.f32 0.0, %v7061
    %7063 = vdwg.mxu0
    %v7064 = vadd.f32 %v7035, %v7062
    %v7065 = vld [vmem:[#allocation6 + $0xb] sm:$0x1]
    %v7066 = vld [vmem:[%s7 + $0x100] sm:$0xff]
    %v7067 = vld [vmem:[%s7 + $0x108] sm:$0xff]
    %v7068 = vld [vmem:[%s7 + $0x110] sm:$0xff]
    %v7069 = vld [vmem:[%s7 + $0x118] sm:$0xff]
    %v7071 = vsel %vm6794, %v7065, 0
    %7073 = vmatpush.msra.mxu0 0.0
    %7074 = vmatpush.msra.mxu0 0.0
    %7075 = vmatpush.msra.mxu0 0.0
    %7076 = vmatpush.msra.mxu0 0.0
    %7077 = vmatpush.msra.mxu0 0.0
    %7078 = vmatpush.msra.mxu0 0.0
    %7079 = vmatpush.msra.mxu0 0.0
    %7080 = vmatpush.msra.mxu0 0.0
    %7081 = vmatpush.msra.mxu0 0.0
    %7082 = vmatpush.msra.mxu0 0.0
    %7083 = vmatpush.msra.mxu0 0.0
    %7084 = vmatpush.msra.mxu0 0.0
    %7085 = vmatpush.msra.mxu0 %v7069
    %7086 = vmatpush.msra.mxu0 %v7068
    %7087 = vmatpush.msra.mxu0 %v7067
    %7088 = vmatpush.msra.mxu0 %v7066
    %7089 = vmatmul.f32.gmra.mxu0 %v7071
    %v7090 = vpop.f32.mrf.mxu0
    %v7091 = vadd.f32 0.0, %v7090
    %7092 = vdwg.mxu0
    %v7093 = vadd.f32 %v7064, %v7091
    %v7094 = vld [vmem:[#allocation6 + $0xc] sm:$0x1]
    %v7095 = vld [vmem:[%s7 + $0x120] sm:$0xff]
    %v7096 = vld [vmem:[%s7 + $0x128] sm:$0xff]
    %v7097 = vld [vmem:[%s7 + $0x130] sm:$0xff]
    %v7098 = vld [vmem:[%s7 + $0x138] sm:$0xff]
    %v7100 = vsel %vm6794, %v7094, 0
    %7102 = vmatpush.msra.mxu0 0.0
    %7103 = vmatpush.msra.mxu0 0.0
    %7104 = vmatpush.msra.mxu0 0.0
    %7105 = vmatpush.msra.mxu0 0.0
    %7106 = vmatpush.msra.mxu0 0.0
    %7107 = vmatpush.msra.mxu0 0.0
    %7108 = vmatpush.msra.mxu0 0.0
    %7109 = vmatpush.msra.mxu0 0.0
    %7110 = vmatpush.msra.mxu0 0.0
    %7111 = vmatpush.msra.mxu0 0.0
    %7112 = vmatpush.msra.mxu0 0.0
    %7113 = vmatpush.msra.mxu0 0.0
    %7114 = vmatpush.msra.mxu0 %v7098
    %7115 = vmatpush.msra.mxu0 %v7097
    %7116 = vmatpush.msra.mxu0 %v7096
    %7117 = vmatpush.msra.mxu0 %v7095
    %7118 = vmatmul.f32.gmra.mxu0 %v7100
    %v7119 = vpop.f32.mrf.mxu0
    %v7120 = vadd.f32 0.0, %v7119
    %7121 = vdwg.mxu0
    %v7122 = vadd.f32 %v7093, %v7120
    %v7123 = vld [vmem:[#allocation6 + $0x10] sm:$0x1]
    %v7124 = vld [vmem:[%s7 + $0x140] sm:$0xff]
    %v7125 = vld [vmem:[%s7 + $0x148] sm:$0xff]
    %v7126 = vld [vmem:[%s7 + $0x150] sm:$0xff]
    %v7127 = vld [vmem:[%s7 + $0x158] sm:$0xff]
    %v7129 = vsel %vm6794, %v7123, 0
    %7131 = vmatpush.msra.mxu0 0.0
    %7132 = vmatpush.msra.mxu0 0.0
    %7133 = vmatpush.msra.mxu0 0.0
    %7134 = vmatpush.msra.mxu0 0.0
    %7135 = vmatpush.msra.mxu0 0.0
    %7136 = vmatpush.msra.mxu0 0.0
    %7137 = vmatpush.msra.mxu0 0.0
    %7138 = vmatpush.msra.mxu0 0.0
    %7139 = vmatpush.msra.mxu0 0.0
    %7140 = vmatpush.msra.mxu0 0.0
    %7141 = vmatpush.msra.mxu0 0.0
    %7142 = vmatpush.msra.mxu0 0.0
    %7143 = vmatpush.msra.mxu0 %v7127
    %7144 = vmatpush.msra.mxu0 %v7126
    %7145 = vmatpush.msra.mxu0 %v7125
    %7146 = vmatpush.msra.mxu0 %v7124
    %7147 = vmatmul.f32.gmra.mxu0 %v7129
    %v7148 = vpop.f32.mrf.mxu0
    %v7149 = vadd.f32 0.0, %v7148
    %7150 = vdwg.mxu0
    %v7151 = vadd.f32 %v7122, %v7149
    %v7152 = vld [vmem:[#allocation6 + $0x11] sm:$0x1]
    %v7153 = vld [vmem:[%s7 + $0x160] sm:$0xff]
    %v7154 = vld [vmem:[%s7 + $0x168] sm:$0xff]
    %v7155 = vld [vmem:[%s7 + $0x170] sm:$0xff]
    %v7156 = vld [vmem:[%s7 + $0x178] sm:$0xff]
    %v7158 = vsel %vm6794, %v7152, 0
    %7160 = vmatpush.msra.mxu0 0.0
    %7161 = vmatpush.msra.mxu0 0.0
    %7162 = vmatpush.msra.mxu0 0.0
    %7163 = vmatpush.msra.mxu0 0.0
    %7164 = vmatpush.msra.mxu0 0.0
    %7165 = vmatpush.msra.mxu0 0.0
    %7166 = vmatpush.msra.mxu0 0.0
    %7167 = vmatpush.msra.mxu0 0.0
    %7168 = vmatpush.msra.mxu0 0.0
    %7169 = vmatpush.msra.mxu0 0.0
    %7170 = vmatpush.msra.mxu0 0.0
    %7171 = vmatpush.msra.mxu0 0.0
    %7172 = vmatpush.msra.mxu0 %v7156
    %7173 = vmatpush.msra.mxu0 %v7155
    %7174 = vmatpush.msra.mxu0 %v7154
    %7175 = vmatpush.msra.mxu0 %v7153
    %7176 = vmatmul.f32.gmra.mxu0 %v7158
    %v7177 = vpop.f32.mrf.mxu0
    %v7178 = vadd.f32 0.0, %v7177
    %7179 = vdwg.mxu0
    %v7180 = vadd.f32 %v7151, %v7178
    %v7181 = vld [vmem:[#allocation6 + $0x12] sm:$0x1]
    %v7182 = vld [vmem:[%s7 + $0x180] sm:$0xff]
    %v7183 = vld [vmem:[%s7 + $0x188] sm:$0xff]
    %v7184 = vld [vmem:[%s7 + $0x190] sm:$0xff]
    %v7185 = vld [vmem:[%s7 + $0x198] sm:$0xff]
    %v7187 = vsel %vm6794, %v7181, 0
    %7189 = vmatpush.msra.mxu0 0.0
    %7190 = vmatpush.msra.mxu0 0.0
    %7191 = vmatpush.msra.mxu0 0.0
    %7192 = vmatpush.msra.mxu0 0.0
    %7193 = vmatpush.msra.mxu0 0.0
    %7194 = vmatpush.msra.mxu0 0.0
    %7195 = vmatpush.msra.mxu0 0.0
    %7196 = vmatpush.msra.mxu0 0.0
    %7197 = vmatpush.msra.mxu0 0.0
    %7198 = vmatpush.msra.mxu0 0.0
    %7199 = vmatpush.msra.mxu0 0.0
    %7200 = vmatpush.msra.mxu0 0.0
    %7201 = vmatpush.msra.mxu0 %v7185
    %7202 = vmatpush.msra.mxu0 %v7184
    %7203 = vmatpush.msra.mxu0 %v7183
    %7204 = vmatpush.msra.mxu0 %v7182
    %7205 = vmatmul.f32.gmra.mxu0 %v7187
    %v7206 = vpop.f32.mrf.mxu0
    %v7207 = vadd.f32 0.0, %v7206
    %7208 = vdwg.mxu0
    %v7209 = vadd.f32 %v7180, %v7207
    %v7210 = vld [vmem:[#allocation6 + $0x13] sm:$0x1]
    %v7211 = vld [vmem:[%s7 + $0x1a0] sm:$0xff]
    %v7212 = vld [vmem:[%s7 + $0x1a8] sm:$0xff]
    %v7213 = vld [vmem:[%s7 + $0x1b0] sm:$0xff]
    %v7214 = vld [vmem:[%s7 + $0x1b8] sm:$0xff]
    %v7216 = vsel %vm6794, %v7210, 0
    %7218 = vmatpush.msra.mxu0 0.0
    %7219 = vmatpush.msra.mxu0 0.0
    %7220 = vmatpush.msra.mxu0 0.0
    %7221 = vmatpush.msra.mxu0 0.0
    %7222 = vmatpush.msra.mxu0 0.0
    %7223 = vmatpush.msra.mxu0 0.0
    %7224 = vmatpush.msra.mxu0 0.0
    %7225 = vmatpush.msra.mxu0 0.0
    %7226 = vmatpush.msra.mxu0 0.0
    %7227 = vmatpush.msra.mxu0 0.0
    %7228 = vmatpush.msra.mxu0 0.0
    %7229 = vmatpush.msra.mxu0 0.0
    %7230 = vmatpush.msra.mxu0 %v7214
    %7231 = vmatpush.msra.mxu0 %v7213
    %7232 = vmatpush.msra.mxu0 %v7212
    %7233 = vmatpush.msra.mxu0 %v7211
    %7234 = vmatmul.f32.gmra.mxu0 %v7216
    %v7235 = vpop.f32.mrf.mxu0
    %v7236 = vadd.f32 0.0, %v7235
    %7237 = vdwg.mxu0
    %v7238 = vadd.f32 %v7209, %v7236
    %v7239 = vld [vmem:[#allocation6 + $0x14] sm:$0x1]
    %v7240 = vld [vmem:[%s7 + $0x1c0] sm:$0xff]
    %v7241 = vld [vmem:[%s7 + $0x1c8] sm:$0xff]
    %v7242 = vld [vmem:[%s7 + $0x1d0] sm:$0xff]
    %v7243 = vld [vmem:[%s7 + $0x1d8] sm:$0xff]
    %v7245 = vsel %vm6794, %v7239, 0
    %7247 = vmatpush.msra.mxu0 0.0
    %7248 = vmatpush.msra.mxu0 0.0
    %7249 = vmatpush.msra.mxu0 0.0
    %7250 = vmatpush.msra.mxu0 0.0
    %7251 = vmatpush.msra.mxu0 0.0
    %7252 = vmatpush.msra.mxu0 0.0
    %7253 = vmatpush.msra.mxu0 0.0
    %7254 = vmatpush.msra.mxu0 0.0
    %7255 = vmatpush.msra.mxu0 0.0
    %7256 = vmatpush.msra.mxu0 0.0
    %7257 = vmatpush.msra.mxu0 0.0
    %7258 = vmatpush.msra.mxu0 0.0
    %7259 = vmatpush.msra.mxu0 %v7243
    %7260 = vmatpush.msra.mxu0 %v7242
    %7261 = vmatpush.msra.mxu0 %v7241
    %7262 = vmatpush.msra.mxu0 %v7240
    %7263 = vmatmul.f32.gmra.mxu0 %v7245
    %v7264 = vpop.f32.mrf.mxu0
    %v7265 = vadd.f32 0.0, %v7264
    %7266 = vdwg.mxu0
    %v7267 = vadd.f32 %v7238, %v7265
    %v7268 = vld [vmem:[#allocation6 + $0x18] sm:$0x1]
    %v7269 = vld [vmem:[%s7 + $0x1e0] sm:$0xff]
    %v7270 = vld [vmem:[%s7 + $0x1e8] sm:$0xff]
    %v7271 = vld [vmem:[%s7 + $0x1f0] sm:$0xff]
    %v7272 = vld [vmem:[%s7 + $0x1f8] sm:$0xff]
    %v7274 = vsel %vm6794, %v7268, 0
    %7276 = vmatpush.msra.mxu0 0.0
    %7277 = vmatpush.msra.mxu0 0.0
    %7278 = vmatpush.msra.mxu0 0.0
    %7279 = vmatpush.msra.mxu0 0.0
    %7280 = vmatpush.msra.mxu0 0.0
    %7281 = vmatpush.msra.mxu0 0.0
    %7282 = vmatpush.msra.mxu0 0.0
    %7283 = vmatpush.msra.mxu0 0.0
    %7284 = vmatpush.msra.mxu0 0.0
    %7285 = vmatpush.msra.mxu0 0.0
    %7286 = vmatpush.msra.mxu0 0.0
    %7287 = vmatpush.msra.mxu0 0.0
    %7288 = vmatpush.msra.mxu0 %v7272
    %7289 = vmatpush.msra.mxu0 %v7271
    %7290 = vmatpush.msra.mxu0 %v7270
    %7291 = vmatpush.msra.mxu0 %v7269
    %7292 = vmatmul.f32.gmra.mxu0 %v7274
    %v7293 = vpop.f32.mrf.mxu0
    %v7294 = vadd.f32 0.0, %v7293
    %7295 = vdwg.mxu0
    %v7296 = vadd.f32 %v7267, %v7294
    %v7297 = vld [vmem:[#allocation6 + $0x19] sm:$0x1]
    %v7298 = vld [vmem:[%s7 + $0x200] sm:$0xff]
    %v7299 = vld [vmem:[%s7 + $0x208] sm:$0xff]
    %v7300 = vld [vmem:[%s7 + $0x210] sm:$0xff]
    %v7301 = vld [vmem:[%s7 + $0x218] sm:$0xff]
    %v7303 = vsel %vm6794, %v7297, 0
    %7305 = vmatpush.msra.mxu0 0.0
    %7306 = vmatpush.msra.mxu0 0.0
    %7307 = vmatpush.msra.mxu0 0.0
    %7308 = vmatpush.msra.mxu0 0.0
    %7309 = vmatpush.msra.mxu0 0.0
    %7310 = vmatpush.msra.mxu0 0.0
    %7311 = vmatpush.msra.mxu0 0.0
    %7312 = vmatpush.msra.mxu0 0.0
    %7313 = vmatpush.msra.mxu0 0.0
    %7314 = vmatpush.msra.mxu0 0.0
    %7315 = vmatpush.msra.mxu0 0.0
    %7316 = vmatpush.msra.mxu0 0.0
    %7317 = vmatpush.msra.mxu0 %v7301
    %7318 = vmatpush.msra.mxu0 %v7300
    %7319 = vmatpush.msra.mxu0 %v7299
    %7320 = vmatpush.msra.mxu0 %v7298
    %7321 = vmatmul.f32.gmra.mxu0 %v7303
    %v7322 = vpop.f32.mrf.mxu0
    %v7323 = vadd.f32 0.0, %v7322
    %7324 = vdwg.mxu0
    %v7325 = vadd.f32 %v7296, %v7323
    %v7326 = vld [vmem:[#allocation6 + $0x1a] sm:$0x1]
    %v7327 = vld [vmem:[%s7 + $0x220] sm:$0xff]
    %v7328 = vld [vmem:[%s7 + $0x228] sm:$0xff]
    %v7329 = vld [vmem:[%s7 + $0x230] sm:$0xff]
    %v7330 = vld [vmem:[%s7 + $0x238] sm:$0xff]
    %v7332 = vsel %vm6794, %v7326, 0
    %7334 = vmatpush.msra.mxu0 0.0
    %7335 = vmatpush.msra.mxu0 0.0
    %7336 = vmatpush.msra.mxu0 0.0
    %7337 = vmatpush.msra.mxu0 0.0
    %7338 = vmatpush.msra.mxu0 0.0
    %7339 = vmatpush.msra.mxu0 0.0
    %7340 = vmatpush.msra.mxu0 0.0
    %7341 = vmatpush.msra.mxu0 0.0
    %7342 = vmatpush.msra.mxu0 0.0
    %7343 = vmatpush.msra.mxu0 0.0
    %7344 = vmatpush.msra.mxu0 0.0
    %7345 = vmatpush.msra.mxu0 0.0
    %7346 = vmatpush.msra.mxu0 %v7330
    %7347 = vmatpush.msra.mxu0 %v7329
    %7348 = vmatpush.msra.mxu0 %v7328
    %7349 = vmatpush.msra.mxu0 %v7327
    %7350 = vmatmul.f32.gmra.mxu0 %v7332
    %v7351 = vpop.f32.mrf.mxu0
    %v7352 = vadd.f32 0.0, %v7351
    %7353 = vdwg.mxu0
    %v7354 = vadd.f32 %v7325, %v7352
    %v7355 = vld [vmem:[#allocation6 + $0x1b] sm:$0x1]
    %v7356 = vld [vmem:[%s7 + $0x240] sm:$0xff]
    %v7357 = vld [vmem:[%s7 + $0x248] sm:$0xff]
    %v7358 = vld [vmem:[%s7 + $0x250] sm:$0xff]
    %v7359 = vld [vmem:[%s7 + $0x258] sm:$0xff]
    %v7361 = vsel %vm6794, %v7355, 0
    %7363 = vmatpush.msra.mxu0 0.0
    %7364 = vmatpush.msra.mxu0 0.0
    %7365 = vmatpush.msra.mxu0 0.0
    %7366 = vmatpush.msra.mxu0 0.0
    %7367 = vmatpush.msra.mxu0 0.0
    %7368 = vmatpush.msra.mxu0 0.0
    %7369 = vmatpush.msra.mxu0 0.0
    %7370 = vmatpush.msra.mxu0 0.0
    %7371 = vmatpush.msra.mxu0 0.0
    %7372 = vmatpush.msra.mxu0 0.0
    %7373 = vmatpush.msra.mxu0 0.0
    %7374 = vmatpush.msra.mxu0 0.0
    %7375 = vmatpush.msra.mxu0 %v7359
    %7376 = vmatpush.msra.mxu0 %v7358
    %7377 = vmatpush.msra.mxu0 %v7357
    %7378 = vmatpush.msra.mxu0 %v7356
    %7379 = vmatmul.f32.gmra.mxu0 %v7361
    %v7380 = vpop.f32.mrf.mxu0
    %v7381 = vadd.f32 0.0, %v7380
    %7382 = vdwg.mxu0
    %v7383 = vadd.f32 %v7354, %v7381
    %v7384 = vld [vmem:[#allocation6 + $0x1c] sm:$0x1]
    %v7385 = vld [vmem:[%s7 + $0x260] sm:$0xff]
    %v7386 = vld [vmem:[%s7 + $0x268] sm:$0xff]
    %v7387 = vld [vmem:[%s7 + $0x270] sm:$0xff]
    %v7388 = vld [vmem:[%s7 + $0x278] sm:$0xff]
    %v7390 = vsel %vm6794, %v7384, 0
    %7392 = vmatpush.msra.mxu0 0.0
    %7393 = vmatpush.msra.mxu0 0.0
    %7394 = vmatpush.msra.mxu0 0.0
    %7395 = vmatpush.msra.mxu0 0.0
    %7396 = vmatpush.msra.mxu0 0.0
    %7397 = vmatpush.msra.mxu0 0.0
    %7398 = vmatpush.msra.mxu0 0.0
    %7399 = vmatpush.msra.mxu0 0.0
    %7400 = vmatpush.msra.mxu0 0.0
    %7401 = vmatpush.msra.mxu0 0.0
    %7402 = vmatpush.msra.mxu0 0.0
    %7403 = vmatpush.msra.mxu0 0.0
    %7404 = vmatpush.msra.mxu0 %v7388
    %7405 = vmatpush.msra.mxu0 %v7387
    %7406 = vmatpush.msra.mxu0 %v7386
    %7407 = vmatpush.msra.mxu0 %v7385
    %7408 = vmatmul.f32.gmra.mxu0 %v7390
    %v7409 = vpop.f32.mrf.mxu0
    %v7410 = vadd.f32 0.0, %v7409
    %7411 = vdwg.mxu0
    %v7412 = vadd.f32 %v7383, %v7410
    %v7413 = vld [vmem:[#allocation6 + $0x20] sm:$0x1]
    %v7414 = vld [vmem:[%s7 + $0x280] sm:$0xff]
    %v7415 = vld [vmem:[%s7 + $0x288] sm:$0xff]
    %v7416 = vld [vmem:[%s7 + $0x290] sm:$0xff]
    %v7417 = vld [vmem:[%s7 + $0x298] sm:$0xff]
    %v7419 = vsel %vm6794, %v7413, 0
    %7421 = vmatpush.msra.mxu0 0.0
    %7422 = vmatpush.msra.mxu0 0.0
    %7423 = vmatpush.msra.mxu0 0.0
    %7424 = vmatpush.msra.mxu0 0.0
    %7425 = vmatpush.msra.mxu0 0.0
    %7426 = vmatpush.msra.mxu0 0.0
    %7427 = vmatpush.msra.mxu0 0.0
    %7428 = vmatpush.msra.mxu0 0.0
    %7429 = vmatpush.msra.mxu0 0.0
    %7430 = vmatpush.msra.mxu0 0.0
    %7431 = vmatpush.msra.mxu0 0.0
    %7432 = vmatpush.msra.mxu0 0.0
    %7433 = vmatpush.msra.mxu0 %v7417
    %7434 = vmatpush.msra.mxu0 %v7416
    %7435 = vmatpush.msra.mxu0 %v7415
    %7436 = vmatpush.msra.mxu0 %v7414
    %7437 = vmatmul.f32.gmra.mxu0 %v7419
    %v7438 = vpop.f32.mrf.mxu0
    %v7439 = vadd.f32 0.0, %v7438
    %7440 = vdwg.mxu0
    %v7441 = vadd.f32 %v7412, %v7439
    %v7442 = vld [vmem:[#allocation6 + $0x21] sm:$0x1]
    %v7443 = vld [vmem:[%s7 + $0x2a0] sm:$0xff]
    %v7444 = vld [vmem:[%s7 + $0x2a8] sm:$0xff]
    %v7445 = vld [vmem:[%s7 + $0x2b0] sm:$0xff]
    %v7446 = vld [vmem:[%s7 + $0x2b8] sm:$0xff]
    %v7448 = vsel %vm6794, %v7442, 0
    %7450 = vmatpush.msra.mxu0 0.0
    %7451 = vmatpush.msra.mxu0 0.0
    %7452 = vmatpush.msra.mxu0 0.0
    %7453 = vmatpush.msra.mxu0 0.0
    %7454 = vmatpush.msra.mxu0 0.0
    %7455 = vmatpush.msra.mxu0 0.0
    %7456 = vmatpush.msra.mxu0 0.0
    %7457 = vmatpush.msra.mxu0 0.0
    %7458 = vmatpush.msra.mxu0 0.0
    %7459 = vmatpush.msra.mxu0 0.0
    %7460 = vmatpush.msra.mxu0 0.0
    %7461 = vmatpush.msra.mxu0 0.0
    %7462 = vmatpush.msra.mxu0 %v7446
    %7463 = vmatpush.msra.mxu0 %v7445
    %7464 = vmatpush.msra.mxu0 %v7444
    %7465 = vmatpush.msra.mxu0 %v7443
    %7466 = vmatmul.f32.gmra.mxu0 %v7448
    %v7467 = vpop.f32.mrf.mxu0
    %v7468 = vadd.f32 0.0, %v7467
    %7469 = vdwg.mxu0
    %v7470 = vadd.f32 %v7441, %v7468
    %v7471 = vld [vmem:[#allocation6 + $0x22] sm:$0x1]
    %v7472 = vld [vmem:[%s7 + $0x2c0] sm:$0xff]
    %v7473 = vld [vmem:[%s7 + $0x2c8] sm:$0xff]
    %v7474 = vld [vmem:[%s7 + $0x2d0] sm:$0xff]
    %v7475 = vld [vmem:[%s7 + $0x2d8] sm:$0xff]
    %v7477 = vsel %vm6794, %v7471, 0
    %7479 = vmatpush.msra.mxu0 0.0
    %7480 = vmatpush.msra.mxu0 0.0
    %7481 = vmatpush.msra.mxu0 0.0
    %7482 = vmatpush.msra.mxu0 0.0
    %7483 = vmatpush.msra.mxu0 0.0
    %7484 = vmatpush.msra.mxu0 0.0
    %7485 = vmatpush.msra.mxu0 0.0
    %7486 = vmatpush.msra.mxu0 0.0
    %7487 = vmatpush.msra.mxu0 0.0
    %7488 = vmatpush.msra.mxu0 0.0
    %7489 = vmatpush.msra.mxu0 0.0
    %7490 = vmatpush.msra.mxu0 0.0
    %7491 = vmatpush.msra.mxu0 %v7475
    %7492 = vmatpush.msra.mxu0 %v7474
    %7493 = vmatpush.msra.mxu0 %v7473
    %7494 = vmatpush.msra.mxu0 %v7472
    %7495 = vmatmul.f32.gmra.mxu0 %v7477
    %v7496 = vpop.f32.mrf.mxu0
    %v7497 = vadd.f32 0.0, %v7496
    %7498 = vdwg.mxu0
    %v7499 = vadd.f32 %v7470, %v7497
    %v7500 = vld [vmem:[#allocation6 + $0x23] sm:$0x1]
    %v7501 = vld [vmem:[%s7 + $0x2e0] sm:$0xff]
    %v7502 = vld [vmem:[%s7 + $0x2e8] sm:$0xff]
    %v7503 = vld [vmem:[%s7 + $0x2f0] sm:$0xff]
    %v7504 = vld [vmem:[%s7 + $0x2f8] sm:$0xff]
    %v7506 = vsel %vm6794, %v7500, 0
    %7508 = vmatpush.msra.mxu0 0.0
    %7509 = vmatpush.msra.mxu0 0.0
    %7510 = vmatpush.msra.mxu0 0.0
    %7511 = vmatpush.msra.mxu0 0.0
    %7512 = vmatpush.msra.mxu0 0.0
    %7513 = vmatpush.msra.mxu0 0.0
    %7514 = vmatpush.msra.mxu0 0.0
    %7515 = vmatpush.msra.mxu0 0.0
    %7516 = vmatpush.msra.mxu0 0.0
    %7517 = vmatpush.msra.mxu0 0.0
    %7518 = vmatpush.msra.mxu0 0.0
    %7519 = vmatpush.msra.mxu0 0.0
    %7520 = vmatpush.msra.mxu0 %v7504
    %7521 = vmatpush.msra.mxu0 %v7503
    %7522 = vmatpush.msra.mxu0 %v7502
    %7523 = vmatpush.msra.mxu0 %v7501
    %7524 = vmatmul.f32.gmra.mxu0 %v7506
    %v7525 = vpop.f32.mrf.mxu0
    %v7526 = vadd.f32 0.0, %v7525
    %7527 = vdwg.mxu0
    %v7528 = vadd.f32 %v7499, %v7526
    %v7529 = vld [vmem:[#allocation6 + $0x24] sm:$0x1]
    %v7530 = vld [vmem:[%s7 + $0x300] sm:$0xff]
    %v7531 = vld [vmem:[%s7 + $0x308] sm:$0xff]
    %v7532 = vld [vmem:[%s7 + $0x310] sm:$0xff]
    %v7533 = vld [vmem:[%s7 + $0x318] sm:$0xff]
    %v7535 = vsel %vm6794, %v7529, 0
    %7537 = vmatpush.msra.mxu0 0.0
    %7538 = vmatpush.msra.mxu0 0.0
    %7539 = vmatpush.msra.mxu0 0.0
    %7540 = vmatpush.msra.mxu0 0.0
    %7541 = vmatpush.msra.mxu0 0.0
    %7542 = vmatpush.msra.mxu0 0.0
    %7543 = vmatpush.msra.mxu0 0.0
    %7544 = vmatpush.msra.mxu0 0.0
    %7545 = vmatpush.msra.mxu0 0.0
    %7546 = vmatpush.msra.mxu0 0.0
    %7547 = vmatpush.msra.mxu0 0.0
    %7548 = vmatpush.msra.mxu0 0.0
    %7549 = vmatpush.msra.mxu0 %v7533
    %7550 = vmatpush.msra.mxu0 %v7532
    %7551 = vmatpush.msra.mxu0 %v7531
    %7552 = vmatpush.msra.mxu0 %v7530
    %7553 = vmatmul.f32.gmra.mxu0 %v7535
    %v7554 = vpop.f32.mrf.mxu0
    %v7555 = vadd.f32 0.0, %v7554
    %7556 = vdwg.mxu0
    %v7557 = vadd.f32 %v7528, %v7555
    %v7558 = vadd.f32 %v7557, %v6807
    %v7559 = vmax.f32 %v7558, 0.0
    %vm7560 = vcmask 883712
    %v7562 = vsel %vm7560, %v7559, 0
    %v7565 = vsel %vm1286, %v6823, 0
    %7567 = vmatpush.msra.mxu0 0.0
    %7568 = vmatpush.msra.mxu0 0.0
    %7569 = vmatpush.msra.mxu0 %v7565
    %7570 = vmatpush.msra.mxu0 %v6822
    %7571 = vmatpush.msra.mxu0 %v6821
    %7572 = vmatpush.msra.mxu0 %v6820
    %7573 = vmatpush.msra.mxu0 %v6819
    %7574 = vmatpush.msra.mxu0 %v6818
    %7575 = vmatpush.msra.mxu0 %v6817
    %7576 = vmatpush.msra.mxu0 %v6816
    %7577 = vmatpush.msra.mxu0 %v6815
    %7578 = vmatpush.msra.mxu0 %v6814
    %7579 = vmatpush.msra.mxu0 %v6813
    %7580 = vmatpush.msra.mxu0 %v6812
    %7581 = vmatpush.msra.mxu0 %v6811
    %7582 = vmatpush.msra.mxu0 %v6810
    %7583 = vmatmul.f32.gmra.mxu0 %v7562
    %v7584 = vpop.f32.mrf.mxu0
    %v7585 = vadd.f32 %v6808, %v7584
    %7586 = vdwg.mxu0
    %v7587 = vmax.f32 %v7585, 0.0
    %vm7588 = vcmask 687104
    %v7590 = vsel %vm7588, %v7587, 0
    %v7593 = vsel %vm1286, %v6834, 0
    %7595 = vmatpush.msra.mxu0 0.0
    %7596 = vmatpush.msra.mxu0 0.0
    %7597 = vmatpush.msra.mxu0 0.0
    %7598 = vmatpush.msra.mxu0 0.0
    %7599 = vmatpush.msra.mxu0 0.0
    %7600 = vmatpush.msra.mxu0 %v7593
    %7601 = vmatpush.msra.mxu0 %v6833
    %7602 = vmatpush.msra.mxu0 %v6832
    %7603 = vmatpush.msra.mxu0 %v6831
    %7604 = vmatpush.msra.mxu0 %v6830
    %7605 = vmatpush.msra.mxu0 %v6829
    %7606 = vmatpush.msra.mxu0 %v6828
    %7607 = vmatpush.msra.mxu0 %v6827
    %7608 = vmatpush.msra.mxu0 %v6826
    %7609 = vmatpush.msra.mxu0 %v6825
    %7610 = vmatpush.msra.mxu0 %v6824
    %7611 = vmatmul.f32.gmra.mxu0 %v7590
    %v7612 = vpop.f32.mrf.mxu0
    %v7613 = vadd.f32 %v6809, %v7612
    %7614 = vdwg.mxu0
    %v7615 = vmax.f32 %v7613, 0.0
    %vm7616 = vcmask 73728
    %7617 = vst.msk [vmem:[#allocation7] sm:$0x1] %vm7616, %v7615
    %v7618 = vld [vmem:[#allocation6 + $0x30] sm:$0x1]
    %v7619 = vld [vmem:[%s7] sm:$0xff]
    %v7620 = vld [vmem:[%s7 + $0x8] sm:$0xff]
    %v7621 = vld [vmem:[%s7 + $0x10] sm:$0xff]
    %v7622 = vld [vmem:[%s7 + $0x18] sm:$0xff]
    %v7623 = vld [vmem:[#allocation6 + $0x31] sm:$0x1]
    %v7624 = vld [vmem:[%s7 + $0x20] sm:$0xff]
    %v7625 = vld [vmem:[%s7 + $0x28] sm:$0xff]
    %v7626 = vld [vmem:[%s7 + $0x30] sm:$0xff]
    %v7627 = vld [vmem:[%s7 + $0x38] sm:$0xff]
    %v7629 = vsel %vm6794, %v7623, 0
    %7631 = vmatpush.msra.mxu0 0.0
    %7632 = vmatpush.msra.mxu0 0.0
    %7633 = vmatpush.msra.mxu0 0.0
    %7634 = vmatpush.msra.mxu0 0.0
    %7635 = vmatpush.msra.mxu0 0.0
    %7636 = vmatpush.msra.mxu0 0.0
    %7637 = vmatpush.msra.mxu0 0.0
    %7638 = vmatpush.msra.mxu0 0.0
    %7639 = vmatpush.msra.mxu0 0.0
    %7640 = vmatpush.msra.mxu0 0.0
    %7641 = vmatpush.msra.mxu0 0.0
    %7642 = vmatpush.msra.mxu0 0.0
    %7643 = vmatpush.msra.mxu0 %v7627
    %7644 = vmatpush.msra.mxu0 %v7626
    %7645 = vmatpush.msra.mxu0 %v7625
    %7646 = vmatpush.msra.mxu0 %v7624
    %7647 = vmatmul.f32.gmra.mxu0 %v7629
    %v7648 = vpop.f32.mrf.mxu0
    %v7649 = vadd.f32 0.0, %v7648
    %7650 = vdwg.mxu0
    %v7652 = vsel %vm6794, %v7618, 0
    %7654 = vmatpush.msra.mxu0 0.0
    %7655 = vmatpush.msra.mxu0 0.0
    %7656 = vmatpush.msra.mxu0 0.0
    %7657 = vmatpush.msra.mxu0 0.0
    %7658 = vmatpush.msra.mxu0 0.0
    %7659 = vmatpush.msra.mxu0 0.0
    %7660 = vmatpush.msra.mxu0 0.0
    %7661 = vmatpush.msra.mxu0 0.0
    %7662 = vmatpush.msra.mxu0 0.0
    %7663 = vmatpush.msra.mxu0 0.0
    %7664 = vmatpush.msra.mxu0 0.0
    %7665 = vmatpush.msra.mxu0 0.0
    %7666 = vmatpush.msra.mxu0 %v7622
    %7667 = vmatpush.msra.mxu0 %v7621
    %7668 = vmatpush.msra.mxu0 %v7620
    %7669 = vmatpush.msra.mxu0 %v7619
    %7670 = vmatmul.f32.gmra.mxu0 %v7652
    %v7671 = vpop.f32.mrf.mxu0
    %v7672 = vadd.f32 %v7649, %v7671
    %7673 = vdwg.mxu0
    %v7674 = vld [vmem:[#allocation6 + $0x32] sm:$0x1]
    %v7675 = vld [vmem:[%s7 + $0x40] sm:$0xff]
    %v7676 = vld [vmem:[%s7 + $0x48] sm:$0xff]
    %v7677 = vld [vmem:[%s7 + $0x50] sm:$0xff]
    %v7678 = vld [vmem:[%s7 + $0x58] sm:$0xff]
    %v7680 = vsel %vm6794, %v7674, 0
    %7682 = vmatpush.msra.mxu0 0.0
    %7683 = vmatpush.msra.mxu0 0.0
    %7684 = vmatpush.msra.mxu0 0.0
    %7685 = vmatpush.msra.mxu0 0.0
    %7686 = vmatpush.msra.mxu0 0.0
    %7687 = vmatpush.msra.mxu0 0.0
    %7688 = vmatpush.msra.mxu0 0.0
    %7689 = vmatpush.msra.mxu0 0.0
    %7690 = vmatpush.msra.mxu0 0.0
    %7691 = vmatpush.msra.mxu0 0.0
    %7692 = vmatpush.msra.mxu0 0.0
    %7693 = vmatpush.msra.mxu0 0.0
    %7694 = vmatpush.msra.mxu0 %v7678
    %7695 = vmatpush.msra.mxu0 %v7677
    %7696 = vmatpush.msra.mxu0 %v7676
    %7697 = vmatpush.msra.mxu0 %v7675
    %7698 = vmatmul.f32.gmra.mxu0 %v7680
    %v7699 = vpop.f32.mrf.mxu0
    %v7700 = vadd.f32 0.0, %v7699
    %7701 = vdwg.mxu0
    %v7702 = vadd.f32 %v7672, %v7700
    %v7703 = vld [vmem:[#allocation6 + $0x33] sm:$0x1]
    %v7704 = vld [vmem:[%s7 + $0x60] sm:$0xff]
    %v7705 = vld [vmem:[%s7 + $0x68] sm:$0xff]
    %v7706 = vld [vmem:[%s7 + $0x70] sm:$0xff]
    %v7707 = vld [vmem:[%s7 + $0x78] sm:$0xff]
    %v7709 = vsel %vm6794, %v7703, 0
    %7711 = vmatpush.msra.mxu0 0.0
    %7712 = vmatpush.msra.mxu0 0.0
    %7713 = vmatpush.msra.mxu0 0.0
    %7714 = vmatpush.msra.mxu0 0.0
    %7715 = vmatpush.msra.mxu0 0.0
    %7716 = vmatpush.msra.mxu0 0.0
    %7717 = vmatpush.msra.mxu0 0.0
    %7718 = vmatpush.msra.mxu0 0.0
    %7719 = vmatpush.msra.mxu0 0.0
    %7720 = vmatpush.msra.mxu0 0.0
    %7721 = vmatpush.msra.mxu0 0.0
    %7722 = vmatpush.msra.mxu0 0.0
    %7723 = vmatpush.msra.mxu0 %v7707
    %7724 = vmatpush.msra.mxu0 %v7706
    %7725 = vmatpush.msra.mxu0 %v7705
    %7726 = vmatpush.msra.mxu0 %v7704
    %7727 = vmatmul.f32.gmra.mxu0 %v7709
    %v7728 = vpop.f32.mrf.mxu0
    %v7729 = vadd.f32 0.0, %v7728
    %7730 = vdwg.mxu0
    %v7731 = vadd.f32 %v7702, %v7729
    %v7732 = vld [vmem:[#allocation6 + $0x34] sm:$0x1]
    %v7733 = vld [vmem:[%s7 + $0x80] sm:$0xff]
    %v7734 = vld [vmem:[%s7 + $0x88] sm:$0xff]
    %v7735 = vld [vmem:[%s7 + $0x90] sm:$0xff]
    %v7736 = vld [vmem:[%s7 + $0x98] sm:$0xff]
    %v7738 = vsel %vm6794, %v7732, 0
    %7740 = vmatpush.msra.mxu0 0.0
    %7741 = vmatpush.msra.mxu0 0.0
    %7742 = vmatpush.msra.mxu0 0.0
    %7743 = vmatpush.msra.mxu0 0.0
    %7744 = vmatpush.msra.mxu0 0.0
    %7745 = vmatpush.msra.mxu0 0.0
    %7746 = vmatpush.msra.mxu0 0.0
    %7747 = vmatpush.msra.mxu0 0.0
    %7748 = vmatpush.msra.mxu0 0.0
    %7749 = vmatpush.msra.mxu0 0.0
    %7750 = vmatpush.msra.mxu0 0.0
    %7751 = vmatpush.msra.mxu0 0.0
    %7752 = vmatpush.msra.mxu0 %v7736
    %7753 = vmatpush.msra.mxu0 %v7735
    %7754 = vmatpush.msra.mxu0 %v7734
    %7755 = vmatpush.msra.mxu0 %v7733
    %7756 = vmatmul.f32.gmra.mxu0 %v7738
    %v7757 = vpop.f32.mrf.mxu0
    %v7758 = vadd.f32 0.0, %v7757
    %7759 = vdwg.mxu0
    %v7760 = vadd.f32 %v7731, %v7758
    %v7761 = vld [vmem:[#allocation6 + $0x38] sm:$0x1]
    %v7762 = vld [vmem:[%s7 + $0xa0] sm:$0xff]
    %v7763 = vld [vmem:[%s7 + $0xa8] sm:$0xff]
    %v7764 = vld [vmem:[%s7 + $0xb0] sm:$0xff]
    %v7765 = vld [vmem:[%s7 + $0xb8] sm:$0xff]
    %v7767 = vsel %vm6794, %v7761, 0
    %7769 = vmatpush.msra.mxu0 0.0
    %7770 = vmatpush.msra.mxu0 0.0
    %7771 = vmatpush.msra.mxu0 0.0
    %7772 = vmatpush.msra.mxu0 0.0
    %7773 = vmatpush.msra.mxu0 0.0
    %7774 = vmatpush.msra.mxu0 0.0
    %7775 = vmatpush.msra.mxu0 0.0
    %7776 = vmatpush.msra.mxu0 0.0
    %7777 = vmatpush.msra.mxu0 0.0
    %7778 = vmatpush.msra.mxu0 0.0
    %7779 = vmatpush.msra.mxu0 0.0
    %7780 = vmatpush.msra.mxu0 0.0
    %7781 = vmatpush.msra.mxu0 %v7765
    %7782 = vmatpush.msra.mxu0 %v7764
    %7783 = vmatpush.msra.mxu0 %v7763
    %7784 = vmatpush.msra.mxu0 %v7762
    %7785 = vmatmul.f32.gmra.mxu0 %v7767
    %v7786 = vpop.f32.mrf.mxu0
    %v7787 = vadd.f32 0.0, %v7786
    %7788 = vdwg.mxu0
    %v7789 = vadd.f32 %v7760, %v7787
    %v7790 = vld [vmem:[#allocation6 + $0x39] sm:$0x1]
    %v7791 = vld [vmem:[%s7 + $0xc0] sm:$0xff]
    %v7792 = vld [vmem:[%s7 + $0xc8] sm:$0xff]
    %v7793 = vld [vmem:[%s7 + $0xd0] sm:$0xff]
    %v7794 = vld [vmem:[%s7 + $0xd8] sm:$0xff]
    %v7796 = vsel %vm6794, %v7790, 0
    %7798 = vmatpush.msra.mxu0 0.0
    %7799 = vmatpush.msra.mxu0 0.0
    %7800 = vmatpush.msra.mxu0 0.0
    %7801 = vmatpush.msra.mxu0 0.0
    %7802 = vmatpush.msra.mxu0 0.0
    %7803 = vmatpush.msra.mxu0 0.0
    %7804 = vmatpush.msra.mxu0 0.0
    %7805 = vmatpush.msra.mxu0 0.0
    %7806 = vmatpush.msra.mxu0 0.0
    %7807 = vmatpush.msra.mxu0 0.0
    %7808 = vmatpush.msra.mxu0 0.0
    %7809 = vmatpush.msra.mxu0 0.0
    %7810 = vmatpush.msra.mxu0 %v7794
    %7811 = vmatpush.msra.mxu0 %v7793
    %7812 = vmatpush.msra.mxu0 %v7792
    %7813 = vmatpush.msra.mxu0 %v7791
    %7814 = vmatmul.f32.gmra.mxu0 %v7796
    %v7815 = vpop.f32.mrf.mxu0
    %v7816 = vadd.f32 0.0, %v7815
    %7817 = vdwg.mxu0
    %v7818 = vadd.f32 %v7789, %v7816
    %v7819 = vld [vmem:[#allocation6 + $0x3a] sm:$0x1]
    %v7820 = vld [vmem:[%s7 + $0xe0] sm:$0xff]
    %v7821 = vld [vmem:[%s7 + $0xe8] sm:$0xff]
    %v7822 = vld [vmem:[%s7 + $0xf0] sm:$0xff]
    %v7823 = vld [vmem:[%s7 + $0xf8] sm:$0xff]
    %v7825 = vsel %vm6794, %v7819, 0
    %7827 = vmatpush.msra.mxu0 0.0
    %7828 = vmatpush.msra.mxu0 0.0
    %7829 = vmatpush.msra.mxu0 0.0
    %7830 = vmatpush.msra.mxu0 0.0
    %7831 = vmatpush.msra.mxu0 0.0
    %7832 = vmatpush.msra.mxu0 0.0
    %7833 = vmatpush.msra.mxu0 0.0
    %7834 = vmatpush.msra.mxu0 0.0
    %7835 = vmatpush.msra.mxu0 0.0
    %7836 = vmatpush.msra.mxu0 0.0
    %7837 = vmatpush.msra.mxu0 0.0
    %7838 = vmatpush.msra.mxu0 0.0
    %7839 = vmatpush.msra.mxu0 %v7823
    %7840 = vmatpush.msra.mxu0 %v7822
    %7841 = vmatpush.msra.mxu0 %v7821
    %7842 = vmatpush.msra.mxu0 %v7820
    %7843 = vmatmul.f32.gmra.mxu0 %v7825
    %v7844 = vpop.f32.mrf.mxu0
    %v7845 = vadd.f32 0.0, %v7844
    %7846 = vdwg.mxu0
    %v7847 = vadd.f32 %v7818, %v7845
    %v7848 = vld [vmem:[#allocation6 + $0x3b] sm:$0x1]
    %v7849 = vld [vmem:[%s7 + $0x100] sm:$0xff]
    %v7850 = vld [vmem:[%s7 + $0x108] sm:$0xff]
    %v7851 = vld [vmem:[%s7 + $0x110] sm:$0xff]
    %v7852 = vld [vmem:[%s7 + $0x118] sm:$0xff]
    %v7854 = vsel %vm6794, %v7848, 0
    %7856 = vmatpush.msra.mxu0 0.0
    %7857 = vmatpush.msra.mxu0 0.0
    %7858 = vmatpush.msra.mxu0 0.0
    %7859 = vmatpush.msra.mxu0 0.0
    %7860 = vmatpush.msra.mxu0 0.0
    %7861 = vmatpush.msra.mxu0 0.0
    %7862 = vmatpush.msra.mxu0 0.0
    %7863 = vmatpush.msra.mxu0 0.0
    %7864 = vmatpush.msra.mxu0 0.0
    %7865 = vmatpush.msra.mxu0 0.0
    %7866 = vmatpush.msra.mxu0 0.0
    %7867 = vmatpush.msra.mxu0 0.0
    %7868 = vmatpush.msra.mxu0 %v7852
    %7869 = vmatpush.msra.mxu0 %v7851
    %7870 = vmatpush.msra.mxu0 %v7850
    %7871 = vmatpush.msra.mxu0 %v7849
    %7872 = vmatmul.f32.gmra.mxu0 %v7854
    %v7873 = vpop.f32.mrf.mxu0
    %v7874 = vadd.f32 0.0, %v7873
    %7875 = vdwg.mxu0
    %v7876 = vadd.f32 %v7847, %v7874
    %v7877 = vld [vmem:[#allocation6 + $0x3c] sm:$0x1]
    %v7878 = vld [vmem:[%s7 + $0x120] sm:$0xff]
    %v7879 = vld [vmem:[%s7 + $0x128] sm:$0xff]
    %v7880 = vld [vmem:[%s7 + $0x130] sm:$0xff]
    %v7881 = vld [vmem:[%s7 + $0x138] sm:$0xff]
    %v7883 = vsel %vm6794, %v7877, 0
    %7885 = vmatpush.msra.mxu0 0.0
    %7886 = vmatpush.msra.mxu0 0.0
    %7887 = vmatpush.msra.mxu0 0.0
    %7888 = vmatpush.msra.mxu0 0.0
    %7889 = vmatpush.msra.mxu0 0.0
    %7890 = vmatpush.msra.mxu0 0.0
    %7891 = vmatpush.msra.mxu0 0.0
    %7892 = vmatpush.msra.mxu0 0.0
    %7893 = vmatpush.msra.mxu0 0.0
    %7894 = vmatpush.msra.mxu0 0.0
    %7895 = vmatpush.msra.mxu0 0.0
    %7896 = vmatpush.msra.mxu0 0.0
    %7897 = vmatpush.msra.mxu0 %v7881
    %7898 = vmatpush.msra.mxu0 %v7880
    %7899 = vmatpush.msra.mxu0 %v7879
    %7900 = vmatpush.msra.mxu0 %v7878
    %7901 = vmatmul.f32.gmra.mxu0 %v7883
    %v7902 = vpop.f32.mrf.mxu0
    %v7903 = vadd.f32 0.0, %v7902
    %7904 = vdwg.mxu0
    %v7905 = vadd.f32 %v7876, %v7903
    %v7906 = vld [vmem:[#allocation6 + $0x40] sm:$0x1]
    %v7907 = vld [vmem:[%s7 + $0x140] sm:$0xff]
    %v7908 = vld [vmem:[%s7 + $0x148] sm:$0xff]
    %v7909 = vld [vmem:[%s7 + $0x150] sm:$0xff]
    %v7910 = vld [vmem:[%s7 + $0x158] sm:$0xff]
    %v7912 = vsel %vm6794, %v7906, 0
    %7914 = vmatpush.msra.mxu0 0.0
    %7915 = vmatpush.msra.mxu0 0.0
    %7916 = vmatpush.msra.mxu0 0.0
    %7917 = vmatpush.msra.mxu0 0.0
    %7918 = vmatpush.msra.mxu0 0.0
    %7919 = vmatpush.msra.mxu0 0.0
    %7920 = vmatpush.msra.mxu0 0.0
    %7921 = vmatpush.msra.mxu0 0.0
    %7922 = vmatpush.msra.mxu0 0.0
    %7923 = vmatpush.msra.mxu0 0.0
    %7924 = vmatpush.msra.mxu0 0.0
    %7925 = vmatpush.msra.mxu0 0.0
    %7926 = vmatpush.msra.mxu0 %v7910
    %7927 = vmatpush.msra.mxu0 %v7909
    %7928 = vmatpush.msra.mxu0 %v7908
    %7929 = vmatpush.msra.mxu0 %v7907
    %7930 = vmatmul.f32.gmra.mxu0 %v7912
    %v7931 = vpop.f32.mrf.mxu0
    %v7932 = vadd.f32 0.0, %v7931
    %7933 = vdwg.mxu0
    %v7934 = vadd.f32 %v7905, %v7932
    %v7935 = vld [vmem:[#allocation6 + $0x41] sm:$0x1]
    %v7936 = vld [vmem:[%s7 + $0x160] sm:$0xff]
    %v7937 = vld [vmem:[%s7 + $0x168] sm:$0xff]
    %v7938 = vld [vmem:[%s7 + $0x170] sm:$0xff]
    %v7939 = vld [vmem:[%s7 + $0x178] sm:$0xff]
    %v7941 = vsel %vm6794, %v7935, 0
    %7943 = vmatpush.msra.mxu0 0.0
    %7944 = vmatpush.msra.mxu0 0.0
    %7945 = vmatpush.msra.mxu0 0.0
    %7946 = vmatpush.msra.mxu0 0.0
    %7947 = vmatpush.msra.mxu0 0.0
    %7948 = vmatpush.msra.mxu0 0.0
    %7949 = vmatpush.msra.mxu0 0.0
    %7950 = vmatpush.msra.mxu0 0.0
    %7951 = vmatpush.msra.mxu0 0.0
    %7952 = vmatpush.msra.mxu0 0.0
    %7953 = vmatpush.msra.mxu0 0.0
    %7954 = vmatpush.msra.mxu0 0.0
    %7955 = vmatpush.msra.mxu0 %v7939
    %7956 = vmatpush.msra.mxu0 %v7938
    %7957 = vmatpush.msra.mxu0 %v7937
    %7958 = vmatpush.msra.mxu0 %v7936
    %7959 = vmatmul.f32.gmra.mxu0 %v7941
    %v7960 = vpop.f32.mrf.mxu0
    %v7961 = vadd.f32 0.0, %v7960
    %7962 = vdwg.mxu0
    %v7963 = vadd.f32 %v7934, %v7961
    %v7964 = vld [vmem:[#allocation6 + $0x42] sm:$0x1]
    %v7965 = vld [vmem:[%s7 + $0x180] sm:$0xff]
    %v7966 = vld [vmem:[%s7 + $0x188] sm:$0xff]
    %v7967 = vld [vmem:[%s7 + $0x190] sm:$0xff]
    %v7968 = vld [vmem:[%s7 + $0x198] sm:$0xff]
    %v7970 = vsel %vm6794, %v7964, 0
    %7972 = vmatpush.msra.mxu0 0.0
    %7973 = vmatpush.msra.mxu0 0.0
    %7974 = vmatpush.msra.mxu0 0.0
    %7975 = vmatpush.msra.mxu0 0.0
    %7976 = vmatpush.msra.mxu0 0.0
    %7977 = vmatpush.msra.mxu0 0.0
    %7978 = vmatpush.msra.mxu0 0.0
    %7979 = vmatpush.msra.mxu0 0.0
    %7980 = vmatpush.msra.mxu0 0.0
    %7981 = vmatpush.msra.mxu0 0.0
    %7982 = vmatpush.msra.mxu0 0.0
    %7983 = vmatpush.msra.mxu0 0.0
    %7984 = vmatpush.msra.mxu0 %v7968
    %7985 = vmatpush.msra.mxu0 %v7967
    %7986 = vmatpush.msra.mxu0 %v7966
    %7987 = vmatpush.msra.mxu0 %v7965
    %7988 = vmatmul.f32.gmra.mxu0 %v7970
    %v7989 = vpop.f32.mrf.mxu0
    %v7990 = vadd.f32 0.0, %v7989
    %7991 = vdwg.mxu0
    %v7992 = vadd.f32 %v7963, %v7990
    %v7993 = vld [vmem:[#allocation6 + $0x43] sm:$0x1]
    %v7994 = vld [vmem:[%s7 + $0x1a0] sm:$0xff]
    %v7995 = vld [vmem:[%s7 + $0x1a8] sm:$0xff]
    %v7996 = vld [vmem:[%s7 + $0x1b0] sm:$0xff]
    %v7997 = vld [vmem:[%s7 + $0x1b8] sm:$0xff]
    %v7999 = vsel %vm6794, %v7993, 0
    %8001 = vmatpush.msra.mxu0 0.0
    %8002 = vmatpush.msra.mxu0 0.0
    %8003 = vmatpush.msra.mxu0 0.0
    %8004 = vmatpush.msra.mxu0 0.0
    %8005 = vmatpush.msra.mxu0 0.0
    %8006 = vmatpush.msra.mxu0 0.0
    %8007 = vmatpush.msra.mxu0 0.0
    %8008 = vmatpush.msra.mxu0 0.0
    %8009 = vmatpush.msra.mxu0 0.0
    %8010 = vmatpush.msra.mxu0 0.0
    %8011 = vmatpush.msra.mxu0 0.0
    %8012 = vmatpush.msra.mxu0 0.0
    %8013 = vmatpush.msra.mxu0 %v7997
    %8014 = vmatpush.msra.mxu0 %v7996
    %8015 = vmatpush.msra.mxu0 %v7995
    %8016 = vmatpush.msra.mxu0 %v7994
    %8017 = vmatmul.f32.gmra.mxu0 %v7999
    %v8018 = vpop.f32.mrf.mxu0
    %v8019 = vadd.f32 0.0, %v8018
    %8020 = vdwg.mxu0
    %v8021 = vadd.f32 %v7992, %v8019
    %v8022 = vld [vmem:[#allocation6 + $0x44] sm:$0x1]
    %v8023 = vld [vmem:[%s7 + $0x1c0] sm:$0xff]
    %v8024 = vld [vmem:[%s7 + $0x1c8] sm:$0xff]
    %v8025 = vld [vmem:[%s7 + $0x1d0] sm:$0xff]
    %v8026 = vld [vmem:[%s7 + $0x1d8] sm:$0xff]
    %v8028 = vsel %vm6794, %v8022, 0
    %8030 = vmatpush.msra.mxu0 0.0
    %8031 = vmatpush.msra.mxu0 0.0
    %8032 = vmatpush.msra.mxu0 0.0
    %8033 = vmatpush.msra.mxu0 0.0
    %8034 = vmatpush.msra.mxu0 0.0
    %8035 = vmatpush.msra.mxu0 0.0
    %8036 = vmatpush.msra.mxu0 0.0
    %8037 = vmatpush.msra.mxu0 0.0
    %8038 = vmatpush.msra.mxu0 0.0
    %8039 = vmatpush.msra.mxu0 0.0
    %8040 = vmatpush.msra.mxu0 0.0
    %8041 = vmatpush.msra.mxu0 0.0
    %8042 = vmatpush.msra.mxu0 %v8026
    %8043 = vmatpush.msra.mxu0 %v8025
    %8044 = vmatpush.msra.mxu0 %v8024
    %8045 = vmatpush.msra.mxu0 %v8023
    %8046 = vmatmul.f32.gmra.mxu0 %v8028
    %v8047 = vpop.f32.mrf.mxu0
    %v8048 = vadd.f32 0.0, %v8047
    %8049 = vdwg.mxu0
    %v8050 = vadd.f32 %v8021, %v8048
    %v8051 = vld [vmem:[#allocation6 + $0x48] sm:$0x1]
    %v8052 = vld [vmem:[%s7 + $0x1e0] sm:$0xff]
    %v8053 = vld [vmem:[%s7 + $0x1e8] sm:$0xff]
    %v8054 = vld [vmem:[%s7 + $0x1f0] sm:$0xff]
    %v8055 = vld [vmem:[%s7 + $0x1f8] sm:$0xff]
    %v8057 = vsel %vm6794, %v8051, 0
    %8059 = vmatpush.msra.mxu0 0.0
    %8060 = vmatpush.msra.mxu0 0.0
    %8061 = vmatpush.msra.mxu0 0.0
    %8062 = vmatpush.msra.mxu0 0.0
    %8063 = vmatpush.msra.mxu0 0.0
    %8064 = vmatpush.msra.mxu0 0.0
    %8065 = vmatpush.msra.mxu0 0.0
    %8066 = vmatpush.msra.mxu0 0.0
    %8067 = vmatpush.msra.mxu0 0.0
    %8068 = vmatpush.msra.mxu0 0.0
    %8069 = vmatpush.msra.mxu0 0.0
    %8070 = vmatpush.msra.mxu0 0.0
    %8071 = vmatpush.msra.mxu0 %v8055
    %8072 = vmatpush.msra.mxu0 %v8054
    %8073 = vmatpush.msra.mxu0 %v8053
    %8074 = vmatpush.msra.mxu0 %v8052
    %8075 = vmatmul.f32.gmra.mxu0 %v8057
    %v8076 = vpop.f32.mrf.mxu0
    %v8077 = vadd.f32 0.0, %v8076
    %8078 = vdwg.mxu0
    %v8079 = vadd.f32 %v8050, %v8077
    %v8080 = vld [vmem:[#allocation6 + $0x49] sm:$0x1]
    %v8081 = vld [vmem:[%s7 + $0x200] sm:$0xff]
    %v8082 = vld [vmem:[%s7 + $0x208] sm:$0xff]
    %v8083 = vld [vmem:[%s7 + $0x210] sm:$0xff]
    %v8084 = vld [vmem:[%s7 + $0x218] sm:$0xff]
    %v8086 = vsel %vm6794, %v8080, 0
    %8088 = vmatpush.msra.mxu0 0.0
    %8089 = vmatpush.msra.mxu0 0.0
    %8090 = vmatpush.msra.mxu0 0.0
    %8091 = vmatpush.msra.mxu0 0.0
    %8092 = vmatpush.msra.mxu0 0.0
    %8093 = vmatpush.msra.mxu0 0.0
    %8094 = vmatpush.msra.mxu0 0.0
    %8095 = vmatpush.msra.mxu0 0.0
    %8096 = vmatpush.msra.mxu0 0.0
    %8097 = vmatpush.msra.mxu0 0.0
    %8098 = vmatpush.msra.mxu0 0.0
    %8099 = vmatpush.msra.mxu0 0.0
    %8100 = vmatpush.msra.mxu0 %v8084
    %8101 = vmatpush.msra.mxu0 %v8083
    %8102 = vmatpush.msra.mxu0 %v8082
    %8103 = vmatpush.msra.mxu0 %v8081
    %8104 = vmatmul.f32.gmra.mxu0 %v8086
    %v8105 = vpop.f32.mrf.mxu0
    %v8106 = vadd.f32 0.0, %v8105
    %8107 = vdwg.mxu0
    %v8108 = vadd.f32 %v8079, %v8106
    %v8109 = vld [vmem:[#allocation6 + $0x4a] sm:$0x1]
    %v8110 = vld [vmem:[%s7 + $0x220] sm:$0xff]
    %v8111 = vld [vmem:[%s7 + $0x228] sm:$0xff]
    %v8112 = vld [vmem:[%s7 + $0x230] sm:$0xff]
    %v8113 = vld [vmem:[%s7 + $0x238] sm:$0xff]
    %v8115 = vsel %vm6794, %v8109, 0
    %8117 = vmatpush.msra.mxu0 0.0
    %8118 = vmatpush.msra.mxu0 0.0
    %8119 = vmatpush.msra.mxu0 0.0
    %8120 = vmatpush.msra.mxu0 0.0
    %8121 = vmatpush.msra.mxu0 0.0
    %8122 = vmatpush.msra.mxu0 0.0
    %8123 = vmatpush.msra.mxu0 0.0
    %8124 = vmatpush.msra.mxu0 0.0
    %8125 = vmatpush.msra.mxu0 0.0
    %8126 = vmatpush.msra.mxu0 0.0
    %8127 = vmatpush.msra.mxu0 0.0
    %8128 = vmatpush.msra.mxu0 0.0
    %8129 = vmatpush.msra.mxu0 %v8113
    %8130 = vmatpush.msra.mxu0 %v8112
    %8131 = vmatpush.msra.mxu0 %v8111
    %8132 = vmatpush.msra.mxu0 %v8110
    %8133 = vmatmul.f32.gmra.mxu0 %v8115
    %v8134 = vpop.f32.mrf.mxu0
    %v8135 = vadd.f32 0.0, %v8134
    %8136 = vdwg.mxu0
    %v8137 = vadd.f32 %v8108, %v8135
    %v8138 = vld [vmem:[#allocation6 + $0x4b] sm:$0x1]
    %v8139 = vld [vmem:[%s7 + $0x240] sm:$0xff]
    %v8140 = vld [vmem:[%s7 + $0x248] sm:$0xff]
    %v8141 = vld [vmem:[%s7 + $0x250] sm:$0xff]
    %v8142 = vld [vmem:[%s7 + $0x258] sm:$0xff]
    %v8144 = vsel %vm6794, %v8138, 0
    %8146 = vmatpush.msra.mxu0 0.0
    %8147 = vmatpush.msra.mxu0 0.0
    %8148 = vmatpush.msra.mxu0 0.0
    %8149 = vmatpush.msra.mxu0 0.0
    %8150 = vmatpush.msra.mxu0 0.0
    %8151 = vmatpush.msra.mxu0 0.0
    %8152 = vmatpush.msra.mxu0 0.0
    %8153 = vmatpush.msra.mxu0 0.0
    %8154 = vmatpush.msra.mxu0 0.0
    %8155 = vmatpush.msra.mxu0 0.0
    %8156 = vmatpush.msra.mxu0 0.0
    %8157 = vmatpush.msra.mxu0 0.0
    %8158 = vmatpush.msra.mxu0 %v8142
    %8159 = vmatpush.msra.mxu0 %v8141
    %8160 = vmatpush.msra.mxu0 %v8140
    %8161 = vmatpush.msra.mxu0 %v8139
    %8162 = vmatmul.f32.gmra.mxu0 %v8144
    %v8163 = vpop.f32.mrf.mxu0
    %v8164 = vadd.f32 0.0, %v8163
    %8165 = vdwg.mxu0
    %v8166 = vadd.f32 %v8137, %v8164
    %v8167 = vld [vmem:[#allocation6 + $0x4c] sm:$0x1]
    %v8168 = vld [vmem:[%s7 + $0x260] sm:$0xff]
    %v8169 = vld [vmem:[%s7 + $0x268] sm:$0xff]
    %v8170 = vld [vmem:[%s7 + $0x270] sm:$0xff]
    %v8171 = vld [vmem:[%s7 + $0x278] sm:$0xff]
    %v8173 = vsel %vm6794, %v8167, 0
    %8175 = vmatpush.msra.mxu0 0.0
    %8176 = vmatpush.msra.mxu0 0.0
    %8177 = vmatpush.msra.mxu0 0.0
    %8178 = vmatpush.msra.mxu0 0.0
    %8179 = vmatpush.msra.mxu0 0.0
    %8180 = vmatpush.msra.mxu0 0.0
    %8181 = vmatpush.msra.mxu0 0.0
    %8182 = vmatpush.msra.mxu0 0.0
    %8183 = vmatpush.msra.mxu0 0.0
    %8184 = vmatpush.msra.mxu0 0.0
    %8185 = vmatpush.msra.mxu0 0.0
    %8186 = vmatpush.msra.mxu0 0.0
    %8187 = vmatpush.msra.mxu0 %v8171
    %8188 = vmatpush.msra.mxu0 %v8170
    %8189 = vmatpush.msra.mxu0 %v8169
    %8190 = vmatpush.msra.mxu0 %v8168
    %8191 = vmatmul.f32.gmra.mxu0 %v8173
    %v8192 = vpop.f32.mrf.mxu0
    %v8193 = vadd.f32 0.0, %v8192
    %8194 = vdwg.mxu0
    %v8195 = vadd.f32 %v8166, %v8193
    %v8196 = vld [vmem:[#allocation6 + $0x50] sm:$0x1]
    %v8197 = vld [vmem:[%s7 + $0x280] sm:$0xff]
    %v8198 = vld [vmem:[%s7 + $0x288] sm:$0xff]
    %v8199 = vld [vmem:[%s7 + $0x290] sm:$0xff]
    %v8200 = vld [vmem:[%s7 + $0x298] sm:$0xff]
    %v8202 = vsel %vm6794, %v8196, 0
    %8204 = vmatpush.msra.mxu0 0.0
    %8205 = vmatpush.msra.mxu0 0.0
    %8206 = vmatpush.msra.mxu0 0.0
    %8207 = vmatpush.msra.mxu0 0.0
    %8208 = vmatpush.msra.mxu0 0.0
    %8209 = vmatpush.msra.mxu0 0.0
    %8210 = vmatpush.msra.mxu0 0.0
    %8211 = vmatpush.msra.mxu0 0.0
    %8212 = vmatpush.msra.mxu0 0.0
    %8213 = vmatpush.msra.mxu0 0.0
    %8214 = vmatpush.msra.mxu0 0.0
    %8215 = vmatpush.msra.mxu0 0.0
    %8216 = vmatpush.msra.mxu0 %v8200
    %8217 = vmatpush.msra.mxu0 %v8199
    %8218 = vmatpush.msra.mxu0 %v8198
    %8219 = vmatpush.msra.mxu0 %v8197
    %8220 = vmatmul.f32.gmra.mxu0 %v8202
    %v8221 = vpop.f32.mrf.mxu0
    %v8222 = vadd.f32 0.0, %v8221
    %8223 = vdwg.mxu0
    %v8224 = vadd.f32 %v8195, %v8222
    %v8225 = vld [vmem:[#allocation6 + $0x51] sm:$0x1]
    %v8226 = vld [vmem:[%s7 + $0x2a0] sm:$0xff]
    %v8227 = vld [vmem:[%s7 + $0x2a8] sm:$0xff]
    %v8228 = vld [vmem:[%s7 + $0x2b0] sm:$0xff]
    %v8229 = vld [vmem:[%s7 + $0x2b8] sm:$0xff]
    %v8231 = vsel %vm6794, %v8225, 0
    %8233 = vmatpush.msra.mxu0 0.0
    %8234 = vmatpush.msra.mxu0 0.0
    %8235 = vmatpush.msra.mxu0 0.0
    %8236 = vmatpush.msra.mxu0 0.0
    %8237 = vmatpush.msra.mxu0 0.0
    %8238 = vmatpush.msra.mxu0 0.0
    %8239 = vmatpush.msra.mxu0 0.0
    %8240 = vmatpush.msra.mxu0 0.0
    %8241 = vmatpush.msra.mxu0 0.0
    %8242 = vmatpush.msra.mxu0 0.0
    %8243 = vmatpush.msra.mxu0 0.0
    %8244 = vmatpush.msra.mxu0 0.0
    %8245 = vmatpush.msra.mxu0 %v8229
    %8246 = vmatpush.msra.mxu0 %v8228
    %8247 = vmatpush.msra.mxu0 %v8227
    %8248 = vmatpush.msra.mxu0 %v8226
    %8249 = vmatmul.f32.gmra.mxu0 %v8231
    %v8250 = vpop.f32.mrf.mxu0
    %v8251 = vadd.f32 0.0, %v8250
    %8252 = vdwg.mxu0
    %v8253 = vadd.f32 %v8224, %v8251
    %v8254 = vld [vmem:[#allocation6 + $0x52] sm:$0x1]
    %v8255 = vld [vmem:[%s7 + $0x2c0] sm:$0xff]
    %v8256 = vld [vmem:[%s7 + $0x2c8] sm:$0xff]
    %v8257 = vld [vmem:[%s7 + $0x2d0] sm:$0xff]
    %v8258 = vld [vmem:[%s7 + $0x2d8] sm:$0xff]
    %v8260 = vsel %vm6794, %v8254, 0
    %8262 = vmatpush.msra.mxu0 0.0
    %8263 = vmatpush.msra.mxu0 0.0
    %8264 = vmatpush.msra.mxu0 0.0
    %8265 = vmatpush.msra.mxu0 0.0
    %8266 = vmatpush.msra.mxu0 0.0
    %8267 = vmatpush.msra.mxu0 0.0
    %8268 = vmatpush.msra.mxu0 0.0
    %8269 = vmatpush.msra.mxu0 0.0
    %8270 = vmatpush.msra.mxu0 0.0
    %8271 = vmatpush.msra.mxu0 0.0
    %8272 = vmatpush.msra.mxu0 0.0
    %8273 = vmatpush.msra.mxu0 0.0
    %8274 = vmatpush.msra.mxu0 %v8258
    %8275 = vmatpush.msra.mxu0 %v8257
    %8276 = vmatpush.msra.mxu0 %v8256
    %8277 = vmatpush.msra.mxu0 %v8255
    %8278 = vmatmul.f32.gmra.mxu0 %v8260
    %v8279 = vpop.f32.mrf.mxu0
    %v8280 = vadd.f32 0.0, %v8279
    %8281 = vdwg.mxu0
    %v8282 = vadd.f32 %v8253, %v8280
    %v8283 = vld [vmem:[#allocation6 + $0x53] sm:$0x1]
    %v8284 = vld [vmem:[%s7 + $0x2e0] sm:$0xff]
    %v8285 = vld [vmem:[%s7 + $0x2e8] sm:$0xff]
    %v8286 = vld [vmem:[%s7 + $0x2f0] sm:$0xff]
    %v8287 = vld [vmem:[%s7 + $0x2f8] sm:$0xff]
    %v8289 = vsel %vm6794, %v8283, 0
    %8291 = vmatpush.msra.mxu0 0.0
    %8292 = vmatpush.msra.mxu0 0.0
    %8293 = vmatpush.msra.mxu0 0.0
    %8294 = vmatpush.msra.mxu0 0.0
    %8295 = vmatpush.msra.mxu0 0.0
    %8296 = vmatpush.msra.mxu0 0.0
    %8297 = vmatpush.msra.mxu0 0.0
    %8298 = vmatpush.msra.mxu0 0.0
    %8299 = vmatpush.msra.mxu0 0.0
    %8300 = vmatpush.msra.mxu0 0.0
    %8301 = vmatpush.msra.mxu0 0.0
    %8302 = vmatpush.msra.mxu0 0.0
    %8303 = vmatpush.msra.mxu0 %v8287
    %8304 = vmatpush.msra.mxu0 %v8286
    %8305 = vmatpush.msra.mxu0 %v8285
    %8306 = vmatpush.msra.mxu0 %v8284
    %8307 = vmatmul.f32.gmra.mxu0 %v8289
    %v8308 = vpop.f32.mrf.mxu0
    %v8309 = vadd.f32 0.0, %v8308
    %8310 = vdwg.mxu0
    %v8311 = vadd.f32 %v8282, %v8309
    %v8312 = vld [vmem:[#allocation6 + $0x54] sm:$0x1]
    %v8313 = vld [vmem:[%s7 + $0x300] sm:$0xff]
    %v8314 = vld [vmem:[%s7 + $0x308] sm:$0xff]
    %v8315 = vld [vmem:[%s7 + $0x310] sm:$0xff]
    %v8316 = vld [vmem:[%s7 + $0x318] sm:$0xff]
    %v8318 = vsel %vm6794, %v8312, 0
    %8320 = vmatpush.msra.mxu0 0.0
    %8321 = vmatpush.msra.mxu0 0.0
    %8322 = vmatpush.msra.mxu0 0.0
    %8323 = vmatpush.msra.mxu0 0.0
    %8324 = vmatpush.msra.mxu0 0.0
    %8325 = vmatpush.msra.mxu0 0.0
    %8326 = vmatpush.msra.mxu0 0.0
    %8327 = vmatpush.msra.mxu0 0.0
    %8328 = vmatpush.msra.mxu0 0.0
    %8329 = vmatpush.msra.mxu0 0.0
    %8330 = vmatpush.msra.mxu0 0.0
    %8331 = vmatpush.msra.mxu0 0.0
    %8332 = vmatpush.msra.mxu0 %v8316
    %8333 = vmatpush.msra.mxu0 %v8315
    %8334 = vmatpush.msra.mxu0 %v8314
    %8335 = vmatpush.msra.mxu0 %v8313
    %8336 = vmatmul.f32.gmra.mxu0 %v8318
    %v8337 = vpop.f32.mrf.mxu0
    %v8338 = vadd.f32 0.0, %v8337
    %8339 = vdwg.mxu0
    %v8340 = vadd.f32 %v8311, %v8338
    %v8341 = vadd.f32 %v8340, %v6807
    %v8342 = vmax.f32 %v8341, 0.0
    %v8344 = vsel %vm7560, %v8342, 0
    %8346 = vmatpush.msra.mxu0 0.0
    %8347 = vmatpush.msra.mxu0 0.0
    %8348 = vmatpush.msra.mxu0 %v7565
    %8349 = vmatpush.msra.mxu0 %v6822
    %8350 = vmatpush.msra.mxu0 %v6821
    %8351 = vmatpush.msra.mxu0 %v6820
    %8352 = vmatpush.msra.mxu0 %v6819
    %8353 = vmatpush.msra.mxu0 %v6818
    %8354 = vmatpush.msra.mxu0 %v6817
    %8355 = vmatpush.msra.mxu0 %v6816
    %8356 = vmatpush.msra.mxu0 %v6815
    %8357 = vmatpush.msra.mxu0 %v6814
    %8358 = vmatpush.msra.mxu0 %v6813
    %8359 = vmatpush.msra.mxu0 %v6812
    %8360 = vmatpush.msra.mxu0 %v6811
    %8361 = vmatpush.msra.mxu0 %v6810
    %8362 = vmatmul.f32.gmra.mxu0 %v8344
    %v8363 = vpop.f32.mrf.mxu0
    %v8364 = vadd.f32 %v6808, %v8363
    %8365 = vdwg.mxu0
    %v8366 = vmax.f32 %v8364, 0.0
    %v8368 = vsel %vm7588, %v8366, 0
    %8370 = vmatpush.msra.mxu0 0.0
    %8371 = vmatpush.msra.mxu0 0.0
    %8372 = vmatpush.msra.mxu0 0.0
    %8373 = vmatpush.msra.mxu0 0.0
    %8374 = vmatpush.msra.mxu0 0.0
    %8375 = vmatpush.msra.mxu0 %v7593
    %8376 = vmatpush.msra.mxu0 %v6833
    %8377 = vmatpush.msra.mxu0 %v6832
    %8378 = vmatpush.msra.mxu0 %v6831
    %8379 = vmatpush.msra.mxu0 %v6830
    %8380 = vmatpush.msra.mxu0 %v6829
    %8381 = vmatpush.msra.mxu0 %v6828
    %8382 = vmatpush.msra.mxu0 %v6827
    %8383 = vmatpush.msra.mxu0 %v6826
    %8384 = vmatpush.msra.mxu0 %v6825
    %8385 = vmatpush.msra.mxu0 %v6824
    %8386 = vmatmul.f32.gmra.mxu0 %v8368
    %v8387 = vpop.f32.mrf.mxu0
    %v8388 = vadd.f32 %v6809, %v8387
    %8389 = vdwg.mxu0
    %v8390 = vmax.f32 %v8388, 0.0
    %8391 = vst.msk [vmem:[#allocation7 + $0x1] sm:$0x1] %vm7616, %v8390
    // Predicated region
    $region105: #{mynet_forward.1} parent=1 // pred_check
      _
    $region106: #{mynet_forward.1} parent=1 // pred_check_branch
      %8393 = sbr.rel (0) target = $region108
    $region107: #{mynet_forward.1} parent=1 // pred_region
      %8395 = vsyncadd [#allocation8], 0
      %s8397 = sshll.u32 [#allocation7], 4
      %s8398 = int_to_ptr.vmem [resolvable:$true] %s8397
      %s8399 = sshll.u32 %s17, 4
      %s8400 = int_to_ptr.hbm [resolvable:$true] %s8399
      %8402 = dma.vmem_to_hbm [thread:$0]  %s8398, 32, %s8400, [#allocation8]
    $region108: #{mynet_forward.1} parent=1 // pred_fallthru
      _
    // Predicated region
    $region109: #{mynet_forward.1} parent=1 // pred_check
      _
    $region110: #{mynet_forward.1} parent=1 // pred_check_branch
      %8404 = sbr.rel (0) target = $region112
    $region111: #{mynet_forward.1} parent=1 // pred_region
      %8406 = dma.done [#allocation8], 32
    $region112: #{mynet_forward.1} parent=1 // pred_fallthru
      _
    %8407 = vsyncpa [#allocation8], 1

</llo_original>
